<compile_context>
chip_gen: v7x
topology: tpu7x:2x2x1
jax: 0.10.0
libtpu: 0.0.40
codegen_flags: <defaults>
</compile_context>

<pallas_src>
import functools

import jax
import jax.numpy as jnp
from jax.experimental import pallas as pl
from jax.experimental.pallas import tpu as pltpu

BN_EPS = 1e-5
# Scoped-VMEM budget: per-step blocks here are small at realistic globalNet
# sizes; 40 MiB leaves headroom (compiler scratch, weights, temporaries) under
# v7x's 64 MiB physical VMEM while exceeding the 16/32 MiB scoped defaults.
_VMEM_LIMIT_BYTES = 40 * 1024 * 1024


# ----------------------------------------------------------------------------
# Weight layout helpers (XLA glue, tiny)
# ----------------------------------------------------------------------------
def _fold_taps(w):
    """(9, Cin, Cout) tap-major (ky*3+kx) weights -> (3, 3*Cin, Cout) kx-major.

    Lets the conv contract over (ky, Cin) in ONE MXU pass per kx (K = 3*Cin),
    better filling the 256-wide v6e/v7x contraction dim and cutting the number
    of MXU push/drain sequences from 9 to 3."""
    t, cin, cout = w.shape
    assert t == 9
    w = w.reshape(3, 3, cin, cout)          # (ky, kx, cin, cout)
    w = jnp.transpose(w, (1, 0, 2, 3))      # (kx, ky, cin, cout)
    return w.reshape(3, 3 * cin, cout)


def _prep_conv_w(w):
    """Fold the ky taps into the contraction dim when Cin is lane-aligned
    (the in-kernel slab concat needs 128-multiple lane pieces)."""
    return _fold_taps(w) if (w.shape[1] % 128 == 0) else w


# ----------------------------------------------------------------------------
# In-kernel helpers
# ----------------------------------------------------------------------------
def _conv3x3_acc(x, w_ref, *, dilation, H, W, cout):
    """3x3 (dilated) conv accumulation for one batch element.

    x:      (Hp, Wp, Cin) values, already zero-padded by `dilation`.
    w_ref:  bf16 weight Ref, either
              (9, Cin, cout)     taps ordered ky*3+kx   (small Cin), or
              (3, 3*Cin, cout)   kx-major, ky folded into the contraction.
    returns (H*W, cout) f32 accumulator (no bias).

    The whole plane is cast to bf16 ONCE (no per-tap casts).  Only the 3 kx
    (sublane-axis) shifted planes are materialized; the ky shifts slice a
    major axis (cheap).  In the folded form the 3 ky taps are stacked along
    channels -> 3 matmuls with K=3*Cin instead of 9 with K=Cin.
    """
    cin = x.shape[-1]
    folded = w_ref.shape[0] == 3
    d = dilation
    x = x.astype(jnp.bfloat16)                            # no-op if already bf16
    acc = jnp.zeros((H * W, cout), jnp.float32)
    for kx in range(3):
        xw = x[:, kx * d:kx * d + W, :]                   # (Hp, W, Cin)
        if folded:
            slab = jnp.concatenate(
                [xw[ky * d:ky * d + H].reshape(H * W, cin) for ky in range(3)],
                axis=-1)                                  # (H*W, 3*Cin)
            acc = acc + jnp.dot(slab, w_ref[kx],
                                preferred_element_type=jnp.float32)
        else:
            for ky in range(3):
                xs = xw[ky * d:ky * d + H].reshape(H * W, cin)
                acc = acc + jnp.dot(xs, w_ref[ky * 3 + kx],
                                    preferred_element_type=jnp.float32)
    return acc


def _bn_relu_prologue(x, scale, shift, *, pad, H, W):
    """Fused BN (scale/shift) + ReLU applied to a zero-padded bf16 input tile.

    VPU math is done in f32 (v5e has no bf16 VPU path) and the result is cast
    to bf16 once for the MXU.  The padded border must stay exactly zero after
    the affine transform, so it is re-zeroed with an iota mask (VPU work that
    overlaps with the MXU).
    """
    y = jnp.maximum(x.astype(jnp.float32) * scale + shift, 0.0)
    hp, wp = y.shape[0], y.shape[1]
    row = jax.lax.broadcasted_iota(jnp.int32, (hp, wp, 1), 0)
    col = jax.lax.broadcasted_iota(jnp.int32, (hp, wp, 1), 1)
    inside = ((row >= pad) & (row < pad + H) &
              (col >= pad) & (col < pad + W))
    return jnp.where(inside, y, 0.0).astype(jnp.bfloat16)


# ----------------------------------------------------------------------------
# Pallas kernels
# ----------------------------------------------------------------------------
def _in_convs_kernel(x_ref, lf_ref, w1_ref, w2_ref, b_ref, o_ref, *, H, W):
    """Fused in_conv + in_local.

    Both weight tensors are zero-padded to the full mid_channel output width
    (block diagonal), so the two convs accumulate into ONE lane-dense
    accumulator and the writeback is a single full-width unmasked store."""
    cmid = o_ref.shape[-1]
    acc = _conv3x3_acc(x_ref[0], w1_ref, dilation=1, H=H, W=W, cout=cmid)
    acc = acc + _conv3x3_acc(lf_ref[0], w2_ref, dilation=1, H=H, W=W, cout=cmid)
    acc = acc + b_ref[...]
    o_ref[...] = acc.reshape(1, H, W, cmid).astype(o_ref.dtype)


def _dconv_kernel(x_ref, w_ref, b_ref, scale_ref, shift_ref,
                  o_ref, ssum_ref, ssq_ref,
                  *, dilation, H, W, apply_prologue):
    """dilatedConv stage: (optional fused BN+ReLU prologue of the previous
    layer) + dilated 3x3 conv + bias.  Emits the pre-BN conv output (bf16)
    plus per-(batch, channel-block) partial sum / sum-of-squares computed from
    the f32 accumulator; the partials are reduced in XLA glue (no resident
    accumulator -> both grid axes can be 'parallel' / megacore-split)."""
    pad = dilation
    cb = o_ref.shape[-1]
    x = x_ref[0]                                   # (Hp, Wp, Cin) bf16
    if apply_prologue:
        x = _bn_relu_prologue(x, scale_ref[...], shift_ref[...],
                              pad=pad, H=H, W=W)
    acc = _conv3x3_acc(x, w_ref, dilation=dilation, H=H, W=W, cout=cb)
    acc = acc + b_ref[...]
    o_ref[...] = acc.reshape(1, H, W, cb).astype(o_ref.dtype)
    ssum_ref[...] = jnp.sum(acc, axis=0, keepdims=True).reshape(1, 1, cb)
    ssq_ref[...] = jnp.sum(acc * acc, axis=0, keepdims=True).reshape(1, 1, cb)


def _outconv_kernel(x_ref, w_ref, b_ref, scale_ref, shift_ref, o_ref,
                    *, H, W):
    """out_conv stage: fused BN+ReLU prologue (last dilatedConv's BN), 3x3
    conv with the output channels zero-padded to a lane-dense multiple of 128,
    and the final sigmoid fused in-kernel (EUP slot, ~free)."""
    cpad = o_ref.shape[-1]
    x = _bn_relu_prologue(x_ref[0], scale_ref[...], shift_ref[...],
                          pad=1, H=H, W=W)
    acc = _conv3x3_acc(x, w_ref, dilation=1, H=H, W=W, cout=cpad)
    acc = acc + b_ref[...]
    o_ref[...] = jax.nn.sigmoid(acc).reshape(1, H, W, cpad)


# ----------------------------------------------------------------------------
# pallas_call wrappers
# ----------------------------------------------------------------------------
def _pad_hw(x, pad):
    # TODO(synk): zero padding stays in XLA glue (one extra bf16 HBM pass per
    # stage); in-kernel concat/scratch-based padding was avoided for lowering
    # robustness of unaligned sublane writes.
    return jnp.pad(x, ((0, 0), (pad, pad), (pad, pad), (0, 0)))


def fused_in_convs(x, lf, w1p, w2p, b):
    """in_conv(x) || in_local(lf) -> concatenated (N,H,W,mid) bf16 output."""
    N, H, W, c1in = x.shape
    c2in = lf.shape[-1]
    cmid = b.shape[-1]
    xp, lfp = _pad_hw(x, 1), _pad_hw(lf, 1)
    Hp, Wp = H + 2, W + 2
    kern = functools.partial(_in_convs_kernel, H=H, W=W)
    return pl.pallas_call(
        kern,
        out_shape=jax.ShapeDtypeStruct((N, H, W, cmid), jnp.bfloat16),
        grid=(N,),
        in_specs=[
            pl.BlockSpec((1, Hp, Wp, c1in), lambda n: (n, 0, 0, 0)),
            pl.BlockSpec((1, Hp, Wp, c2in), lambda n: (n, 0, 0, 0)),
            pl.BlockSpec(w1p.shape, lambda n: (0, 0, 0)),
            pl.BlockSpec(w2p.shape, lambda n: (0, 0, 0)),
            pl.BlockSpec((1, cmid), lambda n: (0, 0)),
        ],
        out_specs=pl.BlockSpec((1, H, W, cmid), lambda n: (n, 0, 0, 0)),
        compiler_params=pltpu.CompilerParams(
            dimension_semantics=("parallel",),
            vmem_limit_bytes=_VMEM_LIMIT_BYTES),
    )(xp, lfp, w1p, w2p, b)


def dilated_conv_block(x, w, b, dilation, scale, shift, apply_prologue):
    """One dilatedConv stage on bf16 NHWC input.

    Returns (pre-BN conv output bf16, per-batch partial sums (N,1,cout),
    per-batch partial sums-of-squares (N,1,cout))."""
    N, H, W, cin = x.shape
    cout = b.shape[-1]
    # Channel-block tiling of the output (stats are per-channel -> blocks are
    # independent).  Both grid axes are 'parallel' (partial stats per n).
    cb = 128 if (cout > 128 and cout % 128 == 0) else cout
    num_cb = cout // cb
    pad = dilation
    xp = _pad_hw(x, pad)
    Hp, Wp = H + 2 * pad, W + 2 * pad
    w_k = _prep_conv_w(w)
    kern = functools.partial(_dconv_kernel, dilation=dilation, H=H, W=W,
                             apply_prologue=apply_prologue)
    out, ssum, ssq = pl.pallas_call(
        kern,
        out_shape=(jax.ShapeDtypeStruct((N, H, W, cout), jnp.bfloat16),
                   jax.ShapeDtypeStruct((N, 1, cout), jnp.float32),
                   jax.ShapeDtypeStruct((N, 1, cout), jnp.float32)),
        grid=(num_cb, N),
        in_specs=[
            pl.BlockSpec((1, Hp, Wp, cin), lambda c, n: (n, 0, 0, 0)),
            pl.BlockSpec((w_k.shape[0], w_k.shape[1], cb),
                         lambda c, n: (0, 0, c)),
            pl.BlockSpec((1, cb), lambda c, n: (0, c)),
            pl.BlockSpec((1, cin), lambda c, n: (0, 0)),
            pl.BlockSpec((1, cin), lambda c, n: (0, 0)),
        ],
        out_specs=(
            pl.BlockSpec((1, H, W, cb), lambda c, n: (n, 0, 0, c)),
            pl.BlockSpec((1, 1, cb), lambda c, n: (n, 0, c)),
            pl.BlockSpec((1, 1, cb), lambda c, n: (n, 0, c)),
        ),
        compiler_params=pltpu.CompilerParams(
            dimension_semantics=("parallel", "parallel"),
            vmem_limit_bytes=_VMEM_LIMIT_BYTES),
    )(xp, w_k, b, scale, shift)
    return out, ssum, ssq


def out_conv_sigmoid(x, w_k, b_pad, scale, shift):
    """out_conv with fused BN+ReLU prologue and sigmoid; lane-dense output."""
    N, H, W, cin = x.shape
    cpad = b_pad.shape[-1]
    xp = _pad_hw(x, 1)
    Hp, Wp = H + 2, W + 2
    kern = functools.partial(_outconv_kernel, H=H, W=W)
    return pl.pallas_call(
        kern,
        out_shape=jax.ShapeDtypeStruct((N, H, W, cpad), jnp.float32),
        grid=(N,),
        in_specs=[
            pl.BlockSpec((1, Hp, Wp, cin), lambda n: (n, 0, 0, 0)),
            pl.BlockSpec(w_k.shape, lambda n: (0, 0, 0)),
            pl.BlockSpec((1, cpad), lambda n: (0, 0)),
            pl.BlockSpec((1, cin), lambda n: (0, 0)),
            pl.BlockSpec((1, cin), lambda n: (0, 0)),
        ],
        out_specs=pl.BlockSpec((1, H, W, cpad), lambda n: (n, 0, 0, 0)),
        compiler_params=pltpu.CompilerParams(
            dimension_semantics=("parallel",),
            vmem_limit_bytes=_VMEM_LIMIT_BYTES),
    )(xp, w_k, b_pad, scale, shift)


# ----------------------------------------------------------------------------
# Glue (pure JAX): interpolation, BN affine from partial stats
# ----------------------------------------------------------------------------
def interpolate_nearest(x_nhwc, out_h, out_w):
    """F.interpolate(mode='nearest') on NHWC, matching PyTorch's floor rule.
    Uses strided slices (downscale) / pixel-replication broadcast (upscale)
    for integer ratios instead of gather."""
    N, H, W, C = x_nhwc.shape
    if out_h == H and out_w == W:
        return x_nhwc
    if out_h <= H and out_w <= W and H % out_h == 0 and W % out_w == 0:
        return x_nhwc[:, ::H // out_h, ::W // out_w, :]
    if out_h >= H and out_w >= W and out_h % H == 0 and out_w % W == 0:
        rh, rw = out_h // H, out_w // W
        y = jnp.broadcast_to(x_nhwc[:, :, None, :, None, :],
                             (N, H, rh, W, rw, C))
        return y.reshape(N, out_h, out_w, C)
    hi = (jnp.arange(out_h) * H) // out_h          # general fallback (gather)
    wi = (jnp.arange(out_w) * W) // out_w
    return x_nhwc[:, hi][:, :, wi]


def _bn_scale_shift(ssum, ssq, gamma, beta, count):
    """Per-channel BN affine (training-mode biased batch stats) from per-batch
    partial sums of shape (N, 1, C)."""
    s = jnp.sum(ssum, axis=0)                      # (1, C)
    sq = jnp.sum(ssq, axis=0)
    mean = s / count
    # TODO(synk): E[x^2]-E[x]^2 in f32 can cancel when |mean| >> std; a
    # shifted-mean / Welford reduction over the per-batch partials is safer.
    var = jnp.maximum(sq / count - mean * mean, 0.0)
    scale = gamma * jax.lax.rsqrt(var + BN_EPS)
    shift = beta - mean * scale
    return scale, shift


# ----------------------------------------------------------------------------
# globalNet: parameters + forward
# ----------------------------------------------------------------------------
def init_global_net_params(key, in_channel, out_channel, mid_channel=128):
    """Deterministic init matching the module's __init__ shapes.

    Conv weights stored in bf16 kernel layout (9, Cin, Cout), taps ky*3+kx.
    """
    def conv_param(k, cin, cout):
        k1, k2 = jax.random.split(k)
        bound = 1.0 / float(cin * 9) ** 0.5
        w = jax.random.uniform(k1, (9, cin, cout), jnp.float32, -bound, bound)
        b = jax.random.uniform(k2, (1, cout), jnp.float32, -bound, bound)
        return w.astype(jnp.bfloat16), b

    keys = jax.random.split(key, 6)
    p = {}
    p['in_conv_w'], p['in_conv_b'] = conv_param(keys[0], in_channel,
                                                mid_channel // 2)
    p['in_local_w'], p['in_local_b'] = conv_param(keys[1], out_channel,
                                                  (mid_channel + 1) // 2)
    p['out_conv_w'], p['out_conv_b'] = conv_param(keys[2], mid_channel,
                                                  out_channel)
    for i in range(3):
        w, b = conv_param(keys[3 + i], mid_channel, mid_channel)
        p[f'dconv{i}_w'] = w
        p[f'dconv{i}_b'] = b
        p[f'dconv{i}_gamma'] = jnp.ones((1, mid_channel), jnp.float32)
        p[f'dconv{i}_beta'] = jnp.zeros((1, mid_channel), jnp.float32)
    return p


def global_net_forward(params, x_nchw, local_nchw,
                       scale_factor=0.25, dilations=(1, 2, 5)):
    N, _, H0, W0 = x_nchw.shape
    # NHWC; bf16 at the boundary (the MXU consumes bf16 anyway, halves DMA).
    x = jnp.transpose(x_nchw, (0, 2, 3, 1)).astype(jnp.bfloat16)
    lf = jnp.transpose(local_nchw, (0, 2, 3, 1)).astype(jnp.bfloat16)

    sf = scale_factor
    x = interpolate_nearest(x, int(x.shape[1] * sf), int(x.shape[2] * sf))
    lf = interpolate_nearest(lf, int(lf.shape[1] * sf / 2),
                             int(lf.shape[2] * sf / 2))
    assert x.shape[1:3] == lf.shape[1:3]

    # in_conv / in_local weights zero-padded to the full mid width (block
    # diagonal) -> one lane-dense accumulator + store in the fused kernel.
    c1 = params['in_conv_w'].shape[-1]
    c2 = params['in_local_w'].shape[-1]
    cmid = c1 + c2
    w1p = _prep_conv_w(jnp.pad(params['in_conv_w'],
                               ((0, 0), (0, 0), (0, cmid - c1))))
    w2p = _prep_conv_w(jnp.pad(params['in_local_w'],
                               ((0, 0), (0, 0), (c1, 0))))
    b_in = jnp.concatenate([params['in_conv_b'], params['in_local_b']],
                           axis=-1)
    fuse = fused_in_convs(x, lf, w1p, w2p, b_in)

    Nn, Hh, Ww, _ = fuse.shape
    count = float(Nn * Hh * Ww)

    # Dilated conv chain.  Each stage emits the pre-BN output + per-batch
    # partial stats; BN normalize + ReLU are the next stage's fused prologue.
    h = fuse
    scale = jnp.ones((1, cmid), jnp.float32)
    shift = jnp.zeros((1, cmid), jnp.float32)
    apply_prologue = False
    for i, d in enumerate(dilations):
        h, ssum, ssq = dilated_conv_block(
            h, params[f'dconv{i}_w'], params[f'dconv{i}_b'], d,
            scale, shift, apply_prologue)
        scale, shift = _bn_scale_shift(ssum, ssq,
                                       params[f'dconv{i}_gamma'],
                                       params[f'dconv{i}_beta'], count)
        apply_prologue = True

    # out_conv (last BN+ReLU fused in) + sigmoid, lane-dense 128-padded Cout.
    cout = params['out_conv_b'].shape[-1]
    cpad = ((cout + 127) // 128) * 128
    w_out = _prep_conv_w(jnp.pad(params['out_conv_w'],
                                 ((0, 0), (0, 0), (0, cpad - cout))))
    b_out = jnp.pad(params['out_conv_b'], ((0, 0), (0, cpad - cout)))
    out = out_conv_sigmoid(h, w_out, b_out, scale, shift)[..., :cout]

    # sigmoid already applied; nearest upsample commutes with it.
    out = interpolate_nearest(out, H0, W0)
    return jnp.transpose(out, (0, 3, 1, 2))            # back to NCHW


# ----------------------------------------------------------------------------
if __name__ == "__main__":
    # Small synthetic config: in_channel=4, out_channel=3, mid_channel=128
    # (module default mid width -> exercises the folded K=3*128 MXU path).
    # x is NCHW (2, 4, 16, 16); local_feature is at 2x spatial resolution
    # (2, 3, 32, 32) so that after scale_factor 0.25 / 0.125 both land at 4x4.
    key = jax.random.PRNGKey(0)
    k_params, k_x, k_lf = jax.random.split(key, 3)

    in_channel, out_channel, mid_channel = 4, 3, 128
    x = jax.random.normal(k_x, (2, in_channel, 16, 16), jnp.float32)
    local_feature = jax.random.normal(k_lf, (2, out_channel, 32, 32),
                                      jnp.float32)

    params = init_global_net_params(k_params, in_channel, out_channel,
                                    mid_channel)

    fwd = jax.jit(global_net_forward)
    out = jax.block_until_ready(fwd(params, x, local_feature))

    assert out.shape == (2, out_channel, 16, 16), out.shape
    assert bool(jnp.all(jnp.isfinite(out)))
    assert bool(jnp.all(out >= 0.0)) and bool(jnp.all(out <= 1.0))  # sigmoid
    print("KERNEL_OK")
</pallas_src>

<mosaic_0001>
module attributes {stable_mosaic.version = 11 : i64} {
  func.func @_in_convs_kernel(%arg0: i32, %arg1: memref<1x6x6x4xbf16, #tpu.memory_space<vmem>>, %arg2: memref<1x6x6x3xbf16, #tpu.memory_space<vmem>>, %arg3: memref<9x4x128xbf16, #tpu.memory_space<vmem>>, %arg4: memref<9x3x128xbf16, #tpu.memory_space<vmem>>, %arg5: memref<1x128xf32, #tpu.memory_space<vmem>>, %arg6: memref<1x4x4x128xbf16, #tpu.memory_space<vmem>>) attributes {dimension_semantics = [#tpu.dimension_semantics<parallel>], iteration_bounds = array<i64: 2>, scalar_prefetch = 0 : i64, scratch_operands = 0 : i64, tpu.core_type = #tpu.core_type<tc>, window_params = [{transform_indices = @transform_0, window_bounds = array<i64: 1, 6, 6, 4>}, {transform_indices = @transform_1, window_bounds = array<i64: 1, 6, 6, 3>}, {pipeline_mode = #tpu.pipeline_mode<synchronous>, transform_indices = @transform_2, window_bounds = array<i64: 9, 4, 128>}, {pipeline_mode = #tpu.pipeline_mode<synchronous>, transform_indices = @transform_3, window_bounds = array<i64: 9, 3, 128>}, {pipeline_mode = #tpu.pipeline_mode<synchronous>, transform_indices = @transform_4, window_bounds = array<i64: 1, 128>}, {transform_indices = @transform_5, window_bounds = array<i64: 1, 4, 4, 128>}]} {
    %c0 = arith.constant 0 : index
    %c0_0 = arith.constant 0 : index
    %c0_1 = arith.constant 0 : index
    %c0_2 = arith.constant 0 : index
    %0 = vector.load %arg1[%c0, %c0_0, %c0_1, %c0_2] : memref<1x6x6x4xbf16, #tpu.memory_space<vmem>>, vector<1x6x6x4xbf16>
    %1 = vector.shape_cast %0 : vector<1x6x6x4xbf16> to vector<6x6x4xbf16>
    %cst = arith.constant 0.000000e+00 : f32
    %2 = vector.broadcast %cst : f32 to vector<16x128xf32>
    %3 = vector.extract_strided_slice %1 {offsets = [0, 0, 0], sizes = [6, 4, 4], strides = [1, 1, 1]} : vector<6x6x4xbf16> to vector<6x4x4xbf16>
    %4 = vector.extract_strided_slice %3 {offsets = [0, 0, 0], sizes = [4, 4, 4], strides = [1, 1, 1]} : vector<6x4x4xbf16> to vector<4x4x4xbf16>
    %5 = vector.shape_cast %4 : vector<4x4x4xbf16> to vector<16x4xbf16>
    %c0_3 = arith.constant 0 : index
    %c0_4 = arith.constant 0 : index
    %c0_5 = arith.constant 0 : index
    %6 = vector.load %arg3[%c0_3, %c0_4, %c0_5] : memref<9x4x128xbf16, #tpu.memory_space<vmem>>, vector<1x4x128xbf16>
    %7 = vector.shape_cast %6 : vector<1x4x128xbf16> to vector<4x128xbf16>
    %cst_6 = arith.constant dense<0.000000e+00> : vector<16x128xf32>
    %8 = tpu.matmul %5, %7, %cst_6 {dimension_numbers = #tpu.dot_dimension_numbers<[1], [0], [0], [1], [0, 0, 1, 1], [], []>} : vector<16x4xbf16>, vector<4x128xbf16>, vector<16x128xf32> -> vector<16x128xf32>
    %9 = arith.addf %2, %8 : vector<16x128xf32>
    %10 = vector.extract_strided_slice %3 {offsets = [1, 0, 0], sizes = [4, 4, 4], strides = [1, 1, 1]} : vector<6x4x4xbf16> to vector<4x4x4xbf16>
    %11 = vector.shape_cast %10 : vector<4x4x4xbf16> to vector<16x4xbf16>
    %c3 = arith.constant 3 : index
    %c0_7 = arith.constant 0 : index
    %c0_8 = arith.constant 0 : index
    %12 = vector.load %arg3[%c3, %c0_7, %c0_8] : memref<9x4x128xbf16, #tpu.memory_space<vmem>>, vector<1x4x128xbf16>
    %13 = vector.shape_cast %12 : vector<1x4x128xbf16> to vector<4x128xbf16>
    %cst_9 = arith.constant dense<0.000000e+00> : vector<16x128xf32>
    %14 = tpu.matmul %11, %13, %cst_9 {dimension_numbers = #tpu.dot_dimension_numbers<[1], [0], [0], [1], [0, 0, 1, 1], [], []>} : vector<16x4xbf16>, vector<4x128xbf16>, vector<16x128xf32> -> vector<16x128xf32>
    %15 = arith.addf %9, %14 : vector<16x128xf32>
    %16 = vector.extract_strided_slice %3 {offsets = [2, 0, 0], sizes = [4, 4, 4], strides = [1, 1, 1]} : vector<6x4x4xbf16> to vector<4x4x4xbf16>
    %17 = vector.shape_cast %16 : vector<4x4x4xbf16> to vector<16x4xbf16>
    %c6 = arith.constant 6 : index
    %c0_10 = arith.constant 0 : index
    %c0_11 = arith.constant 0 : index
    %18 = vector.load %arg3[%c6, %c0_10, %c0_11] : memref<9x4x128xbf16, #tpu.memory_space<vmem>>, vector<1x4x128xbf16>
    %19 = vector.shape_cast %18 : vector<1x4x128xbf16> to vector<4x128xbf16>
    %cst_12 = arith.constant dense<0.000000e+00> : vector<16x128xf32>
    %20 = tpu.matmul %17, %19, %cst_12 {dimension_numbers = #tpu.dot_dimension_numbers<[1], [0], [0], [1], [0, 0, 1, 1], [], []>} : vector<16x4xbf16>, vector<4x128xbf16>, vector<16x128xf32> -> vector<16x128xf32>
    %21 = arith.addf %15, %20 : vector<16x128xf32>
    %22 = vector.extract_strided_slice %1 {offsets = [0, 1, 0], sizes = [6, 4, 4], strides = [1, 1, 1]} : vector<6x6x4xbf16> to vector<6x4x4xbf16>
    %23 = vector.extract_strided_slice %22 {offsets = [0, 0, 0], sizes = [4, 4, 4], strides = [1, 1, 1]} : vector<6x4x4xbf16> to vector<4x4x4xbf16>
    %24 = vector.shape_cast %23 : vector<4x4x4xbf16> to vector<16x4xbf16>
    %c1 = arith.constant 1 : index
    %c0_13 = arith.constant 0 : index
    %c0_14 = arith.constant 0 : index
    %25 = vector.load %arg3[%c1, %c0_13, %c0_14] : memref<9x4x128xbf16, #tpu.memory_space<vmem>>, vector<1x4x128xbf16>
    %26 = vector.shape_cast %25 : vector<1x4x128xbf16> to vector<4x128xbf16>
    %cst_15 = arith.constant dense<0.000000e+00> : vector<16x128xf32>
    %27 = tpu.matmul %24, %26, %cst_15 {dimension_numbers = #tpu.dot_dimension_numbers<[1], [0], [0], [1], [0, 0, 1, 1], [], []>} : vector<16x4xbf16>, vector<4x128xbf16>, vector<16x128xf32> -> vector<16x128xf32>
    %28 = arith.addf %21, %27 : vector<16x128xf32>
    %29 = vector.extract_strided_slice %22 {offsets = [1, 0, 0], sizes = [4, 4, 4], strides = [1, 1, 1]} : vector<6x4x4xbf16> to vector<4x4x4xbf16>
    %30 = vector.shape_cast %29 : vector<4x4x4xbf16> to vector<16x4xbf16>
    %c4 = arith.constant 4 : index
    %c0_16 = arith.constant 0 : index
    %c0_17 = arith.constant 0 : index
    %31 = vector.load %arg3[%c4, %c0_16, %c0_17] : memref<9x4x128xbf16, #tpu.memory_space<vmem>>, vector<1x4x128xbf16>
    %32 = vector.shape_cast %31 : vector<1x4x128xbf16> to vector<4x128xbf16>
    %cst_18 = arith.constant dense<0.000000e+00> : vector<16x128xf32>
    %33 = tpu.matmul %30, %32, %cst_18 {dimension_numbers = #tpu.dot_dimension_numbers<[1], [0], [0], [1], [0, 0, 1, 1], [], []>} : vector<16x4xbf16>, vector<4x128xbf16>, vector<16x128xf32> -> vector<16x128xf32>
    %34 = arith.addf %28, %33 : vector<16x128xf32>
    %35 = vector.extract_strided_slice %22 {offsets = [2, 0, 0], sizes = [4, 4, 4], strides = [1, 1, 1]} : vector<6x4x4xbf16> to vector<4x4x4xbf16>
    %36 = vector.shape_cast %35 : vector<4x4x4xbf16> to vector<16x4xbf16>
    %c7 = arith.constant 7 : index
    %c0_19 = arith.constant 0 : index
    %c0_20 = arith.constant 0 : index
    %37 = vector.load %arg3[%c7, %c0_19, %c0_20] : memref<9x4x128xbf16, #tpu.memory_space<vmem>>, vector<1x4x128xbf16>
    %38 = vector.shape_cast %37 : vector<1x4x128xbf16> to vector<4x128xbf16>
    %cst_21 = arith.constant dense<0.000000e+00> : vector<16x128xf32>
    %39 = tpu.matmul %36, %38, %cst_21 {dimension_numbers = #tpu.dot_dimension_numbers<[1], [0], [0], [1], [0, 0, 1, 1], [], []>} : vector<16x4xbf16>, vector<4x128xbf16>, vector<16x128xf32> -> vector<16x128xf32>
    %40 = arith.addf %34, %39 : vector<16x128xf32>
    %41 = vector.extract_strided_slice %1 {offsets = [0, 2, 0], sizes = [6, 4, 4], strides = [1, 1, 1]} : vector<6x6x4xbf16> to vector<6x4x4xbf16>
    %42 = vector.extract_strided_slice %41 {offsets = [0, 0, 0], sizes = [4, 4, 4], strides = [1, 1, 1]} : vector<6x4x4xbf16> to vector<4x4x4xbf16>
    %43 = vector.shape_cast %42 : vector<4x4x4xbf16> to vector<16x4xbf16>
    %c2 = arith.constant 2 : index
    %c0_22 = arith.constant 0 : index
    %c0_23 = arith.constant 0 : index
    %44 = vector.load %arg3[%c2, %c0_22, %c0_23] : memref<9x4x128xbf16, #tpu.memory_space<vmem>>, vector<1x4x128xbf16>
    %45 = vector.shape_cast %44 : vector<1x4x128xbf16> to vector<4x128xbf16>
    %cst_24 = arith.constant dense<0.000000e+00> : vector<16x128xf32>
    %46 = tpu.matmul %43, %45, %cst_24 {dimension_numbers = #tpu.dot_dimension_numbers<[1], [0], [0], [1], [0, 0, 1, 1], [], []>} : vector<16x4xbf16>, vector<4x128xbf16>, vector<16x128xf32> -> vector<16x128xf32>
    %47 = arith.addf %40, %46 : vector<16x128xf32>
    %48 = vector.extract_strided_slice %41 {offsets = [1, 0, 0], sizes = [4, 4, 4], strides = [1, 1, 1]} : vector<6x4x4xbf16> to vector<4x4x4xbf16>
    %49 = vector.shape_cast %48 : vector<4x4x4xbf16> to vector<16x4xbf16>
    %c5 = arith.constant 5 : index
    %c0_25 = arith.constant 0 : index
    %c0_26 = arith.constant 0 : index
    %50 = vector.load %arg3[%c5, %c0_25, %c0_26] : memref<9x4x128xbf16, #tpu.memory_space<vmem>>, vector<1x4x128xbf16>
    %51 = vector.shape_cast %50 : vector<1x4x128xbf16> to vector<4x128xbf16>
    %cst_27 = arith.constant dense<0.000000e+00> : vector<16x128xf32>
    %52 = tpu.matmul %49, %51, %cst_27 {dimension_numbers = #tpu.dot_dimension_numbers<[1], [0], [0], [1], [0, 0, 1, 1], [], []>} : vector<16x4xbf16>, vector<4x128xbf16>, vector<16x128xf32> -> vector<16x128xf32>
    %53 = arith.addf %47, %52 : vector<16x128xf32>
    %54 = vector.extract_strided_slice %41 {offsets = [2, 0, 0], sizes = [4, 4, 4], strides = [1, 1, 1]} : vector<6x4x4xbf16> to vector<4x4x4xbf16>
    %55 = vector.shape_cast %54 : vector<4x4x4xbf16> to vector<16x4xbf16>
    %c8 = arith.constant 8 : index
    %c0_28 = arith.constant 0 : index
    %c0_29 = arith.constant 0 : index
    %56 = vector.load %arg3[%c8, %c0_28, %c0_29] : memref<9x4x128xbf16, #tpu.memory_space<vmem>>, vector<1x4x128xbf16>
    %57 = vector.shape_cast %56 : vector<1x4x128xbf16> to vector<4x128xbf16>
    %cst_30 = arith.constant dense<0.000000e+00> : vector<16x128xf32>
    %58 = tpu.matmul %55, %57, %cst_30 {dimension_numbers = #tpu.dot_dimension_numbers<[1], [0], [0], [1], [0, 0, 1, 1], [], []>} : vector<16x4xbf16>, vector<4x128xbf16>, vector<16x128xf32> -> vector<16x128xf32>
    %59 = arith.addf %53, %58 : vector<16x128xf32>
    %c0_31 = arith.constant 0 : index
    %c0_32 = arith.constant 0 : index
    %c0_33 = arith.constant 0 : index
    %c0_34 = arith.constant 0 : index
    %60 = vector.load %arg2[%c0_31, %c0_32, %c0_33, %c0_34] : memref<1x6x6x3xbf16, #tpu.memory_space<vmem>>, vector<1x6x6x3xbf16>
    %61 = vector.shape_cast %60 : vector<1x6x6x3xbf16> to vector<6x6x3xbf16>
    %cst_35 = arith.constant 0.000000e+00 : f32
    %62 = vector.broadcast %cst_35 : f32 to vector<16x128xf32>
    %63 = vector.extract_strided_slice %61 {offsets = [0, 0, 0], sizes = [6, 4, 3], strides = [1, 1, 1]} : vector<6x6x3xbf16> to vector<6x4x3xbf16>
    %64 = vector.extract_strided_slice %63 {offsets = [0, 0, 0], sizes = [4, 4, 3], strides = [1, 1, 1]} : vector<6x4x3xbf16> to vector<4x4x3xbf16>
    %65 = vector.shape_cast %64 : vector<4x4x3xbf16> to vector<16x3xbf16>
    %c0_36 = arith.constant 0 : index
    %c0_37 = arith.constant 0 : index
    %c0_38 = arith.constant 0 : index
    %66 = vector.load %arg4[%c0_36, %c0_37, %c0_38] : memref<9x3x128xbf16, #tpu.memory_space<vmem>>, vector<1x3x128xbf16>
    %67 = vector.shape_cast %66 : vector<1x3x128xbf16> to vector<3x128xbf16>
    %cst_39 = arith.constant dense<0.000000e+00> : vector<16x128xf32>
    %68 = tpu.matmul %65, %67, %cst_39 {dimension_numbers = #tpu.dot_dimension_numbers<[1], [0], [0], [1], [0, 0, 1, 1], [], []>} : vector<16x3xbf16>, vector<3x128xbf16>, vector<16x128xf32> -> vector<16x128xf32>
    %69 = arith.addf %62, %68 : vector<16x128xf32>
    %70 = vector.extract_strided_slice %63 {offsets = [1, 0, 0], sizes = [4, 4, 3], strides = [1, 1, 1]} : vector<6x4x3xbf16> to vector<4x4x3xbf16>
    %71 = vector.shape_cast %70 : vector<4x4x3xbf16> to vector<16x3xbf16>
    %c3_40 = arith.constant 3 : index
    %c0_41 = arith.constant 0 : index
    %c0_42 = arith.constant 0 : index
    %72 = vector.load %arg4[%c3_40, %c0_41, %c0_42] : memref<9x3x128xbf16, #tpu.memory_space<vmem>>, vector<1x3x128xbf16>
    %73 = vector.shape_cast %72 : vector<1x3x128xbf16> to vector<3x128xbf16>
    %cst_43 = arith.constant dense<0.000000e+00> : vector<16x128xf32>
    %74 = tpu.matmul %71, %73, %cst_43 {dimension_numbers = #tpu.dot_dimension_numbers<[1], [0], [0], [1], [0, 0, 1, 1], [], []>} : vector<16x3xbf16>, vector<3x128xbf16>, vector<16x128xf32> -> vector<16x128xf32>
    %75 = arith.addf %69, %74 : vector<16x128xf32>
    %76 = vector.extract_strided_slice %63 {offsets = [2, 0, 0], sizes = [4, 4, 3], strides = [1, 1, 1]} : vector<6x4x3xbf16> to vector<4x4x3xbf16>
    %77 = vector.shape_cast %76 : vector<4x4x3xbf16> to vector<16x3xbf16>
    %c6_44 = arith.constant 6 : index
    %c0_45 = arith.constant 0 : index
    %c0_46 = arith.constant 0 : index
    %78 = vector.load %arg4[%c6_44, %c0_45, %c0_46] : memref<9x3x128xbf16, #tpu.memory_space<vmem>>, vector<1x3x128xbf16>
    %79 = vector.shape_cast %78 : vector<1x3x128xbf16> to vector<3x128xbf16>
    %cst_47 = arith.constant dense<0.000000e+00> : vector<16x128xf32>
    %80 = tpu.matmul %77, %79, %cst_47 {dimension_numbers = #tpu.dot_dimension_numbers<[1], [0], [0], [1], [0, 0, 1, 1], [], []>} : vector<16x3xbf16>, vector<3x128xbf16>, vector<16x128xf32> -> vector<16x128xf32>
    %81 = arith.addf %75, %80 : vector<16x128xf32>
    %82 = vector.extract_strided_slice %61 {offsets = [0, 1, 0], sizes = [6, 4, 3], strides = [1, 1, 1]} : vector<6x6x3xbf16> to vector<6x4x3xbf16>
    %83 = vector.extract_strided_slice %82 {offsets = [0, 0, 0], sizes = [4, 4, 3], strides = [1, 1, 1]} : vector<6x4x3xbf16> to vector<4x4x3xbf16>
    %84 = vector.shape_cast %83 : vector<4x4x3xbf16> to vector<16x3xbf16>
    %c1_48 = arith.constant 1 : index
    %c0_49 = arith.constant 0 : index
    %c0_50 = arith.constant 0 : index
    %85 = vector.load %arg4[%c1_48, %c0_49, %c0_50] : memref<9x3x128xbf16, #tpu.memory_space<vmem>>, vector<1x3x128xbf16>
    %86 = vector.shape_cast %85 : vector<1x3x128xbf16> to vector<3x128xbf16>
    %cst_51 = arith.constant dense<0.000000e+00> : vector<16x128xf32>
    %87 = tpu.matmul %84, %86, %cst_51 {dimension_numbers = #tpu.dot_dimension_numbers<[1], [0], [0], [1], [0, 0, 1, 1], [], []>} : vector<16x3xbf16>, vector<3x128xbf16>, vector<16x128xf32> -> vector<16x128xf32>
    %88 = arith.addf %81, %87 : vector<16x128xf32>
    %89 = vector.extract_strided_slice %82 {offsets = [1, 0, 0], sizes = [4, 4, 3], strides = [1, 1, 1]} : vector<6x4x3xbf16> to vector<4x4x3xbf16>
    %90 = vector.shape_cast %89 : vector<4x4x3xbf16> to vector<16x3xbf16>
    %c4_52 = arith.constant 4 : index
    %c0_53 = arith.constant 0 : index
    %c0_54 = arith.constant 0 : index
    %91 = vector.load %arg4[%c4_52, %c0_53, %c0_54] : memref<9x3x128xbf16, #tpu.memory_space<vmem>>, vector<1x3x128xbf16>
    %92 = vector.shape_cast %91 : vector<1x3x128xbf16> to vector<3x128xbf16>
    %cst_55 = arith.constant dense<0.000000e+00> : vector<16x128xf32>
    %93 = tpu.matmul %90, %92, %cst_55 {dimension_numbers = #tpu.dot_dimension_numbers<[1], [0], [0], [1], [0, 0, 1, 1], [], []>} : vector<16x3xbf16>, vector<3x128xbf16>, vector<16x128xf32> -> vector<16x128xf32>
    %94 = arith.addf %88, %93 : vector<16x128xf32>
    %95 = vector.extract_strided_slice %82 {offsets = [2, 0, 0], sizes = [4, 4, 3], strides = [1, 1, 1]} : vector<6x4x3xbf16> to vector<4x4x3xbf16>
    %96 = vector.shape_cast %95 : vector<4x4x3xbf16> to vector<16x3xbf16>
    %c7_56 = arith.constant 7 : index
    %c0_57 = arith.constant 0 : index
    %c0_58 = arith.constant 0 : index
    %97 = vector.load %arg4[%c7_56, %c0_57, %c0_58] : memref<9x3x128xbf16, #tpu.memory_space<vmem>>, vector<1x3x128xbf16>
    %98 = vector.shape_cast %97 : vector<1x3x128xbf16> to vector<3x128xbf16>
    %cst_59 = arith.constant dense<0.000000e+00> : vector<16x128xf32>
    %99 = tpu.matmul %96, %98, %cst_59 {dimension_numbers = #tpu.dot_dimension_numbers<[1], [0], [0], [1], [0, 0, 1, 1], [], []>} : vector<16x3xbf16>, vector<3x128xbf16>, vector<16x128xf32> -> vector<16x128xf32>
    %100 = arith.addf %94, %99 : vector<16x128xf32>
    %101 = vector.extract_strided_slice %61 {offsets = [0, 2, 0], sizes = [6, 4, 3], strides = [1, 1, 1]} : vector<6x6x3xbf16> to vector<6x4x3xbf16>
    %102 = vector.extract_strided_slice %101 {offsets = [0, 0, 0], sizes = [4, 4, 3], strides = [1, 1, 1]} : vector<6x4x3xbf16> to vector<4x4x3xbf16>
    %103 = vector.shape_cast %102 : vector<4x4x3xbf16> to vector<16x3xbf16>
    %c2_60 = arith.constant 2 : index
    %c0_61 = arith.constant 0 : index
    %c0_62 = arith.constant 0 : index
    %104 = vector.load %arg4[%c2_60, %c0_61, %c0_62] : memref<9x3x128xbf16, #tpu.memory_space<vmem>>, vector<1x3x128xbf16>
    %105 = vector.shape_cast %104 : vector<1x3x128xbf16> to vector<3x128xbf16>
    %cst_63 = arith.constant dense<0.000000e+00> : vector<16x128xf32>
    %106 = tpu.matmul %103, %105, %cst_63 {dimension_numbers = #tpu.dot_dimension_numbers<[1], [0], [0], [1], [0, 0, 1, 1], [], []>} : vector<16x3xbf16>, vector<3x128xbf16>, vector<16x128xf32> -> vector<16x128xf32>
    %107 = arith.addf %100, %106 : vector<16x128xf32>
    %108 = vector.extract_strided_slice %101 {offsets = [1, 0, 0], sizes = [4, 4, 3], strides = [1, 1, 1]} : vector<6x4x3xbf16> to vector<4x4x3xbf16>
    %109 = vector.shape_cast %108 : vector<4x4x3xbf16> to vector<16x3xbf16>
    %c5_64 = arith.constant 5 : index
    %c0_65 = arith.constant 0 : index
    %c0_66 = arith.constant 0 : index
    %110 = vector.load %arg4[%c5_64, %c0_65, %c0_66] : memref<9x3x128xbf16, #tpu.memory_space<vmem>>, vector<1x3x128xbf16>
    %111 = vector.shape_cast %110 : vector<1x3x128xbf16> to vector<3x128xbf16>
    %cst_67 = arith.constant dense<0.000000e+00> : vector<16x128xf32>
    %112 = tpu.matmul %109, %111, %cst_67 {dimension_numbers = #tpu.dot_dimension_numbers<[1], [0], [0], [1], [0, 0, 1, 1], [], []>} : vector<16x3xbf16>, vector<3x128xbf16>, vector<16x128xf32> -> vector<16x128xf32>
    %113 = arith.addf %107, %112 : vector<16x128xf32>
    %114 = vector.extract_strided_slice %101 {offsets = [2, 0, 0], sizes = [4, 4, 3], strides = [1, 1, 1]} : vector<6x4x3xbf16> to vector<4x4x3xbf16>
    %115 = vector.shape_cast %114 : vector<4x4x3xbf16> to vector<16x3xbf16>
    %c8_68 = arith.constant 8 : index
    %c0_69 = arith.constant 0 : index
    %c0_70 = arith.constant 0 : index
    %116 = vector.load %arg4[%c8_68, %c0_69, %c0_70] : memref<9x3x128xbf16, #tpu.memory_space<vmem>>, vector<1x3x128xbf16>
    %117 = vector.shape_cast %116 : vector<1x3x128xbf16> to vector<3x128xbf16>
    %cst_71 = arith.constant dense<0.000000e+00> : vector<16x128xf32>
    %118 = tpu.matmul %115, %117, %cst_71 {dimension_numbers = #tpu.dot_dimension_numbers<[1], [0], [0], [1], [0, 0, 1, 1], [], []>} : vector<16x3xbf16>, vector<3x128xbf16>, vector<16x128xf32> -> vector<16x128xf32>
    %119 = arith.addf %113, %118 : vector<16x128xf32>
    %120 = arith.addf %59, %119 : vector<16x128xf32>
    %c0_72 = arith.constant 0 : index
    %c0_73 = arith.constant 0 : index
    %121 = vector.load %arg5[%c0_72, %c0_73] : memref<1x128xf32, #tpu.memory_space<vmem>>, vector<1x128xf32>
    %122 = vector.broadcast %121 : vector<1x128xf32> to vector<16x128xf32>
    %123 = arith.addf %120, %122 : vector<16x128xf32>
    %124 = vector.shape_cast %123 : vector<16x128xf32> to vector<1x4x4x128xf32>
    %125 = arith.truncf %124 : vector<1x4x4x128xf32> to vector<1x4x4x128xbf16>
    %c0_74 = arith.constant 0 : index
    %c0_75 = arith.constant 0 : index
    %c0_76 = arith.constant 0 : index
    %c0_77 = arith.constant 0 : index
    %126 = vector.load %arg6[%c0_74, %c0_75, %c0_76, %c0_77] : memref<1x4x4x128xbf16, #tpu.memory_space<vmem>>, vector<1x4x4x128xbf16>
    tpu.vector_store %arg6[%c0_74, %c0_75, %c0_76, %c0_77], %125 {strides = array<i32>} : memref<1x4x4x128xbf16, #tpu.memory_space<vmem>>, vector<1x4x4x128xbf16>,
    return
  }
  func.func @transform_0(%arg0: i32) -> (i32, i32, i32, i32) {
    %c0_i32 = arith.constant 0 : i32
    %c0_i32_0 = arith.constant 0 : i32
    %c0_i32_1 = arith.constant 0 : i32
    %c0_i32_2 = arith.constant 0 : i32
    return %arg0, %c0_i32, %c0_i32_0, %c0_i32_1 : i32, i32, i32, i32
  }
  func.func @transform_1(%arg0: i32) -> (i32, i32, i32, i32) {
    %c0_i32 = arith.constant 0 : i32
    %c0_i32_0 = arith.constant 0 : i32
    %c0_i32_1 = arith.constant 0 : i32
    %c0_i32_2 = arith.constant 0 : i32
    return %arg0, %c0_i32, %c0_i32_0, %c0_i32_1 : i32, i32, i32, i32
  }
  func.func @transform_2(%arg0: i32) -> (i32, i32, i32) {
    %c0_i32 = arith.constant 0 : i32
    %c0_i32_0 = arith.constant 0 : i32
    %c0_i32_1 = arith.constant 0 : i32
    %c0_i32_2 = arith.constant 0 : i32
    return %c0_i32, %c0_i32_0, %c0_i32_1 : i32, i32, i32
  }
  func.func @transform_3(%arg0: i32) -> (i32, i32, i32) {
    %c0_i32 = arith.constant 0 : i32
    %c0_i32_0 = arith.constant 0 : i32
    %c0_i32_1 = arith.constant 0 : i32
    %c0_i32_2 = arith.constant 0 : i32
    return %c0_i32, %c0_i32_0, %c0_i32_1 : i32, i32, i32
  }
  func.func @transform_4(%arg0: i32) -> (i32, i32) {
    %c0_i32 = arith.constant 0 : i32
    %c0_i32_0 = arith.constant 0 : i32
    %c0_i32_1 = arith.constant 0 : i32
    return %c0_i32, %c0_i32_0 : i32, i32
  }
  func.func @transform_5(%arg0: i32) -> (i32, i32, i32, i32) {
    %c0_i32 = arith.constant 0 : i32
    %c0_i32_0 = arith.constant 0 : i32
    %c0_i32_1 = arith.constant 0 : i32
    %c0_i32_2 = arith.constant 0 : i32
    return %arg0, %c0_i32, %c0_i32_0, %c0_i32_1 : i32, i32, i32, i32
  }
}

module attributes {stable_mosaic.version = 11 : i64} {
  func.func @_dconv_kernel(%arg0: i32, %arg1: i32, %arg2: memref<1x8x8x128xbf16, #tpu.memory_space<vmem>>, %arg3: memref<3x384x128xbf16, #tpu.memory_space<vmem>>, %arg4: memref<1x128xf32, #tpu.memory_space<vmem>>, %arg5: memref<1x128xf32, #tpu.memory_space<vmem>>, %arg6: memref<1x128xf32, #tpu.memory_space<vmem>>, %arg7: memref<1x4x4x128xbf16, #tpu.memory_space<vmem>>, %arg8: memref<1x1x128xf32, #tpu.memory_space<vmem>>, %arg9: memref<1x1x128xf32, #tpu.memory_space<vmem>>) attributes {dimension_semantics = [#tpu.dimension_semantics<parallel>, #tpu.dimension_semantics<parallel>], iteration_bounds = array<i64: 1, 2>, scalar_prefetch = 0 : i64, scratch_operands = 0 : i64, tpu.core_type = #tpu.core_type<tc>, window_params = [{transform_indices = @transform_0, window_bounds = array<i64: 1, 8, 8, 128>}, {transform_indices = @transform_1, window_bounds = array<i64: 3, 384, 128>}, {transform_indices = @transform_2, window_bounds = array<i64: 1, 128>}, {pipeline_mode = #tpu.pipeline_mode<synchronous>, transform_indices = @transform_3, window_bounds = array<i64: 1, 128>}, {pipeline_mode = #tpu.pipeline_mode<synchronous>, transform_indices = @transform_4, window_bounds = array<i64: 1, 128>}, {transform_indices = @transform_5, window_bounds = array<i64: 1, 4, 4, 128>}, {transform_indices = @transform_6, window_bounds = array<i64: 1, 1, 128>}, {transform_indices = @transform_7, window_bounds = array<i64: 1, 1, 128>}]} {
    %c0 = arith.constant 0 : index
    %c0_0 = arith.constant 0 : index
    %c0_1 = arith.constant 0 : index
    %c0_2 = arith.constant 0 : index
    %0 = vector.load %arg2[%c0, %c0_0, %c0_1, %c0_2] : memref<1x8x8x128xbf16, #tpu.memory_space<vmem>>, vector<1x8x8x128xbf16>
    %1 = vector.shape_cast %0 : vector<1x8x8x128xbf16> to vector<8x8x128xbf16>
    %c0_3 = arith.constant 0 : index
    %c0_4 = arith.constant 0 : index
    %2 = vector.load %arg5[%c0_3, %c0_4] : memref<1x128xf32, #tpu.memory_space<vmem>>, vector<1x128xf32>
    %c0_5 = arith.constant 0 : index
    %c0_6 = arith.constant 0 : index
    %3 = vector.load %arg6[%c0_5, %c0_6] : memref<1x128xf32, #tpu.memory_space<vmem>>, vector<1x128xf32>
    %4 = arith.extf %1 : vector<8x8x128xbf16> to vector<8x8x128xf32>
    %5 = vector.shape_cast %2 : vector<1x128xf32> to vector<1x1x128xf32>
    %6 = vector.broadcast %5 : vector<1x1x128xf32> to vector<8x8x128xf32>
    %7 = arith.mulf %4, %6 : vector<8x8x128xf32>
    %8 = vector.shape_cast %3 : vector<1x128xf32> to vector<1x1x128xf32>
    %9 = vector.broadcast %8 : vector<1x1x128xf32> to vector<8x8x128xf32>
    %10 = arith.addf %7, %9 : vector<8x8x128xf32>
    %cst = arith.constant 0.000000e+00 : f32
    %11 = vector.broadcast %cst : f32 to vector<8x8x128xf32>
    %12 = arith.maximumf %10, %11 : vector<8x8x128xf32>
    %13 = tpu.iota {dimensions = array<i32: 0>} : vector<8x8x1xi32>
    %14 = tpu.iota {dimensions = array<i32: 1>} : vector<8x8x1xi32>
    %c2_i32 = arith.constant 2 : i32
    %15 = vector.broadcast %c2_i32 : i32 to vector<8x8x1xi32>
    %16 = arith.cmpi sge, %13, %15 : vector<8x8x1xi32>
    %c6_i32 = arith.constant 6 : i32
    %17 = vector.broadcast %c6_i32 : i32 to vector<8x8x1xi32>
    %18 = arith.cmpi slt, %13, %17 : vector<8x8x1xi32>
    %19 = arith.andi %16, %18 : vector<8x8x1xi1>
    %c2_i32_7 = arith.constant 2 : i32
    %20 = vector.broadcast %c2_i32_7 : i32 to vector<8x8x1xi32>
    %21 = arith.cmpi sge, %14, %20 : vector<8x8x1xi32>
    %22 = arith.andi %19, %21 : vector<8x8x1xi1>
    %c6_i32_8 = arith.constant 6 : i32
    %23 = vector.broadcast %c6_i32_8 : i32 to vector<8x8x1xi32>
    %24 = arith.cmpi slt, %14, %23 : vector<8x8x1xi32>
    %25 = arith.andi %22, %24 : vector<8x8x1xi1>
    %cst_9 = arith.constant 0.000000e+00 : f32
    %26 = vector.shape_cast %25 : vector<8x8x1xi1> to vector<8x8x1xi1>
    %27 = vector.broadcast %26 : vector<8x8x1xi1> to vector<8x8x128xi1>
    %28 = vector.broadcast %cst_9 : f32 to vector<8x8x128xf32>
    %29 = arith.select %27, %12, %28 : vector<8x8x128xi1>, vector<8x8x128xf32>
    %30 = arith.truncf %29 : vector<8x8x128xf32> to vector<8x8x128xbf16>
    %cst_10 = arith.constant 0.000000e+00 : f32
    %31 = vector.broadcast %cst_10 : f32 to vector<16x128xf32>
    %32 = vector.extract_strided_slice %30 {offsets = [0, 0, 0], sizes = [8, 4, 128], strides = [1, 1, 1]} : vector<8x8x128xbf16> to vector<8x4x128xbf16>
    %33 = vector.extract_strided_slice %32 {offsets = [0, 0, 0], sizes = [4, 4, 128], strides = [1, 1, 1]} : vector<8x4x128xbf16> to vector<4x4x128xbf16>
    %34 = vector.shape_cast %33 : vector<4x4x128xbf16> to vector<16x128xbf16>
    %35 = vector.extract_strided_slice %32 {offsets = [2, 0, 0], sizes = [4, 4, 128], strides = [1, 1, 1]} : vector<8x4x128xbf16> to vector<4x4x128xbf16>
    %36 = vector.shape_cast %35 : vector<4x4x128xbf16> to vector<16x128xbf16>
    %37 = vector.extract_strided_slice %32 {offsets = [4, 0, 0], sizes = [4, 4, 128], strides = [1, 1, 1]} : vector<8x4x128xbf16> to vector<4x4x128xbf16>
    %38 = vector.shape_cast %37 : vector<4x4x128xbf16> to vector<16x128xbf16>
    %39 = tpu.concatenate %34, %36, %38 in 1 : vector<16x128xbf16>, vector<16x128xbf16>, vector<16x128xbf16> -> vector<16x384xbf16>
    %c0_11 = arith.constant 0 : index
    %c0_12 = arith.constant 0 : index
    %c0_13 = arith.constant 0 : index
    %40 = vector.load %arg3[%c0_11, %c0_12, %c0_13] : memref<3x384x128xbf16, #tpu.memory_space<vmem>>, vector<1x384x128xbf16>
    %41 = vector.shape_cast %40 : vector<1x384x128xbf16> to vector<384x128xbf16>
    %cst_14 = arith.constant dense<0.000000e+00> : vector<16x128xf32>
    %42 = tpu.matmul %39, %41, %cst_14 {dimension_numbers = #tpu.dot_dimension_numbers<[1], [0], [0], [1], [0, 0, 1, 1], [], []>} : vector<16x384xbf16>, vector<384x128xbf16>, vector<16x128xf32> -> vector<16x128xf32>
    %43 = arith.addf %31, %42 : vector<16x128xf32>
    %44 = vector.extract_strided_slice %30 {offsets = [0, 2, 0], sizes = [8, 4, 128], strides = [1, 1, 1]} : vector<8x8x128xbf16> to vector<8x4x128xbf16>
    %45 = vector.extract_strided_slice %44 {offsets = [0, 0, 0], sizes = [4, 4, 128], strides = [1, 1, 1]} : vector<8x4x128xbf16> to vector<4x4x128xbf16>
    %46 = vector.shape_cast %45 : vector<4x4x128xbf16> to vector<16x128xbf16>
    %47 = vector.extract_strided_slice %44 {offsets = [2, 0, 0], sizes = [4, 4, 128], strides = [1, 1, 1]} : vector<8x4x128xbf16> to vector<4x4x128xbf16>
    %48 = vector.shape_cast %47 : vector<4x4x128xbf16> to vector<16x128xbf16>
    %49 = vector.extract_strided_slice %44 {offsets = [4, 0, 0], sizes = [4, 4, 128], strides = [1, 1, 1]} : vector<8x4x128xbf16> to vector<4x4x128xbf16>
    %50 = vector.shape_cast %49 : vector<4x4x128xbf16> to vector<16x128xbf16>
    %51 = tpu.concatenate %46, %48, %50 in 1 : vector<16x128xbf16>, vector<16x128xbf16>, vector<16x128xbf16> -> vector<16x384xbf16>
    %c1 = arith.constant 1 : index
    %c0_15 = arith.constant 0 : index
    %c0_16 = arith.constant 0 : index
    %52 = vector.load %arg3[%c1, %c0_15, %c0_16] : memref<3x384x128xbf16, #tpu.memory_space<vmem>>, vector<1x384x128xbf16>
    %53 = vector.shape_cast %52 : vector<1x384x128xbf16> to vector<384x128xbf16>
    %cst_17 = arith.constant dense<0.000000e+00> : vector<16x128xf32>
    %54 = tpu.matmul %51, %53, %cst_17 {dimension_numbers = #tpu.dot_dimension_numbers<[1], [0], [0], [1], [0, 0, 1, 1], [], []>} : vector<16x384xbf16>, vector<384x128xbf16>, vector<16x128xf32> -> vector<16x128xf32>
    %55 = arith.addf %43, %54 : vector<16x128xf32>
    %56 = vector.extract_strided_slice %30 {offsets = [0, 4, 0], sizes = [8, 4, 128], strides = [1, 1, 1]} : vector<8x8x128xbf16> to vector<8x4x128xbf16>
    %57 = vector.extract_strided_slice %56 {offsets = [0, 0, 0], sizes = [4, 4, 128], strides = [1, 1, 1]} : vector<8x4x128xbf16> to vector<4x4x128xbf16>
    %58 = vector.shape_cast %57 : vector<4x4x128xbf16> to vector<16x128xbf16>
    %59 = vector.extract_strided_slice %56 {offsets = [2, 0, 0], sizes = [4, 4, 128], strides = [1, 1, 1]} : vector<8x4x128xbf16> to vector<4x4x128xbf16>
    %60 = vector.shape_cast %59 : vector<4x4x128xbf16> to vector<16x128xbf16>
    %61 = vector.extract_strided_slice %56 {offsets = [4, 0, 0], sizes = [4, 4, 128], strides = [1, 1, 1]} : vector<8x4x128xbf16> to vector<4x4x128xbf16>
    %62 = vector.shape_cast %61 : vector<4x4x128xbf16> to vector<16x128xbf16>
    %63 = tpu.concatenate %58, %60, %62 in 1 : vector<16x128xbf16>, vector<16x128xbf16>, vector<16x128xbf16> -> vector<16x384xbf16>
    %c2 = arith.constant 2 : index
    %c0_18 = arith.constant 0 : index
    %c0_19 = arith.constant 0 : index
    %64 = vector.load %arg3[%c2, %c0_18, %c0_19] : memref<3x384x128xbf16, #tpu.memory_space<vmem>>, vector<1x384x128xbf16>
    %65 = vector.shape_cast %64 : vector<1x384x128xbf16> to vector<384x128xbf16>
    %cst_20 = arith.constant dense<0.000000e+00> : vector<16x128xf32>
    %66 = tpu.matmul %63, %65, %cst_20 {dimension_numbers = #tpu.dot_dimension_numbers<[1], [0], [0], [1], [0, 0, 1, 1], [], []>} : vector<16x384xbf16>, vector<384x128xbf16>, vector<16x128xf32> -> vector<16x128xf32>
    %67 = arith.addf %55, %66 : vector<16x128xf32>
    %c0_21 = arith.constant 0 : index
    %c0_22 = arith.constant 0 : index
    %68 = vector.load %arg4[%c0_21, %c0_22] : memref<1x128xf32, #tpu.memory_space<vmem>>, vector<1x128xf32>
    %69 = vector.broadcast %68 : vector<1x128xf32> to vector<16x128xf32>
    %70 = arith.addf %67, %69 : vector<16x128xf32>
    %71 = vector.shape_cast %70 : vector<16x128xf32> to vector<1x4x4x128xf32>
    %72 = arith.truncf %71 : vector<1x4x4x128xf32> to vector<1x4x4x128xbf16>
    %c0_23 = arith.constant 0 : index
    %c0_24 = arith.constant 0 : index
    %c0_25 = arith.constant 0 : index
    %c0_26 = arith.constant 0 : index
    %73 = vector.load %arg7[%c0_23, %c0_24, %c0_25, %c0_26] : memref<1x4x4x128xbf16, #tpu.memory_space<vmem>>, vector<1x4x4x128xbf16>
    tpu.vector_store %arg7[%c0_23, %c0_24, %c0_25, %c0_26], %72 {strides = array<i32>} : memref<1x4x4x128xbf16, #tpu.memory_space<vmem>>, vector<1x4x4x128xbf16>,
    %cst_27 = arith.constant dense<0.000000e+00> : vector<128xf32>
    %74 = vector.multi_reduction <add>, %70, %cst_27 [0] : vector<16x128xf32> to vector<128xf32>
    %75 = vector.shape_cast %74 : vector<128xf32> to vector<1x128xf32>
    %76 = vector.shape_cast %75 : vector<1x128xf32> to vector<1x1x128xf32>
    %c0_28 = arith.constant 0 : index
    %c0_29 = arith.constant 0 : index
    %c0_30 = arith.constant 0 : index
    %77 = vector.load %arg8[%c0_28, %c0_29, %c0_30] : memref<1x1x128xf32, #tpu.memory_space<vmem>>, vector<1x1x128xf32>
    tpu.vector_store %arg8[%c0_28, %c0_29, %c0_30], %76 {strides = array<i32>} : memref<1x1x128xf32, #tpu.memory_space<vmem>>, vector<1x1x128xf32>,
    %78 = arith.mulf %70, %70 : vector<16x128xf32>
    %cst_31 = arith.constant dense<0.000000e+00> : vector<128xf32>
    %79 = vector.multi_reduction <add>, %78, %cst_31 [0] : vector<16x128xf32> to vector<128xf32>
    %80 = vector.shape_cast %79 : vector<128xf32> to vector<1x128xf32>
    %81 = vector.shape_cast %80 : vector<1x128xf32> to vector<1x1x128xf32>
    %c0_32 = arith.constant 0 : index
    %c0_33 = arith.constant 0 : index
    %c0_34 = arith.constant 0 : index
    %82 = vector.load %arg9[%c0_32, %c0_33, %c0_34] : memref<1x1x128xf32, #tpu.memory_space<vmem>>, vector<1x1x128xf32>
    tpu.vector_store %arg9[%c0_32, %c0_33, %c0_34], %81 {strides = array<i32>} : memref<1x1x128xf32, #tpu.memory_space<vmem>>, vector<1x1x128xf32>,
    return
  }
  func.func @transform_0(%arg0: i32, %arg1: i32) -> (i32, i32, i32, i32) {
    %c0_i32 = arith.constant 0 : i32
    %c0_i32_0 = arith.constant 0 : i32
    %c0_i32_1 = arith.constant 0 : i32
    %c0_i32_2 = arith.constant 0 : i32
    return %arg1, %c0_i32, %c0_i32_0, %c0_i32_1 : i32, i32, i32, i32
  }
  func.func @transform_1(%arg0: i32, %arg1: i32) -> (i32, i32, i32) {
    %c0_i32 = arith.constant 0 : i32
    %c0_i32_0 = arith.constant 0 : i32
    %c0_i32_1 = arith.constant 0 : i32
    return %c0_i32, %c0_i32_0, %arg0 : i32, i32, i32
  }
  func.func @transform_2(%arg0: i32, %arg1: i32) -> (i32, i32) {
    %c0_i32 = arith.constant 0 : i32
    %c0_i32_0 = arith.constant 0 : i32
    return %c0_i32, %arg0 : i32, i32
  }
  func.func @transform_3(%arg0: i32, %arg1: i32) -> (i32, i32) {
    %c0_i32 = arith.constant 0 : i32
    %c0_i32_0 = arith.constant 0 : i32
    %c0_i32_1 = arith.constant 0 : i32
    return %c0_i32, %c0_i32_0 : i32, i32
  }
  func.func @transform_4(%arg0: i32, %arg1: i32) -> (i32, i32) {
    %c0_i32 = arith.constant 0 : i32
    %c0_i32_0 = arith.constant 0 : i32
    %c0_i32_1 = arith.constant 0 : i32
    return %c0_i32, %c0_i32_0 : i32, i32
  }
  func.func @transform_5(%arg0: i32, %arg1: i32) -> (i32, i32, i32, i32) {
    %c0_i32 = arith.constant 0 : i32
    %c0_i32_0 = arith.constant 0 : i32
    %c0_i32_1 = arith.constant 0 : i32
    return %arg1, %c0_i32, %c0_i32_0, %arg0 : i32, i32, i32, i32
  }
  func.func @transform_6(%arg0: i32, %arg1: i32) -> (i32, i32, i32) {
    %c0_i32 = arith.constant 0 : i32
    %c0_i32_0 = arith.constant 0 : i32
    return %arg1, %c0_i32, %arg0 : i32, i32, i32
  }
  func.func @transform_7(%arg0: i32, %arg1: i32) -> (i32, i32, i32) {
    %c0_i32 = arith.constant 0 : i32
    %c0_i32_0 = arith.constant 0 : i32
    return %arg1, %c0_i32, %arg0 : i32, i32, i32
  }
}

module attributes {stable_mosaic.version = 11 : i64} {
  func.func @_dconv_kernel(%arg0: i32, %arg1: i32, %arg2: memref<1x6x6x128xbf16, #tpu.memory_space<vmem>>, %arg3: memref<3x384x128xbf16, #tpu.memory_space<vmem>>, %arg4: memref<1x128xf32, #tpu.memory_space<vmem>>, %arg5: memref<1x128xf32, #tpu.memory_space<vmem>>, %arg6: memref<1x128xf32, #tpu.memory_space<vmem>>, %arg7: memref<1x4x4x128xbf16, #tpu.memory_space<vmem>>, %arg8: memref<1x1x128xf32, #tpu.memory_space<vmem>>, %arg9: memref<1x1x128xf32, #tpu.memory_space<vmem>>) attributes {dimension_semantics = [#tpu.dimension_semantics<parallel>, #tpu.dimension_semantics<parallel>], iteration_bounds = array<i64: 1, 2>, scalar_prefetch = 0 : i64, scratch_operands = 0 : i64, tpu.core_type = #tpu.core_type<tc>, window_params = [{transform_indices = @transform_0, window_bounds = array<i64: 1, 6, 6, 128>}, {transform_indices = @transform_1, window_bounds = array<i64: 3, 384, 128>}, {transform_indices = @transform_2, window_bounds = array<i64: 1, 128>}, {pipeline_mode = #tpu.pipeline_mode<synchronous>, transform_indices = @transform_3, window_bounds = array<i64: 1, 128>}, {pipeline_mode = #tpu.pipeline_mode<synchronous>, transform_indices = @transform_4, window_bounds = array<i64: 1, 128>}, {transform_indices = @transform_5, window_bounds = array<i64: 1, 4, 4, 128>}, {transform_indices = @transform_6, window_bounds = array<i64: 1, 1, 128>}, {transform_indices = @transform_7, window_bounds = array<i64: 1, 1, 128>}]} {
    %c0 = arith.constant 0 : index
    %c0_0 = arith.constant 0 : index
    %c0_1 = arith.constant 0 : index
    %c0_2 = arith.constant 0 : index
    %0 = vector.load %arg2[%c0, %c0_0, %c0_1, %c0_2] : memref<1x6x6x128xbf16, #tpu.memory_space<vmem>>, vector<1x6x6x128xbf16>
    %1 = vector.shape_cast %0 : vector<1x6x6x128xbf16> to vector<6x6x128xbf16>
    %cst = arith.constant 0.000000e+00 : f32
    %2 = vector.broadcast %cst : f32 to vector<16x128xf32>
    %3 = vector.extract_strided_slice %1 {offsets = [0, 0, 0], sizes = [6, 4, 128], strides = [1, 1, 1]} : vector<6x6x128xbf16> to vector<6x4x128xbf16>
    %4 = vector.extract_strided_slice %3 {offsets = [0, 0, 0], sizes = [4, 4, 128], strides = [1, 1, 1]} : vector<6x4x128xbf16> to vector<4x4x128xbf16>
    %5 = vector.shape_cast %4 : vector<4x4x128xbf16> to vector<16x128xbf16>
    %6 = vector.extract_strided_slice %3 {offsets = [1, 0, 0], sizes = [4, 4, 128], strides = [1, 1, 1]} : vector<6x4x128xbf16> to vector<4x4x128xbf16>
    %7 = vector.shape_cast %6 : vector<4x4x128xbf16> to vector<16x128xbf16>
    %8 = vector.extract_strided_slice %3 {offsets = [2, 0, 0], sizes = [4, 4, 128], strides = [1, 1, 1]} : vector<6x4x128xbf16> to vector<4x4x128xbf16>
    %9 = vector.shape_cast %8 : vector<4x4x128xbf16> to vector<16x128xbf16>
    %10 = tpu.concatenate %5, %7, %9 in 1 : vector<16x128xbf16>, vector<16x128xbf16>, vector<16x128xbf16> -> vector<16x384xbf16>
    %c0_3 = arith.constant 0 : index
    %c0_4 = arith.constant 0 : index
    %c0_5 = arith.constant 0 : index
    %11 = vector.load %arg3[%c0_3, %c0_4, %c0_5] : memref<3x384x128xbf16, #tpu.memory_space<vmem>>, vector<1x384x128xbf16>
    %12 = vector.shape_cast %11 : vector<1x384x128xbf16> to vector<384x128xbf16>
    %cst_6 = arith.constant dense<0.000000e+00> : vector<16x128xf32>
    %13 = tpu.matmul %10, %12, %cst_6 {dimension_numbers = #tpu.dot_dimension_numbers<[1], [0], [0], [1], [0, 0, 1, 1], [], []>} : vector<16x384xbf16>, vector<384x128xbf16>, vector<16x128xf32> -> vector<16x128xf32>
    %14 = arith.addf %2, %13 : vector<16x128xf32>
    %15 = vector.extract_strided_slice %1 {offsets = [0, 1, 0], sizes = [6, 4, 128], strides = [1, 1, 1]} : vector<6x6x128xbf16> to vector<6x4x128xbf16>
    %16 = vector.extract_strided_slice %15 {offsets = [0, 0, 0], sizes = [4, 4, 128], strides = [1, 1, 1]} : vector<6x4x128xbf16> to vector<4x4x128xbf16>
    %17 = vector.shape_cast %16 : vector<4x4x128xbf16> to vector<16x128xbf16>
    %18 = vector.extract_strided_slice %15 {offsets = [1, 0, 0], sizes = [4, 4, 128], strides = [1, 1, 1]} : vector<6x4x128xbf16> to vector<4x4x128xbf16>
    %19 = vector.shape_cast %18 : vector<4x4x128xbf16> to vector<16x128xbf16>
    %20 = vector.extract_strided_slice %15 {offsets = [2, 0, 0], sizes = [4, 4, 128], strides = [1, 1, 1]} : vector<6x4x128xbf16> to vector<4x4x128xbf16>
    %21 = vector.shape_cast %20 : vector<4x4x128xbf16> to vector<16x128xbf16>
    %22 = tpu.concatenate %17, %19, %21 in 1 : vector<16x128xbf16>, vector<16x128xbf16>, vector<16x128xbf16> -> vector<16x384xbf16>
    %c1 = arith.constant 1 : index
    %c0_7 = arith.constant 0 : index
    %c0_8 = arith.constant 0 : index
    %23 = vector.load %arg3[%c1, %c0_7, %c0_8] : memref<3x384x128xbf16, #tpu.memory_space<vmem>>, vector<1x384x128xbf16>
    %24 = vector.shape_cast %23 : vector<1x384x128xbf16> to vector<384x128xbf16>
    %cst_9 = arith.constant dense<0.000000e+00> : vector<16x128xf32>
    %25 = tpu.matmul %22, %24, %cst_9 {dimension_numbers = #tpu.dot_dimension_numbers<[1], [0], [0], [1], [0, 0, 1, 1], [], []>} : vector<16x384xbf16>, vector<384x128xbf16>, vector<16x128xf32> -> vector<16x128xf32>
    %26 = arith.addf %14, %25 : vector<16x128xf32>
    %27 = vector.extract_strided_slice %1 {offsets = [0, 2, 0], sizes = [6, 4, 128], strides = [1, 1, 1]} : vector<6x6x128xbf16> to vector<6x4x128xbf16>
    %28 = vector.extract_strided_slice %27 {offsets = [0, 0, 0], sizes = [4, 4, 128], strides = [1, 1, 1]} : vector<6x4x128xbf16> to vector<4x4x128xbf16>
    %29 = vector.shape_cast %28 : vector<4x4x128xbf16> to vector<16x128xbf16>
    %30 = vector.extract_strided_slice %27 {offsets = [1, 0, 0], sizes = [4, 4, 128], strides = [1, 1, 1]} : vector<6x4x128xbf16> to vector<4x4x128xbf16>
    %31 = vector.shape_cast %30 : vector<4x4x128xbf16> to vector<16x128xbf16>
    %32 = vector.extract_strided_slice %27 {offsets = [2, 0, 0], sizes = [4, 4, 128], strides = [1, 1, 1]} : vector<6x4x128xbf16> to vector<4x4x128xbf16>
    %33 = vector.shape_cast %32 : vector<4x4x128xbf16> to vector<16x128xbf16>
    %34 = tpu.concatenate %29, %31, %33 in 1 : vector<16x128xbf16>, vector<16x128xbf16>, vector<16x128xbf16> -> vector<16x384xbf16>
    %c2 = arith.constant 2 : index
    %c0_10 = arith.constant 0 : index
    %c0_11 = arith.constant 0 : index
    %35 = vector.load %arg3[%c2, %c0_10, %c0_11] : memref<3x384x128xbf16, #tpu.memory_space<vmem>>, vector<1x384x128xbf16>
    %36 = vector.shape_cast %35 : vector<1x384x128xbf16> to vector<384x128xbf16>
    %cst_12 = arith.constant dense<0.000000e+00> : vector<16x128xf32>
    %37 = tpu.matmul %34, %36, %cst_12 {dimension_numbers = #tpu.dot_dimension_numbers<[1], [0], [0], [1], [0, 0, 1, 1], [], []>} : vector<16x384xbf16>, vector<384x128xbf16>, vector<16x128xf32> -> vector<16x128xf32>
    %38 = arith.addf %26, %37 : vector<16x128xf32>
    %c0_13 = arith.constant 0 : index
    %c0_14 = arith.constant 0 : index
    %39 = vector.load %arg4[%c0_13, %c0_14] : memref<1x128xf32, #tpu.memory_space<vmem>>, vector<1x128xf32>
    %40 = vector.broadcast %39 : vector<1x128xf32> to vector<16x128xf32>
    %41 = arith.addf %38, %40 : vector<16x128xf32>
    %42 = vector.shape_cast %41 : vector<16x128xf32> to vector<1x4x4x128xf32>
    %43 = arith.truncf %42 : vector<1x4x4x128xf32> to vector<1x4x4x128xbf16>
    %c0_15 = arith.constant 0 : index
    %c0_16 = arith.constant 0 : index
    %c0_17 = arith.constant 0 : index
    %c0_18 = arith.constant 0 : index
    %44 = vector.load %arg7[%c0_15, %c0_16, %c0_17, %c0_18] : memref<1x4x4x128xbf16, #tpu.memory_space<vmem>>, vector<1x4x4x128xbf16>
    tpu.vector_store %arg7[%c0_15, %c0_16, %c0_17, %c0_18], %43 {strides = array<i32>} : memref<1x4x4x128xbf16, #tpu.memory_space<vmem>>, vector<1x4x4x128xbf16>,
    %cst_19 = arith.constant dense<0.000000e+00> : vector<128xf32>
    %45 = vector.multi_reduction <add>, %41, %cst_19 [0] : vector<16x128xf32> to vector<128xf32>
    %46 = vector.shape_cast %45 : vector<128xf32> to vector<1x128xf32>
    %47 = vector.shape_cast %46 : vector<1x128xf32> to vector<1x1x128xf32>
    %c0_20 = arith.constant 0 : index
    %c0_21 = arith.constant 0 : index
    %c0_22 = arith.constant 0 : index
    %48 = vector.load %arg8[%c0_20, %c0_21, %c0_22] : memref<1x1x128xf32, #tpu.memory_space<vmem>>, vector<1x1x128xf32>
    tpu.vector_store %arg8[%c0_20, %c0_21, %c0_22], %47 {strides = array<i32>} : memref<1x1x128xf32, #tpu.memory_space<vmem>>, vector<1x1x128xf32>,
    %49 = arith.mulf %41, %41 : vector<16x128xf32>
    %cst_23 = arith.constant dense<0.000000e+00> : vector<128xf32>
    %50 = vector.multi_reduction <add>, %49, %cst_23 [0] : vector<16x128xf32> to vector<128xf32>
    %51 = vector.shape_cast %50 : vector<128xf32> to vector<1x128xf32>
    %52 = vector.shape_cast %51 : vector<1x128xf32> to vector<1x1x128xf32>
    %c0_24 = arith.constant 0 : index
    %c0_25 = arith.constant 0 : index
    %c0_26 = arith.constant 0 : index
    %53 = vector.load %arg9[%c0_24, %c0_25, %c0_26] : memref<1x1x128xf32, #tpu.memory_space<vmem>>, vector<1x1x128xf32>
    tpu.vector_store %arg9[%c0_24, %c0_25, %c0_26], %52 {strides = array<i32>} : memref<1x1x128xf32, #tpu.memory_space<vmem>>, vector<1x1x128xf32>,
    return
  }
  func.func @transform_0(%arg0: i32, %arg1: i32) -> (i32, i32, i32, i32) {
    %c0_i32 = arith.constant 0 : i32
    %c0_i32_0 = arith.constant 0 : i32
    %c0_i32_1 = arith.constant 0 : i32
    %c0_i32_2 = arith.constant 0 : i32
    return %arg1, %c0_i32, %c0_i32_0, %c0_i32_1 : i32, i32, i32, i32
  }
  func.func @transform_1(%arg0: i32, %arg1: i32) -> (i32, i32, i32) {
    %c0_i32 = arith.constant 0 : i32
    %c0_i32_0 = arith.constant 0 : i32
    %c0_i32_1 = arith.constant 0 : i32
    return %c0_i32, %c0_i32_0, %arg0 : i32, i32, i32
  }
  func.func @transform_2(%arg0: i32, %arg1: i32) -> (i32, i32) {
    %c0_i32 = arith.constant 0 : i32
    %c0_i32_0 = arith.constant 0 : i32
    return %c0_i32, %arg0 : i32, i32
  }
  func.func @transform_3(%arg0: i32, %arg1: i32) -> (i32, i32) {
    %c0_i32 = arith.constant 0 : i32
    %c0_i32_0 = arith.constant 0 : i32
    %c0_i32_1 = arith.constant 0 : i32
    return %c0_i32, %c0_i32_0 : i32, i32
  }
  func.func @transform_4(%arg0: i32, %arg1: i32) -> (i32, i32) {
    %c0_i32 = arith.constant 0 : i32
    %c0_i32_0 = arith.constant 0 : i32
    %c0_i32_1 = arith.constant 0 : i32
    return %c0_i32, %c0_i32_0 : i32, i32
  }
  func.func @transform_5(%arg0: i32, %arg1: i32) -> (i32, i32, i32, i32) {
    %c0_i32 = arith.constant 0 : i32
    %c0_i32_0 = arith.constant 0 : i32
    %c0_i32_1 = arith.constant 0 : i32
    return %arg1, %c0_i32, %c0_i32_0, %arg0 : i32, i32, i32, i32
  }
  func.func @transform_6(%arg0: i32, %arg1: i32) -> (i32, i32, i32) {
    %c0_i32 = arith.constant 0 : i32
    %c0_i32_0 = arith.constant 0 : i32
    return %arg1, %c0_i32, %arg0 : i32, i32, i32
  }
  func.func @transform_7(%arg0: i32, %arg1: i32) -> (i32, i32, i32) {
    %c0_i32 = arith.constant 0 : i32
    %c0_i32_0 = arith.constant 0 : i32
    return %arg1, %c0_i32, %arg0 : i32, i32, i32
  }
}

module attributes {stable_mosaic.version = 11 : i64} {
  func.func @_dconv_kernel(%arg0: i32, %arg1: i32, %arg2: memref<1x14x14x128xbf16, #tpu.memory_space<vmem>>, %arg3: memref<3x384x128xbf16, #tpu.memory_space<vmem>>, %arg4: memref<1x128xf32, #tpu.memory_space<vmem>>, %arg5: memref<1x128xf32, #tpu.memory_space<vmem>>, %arg6: memref<1x128xf32, #tpu.memory_space<vmem>>, %arg7: memref<1x4x4x128xbf16, #tpu.memory_space<vmem>>, %arg8: memref<1x1x128xf32, #tpu.memory_space<vmem>>, %arg9: memref<1x1x128xf32, #tpu.memory_space<vmem>>) attributes {dimension_semantics = [#tpu.dimension_semantics<parallel>, #tpu.dimension_semantics<parallel>], iteration_bounds = array<i64: 1, 2>, scalar_prefetch = 0 : i64, scratch_operands = 0 : i64, tpu.core_type = #tpu.core_type<tc>, window_params = [{transform_indices = @transform_0, window_bounds = array<i64: 1, 14, 14, 128>}, {transform_indices = @transform_1, window_bounds = array<i64: 3, 384, 128>}, {transform_indices = @transform_2, window_bounds = array<i64: 1, 128>}, {pipeline_mode = #tpu.pipeline_mode<synchronous>, transform_indices = @transform_3, window_bounds = array<i64: 1, 128>}, {pipeline_mode = #tpu.pipeline_mode<synchronous>, transform_indices = @transform_4, window_bounds = array<i64: 1, 128>}, {transform_indices = @transform_5, window_bounds = array<i64: 1, 4, 4, 128>}, {transform_indices = @transform_6, window_bounds = array<i64: 1, 1, 128>}, {transform_indices = @transform_7, window_bounds = array<i64: 1, 1, 128>}]} {
    %c0 = arith.constant 0 : index
    %c0_0 = arith.constant 0 : index
    %c0_1 = arith.constant 0 : index
    %c0_2 = arith.constant 0 : index
    %0 = vector.load %arg2[%c0, %c0_0, %c0_1, %c0_2] : memref<1x14x14x128xbf16, #tpu.memory_space<vmem>>, vector<1x14x14x128xbf16>
    %1 = vector.shape_cast %0 : vector<1x14x14x128xbf16> to vector<14x14x128xbf16>
    %c0_3 = arith.constant 0 : index
    %c0_4 = arith.constant 0 : index
    %2 = vector.load %arg5[%c0_3, %c0_4] : memref<1x128xf32, #tpu.memory_space<vmem>>, vector<1x128xf32>
    %c0_5 = arith.constant 0 : index
    %c0_6 = arith.constant 0 : index
    %3 = vector.load %arg6[%c0_5, %c0_6] : memref<1x128xf32, #tpu.memory_space<vmem>>, vector<1x128xf32>
    %4 = arith.extf %1 : vector<14x14x128xbf16> to vector<14x14x128xf32>
    %5 = vector.shape_cast %2 : vector<1x128xf32> to vector<1x1x128xf32>
    %6 = vector.broadcast %5 : vector<1x1x128xf32> to vector<14x14x128xf32>
    %7 = arith.mulf %4, %6 : vector<14x14x128xf32>
    %8 = vector.shape_cast %3 : vector<1x128xf32> to vector<1x1x128xf32>
    %9 = vector.broadcast %8 : vector<1x1x128xf32> to vector<14x14x128xf32>
    %10 = arith.addf %7, %9 : vector<14x14x128xf32>
    %cst = arith.constant 0.000000e+00 : f32
    %11 = vector.broadcast %cst : f32 to vector<14x14x128xf32>
    %12 = arith.maximumf %10, %11 : vector<14x14x128xf32>
    %13 = tpu.iota {dimensions = array<i32: 0>} : vector<14x14x1xi32>
    %14 = tpu.iota {dimensions = array<i32: 1>} : vector<14x14x1xi32>
    %c5_i32 = arith.constant 5 : i32
    %15 = vector.broadcast %c5_i32 : i32 to vector<14x14x1xi32>
    %16 = arith.cmpi sge, %13, %15 : vector<14x14x1xi32>
    %c9_i32 = arith.constant 9 : i32
    %17 = vector.broadcast %c9_i32 : i32 to vector<14x14x1xi32>
    %18 = arith.cmpi slt, %13, %17 : vector<14x14x1xi32>
    %19 = arith.andi %16, %18 : vector<14x14x1xi1>
    %c5_i32_7 = arith.constant 5 : i32
    %20 = vector.broadcast %c5_i32_7 : i32 to vector<14x14x1xi32>
    %21 = arith.cmpi sge, %14, %20 : vector<14x14x1xi32>
    %22 = arith.andi %19, %21 : vector<14x14x1xi1>
    %c9_i32_8 = arith.constant 9 : i32
    %23 = vector.broadcast %c9_i32_8 : i32 to vector<14x14x1xi32>
    %24 = arith.cmpi slt, %14, %23 : vector<14x14x1xi32>
    %25 = arith.andi %22, %24 : vector<14x14x1xi1>
    %cst_9 = arith.constant 0.000000e+00 : f32
    %26 = vector.shape_cast %25 : vector<14x14x1xi1> to vector<14x14x1xi1>
    %27 = vector.broadcast %26 : vector<14x14x1xi1> to vector<14x14x128xi1>
    %28 = vector.broadcast %cst_9 : f32 to vector<14x14x128xf32>
    %29 = arith.select %27, %12, %28 : vector<14x14x128xi1>, vector<14x14x128xf32>
    %30 = arith.truncf %29 : vector<14x14x128xf32> to vector<14x14x128xbf16>
    %cst_10 = arith.constant 0.000000e+00 : f32
    %31 = vector.broadcast %cst_10 : f32 to vector<16x128xf32>
    %32 = vector.extract_strided_slice %30 {offsets = [0, 0, 0], sizes = [14, 4, 128], strides = [1, 1, 1]} : vector<14x14x128xbf16> to vector<14x4x128xbf16>
    %33 = vector.extract_strided_slice %32 {offsets = [0, 0, 0], sizes = [4, 4, 128], strides = [1, 1, 1]} : vector<14x4x128xbf16> to vector<4x4x128xbf16>
    %34 = vector.shape_cast %33 : vector<4x4x128xbf16> to vector<16x128xbf16>
    %35 = vector.extract_strided_slice %32 {offsets = [5, 0, 0], sizes = [4, 4, 128], strides = [1, 1, 1]} : vector<14x4x128xbf16> to vector<4x4x128xbf16>
    %36 = vector.shape_cast %35 : vector<4x4x128xbf16> to vector<16x128xbf16>
    %37 = vector.extract_strided_slice %32 {offsets = [10, 0, 0], sizes = [4, 4, 128], strides = [1, 1, 1]} : vector<14x4x128xbf16> to vector<4x4x128xbf16>
    %38 = vector.shape_cast %37 : vector<4x4x128xbf16> to vector<16x128xbf16>
    %39 = tpu.concatenate %34, %36, %38 in 1 : vector<16x128xbf16>, vector<16x128xbf16>, vector<16x128xbf16> -> vector<16x384xbf16>
    %c0_11 = arith.constant 0 : index
    %c0_12 = arith.constant 0 : index
    %c0_13 = arith.constant 0 : index
    %40 = vector.load %arg3[%c0_11, %c0_12, %c0_13] : memref<3x384x128xbf16, #tpu.memory_space<vmem>>, vector<1x384x128xbf16>
    %41 = vector.shape_cast %40 : vector<1x384x128xbf16> to vector<384x128xbf16>
    %cst_14 = arith.constant dense<0.000000e+00> : vector<16x128xf32>
    %42 = tpu.matmul %39, %41, %cst_14 {dimension_numbers = #tpu.dot_dimension_numbers<[1], [0], [0], [1], [0, 0, 1, 1], [], []>} : vector<16x384xbf16>, vector<384x128xbf16>, vector<16x128xf32> -> vector<16x128xf32>
    %43 = arith.addf %31, %42 : vector<16x128xf32>
    %44 = vector.extract_strided_slice %30 {offsets = [0, 5, 0], sizes = [14, 4, 128], strides = [1, 1, 1]} : vector<14x14x128xbf16> to vector<14x4x128xbf16>
    %45 = vector.extract_strided_slice %44 {offsets = [0, 0, 0], sizes = [4, 4, 128], strides = [1, 1, 1]} : vector<14x4x128xbf16> to vector<4x4x128xbf16>
    %46 = vector.shape_cast %45 : vector<4x4x128xbf16> to vector<16x128xbf16>
    %47 = vector.extract_strided_slice %44 {offsets = [5, 0, 0], sizes = [4, 4, 128], strides = [1, 1, 1]} : vector<14x4x128xbf16> to vector<4x4x128xbf16>
    %48 = vector.shape_cast %47 : vector<4x4x128xbf16> to vector<16x128xbf16>
    %49 = vector.extract_strided_slice %44 {offsets = [10, 0, 0], sizes = [4, 4, 128], strides = [1, 1, 1]} : vector<14x4x128xbf16> to vector<4x4x128xbf16>
    %50 = vector.shape_cast %49 : vector<4x4x128xbf16> to vector<16x128xbf16>
    %51 = tpu.concatenate %46, %48, %50 in 1 : vector<16x128xbf16>, vector<16x128xbf16>, vector<16x128xbf16> -> vector<16x384xbf16>
    %c1 = arith.constant 1 : index
    %c0_15 = arith.constant 0 : index
    %c0_16 = arith.constant 0 : index
    %52 = vector.load %arg3[%c1, %c0_15, %c0_16] : memref<3x384x128xbf16, #tpu.memory_space<vmem>>, vector<1x384x128xbf16>
    %53 = vector.shape_cast %52 : vector<1x384x128xbf16> to vector<384x128xbf16>
    %cst_17 = arith.constant dense<0.000000e+00> : vector<16x128xf32>
    %54 = tpu.matmul %51, %53, %cst_17 {dimension_numbers = #tpu.dot_dimension_numbers<[1], [0], [0], [1], [0, 0, 1, 1], [], []>} : vector<16x384xbf16>, vector<384x128xbf16>, vector<16x128xf32> -> vector<16x128xf32>
    %55 = arith.addf %43, %54 : vector<16x128xf32>
    %56 = vector.extract_strided_slice %30 {offsets = [0, 10, 0], sizes = [14, 4, 128], strides = [1, 1, 1]} : vector<14x14x128xbf16> to vector<14x4x128xbf16>
    %57 = vector.extract_strided_slice %56 {offsets = [0, 0, 0], sizes = [4, 4, 128], strides = [1, 1, 1]} : vector<14x4x128xbf16> to vector<4x4x128xbf16>
    %58 = vector.shape_cast %57 : vector<4x4x128xbf16> to vector<16x128xbf16>
    %59 = vector.extract_strided_slice %56 {offsets = [5, 0, 0], sizes = [4, 4, 128], strides = [1, 1, 1]} : vector<14x4x128xbf16> to vector<4x4x128xbf16>
    %60 = vector.shape_cast %59 : vector<4x4x128xbf16> to vector<16x128xbf16>
    %61 = vector.extract_strided_slice %56 {offsets = [10, 0, 0], sizes = [4, 4, 128], strides = [1, 1, 1]} : vector<14x4x128xbf16> to vector<4x4x128xbf16>
    %62 = vector.shape_cast %61 : vector<4x4x128xbf16> to vector<16x128xbf16>
    %63 = tpu.concatenate %58, %60, %62 in 1 : vector<16x128xbf16>, vector<16x128xbf16>, vector<16x128xbf16> -> vector<16x384xbf16>
    %c2 = arith.constant 2 : index
    %c0_18 = arith.constant 0 : index
    %c0_19 = arith.constant 0 : index
    %64 = vector.load %arg3[%c2, %c0_18, %c0_19] : memref<3x384x128xbf16, #tpu.memory_space<vmem>>, vector<1x384x128xbf16>
    %65 = vector.shape_cast %64 : vector<1x384x128xbf16> to vector<384x128xbf16>
    %cst_20 = arith.constant dense<0.000000e+00> : vector<16x128xf32>
    %66 = tpu.matmul %63, %65, %cst_20 {dimension_numbers = #tpu.dot_dimension_numbers<[1], [0], [0], [1], [0, 0, 1, 1], [], []>} : vector<16x384xbf16>, vector<384x128xbf16>, vector<16x128xf32> -> vector<16x128xf32>
    %67 = arith.addf %55, %66 : vector<16x128xf32>
    %c0_21 = arith.constant 0 : index
    %c0_22 = arith.constant 0 : index
    %68 = vector.load %arg4[%c0_21, %c0_22] : memref<1x128xf32, #tpu.memory_space<vmem>>, vector<1x128xf32>
    %69 = vector.broadcast %68 : vector<1x128xf32> to vector<16x128xf32>
    %70 = arith.addf %67, %69 : vector<16x128xf32>
    %71 = vector.shape_cast %70 : vector<16x128xf32> to vector<1x4x4x128xf32>
    %72 = arith.truncf %71 : vector<1x4x4x128xf32> to vector<1x4x4x128xbf16>
    %c0_23 = arith.constant 0 : index
    %c0_24 = arith.constant 0 : index
    %c0_25 = arith.constant 0 : index
    %c0_26 = arith.constant 0 : index
    %73 = vector.load %arg7[%c0_23, %c0_24, %c0_25, %c0_26] : memref<1x4x4x128xbf16, #tpu.memory_space<vmem>>, vector<1x4x4x128xbf16>
    tpu.vector_store %arg7[%c0_23, %c0_24, %c0_25, %c0_26], %72 {strides = array<i32>} : memref<1x4x4x128xbf16, #tpu.memory_space<vmem>>, vector<1x4x4x128xbf16>,
    %cst_27 = arith.constant dense<0.000000e+00> : vector<128xf32>
    %74 = vector.multi_reduction <add>, %70, %cst_27 [0] : vector<16x128xf32> to vector<128xf32>
    %75 = vector.shape_cast %74 : vector<128xf32> to vector<1x128xf32>
    %76 = vector.shape_cast %75 : vector<1x128xf32> to vector<1x1x128xf32>
    %c0_28 = arith.constant 0 : index
    %c0_29 = arith.constant 0 : index
    %c0_30 = arith.constant 0 : index
    %77 = vector.load %arg8[%c0_28, %c0_29, %c0_30] : memref<1x1x128xf32, #tpu.memory_space<vmem>>, vector<1x1x128xf32>
    tpu.vector_store %arg8[%c0_28, %c0_29, %c0_30], %76 {strides = array<i32>} : memref<1x1x128xf32, #tpu.memory_space<vmem>>, vector<1x1x128xf32>,
    %78 = arith.mulf %70, %70 : vector<16x128xf32>
    %cst_31 = arith.constant dense<0.000000e+00> : vector<128xf32>
    %79 = vector.multi_reduction <add>, %78, %cst_31 [0] : vector<16x128xf32> to vector<128xf32>
    %80 = vector.shape_cast %79 : vector<128xf32> to vector<1x128xf32>
    %81 = vector.shape_cast %80 : vector<1x128xf32> to vector<1x1x128xf32>
    %c0_32 = arith.constant 0 : index
    %c0_33 = arith.constant 0 : index
    %c0_34 = arith.constant 0 : index
    %82 = vector.load %arg9[%c0_32, %c0_33, %c0_34] : memref<1x1x128xf32, #tpu.memory_space<vmem>>, vector<1x1x128xf32>
    tpu.vector_store %arg9[%c0_32, %c0_33, %c0_34], %81 {strides = array<i32>} : memref<1x1x128xf32, #tpu.memory_space<vmem>>, vector<1x1x128xf32>,
    return
  }
  func.func @transform_0(%arg0: i32, %arg1: i32) -> (i32, i32, i32, i32) {
    %c0_i32 = arith.constant 0 : i32
    %c0_i32_0 = arith.constant 0 : i32
    %c0_i32_1 = arith.constant 0 : i32
    %c0_i32_2 = arith.constant 0 : i32
    return %arg1, %c0_i32, %c0_i32_0, %c0_i32_1 : i32, i32, i32, i32
  }
  func.func @transform_1(%arg0: i32, %arg1: i32) -> (i32, i32, i32) {
    %c0_i32 = arith.constant 0 : i32
    %c0_i32_0 = arith.constant 0 : i32
    %c0_i32_1 = arith.constant 0 : i32
    return %c0_i32, %c0_i32_0, %arg0 : i32, i32, i32
  }
  func.func @transform_2(%arg0: i32, %arg1: i32) -> (i32, i32) {
    %c0_i32 = arith.constant 0 : i32
    %c0_i32_0 = arith.constant 0 : i32
    return %c0_i32, %arg0 : i32, i32
  }
  func.func @transform_3(%arg0: i32, %arg1: i32) -> (i32, i32) {
    %c0_i32 = arith.constant 0 : i32
    %c0_i32_0 = arith.constant 0 : i32
    %c0_i32_1 = arith.constant 0 : i32
    return %c0_i32, %c0_i32_0 : i32, i32
  }
  func.func @transform_4(%arg0: i32, %arg1: i32) -> (i32, i32) {
    %c0_i32 = arith.constant 0 : i32
    %c0_i32_0 = arith.constant 0 : i32
    %c0_i32_1 = arith.constant 0 : i32
    return %c0_i32, %c0_i32_0 : i32, i32
  }
  func.func @transform_5(%arg0: i32, %arg1: i32) -> (i32, i32, i32, i32) {
    %c0_i32 = arith.constant 0 : i32
    %c0_i32_0 = arith.constant 0 : i32
    %c0_i32_1 = arith.constant 0 : i32
    return %arg1, %c0_i32, %c0_i32_0, %arg0 : i32, i32, i32, i32
  }
  func.func @transform_6(%arg0: i32, %arg1: i32) -> (i32, i32, i32) {
    %c0_i32 = arith.constant 0 : i32
    %c0_i32_0 = arith.constant 0 : i32
    return %arg1, %c0_i32, %arg0 : i32, i32, i32
  }
  func.func @transform_7(%arg0: i32, %arg1: i32) -> (i32, i32, i32) {
    %c0_i32 = arith.constant 0 : i32
    %c0_i32_0 = arith.constant 0 : i32
    return %arg1, %c0_i32, %arg0 : i32, i32, i32
  }
}

module attributes {stable_mosaic.version = 11 : i64} {
  func.func @_outconv_kernel(%arg0: i32, %arg1: memref<1x6x6x128xbf16, #tpu.memory_space<vmem>>, %arg2: memref<3x384x128xbf16, #tpu.memory_space<vmem>>, %arg3: memref<1x128xf32, #tpu.memory_space<vmem>>, %arg4: memref<1x128xf32, #tpu.memory_space<vmem>>, %arg5: memref<1x128xf32, #tpu.memory_space<vmem>>, %arg6: memref<1x4x4x128xf32, #tpu.memory_space<vmem>>) attributes {dimension_semantics = [#tpu.dimension_semantics<parallel>], iteration_bounds = array<i64: 2>, scalar_prefetch = 0 : i64, scratch_operands = 0 : i64, tpu.core_type = #tpu.core_type<tc>, window_params = [{transform_indices = @transform_0, window_bounds = array<i64: 1, 6, 6, 128>}, {pipeline_mode = #tpu.pipeline_mode<synchronous>, transform_indices = @transform_1, window_bounds = array<i64: 3, 384, 128>}, {pipeline_mode = #tpu.pipeline_mode<synchronous>, transform_indices = @transform_2, window_bounds = array<i64: 1, 128>}, {pipeline_mode = #tpu.pipeline_mode<synchronous>, transform_indices = @transform_3, window_bounds = array<i64: 1, 128>}, {pipeline_mode = #tpu.pipeline_mode<synchronous>, transform_indices = @transform_4, window_bounds = array<i64: 1, 128>}, {transform_indices = @transform_5, window_bounds = array<i64: 1, 4, 4, 128>}]} {
    %c0 = arith.constant 0 : index
    %c0_0 = arith.constant 0 : index
    %c0_1 = arith.constant 0 : index
    %c0_2 = arith.constant 0 : index
    %0 = vector.load %arg1[%c0, %c0_0, %c0_1, %c0_2] : memref<1x6x6x128xbf16, #tpu.memory_space<vmem>>, vector<1x6x6x128xbf16>
    %1 = vector.shape_cast %0 : vector<1x6x6x128xbf16> to vector<6x6x128xbf16>
    %c0_3 = arith.constant 0 : index
    %c0_4 = arith.constant 0 : index
    %2 = vector.load %arg4[%c0_3, %c0_4] : memref<1x128xf32, #tpu.memory_space<vmem>>, vector<1x128xf32>
    %c0_5 = arith.constant 0 : index
    %c0_6 = arith.constant 0 : index
    %3 = vector.load %arg5[%c0_5, %c0_6] : memref<1x128xf32, #tpu.memory_space<vmem>>, vector<1x128xf32>
    %4 = arith.extf %1 : vector<6x6x128xbf16> to vector<6x6x128xf32>
    %5 = vector.shape_cast %2 : vector<1x128xf32> to vector<1x1x128xf32>
    %6 = vector.broadcast %5 : vector<1x1x128xf32> to vector<6x6x128xf32>
    %7 = arith.mulf %4, %6 : vector<6x6x128xf32>
    %8 = vector.shape_cast %3 : vector<1x128xf32> to vector<1x1x128xf32>
    %9 = vector.broadcast %8 : vector<1x1x128xf32> to vector<6x6x128xf32>
    %10 = arith.addf %7, %9 : vector<6x6x128xf32>
    %cst = arith.constant 0.000000e+00 : f32
    %11 = vector.broadcast %cst : f32 to vector<6x6x128xf32>
    %12 = arith.maximumf %10, %11 : vector<6x6x128xf32>
    %13 = tpu.iota {dimensions = array<i32: 0>} : vector<6x6x1xi32>
    %14 = tpu.iota {dimensions = array<i32: 1>} : vector<6x6x1xi32>
    %c1_i32 = arith.constant 1 : i32
    %15 = vector.broadcast %c1_i32 : i32 to vector<6x6x1xi32>
    %16 = arith.cmpi sge, %13, %15 : vector<6x6x1xi32>
    %c5_i32 = arith.constant 5 : i32
    %17 = vector.broadcast %c5_i32 : i32 to vector<6x6x1xi32>
    %18 = arith.cmpi slt, %13, %17 : vector<6x6x1xi32>
    %19 = arith.andi %16, %18 : vector<6x6x1xi1>
    %c1_i32_7 = arith.constant 1 : i32
    %20 = vector.broadcast %c1_i32_7 : i32 to vector<6x6x1xi32>
    %21 = arith.cmpi sge, %14, %20 : vector<6x6x1xi32>
    %22 = arith.andi %19, %21 : vector<6x6x1xi1>
    %c5_i32_8 = arith.constant 5 : i32
    %23 = vector.broadcast %c5_i32_8 : i32 to vector<6x6x1xi32>
    %24 = arith.cmpi slt, %14, %23 : vector<6x6x1xi32>
    %25 = arith.andi %22, %24 : vector<6x6x1xi1>
    %cst_9 = arith.constant 0.000000e+00 : f32
    %26 = vector.shape_cast %25 : vector<6x6x1xi1> to vector<6x6x1xi1>
    %27 = vector.broadcast %26 : vector<6x6x1xi1> to vector<6x6x128xi1>
    %28 = vector.broadcast %cst_9 : f32 to vector<6x6x128xf32>
    %29 = arith.select %27, %12, %28 : vector<6x6x128xi1>, vector<6x6x128xf32>
    %30 = arith.truncf %29 : vector<6x6x128xf32> to vector<6x6x128xbf16>
    %cst_10 = arith.constant 0.000000e+00 : f32
    %31 = vector.broadcast %cst_10 : f32 to vector<16x128xf32>
    %32 = vector.extract_strided_slice %30 {offsets = [0, 0, 0], sizes = [6, 4, 128], strides = [1, 1, 1]} : vector<6x6x128xbf16> to vector<6x4x128xbf16>
    %33 = vector.extract_strided_slice %32 {offsets = [0, 0, 0], sizes = [4, 4, 128], strides = [1, 1, 1]} : vector<6x4x128xbf16> to vector<4x4x128xbf16>
    %34 = vector.shape_cast %33 : vector<4x4x128xbf16> to vector<16x128xbf16>
    %35 = vector.extract_strided_slice %32 {offsets = [1, 0, 0], sizes = [4, 4, 128], strides = [1, 1, 1]} : vector<6x4x128xbf16> to vector<4x4x128xbf16>
    %36 = vector.shape_cast %35 : vector<4x4x128xbf16> to vector<16x128xbf16>
    %37 = vector.extract_strided_slice %32 {offsets = [2, 0, 0], sizes = [4, 4, 128], strides = [1, 1, 1]} : vector<6x4x128xbf16> to vector<4x4x128xbf16>
    %38 = vector.shape_cast %37 : vector<4x4x128xbf16> to vector<16x128xbf16>
    %39 = tpu.concatenate %34, %36, %38 in 1 : vector<16x128xbf16>, vector<16x128xbf16>, vector<16x128xbf16> -> vector<16x384xbf16>
    %c0_11 = arith.constant 0 : index
    %c0_12 = arith.constant 0 : index
    %c0_13 = arith.constant 0 : index
    %40 = vector.load %arg2[%c0_11, %c0_12, %c0_13] : memref<3x384x128xbf16, #tpu.memory_space<vmem>>, vector<1x384x128xbf16>
    %41 = vector.shape_cast %40 : vector<1x384x128xbf16> to vector<384x128xbf16>
    %cst_14 = arith.constant dense<0.000000e+00> : vector<16x128xf32>
    %42 = tpu.matmul %39, %41, %cst_14 {dimension_numbers = #tpu.dot_dimension_numbers<[1], [0], [0], [1], [0, 0, 1, 1], [], []>} : vector<16x384xbf16>, vector<384x128xbf16>, vector<16x128xf32> -> vector<16x128xf32>
    %43 = arith.addf %31, %42 : vector<16x128xf32>
    %44 = vector.extract_strided_slice %30 {offsets = [0, 1, 0], sizes = [6, 4, 128], strides = [1, 1, 1]} : vector<6x6x128xbf16> to vector<6x4x128xbf16>
    %45 = vector.extract_strided_slice %44 {offsets = [0, 0, 0], sizes = [4, 4, 128], strides = [1, 1, 1]} : vector<6x4x128xbf16> to vector<4x4x128xbf16>
    %46 = vector.shape_cast %45 : vector<4x4x128xbf16> to vector<16x128xbf16>
    %47 = vector.extract_strided_slice %44 {offsets = [1, 0, 0], sizes = [4, 4, 128], strides = [1, 1, 1]} : vector<6x4x128xbf16> to vector<4x4x128xbf16>
    %48 = vector.shape_cast %47 : vector<4x4x128xbf16> to vector<16x128xbf16>
    %49 = vector.extract_strided_slice %44 {offsets = [2, 0, 0], sizes = [4, 4, 128], strides = [1, 1, 1]} : vector<6x4x128xbf16> to vector<4x4x128xbf16>
    %50 = vector.shape_cast %49 : vector<4x4x128xbf16> to vector<16x128xbf16>
    %51 = tpu.concatenate %46, %48, %50 in 1 : vector<16x128xbf16>, vector<16x128xbf16>, vector<16x128xbf16> -> vector<16x384xbf16>
    %c1 = arith.constant 1 : index
    %c0_15 = arith.constant 0 : index
    %c0_16 = arith.constant 0 : index
    %52 = vector.load %arg2[%c1, %c0_15, %c0_16] : memref<3x384x128xbf16, #tpu.memory_space<vmem>>, vector<1x384x128xbf16>
    %53 = vector.shape_cast %52 : vector<1x384x128xbf16> to vector<384x128xbf16>
    %cst_17 = arith.constant dense<0.000000e+00> : vector<16x128xf32>
    %54 = tpu.matmul %51, %53, %cst_17 {dimension_numbers = #tpu.dot_dimension_numbers<[1], [0], [0], [1], [0, 0, 1, 1], [], []>} : vector<16x384xbf16>, vector<384x128xbf16>, vector<16x128xf32> -> vector<16x128xf32>
    %55 = arith.addf %43, %54 : vector<16x128xf32>
    %56 = vector.extract_strided_slice %30 {offsets = [0, 2, 0], sizes = [6, 4, 128], strides = [1, 1, 1]} : vector<6x6x128xbf16> to vector<6x4x128xbf16>
    %57 = vector.extract_strided_slice %56 {offsets = [0, 0, 0], sizes = [4, 4, 128], strides = [1, 1, 1]} : vector<6x4x128xbf16> to vector<4x4x128xbf16>
    %58 = vector.shape_cast %57 : vector<4x4x128xbf16> to vector<16x128xbf16>
    %59 = vector.extract_strided_slice %56 {offsets = [1, 0, 0], sizes = [4, 4, 128], strides = [1, 1, 1]} : vector<6x4x128xbf16> to vector<4x4x128xbf16>
    %60 = vector.shape_cast %59 : vector<4x4x128xbf16> to vector<16x128xbf16>
    %61 = vector.extract_strided_slice %56 {offsets = [2, 0, 0], sizes = [4, 4, 128], strides = [1, 1, 1]} : vector<6x4x128xbf16> to vector<4x4x128xbf16>
    %62 = vector.shape_cast %61 : vector<4x4x128xbf16> to vector<16x128xbf16>
    %63 = tpu.concatenate %58, %60, %62 in 1 : vector<16x128xbf16>, vector<16x128xbf16>, vector<16x128xbf16> -> vector<16x384xbf16>
    %c2 = arith.constant 2 : index
    %c0_18 = arith.constant 0 : index
    %c0_19 = arith.constant 0 : index
    %64 = vector.load %arg2[%c2, %c0_18, %c0_19] : memref<3x384x128xbf16, #tpu.memory_space<vmem>>, vector<1x384x128xbf16>
    %65 = vector.shape_cast %64 : vector<1x384x128xbf16> to vector<384x128xbf16>
    %cst_20 = arith.constant dense<0.000000e+00> : vector<16x128xf32>
    %66 = tpu.matmul %63, %65, %cst_20 {dimension_numbers = #tpu.dot_dimension_numbers<[1], [0], [0], [1], [0, 0, 1, 1], [], []>} : vector<16x384xbf16>, vector<384x128xbf16>, vector<16x128xf32> -> vector<16x128xf32>
    %67 = arith.addf %55, %66 : vector<16x128xf32>
    %c0_21 = arith.constant 0 : index
    %c0_22 = arith.constant 0 : index
    %68 = vector.load %arg3[%c0_21, %c0_22] : memref<1x128xf32, #tpu.memory_space<vmem>>, vector<1x128xf32>
    %69 = vector.broadcast %68 : vector<1x128xf32> to vector<16x128xf32>
    %70 = arith.addf %67, %69 : vector<16x128xf32>
    %71 = arith.negf %70 : vector<16x128xf32>
    %72 = math.exp %71 : vector<16x128xf32>
    %cst_23 = arith.constant 1.000000e+00 : f32
    %73 = vector.broadcast %cst_23 : f32 to vector<16x128xf32>
    %74 = arith.addf %73, %72 : vector<16x128xf32>
    %75 = arith.divf %73, %74 : vector<16x128xf32>
    %76 = vector.shape_cast %75 : vector<16x128xf32> to vector<1x4x4x128xf32>
    %c0_24 = arith.constant 0 : index
    %c0_25 = arith.constant 0 : index
    %c0_26 = arith.constant 0 : index
    %c0_27 = arith.constant 0 : index
    %77 = vector.load %arg6[%c0_24, %c0_25, %c0_26, %c0_27] : memref<1x4x4x128xf32, #tpu.memory_space<vmem>>, vector<1x4x4x128xf32>
    tpu.vector_store %arg6[%c0_24, %c0_25, %c0_26, %c0_27], %76 {strides = array<i32>} : memref<1x4x4x128xf32, #tpu.memory_space<vmem>>, vector<1x4x4x128xf32>,
    return
  }
  func.func @transform_0(%arg0: i32) -> (i32, i32, i32, i32) {
    %c0_i32 = arith.constant 0 : i32
    %c0_i32_0 = arith.constant 0 : i32
    %c0_i32_1 = arith.constant 0 : i32
    %c0_i32_2 = arith.constant 0 : i32
    return %arg0, %c0_i32, %c0_i32_0, %c0_i32_1 : i32, i32, i32, i32
  }
  func.func @transform_1(%arg0: i32) -> (i32, i32, i32) {
    %c0_i32 = arith.constant 0 : i32
    %c0_i32_0 = arith.constant 0 : i32
    %c0_i32_1 = arith.constant 0 : i32
    %c0_i32_2 = arith.constant 0 : i32
    return %c0_i32, %c0_i32_0, %c0_i32_1 : i32, i32, i32
  }
  func.func @transform_2(%arg0: i32) -> (i32, i32) {
    %c0_i32 = arith.constant 0 : i32
    %c0_i32_0 = arith.constant 0 : i32
    %c0_i32_1 = arith.constant 0 : i32
    return %c0_i32, %c0_i32_0 : i32, i32
  }
  func.func @transform_3(%arg0: i32) -> (i32, i32) {
    %c0_i32 = arith.constant 0 : i32
    %c0_i32_0 = arith.constant 0 : i32
    %c0_i32_1 = arith.constant 0 : i32
    return %c0_i32, %c0_i32_0 : i32, i32
  }
  func.func @transform_4(%arg0: i32) -> (i32, i32) {
    %c0_i32 = arith.constant 0 : i32
    %c0_i32_0 = arith.constant 0 : i32
    %c0_i32_1 = arith.constant 0 : i32
    return %c0_i32, %c0_i32_0 : i32, i32
  }
  func.func @transform_5(%arg0: i32) -> (i32, i32, i32, i32) {
    %c0_i32 = arith.constant 0 : i32
    %c0_i32_0 = arith.constant 0 : i32
    %c0_i32_1 = arith.constant 0 : i32
    %c0_i32_2 = arith.constant 0 : i32
    return %arg0, %c0_i32, %c0_i32_0, %c0_i32_1 : i32, i32, i32, i32
  }
}

</mosaic_0001>

<llo_original>
// kernel: global_net_forward.7
$region0: #{global_net_forward.7}
  #allocation0 [shape = 'u32[]', space=smem, size = 0x4, offset = 0x4, fixed_abs, tag = 'smem constant byte address 0x4 - core index']
  #allocation1 [shape = 'u32[144,128]{1,0:T(1,128)}', space=vmem, size = 0x12000, scoped, tag = 'internal scratch']
  %s0 = inlined_call_operand.vmem [shape: bf16[2,8,8,128], index: 0, kind: input, shape index: {}]
  %s1 = inlined_call_operand.vmem [shape: bf16[3,384,128], index: 1, kind: input, shape index: {}]
  %s2 = inlined_call_operand.vmem [shape: f32[1,128], index: 2, kind: input, shape index: {}]
  %s3 = inlined_call_operand.vmem [shape: f32[1,128], index: 3, kind: input, shape index: {}]
  %s4 = inlined_call_operand.vmem [shape: f32[1,128], index: 4, kind: input, shape index: {}]
  %s5 = inlined_call_operand.vmem [shape: bf16[2,4,4,128], index: 5, kind: output, shape index: {0}]
  %s6 = inlined_call_operand.vmem [shape: f32[2,1,128], index: 6, kind: output, shape index: {1}]
  %s7 = inlined_call_operand.vmem [shape: f32[2,1,128], index: 7, kind: output, shape index: {2}]
  %8 = xla_tuple %s5, %s6, %s7
  %s9 = sld [smem:[#allocation0]]
  $region69: #{global_net_forward.7} parent=0
    _
  %s11 = ssub.s32 1, %s9
  %s12 = scalar_select 0, %s11, %s9
  loop: start=0, step=1, limit=4
  $region2: #{global_net_forward.7} parent=0 // loop_pre_header
    _
  $region3: #{global_net_forward.7} parent=0 // loop_header
    %s14 = sphi 0, %s18
    %p15 = scmp.ge.s32.totalorder %s14, 4
    %s21 = sphi 0, %s33
    %s22 = sphi 0, %s29
    %s23 = sphi 0, %s21
    %s24 = sphi 0, %s22
    %s25 = sphi 0, %s23
    %s26 = sphi 0, %s24
    %s36 = sphi 0, %s38
    %s39 = sphi 0, %s36
    %s40 = sphi 0, %s39
    %s56 = sphi 0, %s40
    %s62 = sphi 0, %s64
    %s65 = sphi 0, %s62
    %s66 = sphi 0, %s65
    %s82 = sphi 0, %s66
    %s88 = sphi 0, %s90
    %s91 = sphi 0, %s88
    %s92 = sphi 0, %s91
    %s108 = sphi 0, %s92
    %s112 = sphi 0, %s112
    %s114 = sphi 0, %s112
    %s115 = sphi 0, %s114
    %s129 = sphi 0, %s115
    %s133 = sphi 0, %s133
    %s135 = sphi 0, %s133
    %s136 = sphi 0, %s135
    %s150 = sphi 0, %s136
    %s158 = sphi 0, %s160
    %s161 = sphi 0, %s158
    %s162 = sphi 0, %s161
    %s178 = sphi 0, %s162
    %s186 = sphi 0, %s188
    %s189 = sphi 0, %s186
    %s190 = sphi 0, %s189
    %s206 = sphi 0, %s190
    %s214 = sphi 0, %s216
    %s217 = sphi 0, %s214
    %s218 = sphi 0, %s217
    %s234 = sphi 0, %s218
  $region4: #{global_net_forward.7} parent=0 // loop_header_branch
    %17 = sbr.rel (%p15) target = $region8
  $region5: #{global_net_forward.7} parent=0 // loop_body
    %s19 = ssub.s32 %s14, 1
    %s20 = ssub.s32 %s14, 2
    %s27 = sadd.s32 1, %s22
    %p28 = scmp.ge.s32.totalorder %s27, 2
    %s29 = scalar_select %p28, 0, %s27
    %s30 = sadd.s32 1, %s21
    %s31 = scalar_select %p28, %s30, %s21
    %p32 = scmp.ge.s32.totalorder %s31, 1
    %s33 = scalar_select %p32, 0, %s31
    %s34 = ssub.s32 %s22, %s29
    %p35 = scmp.eq.s32.totalorder %s34, 0
    %s37 = sadd.s32 %s36, 1
    %s38 = scalar_select %p35, %s36, %s37
    %p41 = pneg %p35
    %p42 = scmp.eq.s32.totalorder %s14, 1
    %p43 = por %p41, %p42
    %p44 = scmp.ne.s32.totalorder %s36, %s39
    %p45 = scmp.eq.s32.totalorder %s14, 0
    %p46 = por %p44, %p45
    %p47 = scmp.ne.s32.totalorder %s36, %s39
    %p48 = scmp.eq.s32.totalorder %s19, 1
    %p49 = por %p47, %p48
    %p50 = scmp.ne.s32.totalorder %s39, %s40
    %p51 = scmp.eq.s32.totalorder %s19, 0
    %p52 = por %p50, %p51
    %p53 = scmp.ne.s32.totalorder %s39, %s40
    %p54 = scmp.eq.s32.totalorder %s20, 1
    %p55 = por %p53, %p54
    %p57 = scmp.ne.s32.totalorder %s40, %s56
    %p58 = scmp.eq.s32.totalorder %s20, 0
    %p59 = por %p57, %p58
    %s60 = ssub.s32 %s21, %s33
    %p61 = scmp.eq.s32.totalorder %s60, 0
    %s63 = sadd.s32 %s62, 1
    %s64 = scalar_select %p61, %s62, %s63
    %p67 = pneg %p61
    %p68 = scmp.eq.s32.totalorder %s14, 1
    %p69 = por %p67, %p68
    %p70 = scmp.ne.s32.totalorder %s62, %s65
    %p71 = scmp.eq.s32.totalorder %s14, 0
    %p72 = por %p70, %p71
    %p73 = scmp.ne.s32.totalorder %s62, %s65
    %p74 = scmp.eq.s32.totalorder %s19, 1
    %p75 = por %p73, %p74
    %p76 = scmp.ne.s32.totalorder %s65, %s66
    %p77 = scmp.eq.s32.totalorder %s19, 0
    %p78 = por %p76, %p77
    %p79 = scmp.ne.s32.totalorder %s65, %s66
    %p80 = scmp.eq.s32.totalorder %s20, 1
    %p81 = por %p79, %p80
    %p83 = scmp.ne.s32.totalorder %s66, %s82
    %p84 = scmp.eq.s32.totalorder %s20, 0
    %p85 = por %p83, %p84
    %s86 = ssub.s32 %s21, %s33
    %p87 = scmp.eq.s32.totalorder %s86, 0
    %s89 = sadd.s32 %s88, 1
    %s90 = scalar_select %p87, %s88, %s89
    %p93 = pneg %p87
    %p94 = scmp.eq.s32.totalorder %s14, 1
    %p95 = por %p93, %p94
    %p96 = scmp.ne.s32.totalorder %s88, %s91
    %p97 = scmp.eq.s32.totalorder %s14, 0
    %p98 = por %p96, %p97
    %p99 = scmp.ne.s32.totalorder %s88, %s91
    %p100 = scmp.eq.s32.totalorder %s19, 1
    %p101 = por %p99, %p100
    %p102 = scmp.ne.s32.totalorder %s91, %s92
    %p103 = scmp.eq.s32.totalorder %s19, 0
    %p104 = por %p102, %p103
    %p105 = scmp.ne.s32.totalorder %s91, %s92
    %p106 = scmp.eq.s32.totalorder %s20, 1
    %p107 = por %p105, %p106
    %p109 = scmp.ne.s32.totalorder %s92, %s108
    %p110 = scmp.eq.s32.totalorder %s20, 0
    %p111 = por %p109, %p110
    %s113 = sadd.s32 %s112, 1
    %p116 = scmp.eq.s32.totalorder %s14, 1
    %p117 = scmp.ne.s32.totalorder %s112, %s114
    %p118 = scmp.eq.s32.totalorder %s14, 0
    %p119 = por %p117, %p118
    %p120 = scmp.ne.s32.totalorder %s112, %s114
    %p121 = scmp.eq.s32.totalorder %s19, 1
    %p122 = por %p120, %p121
    %p123 = scmp.ne.s32.totalorder %s114, %s115
    %p124 = scmp.eq.s32.totalorder %s19, 0
    %p125 = por %p123, %p124
    %p126 = scmp.ne.s32.totalorder %s114, %s115
    %p127 = scmp.eq.s32.totalorder %s20, 1
    %p128 = por %p126, %p127
    %p130 = scmp.ne.s32.totalorder %s115, %s129
    %p131 = scmp.eq.s32.totalorder %s20, 0
    %p132 = por %p130, %p131
    %s134 = sadd.s32 %s133, 1
    %p137 = scmp.eq.s32.totalorder %s14, 1
    %p138 = scmp.ne.s32.totalorder %s133, %s135
    %p139 = scmp.eq.s32.totalorder %s14, 0
    %p140 = por %p138, %p139
    %p141 = scmp.ne.s32.totalorder %s133, %s135
    %p142 = scmp.eq.s32.totalorder %s19, 1
    %p143 = por %p141, %p142
    %p144 = scmp.ne.s32.totalorder %s135, %s136
    %p145 = scmp.eq.s32.totalorder %s19, 0
    %p146 = por %p144, %p145
    %p147 = scmp.ne.s32.totalorder %s135, %s136
    %p148 = scmp.eq.s32.totalorder %s20, 1
    %p149 = por %p147, %p148
    %p151 = scmp.ne.s32.totalorder %s136, %s150
    %p152 = scmp.eq.s32.totalorder %s20, 0
    %p153 = por %p151, %p152
    %s154 = ssub.s32 %s22, %s29
    %s155 = ssub.s32 %s21, %s33
    %s156 = sor.u32 %s154, %s155
    %p157 = scmp.eq.s32.totalorder %s156, 0
    %s159 = sadd.s32 %s158, 1
    %s160 = scalar_select %p157, %s158, %s159
    %p163 = pneg %p157
    %p164 = scmp.eq.s32.totalorder %s14, 1
    %p165 = por %p163, %p164
    %p166 = scmp.ne.s32.totalorder %s158, %s161
    %p167 = scmp.eq.s32.totalorder %s14, 0
    %p168 = por %p166, %p167
    %p169 = scmp.ne.s32.totalorder %s158, %s161
    %p170 = scmp.eq.s32.totalorder %s19, 1
    %p171 = por %p169, %p170
    %p172 = scmp.ne.s32.totalorder %s161, %s162
    %p173 = scmp.eq.s32.totalorder %s19, 0
    %p174 = por %p172, %p173
    %p175 = scmp.ne.s32.totalorder %s161, %s162
    %p176 = scmp.eq.s32.totalorder %s20, 1
    %p177 = por %p175, %p176
    %p179 = scmp.ne.s32.totalorder %s162, %s178
    %p180 = scmp.eq.s32.totalorder %s20, 0
    %p181 = por %p179, %p180
    %s182 = ssub.s32 %s22, %s29
    %s183 = ssub.s32 %s21, %s33
    %s184 = sor.u32 %s182, %s183
    %p185 = scmp.eq.s32.totalorder %s184, 0
    %s187 = sadd.s32 %s186, 1
    %s188 = scalar_select %p185, %s186, %s187
    %p191 = pneg %p185
    %p192 = scmp.eq.s32.totalorder %s14, 1
    %p193 = por %p191, %p192
    %p194 = scmp.ne.s32.totalorder %s186, %s189
    %p195 = scmp.eq.s32.totalorder %s14, 0
    %p196 = por %p194, %p195
    %p197 = scmp.ne.s32.totalorder %s186, %s189
    %p198 = scmp.eq.s32.totalorder %s19, 1
    %p199 = por %p197, %p198
    %p200 = scmp.ne.s32.totalorder %s189, %s190
    %p201 = scmp.eq.s32.totalorder %s19, 0
    %p202 = por %p200, %p201
    %p203 = scmp.ne.s32.totalorder %s189, %s190
    %p204 = scmp.eq.s32.totalorder %s20, 1
    %p205 = por %p203, %p204
    %p207 = scmp.ne.s32.totalorder %s190, %s206
    %p208 = scmp.eq.s32.totalorder %s20, 0
    %p209 = por %p207, %p208
    %s210 = ssub.s32 %s22, %s29
    %s211 = ssub.s32 %s21, %s33
    %s212 = sor.u32 %s210, %s211
    %p213 = scmp.eq.s32.totalorder %s212, 0
    %s215 = sadd.s32 %s214, 1
    %s216 = scalar_select %p213, %s214, %s215
    %p219 = pneg %p213
    %p220 = scmp.eq.s32.totalorder %s14, 1
    %p221 = por %p219, %p220
    %p222 = scmp.ne.s32.totalorder %s214, %s217
    %p223 = scmp.eq.s32.totalorder %s14, 0
    %p224 = por %p222, %p223
    %p225 = scmp.ne.s32.totalorder %s214, %s217
    %p226 = scmp.eq.s32.totalorder %s19, 1
    %p227 = por %p225, %p226
    %p228 = scmp.ne.s32.totalorder %s217, %s218
    %p229 = scmp.eq.s32.totalorder %s19, 0
    %p230 = por %p228, %p229
    %p231 = scmp.ne.s32.totalorder %s217, %s218
    %p232 = scmp.eq.s32.totalorder %s20, 1
    %p233 = por %p231, %p232
    %p235 = scmp.ne.s32.totalorder %s218, %s234
    %p236 = scmp.eq.s32.totalorder %s20, 0
    %p237 = por %p235, %p236
    %p238 = scmp.le.s32.totalorder 1, %s14
    %p239 = scmp.lt.s32.totalorder %s14, 3
    %p240 = pnand %p238, %p239
    %p241 = pneg %p240
    // Predicated region
    $region9: #{global_net_forward.7} parent=5 // pred_check
      _
    $region10: #{global_net_forward.7} parent=5 // pred_check_branch
      %243 = sbr.rel (%p240) target = $region12
    $region11: #{global_net_forward.7} parent=5 // pred_region
      %s244 = ssub.s32 %s14, 1
      // Predicated region
      $region13: #{global_net_forward.7} parent=11 // pred_check
        %p245 = pneg %p78
      $region14: #{global_net_forward.7} parent=11 // pred_check_branch
        %247 = sbr.rel (%p245) target = $region16
      $region15: #{global_net_forward.7} parent=11 // pred_region
        %p248 = scmp.lt.s32.totalorder %s23, 0
        %s249 = scalar_select %p248, %s23, 0
        %s250 = smul.addr %s249, 4
        %s251 = scalar_lea.vmem %s1, %s250
      $region16: #{global_net_forward.7} parent=11 // pred_fallthru
        _
      // Predicated region
      $region17: #{global_net_forward.7} parent=11 // pred_check
        %p252 = pneg %p104
      $region18: #{global_net_forward.7} parent=11 // pred_check_branch
        %254 = sbr.rel (%p252) target = $region20
      $region19: #{global_net_forward.7} parent=11 // pred_region
        %p255 = scmp.lt.s32.totalorder %s23, 0
        %s256 = scalar_select %p255, %s23, 0
        %s257 = scalar_lea.vmem %s2, %s256
      $region20: #{global_net_forward.7} parent=11 // pred_fallthru
        _
      // Predicated region
      $region21: #{global_net_forward.7} parent=11 // pred_check
        %p258 = pneg %p125
      $region22: #{global_net_forward.7} parent=11 // pred_check_branch
        %260 = sbr.rel (%p258) target = $region24
      $region23: #{global_net_forward.7} parent=11 // pred_region
        _
      $region24: #{global_net_forward.7} parent=11 // pred_fallthru
        _
      // Predicated region
      $region25: #{global_net_forward.7} parent=11 // pred_check
        %p261 = pneg %p146
      $region26: #{global_net_forward.7} parent=11 // pred_check_branch
        %263 = sbr.rel (%p261) target = $region28
      $region27: #{global_net_forward.7} parent=11 // pred_region
        _
      $region28: #{global_net_forward.7} parent=11 // pred_fallthru
        _
    $region12: #{global_net_forward.7} parent=5 // pred_fallthru
      _
    %p264 = scmp.lt.s32.totalorder %s14, 2
    // Predicated region
    $region29: #{global_net_forward.7} parent=5 // pred_check
      %p265 = pneg %p264
    $region30: #{global_net_forward.7} parent=5 // pred_check_branch
      %267 = sbr.rel (%p265) target = $region32
    $region31: #{global_net_forward.7} parent=5 // pred_region
      // Predicated region
      $region33: #{global_net_forward.7} parent=31 // pred_check
        %p268 = pneg %p46
      $region34: #{global_net_forward.7} parent=31 // pred_check_branch
        %270 = sbr.rel (%p268) target = $region36
      $region35: #{global_net_forward.7} parent=31 // pred_region
        %p271 = scmp.lt.s32.totalorder %s22, 1
        %s272 = scalar_select %p271, %s22, 1
        %s273 = smul.addr %s272, 8
        %s274 = smul.addr %s273, 4
        %s275 = scalar_lea.vmem %s0, %s274
      $region36: #{global_net_forward.7} parent=31 // pred_fallthru
        _
    $region32: #{global_net_forward.7} parent=5 // pred_fallthru
      _
    %p276 = scmp.le.s32.totalorder 1, %s14
    %p277 = scmp.lt.s32.totalorder %s14, 3
    %p278 = pnand %p276, %p277
    %p279 = pneg %p278
    // Predicated region
    $region37: #{global_net_forward.7} parent=5 // pred_check
      _
    $region38: #{global_net_forward.7} parent=5 // pred_check_branch
      %281 = sbr.rel (%p278) target = $region40
    $region39: #{global_net_forward.7} parent=5 // pred_region
      %s282 = ssub.s32 %s14, 1
      %p283 = scmp.lt.s32.totalorder %s24, 1
      %s284 = scalar_select %p283, %s24, 1
      %s285 = smul.addr %s284, 8
      %s286 = smul.addr %s285, 4
      %s287 = scalar_lea.vmem %s0, %s286
      %p288 = pneg %p52
      %p289 = pneg %p49
      %p290 = scmp.lt.s32.totalorder %s23, 0
      %s291 = scalar_select %p290, %s23, 0
      %s292 = smul.addr %s291, 4
      %s293 = scalar_lea.vmem %s1, %s292
      %p294 = pneg %p78
      %p295 = pneg %p75
      %p296 = scmp.lt.s32.totalorder %s23, 0
      %s297 = scalar_select %p296, %s23, 0
      %s298 = scalar_lea.vmem %s2, %s297
      %p299 = pneg %p104
      %p300 = pneg %p101
      %p301 = pneg %p125
      %p302 = pneg %p122
      %p303 = pneg %p146
      %p304 = pneg %p143
      %p305 = pneg %p174
      %p306 = pneg %p171
      %p307 = scmp.lt.s32.totalorder %s24, 1
      %s308 = scalar_select %p307, %s24, 1
      %p309 = scmp.lt.s32.totalorder %s23, 0
      %s310 = scalar_select %p309, %s23, 0
      %s311 = smul.addr %s308, 4
      %s312 = sadd.s32 %s310, %s311
      %s313 = smul.addr %s312, 2
      %s314 = scalar_lea.vmem %s5, %s313
      %p315 = pneg %p202
      %p316 = pneg %p199
      %p317 = scmp.lt.s32.totalorder %s24, 1
      %s318 = scalar_select %p317, %s24, 1
      %p319 = scmp.lt.s32.totalorder %s23, 0
      %s320 = scalar_select %p319, %s23, 0
      %s321 = sadd.s32 %s320, %s318
      %s322 = scalar_lea.vmem %s6, %s321
      %p323 = pneg %p230
      %p324 = pneg %p227
      %p325 = scmp.lt.s32.totalorder %s24, 1
      %s326 = scalar_select %p325, %s24, 1
      %p327 = scmp.lt.s32.totalorder %s23, 0
      %s328 = scalar_select %p327, %s23, 0
      %s329 = sadd.s32 %s328, %s326
      %s330 = scalar_lea.vmem %s7, %s329
      %p331 = scmp.lt.s32.totalorder %s24, 1
      %s332 = scalar_select %p331, %s24, 1
      %s333 = smul.addr %s332, 8
      %s334 = smul.addr %s333, 4
      %s335 = scalar_lea.vmem %s0, %s334
      %p336 = scmp.lt.s32.totalorder %s23, 0
      %s337 = scalar_select %p336, %s23, 0
      %s338 = smul.addr %s337, 4
      %s339 = scalar_lea.vmem %s1, %s338
      %p340 = scmp.lt.s32.totalorder %s23, 0
      %s341 = scalar_select %p340, %s23, 0
      %s342 = scalar_lea.vmem %s2, %s341
      %p343 = scmp.lt.s32.totalorder %s24, 1
      %s344 = scalar_select %p343, %s24, 1
      %p345 = scmp.lt.s32.totalorder %s23, 0
      %s346 = scalar_select %p345, %s23, 0
      %s347 = smul.addr %s344, 4
      %s348 = sadd.s32 %s346, %s347
      %s349 = smul.addr %s348, 2
      %s350 = scalar_lea.vmem %s5, %s349
      %p351 = scmp.lt.s32.totalorder %s24, 1
      %s352 = scalar_select %p351, %s24, 1
      %p353 = scmp.lt.s32.totalorder %s23, 0
      %s354 = scalar_select %p353, %s23, 0
      %s355 = sadd.s32 %s354, %s352
      %s356 = scalar_lea.vmem %s6, %s355
      %p357 = scmp.lt.s32.totalorder %s24, 1
      %s358 = scalar_select %p357, %s24, 1
      %p359 = scmp.lt.s32.totalorder %s23, 0
      %s360 = scalar_select %p359, %s23, 0
      %s361 = sadd.s32 %s360, %s358
      %s362 = scalar_lea.vmem %s7, %s361
      %v364 = vld [vmem:[%s335] sm:$0xf]
      %v365 = vld [vmem:[%s335 + $0x4] sm:$0xf]
      %v366 = vld [vmem:[%s335 + $0x8] sm:$0xf]
      %v367 = vld [vmem:[%s335 + $0xc] sm:$0xf]
      %v368 = vld [vmem:[%s335 + $0x10] sm:$0xf]
      %v369 = vld [vmem:[%s335 + $0x14] sm:$0xf]
      %v370 = vld [vmem:[%s335 + $0x18] sm:$0xf]
      %v371 = vld [vmem:[%s335 + $0x1c] sm:$0xf]
      %v372 = vld [vmem:[%s3] sm:$0x1]
      %v373 = vld [vmem:[%s4] sm:$0x1]
      %v374 = vunpack.c.l.bf16 %v364
      %v375 = vunpack.c.l.bf16 %v365
      %v376 = vunpack.c.l.bf16 %v366
      %v377 = vunpack.c.l.bf16 %v367
      %v378 = vunpack.c.l.bf16 %v368
      %v379 = vunpack.c.l.bf16 %v369
      %v380 = vunpack.c.l.bf16 %v370
      %v381 = vunpack.c.l.bf16 %v371
      %v383 = vlaneseq
      %v384 = vshrl.u32 %v383, 7
      %v385 = vsub.s32 0, %v384
      %v386 = vrot.slane %v372, %v385
      %v388 = vmul.f32 %v374, %v386
      %v389 = vmul.f32 %v375, %v386
      %v390 = vmul.f32 %v376, %v386
      %v391 = vmul.f32 %v377, %v386
      %v392 = vmul.f32 %v378, %v386
      %v393 = vmul.f32 %v379, %v386
      %v394 = vmul.f32 %v380, %v386
      %v395 = vmul.f32 %v381, %v386
      %v397 = vlaneseq
      %v398 = vshrl.u32 %v397, 7
      %v399 = vsub.s32 0, %v398
      %v400 = vrot.slane %v373, %v399
      %v402 = vadd.f32 %v388, %v400
      %v403 = vadd.f32 %v389, %v400
      %v404 = vadd.f32 %v390, %v400
      %v405 = vadd.f32 %v391, %v400
      %v406 = vadd.f32 %v392, %v400
      %v407 = vadd.f32 %v393, %v400
      %v408 = vadd.f32 %v394, %v400
      %v409 = vadd.f32 %v395, %v400
      %v410 = vmax.f32 %v402, 0.0
      %v411 = vmax.f32 %v403, 0.0
      %v412 = vmax.f32 %v404, 0.0
      %v413 = vmax.f32 %v405, 0.0
      %v414 = vmax.f32 %v406, 0.0
      %v415 = vmax.f32 %v407, 0.0
      %v416 = vmax.f32 %v408, 0.0
      %v417 = vmax.f32 %v409, 0.0
      %v418 = vlaneseq
      %v419 = vshrl.u32 %v418, 7
      %vm420 = vcmp.ge.s32.totalorder %v419, 2
      %vm421 = vmand 0, %vm420
      %vm422 = vmand 1, %vm420
      %vm423 = vcmp.lt.s32.totalorder %v419, 6
      %vm424 = vmand %vm421, %vm423
      %vm425 = vmand %vm422, %vm423
      %v426 = vsel %vm424, 1, 0
      %v427 = vsel %vm425, 1, 0
      %vm428 = vcmp.eq.s32.totalorder %v426, 1
      %vm429 = vcmp.eq.s32.totalorder %v427, 1
      %v430 = vsel %vm428, %v410, 0.0
      %v431 = vsel %vm428, %v411, 0.0
      %v432 = vsel %vm429, %v412, 0.0
      %v433 = vsel %vm429, %v413, 0.0
      %v434 = vsel %vm429, %v414, 0.0
      %v435 = vsel %vm429, %v415, 0.0
      %v436 = vsel %vm428, %v416, 0.0
      %v437 = vsel %vm428, %v417, 0.0
      %v438 = vpack.c.bf16 %v430, %v430
      %v439 = vpack.c.bf16 %v431, %v431
      %v440 = vpack.c.bf16 %v432, %v432
      %v441 = vpack.c.bf16 %v433, %v433
      %v442 = vpack.c.bf16 %v434, %v434
      %v443 = vpack.c.bf16 %v435, %v435
      %v444 = vpack.c.bf16 %v436, %v436
      %v445 = vpack.c.bf16 %v437, %v437
      %v450 = vcombine.low %v438, %v439
      %v451 = vcombine.low %v440, %v441
      %v453 = vunpack.c.l.s4 1983009808
      %v454 = vunpack.c.0.s8 %v453
      %v455 = vlaneseq
      %v456 = vshrl.u32 %v455, 7
      %v457 = vsub.s32 %v454, %v456
      %v458 = vrot.slane %v450, %v457
      %v460 = vunpack.c.l.s4 1983009808
      %v461 = vunpack.c.0.s8 %v460
      %v462 = vlaneseq
      %v463 = vshrl.u32 %v462, 7
      %v464 = vsub.s32 %v461, %v463
      %v465 = vrot.slane %v451, %v464
      %v466 = vcombine.low %v458, %v465
      %v470 = vcombine.low %v442, %v443
      %v472 = vunpack.c.l.s4 1983009808
      %v473 = vunpack.c.0.s8 %v472
      %v474 = vlaneseq
      %v475 = vshrl.u32 %v474, 7
      %v476 = vsub.s32 %v473, %v475
      %v477 = vrot.slane %v470, %v476
      %v478 = vcombine.low %v465, %v477
      %v482 = vcombine.low %v444, %v445
      %v484 = vunpack.c.l.s4 1983009808
      %v485 = vunpack.c.0.s8 %v484
      %v486 = vlaneseq
      %v487 = vshrl.u32 %v486, 7
      %v488 = vsub.s32 %v485, %v487
      %v489 = vrot.slane %v482, %v488
      %v490 = vcombine.low %v477, %v489
      %v492 = vld [vmem:[%s339] sm:$0xf]
      %v493 = vld [vmem:[%s339 + $0x4] sm:$0xf]
      %v494 = vld [vmem:[%s339 + $0x8] sm:$0xf]
      %v495 = vld [vmem:[%s339 + $0xc] sm:$0xf]
      %v496 = vld [vmem:[%s339 + $0x10] sm:$0xf]
      %v497 = vld [vmem:[%s339 + $0x14] sm:$0xf]
      %v498 = vld [vmem:[%s339 + $0x18] sm:$0xf]
      %v499 = vld [vmem:[%s339 + $0x1c] sm:$0xf]
      %v500 = vld [vmem:[%s339 + $0x20] sm:$0xf]
      %v501 = vld [vmem:[%s339 + $0x24] sm:$0xf]
      %v502 = vld [vmem:[%s339 + $0x28] sm:$0xf]
      %v503 = vld [vmem:[%s339 + $0x2c] sm:$0xf]
      %v504 = vld [vmem:[%s339 + $0x30] sm:$0xf]
      %v505 = vld [vmem:[%s339 + $0x34] sm:$0xf]
      %v506 = vld [vmem:[%s339 + $0x38] sm:$0xf]
      %v507 = vld [vmem:[%s339 + $0x3c] sm:$0xf]
      %v508 = vld [vmem:[%s339 + $0x40] sm:$0xf]
      %v509 = vld [vmem:[%s339 + $0x44] sm:$0xf]
      %v510 = vld [vmem:[%s339 + $0x48] sm:$0xf]
      %v511 = vld [vmem:[%s339 + $0x4c] sm:$0xf]
      %v512 = vld [vmem:[%s339 + $0x50] sm:$0xf]
      %v513 = vld [vmem:[%s339 + $0x54] sm:$0xf]
      %v514 = vld [vmem:[%s339 + $0x58] sm:$0xf]
      %v515 = vld [vmem:[%s339 + $0x5c] sm:$0xf]
      %v516 = vld [vmem:[%s339 + $0x60] sm:$0xf]
      %v517 = vld [vmem:[%s339 + $0x64] sm:$0xf]
      %v518 = vld [vmem:[%s339 + $0x68] sm:$0xf]
      %v519 = vld [vmem:[%s339 + $0x6c] sm:$0xf]
      %v520 = vld [vmem:[%s339 + $0x70] sm:$0xf]
      %v521 = vld [vmem:[%s339 + $0x74] sm:$0xf]
      %v522 = vld [vmem:[%s339 + $0x78] sm:$0xf]
      %v523 = vld [vmem:[%s339 + $0x7c] sm:$0xf]
      %v524 = vld [vmem:[%s339 + $0x80] sm:$0xf]
      %v525 = vld [vmem:[%s339 + $0x84] sm:$0xf]
      %v526 = vld [vmem:[%s339 + $0x88] sm:$0xf]
      %v527 = vld [vmem:[%s339 + $0x8c] sm:$0xf]
      %v528 = vld [vmem:[%s339 + $0x90] sm:$0xf]
      %v529 = vld [vmem:[%s339 + $0x94] sm:$0xf]
      %v530 = vld [vmem:[%s339 + $0x98] sm:$0xf]
      %v531 = vld [vmem:[%s339 + $0x9c] sm:$0xf]
      %v532 = vld [vmem:[%s339 + $0xa0] sm:$0xf]
      %v533 = vld [vmem:[%s339 + $0xa4] sm:$0xf]
      %v534 = vld [vmem:[%s339 + $0xa8] sm:$0xf]
      %v535 = vld [vmem:[%s339 + $0xac] sm:$0xf]
      %v536 = vld [vmem:[%s339 + $0xb0] sm:$0xf]
      %v537 = vld [vmem:[%s339 + $0xb4] sm:$0xf]
      %v538 = vld [vmem:[%s339 + $0xb8] sm:$0xf]
      %v539 = vld [vmem:[%s339 + $0xbc] sm:$0xf]
      %v541 = vunpack.c.l.s4 1983009808
      %v542 = vunpack.c.0.s8 %v541
      %v543 = vlaneseq
      %v544 = vshrl.u32 %v543, 7
      %v545 = vsub.s32 %v542, %v544
      %v546 = vrot.slane %v438, %v545
      %v547 = vcombine.high %v546, %v546
      %v549 = vunpack.c.l.s4 1983009808
      %v550 = vunpack.c.0.s8 %v549
      %v551 = vlaneseq
      %v552 = vshrl.u32 %v551, 7
      %v553 = vsub.s32 %v550, %v552
      %v554 = vrot.slane %v439, %v553
      %v555 = vcombine.high %v554, %v554
      %v557 = vunpack.c.l.s4 1983009808
      %v558 = vunpack.c.0.s8 %v557
      %v559 = vlaneseq
      %v560 = vshrl.u32 %v559, 7
      %v561 = vsub.s32 %v558, %v560
      %v562 = vrot.slane %v440, %v561
      %v563 = vcombine.high %v562, %v562
      %v565 = vunpack.c.l.s4 1983009808
      %v566 = vunpack.c.0.s8 %v565
      %v567 = vlaneseq
      %v568 = vshrl.u32 %v567, 7
      %v569 = vsub.s32 %v566, %v568
      %v570 = vrot.slane %v441, %v569
      %v571 = vcombine.high %v570, %v570
      %vm572 = vcmask 1040384
      %vm573 = vcmask 1042434
      %vm574 = vmor %vm572, %vm573
      %vm575 = vcmask 1044484
      %vm576 = vmor %vm574, %vm575
      %vm577 = vcmask 1046534
      %vm578 = vmor %vm576, %vm577
      %v579 = vrot.slane %v546, 7
      %v580 = vrot.slane %v579, 2
      %v581 = vrot.slane %v547, 7
      %v582 = vsel %vm578, %v580, %v581
      %v583 = vrot.slane %v554, 7
      %v584 = vrot.slane %v583, 2
      %v585 = vrot.slane %v555, 7
      %v586 = vsel %vm578, %v584, %v585
      %v587 = vrot.slane %v562, 7
      %v588 = vrot.slane %v587, 2
      %v589 = vrot.slane %v563, 7
      %v590 = vsel %vm578, %v588, %v589
      %v591 = vrot.slane %v570, 7
      %v592 = vrot.slane %v591, 2
      %v593 = vrot.slane %v571, 7
      %v594 = vsel %vm578, %v592, %v593
      %v596 = vunpack.c.l.s4 1983009808
      %v597 = vunpack.c.0.s8 %v596
      %v598 = vlaneseq
      %v599 = vshrl.u32 %v598, 7
      %v600 = vsub.s32 %v597, %v599
      %v601 = vrot.slane %v442, %v600
      %v602 = vcombine.high %v601, %v601
      %v604 = vunpack.c.l.s4 1983009808
      %v605 = vunpack.c.0.s8 %v604
      %v606 = vlaneseq
      %v607 = vshrl.u32 %v606, 7
      %v608 = vsub.s32 %v605, %v607
      %v609 = vrot.slane %v443, %v608
      %v610 = vcombine.high %v609, %v609
      %v611 = vrot.slane %v601, 7
      %v612 = vrot.slane %v611, 2
      %v613 = vrot.slane %v602, 7
      %v614 = vsel %vm578, %v612, %v613
      %v615 = vrot.slane %v609, 7
      %v616 = vrot.slane %v615, 2
      %v617 = vrot.slane %v610, 7
      %v618 = vsel %vm578, %v616, %v617
      %v620 = vunpack.c.l.s4 1983009808
      %v621 = vunpack.c.0.s8 %v620
      %v622 = vlaneseq
      %v623 = vshrl.u32 %v622, 7
      %v624 = vsub.s32 %v621, %v623
      %v625 = vrot.slane %v444, %v624
      %v626 = vcombine.high %v625, %v625
      %v628 = vunpack.c.l.s4 1983009808
      %v629 = vunpack.c.0.s8 %v628
      %v630 = vlaneseq
      %v631 = vshrl.u32 %v630, 7
      %v632 = vsub.s32 %v629, %v631
      %v633 = vrot.slane %v445, %v632
      %v634 = vcombine.high %v633, %v633
      %v635 = vrot.slane %v625, 7
      %v636 = vrot.slane %v635, 2
      %v637 = vrot.slane %v626, 7
      %v638 = vsel %vm578, %v636, %v637
      %v639 = vrot.slane %v633, 7
      %v640 = vrot.slane %v639, 2
      %v641 = vrot.slane %v634, 7
      %v642 = vsel %vm578, %v640, %v641
      %v643 = vcombine.low %v582, %v586
      %v644 = vcombine.low %v590, %v594
      %v646 = vunpack.c.l.s4 1983009808
      %v647 = vunpack.c.0.s8 %v646
      %v648 = vlaneseq
      %v649 = vshrl.u32 %v648, 7
      %v650 = vsub.s32 %v647, %v649
      %v651 = vrot.slane %v643, %v650
      %v653 = vunpack.c.l.s4 1983009808
      %v654 = vunpack.c.0.s8 %v653
      %v655 = vlaneseq
      %v656 = vshrl.u32 %v655, 7
      %v657 = vsub.s32 %v654, %v656
      %v658 = vrot.slane %v644, %v657
      %v659 = vcombine.low %v651, %v658
      %v661 = vcombine.low %v614, %v618
      %v663 = vunpack.c.l.s4 1983009808
      %v664 = vunpack.c.0.s8 %v663
      %v665 = vlaneseq
      %v666 = vshrl.u32 %v665, 7
      %v667 = vsub.s32 %v664, %v666
      %v668 = vrot.slane %v661, %v667
      %v669 = vcombine.low %v658, %v668
      %v671 = vcombine.low %v638, %v642
      %v673 = vunpack.c.l.s4 1983009808
      %v674 = vunpack.c.0.s8 %v673
      %v675 = vlaneseq
      %v676 = vshrl.u32 %v675, 7
      %v677 = vsub.s32 %v674, %v676
      %v678 = vrot.slane %v671, %v677
      %v679 = vcombine.low %v668, %v678
      %s681 = scalar_lea.vmem %s339, 192
      %v682 = vld [vmem:[%s681] sm:$0xf]
      %v683 = vld [vmem:[%s681 + $0x4] sm:$0xf]
      %v684 = vld [vmem:[%s681 + $0x8] sm:$0xf]
      %v685 = vld [vmem:[%s681 + $0xc] sm:$0xf]
      %v686 = vld [vmem:[%s681 + $0x10] sm:$0xf]
      %v687 = vld [vmem:[%s681 + $0x14] sm:$0xf]
      %v688 = vld [vmem:[%s681 + $0x18] sm:$0xf]
      %v689 = vld [vmem:[%s681 + $0x1c] sm:$0xf]
      %v690 = vld [vmem:[%s681 + $0x20] sm:$0xf]
      %v691 = vld [vmem:[%s681 + $0x24] sm:$0xf]
      %v692 = vld [vmem:[%s681 + $0x28] sm:$0xf]
      %v693 = vld [vmem:[%s681 + $0x2c] sm:$0xf]
      %v694 = vld [vmem:[%s681 + $0x30] sm:$0xf]
      %v695 = vld [vmem:[%s681 + $0x34] sm:$0xf]
      %v696 = vld [vmem:[%s681 + $0x38] sm:$0xf]
      %v697 = vld [vmem:[%s681 + $0x3c] sm:$0xf]
      %v698 = vld [vmem:[%s681 + $0x40] sm:$0xf]
      %v699 = vld [vmem:[%s681 + $0x44] sm:$0xf]
      %v700 = vld [vmem:[%s681 + $0x48] sm:$0xf]
      %v701 = vld [vmem:[%s681 + $0x4c] sm:$0xf]
      %v702 = vld [vmem:[%s681 + $0x50] sm:$0xf]
      %v703 = vld [vmem:[%s681 + $0x54] sm:$0xf]
      %v704 = vld [vmem:[%s681 + $0x58] sm:$0xf]
      %v705 = vld [vmem:[%s681 + $0x5c] sm:$0xf]
      %v706 = vld [vmem:[%s681 + $0x60] sm:$0xf]
      %v707 = vld [vmem:[%s681 + $0x64] sm:$0xf]
      %v708 = vld [vmem:[%s681 + $0x68] sm:$0xf]
      %v709 = vld [vmem:[%s681 + $0x6c] sm:$0xf]
      %v710 = vld [vmem:[%s681 + $0x70] sm:$0xf]
      %v711 = vld [vmem:[%s681 + $0x74] sm:$0xf]
      %v712 = vld [vmem:[%s681 + $0x78] sm:$0xf]
      %v713 = vld [vmem:[%s681 + $0x7c] sm:$0xf]
      %v714 = vld [vmem:[%s681 + $0x80] sm:$0xf]
      %v715 = vld [vmem:[%s681 + $0x84] sm:$0xf]
      %v716 = vld [vmem:[%s681 + $0x88] sm:$0xf]
      %v717 = vld [vmem:[%s681 + $0x8c] sm:$0xf]
      %v718 = vld [vmem:[%s681 + $0x90] sm:$0xf]
      %v719 = vld [vmem:[%s681 + $0x94] sm:$0xf]
      %v720 = vld [vmem:[%s681 + $0x98] sm:$0xf]
      %v721 = vld [vmem:[%s681 + $0x9c] sm:$0xf]
      %v722 = vld [vmem:[%s681 + $0xa0] sm:$0xf]
      %v723 = vld [vmem:[%s681 + $0xa4] sm:$0xf]
      %v724 = vld [vmem:[%s681 + $0xa8] sm:$0xf]
      %v725 = vld [vmem:[%s681 + $0xac] sm:$0xf]
      %v726 = vld [vmem:[%s681 + $0xb0] sm:$0xf]
      %v727 = vld [vmem:[%s681 + $0xb4] sm:$0xf]
      %v728 = vld [vmem:[%s681 + $0xb8] sm:$0xf]
      %v729 = vld [vmem:[%s681 + $0xbc] sm:$0xf]
      %v778 = vunpack.c.l.b16 %v682
      %v779 = vunpack.c.l.b16 %v683
      %v780 = vunpack.c.l.b16 %v684
      %v781 = vunpack.c.l.b16 %v685
      %v782 = vunpack.c.l.b16 %v686
      %v783 = vunpack.c.l.b16 %v687
      %v784 = vunpack.c.l.b16 %v688
      %v785 = vunpack.c.l.b16 %v689
      %v786 = vunpack.c.l.b16 %v690
      %v787 = vunpack.c.l.b16 %v691
      %v788 = vunpack.c.l.b16 %v692
      %v789 = vunpack.c.l.b16 %v693
      %v790 = vunpack.c.l.b16 %v694
      %v791 = vunpack.c.l.b16 %v695
      %v792 = vunpack.c.l.b16 %v696
      %v793 = vunpack.c.l.b16 %v697
      %v794 = vunpack.c.l.b16 %v698
      %v795 = vunpack.c.l.b16 %v699
      %v796 = vunpack.c.l.b16 %v700
      %v797 = vunpack.c.l.b16 %v701
      %v798 = vunpack.c.l.b16 %v702
      %v799 = vunpack.c.l.b16 %v703
      %v800 = vunpack.c.l.b16 %v704
      %v801 = vunpack.c.l.b16 %v705
      %v802 = vunpack.c.l.b16 %v706
      %v803 = vunpack.c.l.b16 %v707
      %v804 = vunpack.c.l.b16 %v708
      %v805 = vunpack.c.l.b16 %v709
      %v806 = vunpack.c.l.b16 %v710
      %v807 = vunpack.c.l.b16 %v711
      %v808 = vunpack.c.l.b16 %v712
      %v809 = vunpack.c.l.b16 %v713
      %v810 = vunpack.c.l.b16 %v714
      %v811 = vunpack.c.l.b16 %v715
      %v812 = vunpack.c.l.b16 %v716
      %v813 = vunpack.c.l.b16 %v717
      %v814 = vunpack.c.l.b16 %v718
      %v815 = vunpack.c.l.b16 %v719
      %v816 = vunpack.c.l.b16 %v720
      %v817 = vunpack.c.l.b16 %v721
      %v818 = vunpack.c.l.b16 %v722
      %v819 = vunpack.c.l.b16 %v723
      %v820 = vunpack.c.l.b16 %v724
      %v821 = vunpack.c.l.b16 %v725
      %v822 = vunpack.c.l.b16 %v726
      %v823 = vunpack.c.l.b16 %v727
      %v824 = vunpack.c.l.b16 %v728
      %v825 = vunpack.c.l.b16 %v729
      %v826 = vpack.c.b16 %v779, %v778
      %v827 = vpack.c.b16 %v781, %v780
      %v828 = vpack.c.b16 %v783, %v782
      %v829 = vpack.c.b16 %v785, %v784
      %v830 = vpack.c.b16 %v787, %v786
      %v831 = vpack.c.b16 %v789, %v788
      %v832 = vpack.c.b16 %v791, %v790
      %v833 = vpack.c.b16 %v793, %v792
      %v834 = vpack.c.b16 %v795, %v794
      %v835 = vpack.c.b16 %v797, %v796
      %v836 = vpack.c.b16 %v799, %v798
      %v837 = vpack.c.b16 %v801, %v800
      %v838 = vpack.c.b16 %v803, %v802
      %v839 = vpack.c.b16 %v805, %v804
      %v840 = vpack.c.b16 %v807, %v806
      %v841 = vpack.c.b16 %v809, %v808
      %v842 = vpack.c.b16 %v811, %v810
      %v843 = vpack.c.b16 %v813, %v812
      %v844 = vpack.c.b16 %v815, %v814
      %v845 = vpack.c.b16 %v817, %v816
      %v846 = vpack.c.b16 %v819, %v818
      %v847 = vpack.c.b16 %v821, %v820
      %v848 = vpack.c.b16 %v823, %v822
      %v849 = vpack.c.b16 %v825, %v824
      %874 = vmatprep.subr.bf16.mxu0 0
      %875 = vmatpush1.bf16.msra.mxu0 %v826
      %876 = vmatprep.subr.bf16.mxu0 0
      %877 = vmatpush1.bf16.msra.mxu0 %v827
      %878 = vmatprep.subr.bf16.mxu0 0
      %879 = vmatpush1.bf16.msra.mxu0 %v828
      %880 = vmatprep.subr.bf16.mxu0 0
      %881 = vmatpush1.bf16.msra.mxu0 %v829
      %882 = vmatprep.subr.bf16.mxu0 0
      %883 = vmatpush1.bf16.msra.mxu0 %v830
      %884 = vmatprep.subr.bf16.mxu0 0
      %885 = vmatpush1.bf16.msra.mxu0 %v831
      %886 = vmatprep.subr.bf16.mxu0 0
      %887 = vmatpush1.bf16.msra.mxu0 %v832
      %888 = vmatprep.subr.bf16.mxu0 0
      %889 = vmatpush1.bf16.msra.mxu0 %v833
      %890 = vmatprep.subr.bf16.mxu0 0
      %891 = vmatpush1.bf16.msra.mxu0 %v834
      %892 = vmatprep.subr.bf16.mxu0 0
      %893 = vmatpush1.bf16.msra.mxu0 %v835
      %894 = vmatprep.subr.bf16.mxu0 0
      %895 = vmatpush1.bf16.msra.mxu0 %v836
      %896 = vmatprep.subr.bf16.mxu0 0
      %897 = vmatpush1.bf16.msra.mxu0 %v837
      %898 = vmatprep.subr.bf16.mxu0 0
      %899 = vmatpush1.bf16.msra.mxu0 %v838
      %900 = vmatprep.subr.bf16.mxu0 0
      %901 = vmatpush1.bf16.msra.mxu0 %v839
      %902 = vmatprep.subr.bf16.mxu0 0
      %903 = vmatpush1.bf16.msra.mxu0 %v840
      %904 = vmatprep.subr.bf16.mxu0 0
      %905 = vmatpush1.bf16.msra.mxu0 %v841
      %906 = vmatprep.mubr.bf16.mxu0 %v669
      %907 = vmatmul.mubr.bf16.gmra.mrb[0].mxu0 %v659
      %v908 = vpop.f32.mrb[0].mxu0
      %v909 = vadd.f32 0.0, %v908
      %v910 = vpop.f32.mrb[0].mxu0
      %v911 = vpop.f32.mrb[0].mxu0
      %v912 = vadd.f32 0.0, %v911
      %v913 = vpop.f32.mrb[0].mxu0
      %914 = vdwg.mxu0
      %915 = vmatprep.subr.bf16.mxu0 0
      %916 = vmatpush1.bf16.msra.mxu0 %v842
      %917 = vmatprep.subr.bf16.mxu0 0
      %918 = vmatpush1.bf16.msra.mxu0 %v843
      %919 = vmatprep.subr.bf16.mxu0 0
      %920 = vmatpush1.bf16.msra.mxu0 %v844
      %921 = vmatprep.subr.bf16.mxu0 0
      %922 = vmatpush1.bf16.msra.mxu0 %v845
      %923 = vmatprep.subr.bf16.mxu0 0
      %924 = vmatpush1.bf16.msra.mxu0 %v846
      %925 = vmatprep.subr.bf16.mxu0 0
      %926 = vmatpush1.bf16.msra.mxu0 %v847
      %927 = vmatprep.subr.bf16.mxu0 0
      %928 = vmatpush1.bf16.msra.mxu0 %v848
      %929 = vmatprep.subr.bf16.mxu0 0
      %930 = vmatpush1.bf16.msra.mxu0 %v849
      %931 = vmatprep.subr.bf16.mxu0 0
      %932 = vmatpush1.bf16.msra.mxu0 0
      %933 = vmatprep.subr.bf16.mxu0 0
      %934 = vmatpush1.bf16.msra.mxu0 0
      %935 = vmatprep.subr.bf16.mxu0 0
      %936 = vmatpush1.bf16.msra.mxu0 0
      %937 = vmatprep.subr.bf16.mxu0 0
      %938 = vmatpush1.bf16.msra.mxu0 0
      %939 = vmatprep.subr.bf16.mxu0 0
      %940 = vmatpush1.bf16.msra.mxu0 0
      %941 = vmatprep.subr.bf16.mxu0 0
      %942 = vmatpush1.bf16.msra.mxu0 0
      %943 = vmatprep.subr.bf16.mxu0 0
      %944 = vmatpush1.bf16.msra.mxu0 0
      %945 = vmatprep.subr.bf16.mxu0 0
      %946 = vmatpush1.bf16.msra.mxu0 0
      %947 = vmatprep.mubr.bf16.mxu0 0
      %948 = vmatmul.mubr.bf16.gmra.mrb[0].mxu0 %v679
      %v949 = vpop.f32.mrb[0].mxu0
      %v950 = vadd.f32 %v909, %v949
      %v951 = vpop.f32.mrb[0].mxu0
      %v952 = vpop.f32.mrb[0].mxu0
      %v953 = vadd.f32 %v912, %v952
      %v954 = vpop.f32.mrb[0].mxu0
      %955 = vdwg.mxu0
      %v1004 = vunpack.c.l.b16 %v492
      %v1005 = vunpack.c.l.b16 %v493
      %v1006 = vunpack.c.l.b16 %v494
      %v1007 = vunpack.c.l.b16 %v495
      %v1008 = vunpack.c.l.b16 %v496
      %v1009 = vunpack.c.l.b16 %v497
      %v1010 = vunpack.c.l.b16 %v498
      %v1011 = vunpack.c.l.b16 %v499
      %v1012 = vunpack.c.l.b16 %v500
      %v1013 = vunpack.c.l.b16 %v501
      %v1014 = vunpack.c.l.b16 %v502
      %v1015 = vunpack.c.l.b16 %v503
      %v1016 = vunpack.c.l.b16 %v504
      %v1017 = vunpack.c.l.b16 %v505
      %v1018 = vunpack.c.l.b16 %v506
      %v1019 = vunpack.c.l.b16 %v507
      %v1020 = vunpack.c.l.b16 %v508
      %v1021 = vunpack.c.l.b16 %v509
      %v1022 = vunpack.c.l.b16 %v510
      %v1023 = vunpack.c.l.b16 %v511
      %v1024 = vunpack.c.l.b16 %v512
      %v1025 = vunpack.c.l.b16 %v513
      %v1026 = vunpack.c.l.b16 %v514
      %v1027 = vunpack.c.l.b16 %v515
      %v1028 = vunpack.c.l.b16 %v516
      %v1029 = vunpack.c.l.b16 %v517
      %v1030 = vunpack.c.l.b16 %v518
      %v1031 = vunpack.c.l.b16 %v519
      %v1032 = vunpack.c.l.b16 %v520
      %v1033 = vunpack.c.l.b16 %v521
      %v1034 = vunpack.c.l.b16 %v522
      %v1035 = vunpack.c.l.b16 %v523
      %v1036 = vunpack.c.l.b16 %v524
      %v1037 = vunpack.c.l.b16 %v525
      %v1038 = vunpack.c.l.b16 %v526
      %v1039 = vunpack.c.l.b16 %v527
      %v1040 = vunpack.c.l.b16 %v528
      %v1041 = vunpack.c.l.b16 %v529
      %v1042 = vunpack.c.l.b16 %v530
      %v1043 = vunpack.c.l.b16 %v531
      %v1044 = vunpack.c.l.b16 %v532
      %v1045 = vunpack.c.l.b16 %v533
      %v1046 = vunpack.c.l.b16 %v534
      %v1047 = vunpack.c.l.b16 %v535
      %v1048 = vunpack.c.l.b16 %v536
      %v1049 = vunpack.c.l.b16 %v537
      %v1050 = vunpack.c.l.b16 %v538
      %v1051 = vunpack.c.l.b16 %v539
      %v1052 = vpack.c.b16 %v1005, %v1004
      %v1053 = vpack.c.b16 %v1007, %v1006
      %v1054 = vpack.c.b16 %v1009, %v1008
      %v1055 = vpack.c.b16 %v1011, %v1010
      %v1056 = vpack.c.b16 %v1013, %v1012
      %v1057 = vpack.c.b16 %v1015, %v1014
      %v1058 = vpack.c.b16 %v1017, %v1016
      %v1059 = vpack.c.b16 %v1019, %v1018
      %v1060 = vpack.c.b16 %v1021, %v1020
      %v1061 = vpack.c.b16 %v1023, %v1022
      %v1062 = vpack.c.b16 %v1025, %v1024
      %v1063 = vpack.c.b16 %v1027, %v1026
      %v1064 = vpack.c.b16 %v1029, %v1028
      %v1065 = vpack.c.b16 %v1031, %v1030
      %v1066 = vpack.c.b16 %v1033, %v1032
      %v1067 = vpack.c.b16 %v1035, %v1034
      %v1068 = vpack.c.b16 %v1037, %v1036
      %v1069 = vpack.c.b16 %v1039, %v1038
      %v1070 = vpack.c.b16 %v1041, %v1040
      %v1071 = vpack.c.b16 %v1043, %v1042
      %v1072 = vpack.c.b16 %v1045, %v1044
      %v1073 = vpack.c.b16 %v1047, %v1046
      %v1074 = vpack.c.b16 %v1049, %v1048
      %v1075 = vpack.c.b16 %v1051, %v1050
      %1100 = vmatprep.subr.bf16.mxu0 0
      %1101 = vmatpush1.bf16.msra.mxu0 %v1052
      %1102 = vmatprep.subr.bf16.mxu0 0
      %1103 = vmatpush1.bf16.msra.mxu0 %v1053
      %1104 = vmatprep.subr.bf16.mxu0 0
      %1105 = vmatpush1.bf16.msra.mxu0 %v1054
      %1106 = vmatprep.subr.bf16.mxu0 0
      %1107 = vmatpush1.bf16.msra.mxu0 %v1055
      %1108 = vmatprep.subr.bf16.mxu0 0
      %1109 = vmatpush1.bf16.msra.mxu0 %v1056
      %1110 = vmatprep.subr.bf16.mxu0 0
      %1111 = vmatpush1.bf16.msra.mxu0 %v1057
      %1112 = vmatprep.subr.bf16.mxu0 0
      %1113 = vmatpush1.bf16.msra.mxu0 %v1058
      %1114 = vmatprep.subr.bf16.mxu0 0
      %1115 = vmatpush1.bf16.msra.mxu0 %v1059
      %1116 = vmatprep.subr.bf16.mxu0 0
      %1117 = vmatpush1.bf16.msra.mxu0 %v1060
      %1118 = vmatprep.subr.bf16.mxu0 0
      %1119 = vmatpush1.bf16.msra.mxu0 %v1061
      %1120 = vmatprep.subr.bf16.mxu0 0
      %1121 = vmatpush1.bf16.msra.mxu0 %v1062
      %1122 = vmatprep.subr.bf16.mxu0 0
      %1123 = vmatpush1.bf16.msra.mxu0 %v1063
      %1124 = vmatprep.subr.bf16.mxu0 0
      %1125 = vmatpush1.bf16.msra.mxu0 %v1064
      %1126 = vmatprep.subr.bf16.mxu0 0
      %1127 = vmatpush1.bf16.msra.mxu0 %v1065
      %1128 = vmatprep.subr.bf16.mxu0 0
      %1129 = vmatpush1.bf16.msra.mxu0 %v1066
      %1130 = vmatprep.subr.bf16.mxu0 0
      %1131 = vmatpush1.bf16.msra.mxu0 %v1067
      %1132 = vmatprep.mubr.bf16.mxu0 %v478
      %1133 = vmatmul.mubr.bf16.gmra.mrb[0].mxu0 %v466
      %v1134 = vpop.f32.mrb[0].mxu0
      %v1135 = vadd.f32 %v950, %v1134
      %v1136 = vpop.f32.mrb[0].mxu0
      %v1137 = vpop.f32.mrb[0].mxu0
      %v1138 = vadd.f32 %v953, %v1137
      %v1139 = vpop.f32.mrb[0].mxu0
      %1140 = vdwg.mxu0
      %1141 = vmatprep.subr.bf16.mxu0 0
      %1142 = vmatpush1.bf16.msra.mxu0 %v1068
      %1143 = vmatprep.subr.bf16.mxu0 0
      %1144 = vmatpush1.bf16.msra.mxu0 %v1069
      %1145 = vmatprep.subr.bf16.mxu0 0
      %1146 = vmatpush1.bf16.msra.mxu0 %v1070
      %1147 = vmatprep.subr.bf16.mxu0 0
      %1148 = vmatpush1.bf16.msra.mxu0 %v1071
      %1149 = vmatprep.subr.bf16.mxu0 0
      %1150 = vmatpush1.bf16.msra.mxu0 %v1072
      %1151 = vmatprep.subr.bf16.mxu0 0
      %1152 = vmatpush1.bf16.msra.mxu0 %v1073
      %1153 = vmatprep.subr.bf16.mxu0 0
      %1154 = vmatpush1.bf16.msra.mxu0 %v1074
      %1155 = vmatprep.subr.bf16.mxu0 0
      %1156 = vmatpush1.bf16.msra.mxu0 %v1075
      %1157 = vmatprep.subr.bf16.mxu0 0
      %1158 = vmatpush1.bf16.msra.mxu0 0
      %1159 = vmatprep.subr.bf16.mxu0 0
      %1160 = vmatpush1.bf16.msra.mxu0 0
      %1161 = vmatprep.subr.bf16.mxu0 0
      %1162 = vmatpush1.bf16.msra.mxu0 0
      %1163 = vmatprep.subr.bf16.mxu0 0
      %1164 = vmatpush1.bf16.msra.mxu0 0
      %1165 = vmatprep.subr.bf16.mxu0 0
      %1166 = vmatpush1.bf16.msra.mxu0 0
      %1167 = vmatprep.subr.bf16.mxu0 0
      %1168 = vmatpush1.bf16.msra.mxu0 0
      %1169 = vmatprep.subr.bf16.mxu0 0
      %1170 = vmatpush1.bf16.msra.mxu0 0
      %1171 = vmatprep.subr.bf16.mxu0 0
      %1172 = vmatpush1.bf16.msra.mxu0 0
      %1173 = vmatprep.mubr.bf16.mxu0 0
      %1174 = vmatmul.mubr.bf16.gmra.mrb[0].mxu0 %v490
      %v1175 = vpop.f32.mrb[0].mxu0
      %v1176 = vadd.f32 %v1135, %v1175
      %v1177 = vpop.f32.mrb[0].mxu0
      %v1178 = vpop.f32.mrb[0].mxu0
      %v1179 = vadd.f32 %v1138, %v1178
      %v1180 = vpop.f32.mrb[0].mxu0
      %1181 = vdwg.mxu0
      %v1182 = vcombine.low %v547, %v555
      %v1183 = vcombine.low %v563, %v571
      %v1185 = vunpack.c.l.s4 1983009808
      %v1186 = vunpack.c.0.s8 %v1185
      %v1187 = vlaneseq
      %v1188 = vshrl.u32 %v1187, 7
      %v1189 = vsub.s32 %v1186, %v1188
      %v1190 = vrot.slane %v1182, %v1189
      %v1192 = vunpack.c.l.s4 1983009808
      %v1193 = vunpack.c.0.s8 %v1192
      %v1194 = vlaneseq
      %v1195 = vshrl.u32 %v1194, 7
      %v1196 = vsub.s32 %v1193, %v1195
      %v1197 = vrot.slane %v1183, %v1196
      %v1198 = vcombine.low %v1190, %v1197
      %v1200 = vcombine.low %v602, %v610
      %v1202 = vunpack.c.l.s4 1983009808
      %v1203 = vunpack.c.0.s8 %v1202
      %v1204 = vlaneseq
      %v1205 = vshrl.u32 %v1204, 7
      %v1206 = vsub.s32 %v1203, %v1205
      %v1207 = vrot.slane %v1200, %v1206
      %v1208 = vcombine.low %v1197, %v1207
      %v1210 = vcombine.low %v626, %v634
      %v1212 = vunpack.c.l.s4 1983009808
      %v1213 = vunpack.c.0.s8 %v1212
      %v1214 = vlaneseq
      %v1215 = vshrl.u32 %v1214, 7
      %v1216 = vsub.s32 %v1213, %v1215
      %v1217 = vrot.slane %v1210, %v1216
      %v1218 = vcombine.low %v1207, %v1217
      %s1220 = scalar_lea.vmem %s339, 384
      %v1221 = vld [vmem:[%s1220] sm:$0xf]
      %v1222 = vld [vmem:[%s1220 + $0x4] sm:$0xf]
      %v1223 = vld [vmem:[%s1220 + $0x8] sm:$0xf]
      %v1224 = vld [vmem:[%s1220 + $0xc] sm:$0xf]
      %v1225 = vld [vmem:[%s1220 + $0x10] sm:$0xf]
      %v1226 = vld [vmem:[%s1220 + $0x14] sm:$0xf]
      %v1227 = vld [vmem:[%s1220 + $0x18] sm:$0xf]
      %v1228 = vld [vmem:[%s1220 + $0x1c] sm:$0xf]
      %v1229 = vld [vmem:[%s1220 + $0x20] sm:$0xf]
      %v1230 = vld [vmem:[%s1220 + $0x24] sm:$0xf]
      %v1231 = vld [vmem:[%s1220 + $0x28] sm:$0xf]
      %v1232 = vld [vmem:[%s1220 + $0x2c] sm:$0xf]
      %v1233 = vld [vmem:[%s1220 + $0x30] sm:$0xf]
      %v1234 = vld [vmem:[%s1220 + $0x34] sm:$0xf]
      %v1235 = vld [vmem:[%s1220 + $0x38] sm:$0xf]
      %v1236 = vld [vmem:[%s1220 + $0x3c] sm:$0xf]
      %v1237 = vld [vmem:[%s1220 + $0x40] sm:$0xf]
      %v1238 = vld [vmem:[%s1220 + $0x44] sm:$0xf]
      %v1239 = vld [vmem:[%s1220 + $0x48] sm:$0xf]
      %v1240 = vld [vmem:[%s1220 + $0x4c] sm:$0xf]
      %v1241 = vld [vmem:[%s1220 + $0x50] sm:$0xf]
      %v1242 = vld [vmem:[%s1220 + $0x54] sm:$0xf]
      %v1243 = vld [vmem:[%s1220 + $0x58] sm:$0xf]
      %v1244 = vld [vmem:[%s1220 + $0x5c] sm:$0xf]
      %v1245 = vld [vmem:[%s1220 + $0x60] sm:$0xf]
      %v1246 = vld [vmem:[%s1220 + $0x64] sm:$0xf]
      %v1247 = vld [vmem:[%s1220 + $0x68] sm:$0xf]
      %v1248 = vld [vmem:[%s1220 + $0x6c] sm:$0xf]
      %v1249 = vld [vmem:[%s1220 + $0x70] sm:$0xf]
      %v1250 = vld [vmem:[%s1220 + $0x74] sm:$0xf]
      %v1251 = vld [vmem:[%s1220 + $0x78] sm:$0xf]
      %v1252 = vld [vmem:[%s1220 + $0x7c] sm:$0xf]
      %v1253 = vld [vmem:[%s1220 + $0x80] sm:$0xf]
      %v1254 = vld [vmem:[%s1220 + $0x84] sm:$0xf]
      %v1255 = vld [vmem:[%s1220 + $0x88] sm:$0xf]
      %v1256 = vld [vmem:[%s1220 + $0x8c] sm:$0xf]
      %v1257 = vld [vmem:[%s1220 + $0x90] sm:$0xf]
      %v1258 = vld [vmem:[%s1220 + $0x94] sm:$0xf]
      %v1259 = vld [vmem:[%s1220 + $0x98] sm:$0xf]
      %v1260 = vld [vmem:[%s1220 + $0x9c] sm:$0xf]
      %v1261 = vld [vmem:[%s1220 + $0xa0] sm:$0xf]
      %v1262 = vld [vmem:[%s1220 + $0xa4] sm:$0xf]
      %v1263 = vld [vmem:[%s1220 + $0xa8] sm:$0xf]
      %v1264 = vld [vmem:[%s1220 + $0xac] sm:$0xf]
      %v1265 = vld [vmem:[%s1220 + $0xb0] sm:$0xf]
      %v1266 = vld [vmem:[%s1220 + $0xb4] sm:$0xf]
      %v1267 = vld [vmem:[%s1220 + $0xb8] sm:$0xf]
      %v1268 = vld [vmem:[%s1220 + $0xbc] sm:$0xf]
      %v1317 = vunpack.c.l.b16 %v1221
      %v1318 = vunpack.c.l.b16 %v1222
      %v1319 = vunpack.c.l.b16 %v1223
      %v1320 = vunpack.c.l.b16 %v1224
      %v1321 = vunpack.c.l.b16 %v1225
      %v1322 = vunpack.c.l.b16 %v1226
      %v1323 = vunpack.c.l.b16 %v1227
      %v1324 = vunpack.c.l.b16 %v1228
      %v1325 = vunpack.c.l.b16 %v1229
      %v1326 = vunpack.c.l.b16 %v1230
      %v1327 = vunpack.c.l.b16 %v1231
      %v1328 = vunpack.c.l.b16 %v1232
      %v1329 = vunpack.c.l.b16 %v1233
      %v1330 = vunpack.c.l.b16 %v1234
      %v1331 = vunpack.c.l.b16 %v1235
      %v1332 = vunpack.c.l.b16 %v1236
      %v1333 = vunpack.c.l.b16 %v1237
      %v1334 = vunpack.c.l.b16 %v1238
      %v1335 = vunpack.c.l.b16 %v1239
      %v1336 = vunpack.c.l.b16 %v1240
      %v1337 = vunpack.c.l.b16 %v1241
      %v1338 = vunpack.c.l.b16 %v1242
      %v1339 = vunpack.c.l.b16 %v1243
      %v1340 = vunpack.c.l.b16 %v1244
      %v1341 = vunpack.c.l.b16 %v1245
      %v1342 = vunpack.c.l.b16 %v1246
      %v1343 = vunpack.c.l.b16 %v1247
      %v1344 = vunpack.c.l.b16 %v1248
      %v1345 = vunpack.c.l.b16 %v1249
      %v1346 = vunpack.c.l.b16 %v1250
      %v1347 = vunpack.c.l.b16 %v1251
      %v1348 = vunpack.c.l.b16 %v1252
      %v1349 = vunpack.c.l.b16 %v1253
      %v1350 = vunpack.c.l.b16 %v1254
      %v1351 = vunpack.c.l.b16 %v1255
      %v1352 = vunpack.c.l.b16 %v1256
      %v1353 = vunpack.c.l.b16 %v1257
      %v1354 = vunpack.c.l.b16 %v1258
      %v1355 = vunpack.c.l.b16 %v1259
      %v1356 = vunpack.c.l.b16 %v1260
      %v1357 = vunpack.c.l.b16 %v1261
      %v1358 = vunpack.c.l.b16 %v1262
      %v1359 = vunpack.c.l.b16 %v1263
      %v1360 = vunpack.c.l.b16 %v1264
      %v1361 = vunpack.c.l.b16 %v1265
      %v1362 = vunpack.c.l.b16 %v1266
      %v1363 = vunpack.c.l.b16 %v1267
      %v1364 = vunpack.c.l.b16 %v1268
      %v1365 = vpack.c.b16 %v1318, %v1317
      %v1366 = vpack.c.b16 %v1320, %v1319
      %v1367 = vpack.c.b16 %v1322, %v1321
      %v1368 = vpack.c.b16 %v1324, %v1323
      %v1369 = vpack.c.b16 %v1326, %v1325
      %v1370 = vpack.c.b16 %v1328, %v1327
      %v1371 = vpack.c.b16 %v1330, %v1329
      %v1372 = vpack.c.b16 %v1332, %v1331
      %v1373 = vpack.c.b16 %v1334, %v1333
      %v1374 = vpack.c.b16 %v1336, %v1335
      %v1375 = vpack.c.b16 %v1338, %v1337
      %v1376 = vpack.c.b16 %v1340, %v1339
      %v1377 = vpack.c.b16 %v1342, %v1341
      %v1378 = vpack.c.b16 %v1344, %v1343
      %v1379 = vpack.c.b16 %v1346, %v1345
      %v1380 = vpack.c.b16 %v1348, %v1347
      %v1381 = vpack.c.b16 %v1350, %v1349
      %v1382 = vpack.c.b16 %v1352, %v1351
      %v1383 = vpack.c.b16 %v1354, %v1353
      %v1384 = vpack.c.b16 %v1356, %v1355
      %v1385 = vpack.c.b16 %v1358, %v1357
      %v1386 = vpack.c.b16 %v1360, %v1359
      %v1387 = vpack.c.b16 %v1362, %v1361
      %v1388 = vpack.c.b16 %v1364, %v1363
      %1413 = vmatprep.subr.bf16.mxu0 0
      %1414 = vmatpush1.bf16.msra.mxu0 %v1365
      %1415 = vmatprep.subr.bf16.mxu0 0
      %1416 = vmatpush1.bf16.msra.mxu0 %v1366
      %1417 = vmatprep.subr.bf16.mxu0 0
      %1418 = vmatpush1.bf16.msra.mxu0 %v1367
      %1419 = vmatprep.subr.bf16.mxu0 0
      %1420 = vmatpush1.bf16.msra.mxu0 %v1368
      %1421 = vmatprep.subr.bf16.mxu0 0
      %1422 = vmatpush1.bf16.msra.mxu0 %v1369
      %1423 = vmatprep.subr.bf16.mxu0 0
      %1424 = vmatpush1.bf16.msra.mxu0 %v1370
      %1425 = vmatprep.subr.bf16.mxu0 0
      %1426 = vmatpush1.bf16.msra.mxu0 %v1371
      %1427 = vmatprep.subr.bf16.mxu0 0
      %1428 = vmatpush1.bf16.msra.mxu0 %v1372
      %1429 = vmatprep.subr.bf16.mxu0 0
      %1430 = vmatpush1.bf16.msra.mxu0 %v1373
      %1431 = vmatprep.subr.bf16.mxu0 0
      %1432 = vmatpush1.bf16.msra.mxu0 %v1374
      %1433 = vmatprep.subr.bf16.mxu0 0
      %1434 = vmatpush1.bf16.msra.mxu0 %v1375
      %1435 = vmatprep.subr.bf16.mxu0 0
      %1436 = vmatpush1.bf16.msra.mxu0 %v1376
      %1437 = vmatprep.subr.bf16.mxu0 0
      %1438 = vmatpush1.bf16.msra.mxu0 %v1377
      %1439 = vmatprep.subr.bf16.mxu0 0
      %1440 = vmatpush1.bf16.msra.mxu0 %v1378
      %1441 = vmatprep.subr.bf16.mxu0 0
      %1442 = vmatpush1.bf16.msra.mxu0 %v1379
      %1443 = vmatprep.subr.bf16.mxu0 0
      %1444 = vmatpush1.bf16.msra.mxu0 %v1380
      %1445 = vmatprep.mubr.bf16.mxu0 %v1208
      %1446 = vmatmul.mubr.bf16.gmra.mrb[0].mxu0 %v1198
      %v1447 = vpop.f32.mrb[0].mxu0
      %v1448 = vadd.f32 0.0, %v1447
      %v1449 = vpop.f32.mrb[0].mxu0
      %v1450 = vpop.f32.mrb[0].mxu0
      %v1451 = vadd.f32 0.0, %v1450
      %v1452 = vpop.f32.mrb[0].mxu0
      %1453 = vdwg.mxu0
      %1454 = vmatprep.subr.bf16.mxu0 0
      %1455 = vmatpush1.bf16.msra.mxu0 %v1381
      %1456 = vmatprep.subr.bf16.mxu0 0
      %1457 = vmatpush1.bf16.msra.mxu0 %v1382
      %1458 = vmatprep.subr.bf16.mxu0 0
      %1459 = vmatpush1.bf16.msra.mxu0 %v1383
      %1460 = vmatprep.subr.bf16.mxu0 0
      %1461 = vmatpush1.bf16.msra.mxu0 %v1384
      %1462 = vmatprep.subr.bf16.mxu0 0
      %1463 = vmatpush1.bf16.msra.mxu0 %v1385
      %1464 = vmatprep.subr.bf16.mxu0 0
      %1465 = vmatpush1.bf16.msra.mxu0 %v1386
      %1466 = vmatprep.subr.bf16.mxu0 0
      %1467 = vmatpush1.bf16.msra.mxu0 %v1387
      %1468 = vmatprep.subr.bf16.mxu0 0
      %1469 = vmatpush1.bf16.msra.mxu0 %v1388
      %1470 = vmatprep.subr.bf16.mxu0 0
      %1471 = vmatpush1.bf16.msra.mxu0 0
      %1472 = vmatprep.subr.bf16.mxu0 0
      %1473 = vmatpush1.bf16.msra.mxu0 0
      %1474 = vmatprep.subr.bf16.mxu0 0
      %1475 = vmatpush1.bf16.msra.mxu0 0
      %1476 = vmatprep.subr.bf16.mxu0 0
      %1477 = vmatpush1.bf16.msra.mxu0 0
      %1478 = vmatprep.subr.bf16.mxu0 0
      %1479 = vmatpush1.bf16.msra.mxu0 0
      %1480 = vmatprep.subr.bf16.mxu0 0
      %1481 = vmatpush1.bf16.msra.mxu0 0
      %1482 = vmatprep.subr.bf16.mxu0 0
      %1483 = vmatpush1.bf16.msra.mxu0 0
      %1484 = vmatprep.subr.bf16.mxu0 0
      %1485 = vmatpush1.bf16.msra.mxu0 0
      %1486 = vmatprep.mubr.bf16.mxu0 0
      %1487 = vmatmul.mubr.bf16.gmra.mrb[0].mxu0 %v1218
      %v1488 = vpop.f32.mrb[0].mxu0
      %v1489 = vadd.f32 %v1448, %v1488
      %v1490 = vpop.f32.mrb[0].mxu0
      %v1491 = vpop.f32.mrb[0].mxu0
      %v1492 = vadd.f32 %v1451, %v1491
      %v1493 = vpop.f32.mrb[0].mxu0
      %1494 = vdwg.mxu0
      %v1495 = vadd.f32 %v1176, %v1489
      %v1496 = vadd.f32 %v1179, %v1492
      %v1497 = vld [vmem:[%s342] sm:$0x1]
      %v1499 = vlaneseq
      %v1500 = vshrl.u32 %v1499, 7
      %v1501 = vsub.s32 0, %v1500
      %v1502 = vrot.slane %v1497, %v1501
      %v1504 = vadd.f32 %v1495, %v1502
      %v1505 = vadd.f32 %v1496, %v1502
      %v1508 = vcombine.high %v1504, %v1504
      %v1509 = vcombine.high %v1505, %v1505
      %v1512 = vpack.c.bf16 %v1504, %v1504
      %v1513 = vpack.c.bf16 %v1508, %v1508
      %v1514 = vpack.c.bf16 %v1505, %v1505
      %v1515 = vpack.c.bf16 %v1509, %v1509
      %1516 = vst [vmem:[%s350] sm:$0x3] %v1512
      %1517 = vst [vmem:[%s350 + $0x2] sm:$0x3] %v1513
      %1518 = vst [vmem:[%s350 + $0x4] sm:$0x3] %v1514
      %1519 = vst [vmem:[%s350 + $0x6] sm:$0x3] %v1515
      %v1520 = vadd.f32 %v1504, %v1505
      %v1521 = vrot.slane %v1520, 4
      %v1522 = vadd.f32 %v1520, %v1521
      %v1523 = vrot.slane %v1522, 2
      %v1524 = vadd.f32 %v1522, %v1523
      %v1525 = vrot.slane %v1524, 1
      %v1526 = vadd.f32 %v1524, %v1525
      %1527 = vst [vmem:[%s356] sm:$0x1] %v1526
      %v1528 = vmul.f32 %v1504, %v1504
      %v1529 = vmul.f32 %v1505, %v1505
      %v1530 = vadd.f32 %v1528, %v1529
      %v1531 = vrot.slane %v1530, 4
      %v1532 = vadd.f32 %v1530, %v1531
      %v1533 = vrot.slane %v1532, 2
      %v1534 = vadd.f32 %v1532, %v1533
      %v1535 = vrot.slane %v1534, 1
      %v1536 = vadd.f32 %v1534, %v1535
      %1537 = vst [vmem:[%s362] sm:$0x1] %v1536
      %p1538 = scmp.lt.s32.totalorder %s24, 1
      %s1539 = scalar_select %p1538, %s24, 1
      %p1540 = scmp.lt.s32.totalorder %s23, 0
      %s1541 = scalar_select %p1540, %s23, 0
      %s1542 = smul.addr %s1539, 4
      %s1543 = sadd.s32 %s1541, %s1542
      %s1544 = smul.addr %s1543, 2
      %s1545 = scalar_lea.vmem %s5, %s1544
      %p1546 = scmp.lt.s32.totalorder %s24, 1
      %s1547 = scalar_select %p1546, %s24, 1
      %p1548 = scmp.lt.s32.totalorder %s23, 0
      %s1549 = scalar_select %p1548, %s23, 0
      %s1550 = sadd.s32 %s1549, %s1547
      %s1551 = scalar_lea.vmem %s6, %s1550
      %p1552 = scmp.lt.s32.totalorder %s24, 1
      %s1553 = scalar_select %p1552, %s24, 1
      %p1554 = scmp.lt.s32.totalorder %s23, 0
      %s1555 = scalar_select %p1554, %s23, 0
      %s1556 = sadd.s32 %s1555, %s1553
      %s1557 = scalar_lea.vmem %s7, %s1556
      // Predicated region
      $region41: #{global_net_forward.7} parent=39 // pred_check
        %p1558 = pneg %p171
      $region42: #{global_net_forward.7} parent=39 // pred_check_branch
        %1560 = sbr.rel (%p1558) target = $region44
      $region43: #{global_net_forward.7} parent=39 // pred_region
        _
      $region44: #{global_net_forward.7} parent=39 // pred_fallthru
        _
      // Predicated region
      $region45: #{global_net_forward.7} parent=39 // pred_check
        %p1561 = pneg %p199
      $region46: #{global_net_forward.7} parent=39 // pred_check_branch
        %1563 = sbr.rel (%p1561) target = $region48
      $region47: #{global_net_forward.7} parent=39 // pred_region
        _
      $region48: #{global_net_forward.7} parent=39 // pred_fallthru
        _
      // Predicated region
      $region49: #{global_net_forward.7} parent=39 // pred_check
        %p1564 = pneg %p227
      $region50: #{global_net_forward.7} parent=39 // pred_check_branch
        %1566 = sbr.rel (%p1564) target = $region52
      $region51: #{global_net_forward.7} parent=39 // pred_region
        _
      $region52: #{global_net_forward.7} parent=39 // pred_fallthru
        _
    $region40: #{global_net_forward.7} parent=5 // pred_fallthru
      _
    %p1567 = scmp.le.s32.totalorder 2, %s14
    // Predicated region
    $region53: #{global_net_forward.7} parent=5 // pred_check
      %p1568 = pneg %p1567
    $region54: #{global_net_forward.7} parent=5 // pred_check_branch
      %1570 = sbr.rel (%p1568) target = $region56
    $region55: #{global_net_forward.7} parent=5 // pred_region
      %s1571 = ssub.s32 %s14, 2
      // Predicated region
      $region57: #{global_net_forward.7} parent=55 // pred_check
        %p1572 = pneg %p177
      $region58: #{global_net_forward.7} parent=55 // pred_check_branch
        %1574 = sbr.rel (%p1572) target = $region60
      $region59: #{global_net_forward.7} parent=55 // pred_region
        %p1575 = scmp.lt.s32.totalorder %s26, 1
        %s1576 = scalar_select %p1575, %s26, 1
        %p1577 = scmp.lt.s32.totalorder %s25, 0
        %s1578 = scalar_select %p1577, %s25, 0
        %s1579 = smul.addr %s1576, 4
        %s1580 = sadd.s32 %s1578, %s1579
        %s1581 = smul.addr %s1580, 2
        %s1582 = scalar_lea.vmem %s5, %s1581
      $region60: #{global_net_forward.7} parent=55 // pred_fallthru
        _
      // Predicated region
      $region61: #{global_net_forward.7} parent=55 // pred_check
        %p1583 = pneg %p205
      $region62: #{global_net_forward.7} parent=55 // pred_check_branch
        %1585 = sbr.rel (%p1583) target = $region64
      $region63: #{global_net_forward.7} parent=55 // pred_region
        %p1586 = scmp.lt.s32.totalorder %s26, 1
        %s1587 = scalar_select %p1586, %s26, 1
        %p1588 = scmp.lt.s32.totalorder %s25, 0
        %s1589 = scalar_select %p1588, %s25, 0
        %s1590 = sadd.s32 %s1589, %s1587
        %s1591 = scalar_lea.vmem %s6, %s1590
      $region64: #{global_net_forward.7} parent=55 // pred_fallthru
        _
      // Predicated region
      $region65: #{global_net_forward.7} parent=55 // pred_check
        %p1592 = pneg %p233
      $region66: #{global_net_forward.7} parent=55 // pred_check_branch
        %1594 = sbr.rel (%p1592) target = $region68
      $region67: #{global_net_forward.7} parent=55 // pred_region
        %p1595 = scmp.lt.s32.totalorder %s26, 1
        %s1596 = scalar_select %p1595, %s26, 1
        %p1597 = scmp.lt.s32.totalorder %s25, 0
        %s1598 = scalar_select %p1597, %s25, 0
        %s1599 = sadd.s32 %s1598, %s1596
        %s1600 = scalar_lea.vmem %s7, %s1599
      $region68: #{global_net_forward.7} parent=55 // pred_fallthru
        _
    $region56: #{global_net_forward.7} parent=5 // pred_fallthru
      _
  $region6: #{global_net_forward.7} parent=0 // loop_footer
    %s18 = sadd.s32 1, %s14
  $region7: #{global_net_forward.7} parent=0 // loop_footer_branch
    %13 = sbr.rel target = $region3
  $region8: #{global_net_forward.7} parent=0 // loop_exit
    _

// kernel: global_net_forward.6
$region0: #{global_net_forward.6}
  #allocation0 [shape = 'u32[]', space=smem, size = 0x4, offset = 0x4, fixed_abs, tag = 'smem constant byte address 0x4 - core index']
  #allocation1 [shape = 'u32[144,128]{1,0:T(1,128)}', space=vmem, size = 0x12000, scoped, tag = 'internal scratch']
  %s0 = inlined_call_operand.vmem [shape: bf16[2,6,6,128], index: 0, kind: input, shape index: {}]
  %s1 = inlined_call_operand.vmem [shape: bf16[3,384,128], index: 1, kind: input, shape index: {}]
  %s2 = inlined_call_operand.vmem [shape: f32[1,128], index: 2, kind: input, shape index: {}]
  %s3 = inlined_call_operand.vmem [shape: f32[1,128], index: 3, kind: input, shape index: {}]
  %s4 = inlined_call_operand.vmem [shape: f32[1,128], index: 4, kind: input, shape index: {}]
  %s5 = inlined_call_operand.vmem [shape: bf16[2,4,4,128], index: 5, kind: output, shape index: {0}]
  %s6 = inlined_call_operand.vmem [shape: f32[2,1,128], index: 6, kind: output, shape index: {1}]
  %s7 = inlined_call_operand.vmem [shape: f32[2,1,128], index: 7, kind: output, shape index: {2}]
  %8 = xla_tuple %s5, %s6, %s7
  %s9 = sld [smem:[#allocation0]]
  $region69: #{global_net_forward.6} parent=0
    _
  %s11 = ssub.s32 1, %s9
  %s12 = scalar_select 0, %s11, %s9
  loop: start=0, step=1, limit=4
  $region2: #{global_net_forward.6} parent=0 // loop_pre_header
    _
  $region3: #{global_net_forward.6} parent=0 // loop_header
    %s14 = sphi 0, %s18
    %p15 = scmp.ge.s32.totalorder %s14, 4
    %s21 = sphi 0, %s33
    %s22 = sphi 0, %s29
    %s23 = sphi 0, %s21
    %s24 = sphi 0, %s22
    %s25 = sphi 0, %s23
    %s26 = sphi 0, %s24
    %s36 = sphi 0, %s38
    %s39 = sphi 0, %s36
    %s40 = sphi 0, %s39
    %s56 = sphi 0, %s40
    %s62 = sphi 0, %s64
    %s65 = sphi 0, %s62
    %s66 = sphi 0, %s65
    %s82 = sphi 0, %s66
    %s88 = sphi 0, %s90
    %s91 = sphi 0, %s88
    %s92 = sphi 0, %s91
    %s108 = sphi 0, %s92
    %s112 = sphi 0, %s112
    %s114 = sphi 0, %s112
    %s115 = sphi 0, %s114
    %s129 = sphi 0, %s115
    %s133 = sphi 0, %s133
    %s135 = sphi 0, %s133
    %s136 = sphi 0, %s135
    %s150 = sphi 0, %s136
    %s158 = sphi 0, %s160
    %s161 = sphi 0, %s158
    %s162 = sphi 0, %s161
    %s178 = sphi 0, %s162
    %s186 = sphi 0, %s188
    %s189 = sphi 0, %s186
    %s190 = sphi 0, %s189
    %s206 = sphi 0, %s190
    %s214 = sphi 0, %s216
    %s217 = sphi 0, %s214
    %s218 = sphi 0, %s217
    %s234 = sphi 0, %s218
  $region4: #{global_net_forward.6} parent=0 // loop_header_branch
    %17 = sbr.rel (%p15) target = $region8
  $region5: #{global_net_forward.6} parent=0 // loop_body
    %s19 = ssub.s32 %s14, 1
    %s20 = ssub.s32 %s14, 2
    %s27 = sadd.s32 1, %s22
    %p28 = scmp.ge.s32.totalorder %s27, 2
    %s29 = scalar_select %p28, 0, %s27
    %s30 = sadd.s32 1, %s21
    %s31 = scalar_select %p28, %s30, %s21
    %p32 = scmp.ge.s32.totalorder %s31, 1
    %s33 = scalar_select %p32, 0, %s31
    %s34 = ssub.s32 %s22, %s29
    %p35 = scmp.eq.s32.totalorder %s34, 0
    %s37 = sadd.s32 %s36, 1
    %s38 = scalar_select %p35, %s36, %s37
    %p41 = pneg %p35
    %p42 = scmp.eq.s32.totalorder %s14, 1
    %p43 = por %p41, %p42
    %p44 = scmp.ne.s32.totalorder %s36, %s39
    %p45 = scmp.eq.s32.totalorder %s14, 0
    %p46 = por %p44, %p45
    %p47 = scmp.ne.s32.totalorder %s36, %s39
    %p48 = scmp.eq.s32.totalorder %s19, 1
    %p49 = por %p47, %p48
    %p50 = scmp.ne.s32.totalorder %s39, %s40
    %p51 = scmp.eq.s32.totalorder %s19, 0
    %p52 = por %p50, %p51
    %p53 = scmp.ne.s32.totalorder %s39, %s40
    %p54 = scmp.eq.s32.totalorder %s20, 1
    %p55 = por %p53, %p54
    %p57 = scmp.ne.s32.totalorder %s40, %s56
    %p58 = scmp.eq.s32.totalorder %s20, 0
    %p59 = por %p57, %p58
    %s60 = ssub.s32 %s21, %s33
    %p61 = scmp.eq.s32.totalorder %s60, 0
    %s63 = sadd.s32 %s62, 1
    %s64 = scalar_select %p61, %s62, %s63
    %p67 = pneg %p61
    %p68 = scmp.eq.s32.totalorder %s14, 1
    %p69 = por %p67, %p68
    %p70 = scmp.ne.s32.totalorder %s62, %s65
    %p71 = scmp.eq.s32.totalorder %s14, 0
    %p72 = por %p70, %p71
    %p73 = scmp.ne.s32.totalorder %s62, %s65
    %p74 = scmp.eq.s32.totalorder %s19, 1
    %p75 = por %p73, %p74
    %p76 = scmp.ne.s32.totalorder %s65, %s66
    %p77 = scmp.eq.s32.totalorder %s19, 0
    %p78 = por %p76, %p77
    %p79 = scmp.ne.s32.totalorder %s65, %s66
    %p80 = scmp.eq.s32.totalorder %s20, 1
    %p81 = por %p79, %p80
    %p83 = scmp.ne.s32.totalorder %s66, %s82
    %p84 = scmp.eq.s32.totalorder %s20, 0
    %p85 = por %p83, %p84
    %s86 = ssub.s32 %s21, %s33
    %p87 = scmp.eq.s32.totalorder %s86, 0
    %s89 = sadd.s32 %s88, 1
    %s90 = scalar_select %p87, %s88, %s89
    %p93 = pneg %p87
    %p94 = scmp.eq.s32.totalorder %s14, 1
    %p95 = por %p93, %p94
    %p96 = scmp.ne.s32.totalorder %s88, %s91
    %p97 = scmp.eq.s32.totalorder %s14, 0
    %p98 = por %p96, %p97
    %p99 = scmp.ne.s32.totalorder %s88, %s91
    %p100 = scmp.eq.s32.totalorder %s19, 1
    %p101 = por %p99, %p100
    %p102 = scmp.ne.s32.totalorder %s91, %s92
    %p103 = scmp.eq.s32.totalorder %s19, 0
    %p104 = por %p102, %p103
    %p105 = scmp.ne.s32.totalorder %s91, %s92
    %p106 = scmp.eq.s32.totalorder %s20, 1
    %p107 = por %p105, %p106
    %p109 = scmp.ne.s32.totalorder %s92, %s108
    %p110 = scmp.eq.s32.totalorder %s20, 0
    %p111 = por %p109, %p110
    %s113 = sadd.s32 %s112, 1
    %p116 = scmp.eq.s32.totalorder %s14, 1
    %p117 = scmp.ne.s32.totalorder %s112, %s114
    %p118 = scmp.eq.s32.totalorder %s14, 0
    %p119 = por %p117, %p118
    %p120 = scmp.ne.s32.totalorder %s112, %s114
    %p121 = scmp.eq.s32.totalorder %s19, 1
    %p122 = por %p120, %p121
    %p123 = scmp.ne.s32.totalorder %s114, %s115
    %p124 = scmp.eq.s32.totalorder %s19, 0
    %p125 = por %p123, %p124
    %p126 = scmp.ne.s32.totalorder %s114, %s115
    %p127 = scmp.eq.s32.totalorder %s20, 1
    %p128 = por %p126, %p127
    %p130 = scmp.ne.s32.totalorder %s115, %s129
    %p131 = scmp.eq.s32.totalorder %s20, 0
    %p132 = por %p130, %p131
    %s134 = sadd.s32 %s133, 1
    %p137 = scmp.eq.s32.totalorder %s14, 1
    %p138 = scmp.ne.s32.totalorder %s133, %s135
    %p139 = scmp.eq.s32.totalorder %s14, 0
    %p140 = por %p138, %p139
    %p141 = scmp.ne.s32.totalorder %s133, %s135
    %p142 = scmp.eq.s32.totalorder %s19, 1
    %p143 = por %p141, %p142
    %p144 = scmp.ne.s32.totalorder %s135, %s136
    %p145 = scmp.eq.s32.totalorder %s19, 0
    %p146 = por %p144, %p145
    %p147 = scmp.ne.s32.totalorder %s135, %s136
    %p148 = scmp.eq.s32.totalorder %s20, 1
    %p149 = por %p147, %p148
    %p151 = scmp.ne.s32.totalorder %s136, %s150
    %p152 = scmp.eq.s32.totalorder %s20, 0
    %p153 = por %p151, %p152
    %s154 = ssub.s32 %s22, %s29
    %s155 = ssub.s32 %s21, %s33
    %s156 = sor.u32 %s154, %s155
    %p157 = scmp.eq.s32.totalorder %s156, 0
    %s159 = sadd.s32 %s158, 1
    %s160 = scalar_select %p157, %s158, %s159
    %p163 = pneg %p157
    %p164 = scmp.eq.s32.totalorder %s14, 1
    %p165 = por %p163, %p164
    %p166 = scmp.ne.s32.totalorder %s158, %s161
    %p167 = scmp.eq.s32.totalorder %s14, 0
    %p168 = por %p166, %p167
    %p169 = scmp.ne.s32.totalorder %s158, %s161
    %p170 = scmp.eq.s32.totalorder %s19, 1
    %p171 = por %p169, %p170
    %p172 = scmp.ne.s32.totalorder %s161, %s162
    %p173 = scmp.eq.s32.totalorder %s19, 0
    %p174 = por %p172, %p173
    %p175 = scmp.ne.s32.totalorder %s161, %s162
    %p176 = scmp.eq.s32.totalorder %s20, 1
    %p177 = por %p175, %p176
    %p179 = scmp.ne.s32.totalorder %s162, %s178
    %p180 = scmp.eq.s32.totalorder %s20, 0
    %p181 = por %p179, %p180
    %s182 = ssub.s32 %s22, %s29
    %s183 = ssub.s32 %s21, %s33
    %s184 = sor.u32 %s182, %s183
    %p185 = scmp.eq.s32.totalorder %s184, 0
    %s187 = sadd.s32 %s186, 1
    %s188 = scalar_select %p185, %s186, %s187
    %p191 = pneg %p185
    %p192 = scmp.eq.s32.totalorder %s14, 1
    %p193 = por %p191, %p192
    %p194 = scmp.ne.s32.totalorder %s186, %s189
    %p195 = scmp.eq.s32.totalorder %s14, 0
    %p196 = por %p194, %p195
    %p197 = scmp.ne.s32.totalorder %s186, %s189
    %p198 = scmp.eq.s32.totalorder %s19, 1
    %p199 = por %p197, %p198
    %p200 = scmp.ne.s32.totalorder %s189, %s190
    %p201 = scmp.eq.s32.totalorder %s19, 0
    %p202 = por %p200, %p201
    %p203 = scmp.ne.s32.totalorder %s189, %s190
    %p204 = scmp.eq.s32.totalorder %s20, 1
    %p205 = por %p203, %p204
    %p207 = scmp.ne.s32.totalorder %s190, %s206
    %p208 = scmp.eq.s32.totalorder %s20, 0
    %p209 = por %p207, %p208
    %s210 = ssub.s32 %s22, %s29
    %s211 = ssub.s32 %s21, %s33
    %s212 = sor.u32 %s210, %s211
    %p213 = scmp.eq.s32.totalorder %s212, 0
    %s215 = sadd.s32 %s214, 1
    %s216 = scalar_select %p213, %s214, %s215
    %p219 = pneg %p213
    %p220 = scmp.eq.s32.totalorder %s14, 1
    %p221 = por %p219, %p220
    %p222 = scmp.ne.s32.totalorder %s214, %s217
    %p223 = scmp.eq.s32.totalorder %s14, 0
    %p224 = por %p222, %p223
    %p225 = scmp.ne.s32.totalorder %s214, %s217
    %p226 = scmp.eq.s32.totalorder %s19, 1
    %p227 = por %p225, %p226
    %p228 = scmp.ne.s32.totalorder %s217, %s218
    %p229 = scmp.eq.s32.totalorder %s19, 0
    %p230 = por %p228, %p229
    %p231 = scmp.ne.s32.totalorder %s217, %s218
    %p232 = scmp.eq.s32.totalorder %s20, 1
    %p233 = por %p231, %p232
    %p235 = scmp.ne.s32.totalorder %s218, %s234
    %p236 = scmp.eq.s32.totalorder %s20, 0
    %p237 = por %p235, %p236
    %p238 = scmp.le.s32.totalorder 1, %s14
    %p239 = scmp.lt.s32.totalorder %s14, 3
    %p240 = pnand %p238, %p239
    %p241 = pneg %p240
    // Predicated region
    $region9: #{global_net_forward.6} parent=5 // pred_check
      _
    $region10: #{global_net_forward.6} parent=5 // pred_check_branch
      %243 = sbr.rel (%p240) target = $region12
    $region11: #{global_net_forward.6} parent=5 // pred_region
      %s244 = ssub.s32 %s14, 1
      // Predicated region
      $region13: #{global_net_forward.6} parent=11 // pred_check
        %p245 = pneg %p78
      $region14: #{global_net_forward.6} parent=11 // pred_check_branch
        %247 = sbr.rel (%p245) target = $region16
      $region15: #{global_net_forward.6} parent=11 // pred_region
        %p248 = scmp.lt.s32.totalorder %s23, 0
        %s249 = scalar_select %p248, %s23, 0
        %s250 = smul.addr %s249, 4
        %s251 = scalar_lea.vmem %s1, %s250
      $region16: #{global_net_forward.6} parent=11 // pred_fallthru
        _
      // Predicated region
      $region17: #{global_net_forward.6} parent=11 // pred_check
        %p252 = pneg %p104
      $region18: #{global_net_forward.6} parent=11 // pred_check_branch
        %254 = sbr.rel (%p252) target = $region20
      $region19: #{global_net_forward.6} parent=11 // pred_region
        %p255 = scmp.lt.s32.totalorder %s23, 0
        %s256 = scalar_select %p255, %s23, 0
        %s257 = scalar_lea.vmem %s2, %s256
      $region20: #{global_net_forward.6} parent=11 // pred_fallthru
        _
      // Predicated region
      $region21: #{global_net_forward.6} parent=11 // pred_check
        %p258 = pneg %p125
      $region22: #{global_net_forward.6} parent=11 // pred_check_branch
        %260 = sbr.rel (%p258) target = $region24
      $region23: #{global_net_forward.6} parent=11 // pred_region
        _
      $region24: #{global_net_forward.6} parent=11 // pred_fallthru
        _
      // Predicated region
      $region25: #{global_net_forward.6} parent=11 // pred_check
        %p261 = pneg %p146
      $region26: #{global_net_forward.6} parent=11 // pred_check_branch
        %263 = sbr.rel (%p261) target = $region28
      $region27: #{global_net_forward.6} parent=11 // pred_region
        _
      $region28: #{global_net_forward.6} parent=11 // pred_fallthru
        _
    $region12: #{global_net_forward.6} parent=5 // pred_fallthru
      _
    %p264 = scmp.lt.s32.totalorder %s14, 2
    // Predicated region
    $region29: #{global_net_forward.6} parent=5 // pred_check
      %p265 = pneg %p264
    $region30: #{global_net_forward.6} parent=5 // pred_check_branch
      %267 = sbr.rel (%p265) target = $region32
    $region31: #{global_net_forward.6} parent=5 // pred_region
      // Predicated region
      $region33: #{global_net_forward.6} parent=31 // pred_check
        %p268 = pneg %p46
      $region34: #{global_net_forward.6} parent=31 // pred_check_branch
        %270 = sbr.rel (%p268) target = $region36
      $region35: #{global_net_forward.6} parent=31 // pred_region
        %p271 = scmp.lt.s32.totalorder %s22, 1
        %s272 = scalar_select %p271, %s22, 1
        %s273 = smul.addr %s272, 6
        %s274 = smul.addr %s273, 4
        %s275 = scalar_lea.vmem %s0, %s274
      $region36: #{global_net_forward.6} parent=31 // pred_fallthru
        _
    $region32: #{global_net_forward.6} parent=5 // pred_fallthru
      _
    %p276 = scmp.le.s32.totalorder 1, %s14
    %p277 = scmp.lt.s32.totalorder %s14, 3
    %p278 = pnand %p276, %p277
    %p279 = pneg %p278
    // Predicated region
    $region37: #{global_net_forward.6} parent=5 // pred_check
      _
    $region38: #{global_net_forward.6} parent=5 // pred_check_branch
      %281 = sbr.rel (%p278) target = $region40
    $region39: #{global_net_forward.6} parent=5 // pred_region
      %s282 = ssub.s32 %s14, 1
      %p283 = scmp.lt.s32.totalorder %s24, 1
      %s284 = scalar_select %p283, %s24, 1
      %s285 = smul.addr %s284, 6
      %s286 = smul.addr %s285, 4
      %s287 = scalar_lea.vmem %s0, %s286
      %p288 = pneg %p52
      %p289 = pneg %p49
      %p290 = scmp.lt.s32.totalorder %s23, 0
      %s291 = scalar_select %p290, %s23, 0
      %s292 = smul.addr %s291, 4
      %s293 = scalar_lea.vmem %s1, %s292
      %p294 = pneg %p78
      %p295 = pneg %p75
      %p296 = scmp.lt.s32.totalorder %s23, 0
      %s297 = scalar_select %p296, %s23, 0
      %s298 = scalar_lea.vmem %s2, %s297
      %p299 = pneg %p104
      %p300 = pneg %p101
      %p301 = pneg %p125
      %p302 = pneg %p122
      %p303 = pneg %p146
      %p304 = pneg %p143
      %p305 = pneg %p174
      %p306 = pneg %p171
      %p307 = scmp.lt.s32.totalorder %s24, 1
      %s308 = scalar_select %p307, %s24, 1
      %p309 = scmp.lt.s32.totalorder %s23, 0
      %s310 = scalar_select %p309, %s23, 0
      %s311 = smul.addr %s308, 4
      %s312 = sadd.s32 %s310, %s311
      %s313 = smul.addr %s312, 2
      %s314 = scalar_lea.vmem %s5, %s313
      %p315 = pneg %p202
      %p316 = pneg %p199
      %p317 = scmp.lt.s32.totalorder %s24, 1
      %s318 = scalar_select %p317, %s24, 1
      %p319 = scmp.lt.s32.totalorder %s23, 0
      %s320 = scalar_select %p319, %s23, 0
      %s321 = sadd.s32 %s320, %s318
      %s322 = scalar_lea.vmem %s6, %s321
      %p323 = pneg %p230
      %p324 = pneg %p227
      %p325 = scmp.lt.s32.totalorder %s24, 1
      %s326 = scalar_select %p325, %s24, 1
      %p327 = scmp.lt.s32.totalorder %s23, 0
      %s328 = scalar_select %p327, %s23, 0
      %s329 = sadd.s32 %s328, %s326
      %s330 = scalar_lea.vmem %s7, %s329
      %p331 = scmp.lt.s32.totalorder %s24, 1
      %s332 = scalar_select %p331, %s24, 1
      %s333 = smul.addr %s332, 6
      %s334 = smul.addr %s333, 4
      %s335 = scalar_lea.vmem %s0, %s334
      %p336 = scmp.lt.s32.totalorder %s23, 0
      %s337 = scalar_select %p336, %s23, 0
      %s338 = smul.addr %s337, 4
      %s339 = scalar_lea.vmem %s1, %s338
      %p340 = scmp.lt.s32.totalorder %s23, 0
      %s341 = scalar_select %p340, %s23, 0
      %s342 = scalar_lea.vmem %s2, %s341
      %p343 = scmp.lt.s32.totalorder %s24, 1
      %s344 = scalar_select %p343, %s24, 1
      %p345 = scmp.lt.s32.totalorder %s23, 0
      %s346 = scalar_select %p345, %s23, 0
      %s347 = smul.addr %s344, 4
      %s348 = sadd.s32 %s346, %s347
      %s349 = smul.addr %s348, 2
      %s350 = scalar_lea.vmem %s5, %s349
      %p351 = scmp.lt.s32.totalorder %s24, 1
      %s352 = scalar_select %p351, %s24, 1
      %p353 = scmp.lt.s32.totalorder %s23, 0
      %s354 = scalar_select %p353, %s23, 0
      %s355 = sadd.s32 %s354, %s352
      %s356 = scalar_lea.vmem %s6, %s355
      %p357 = scmp.lt.s32.totalorder %s24, 1
      %s358 = scalar_select %p357, %s24, 1
      %p359 = scmp.lt.s32.totalorder %s23, 0
      %s360 = scalar_select %p359, %s23, 0
      %s361 = sadd.s32 %s360, %s358
      %s362 = scalar_lea.vmem %s7, %s361
      %v364 = vld [vmem:[%s335] sm:$0x7]
      %v365 = vld [vmem:[%s335 + $0x4] sm:$0x7]
      %v366 = vld [vmem:[%s335 + $0x8] sm:$0x7]
      %v367 = vld [vmem:[%s335 + $0xc] sm:$0x7]
      %v368 = vld [vmem:[%s335 + $0x10] sm:$0x7]
      %v369 = vld [vmem:[%s335 + $0x14] sm:$0x7]
      %v374 = vcombine.low %v364, %v365
      %v375 = vcombine.low %v366, %v367
      %v377 = vunpack.c.l.s4 1983009808
      %v378 = vunpack.c.0.s8 %v377
      %v379 = vlaneseq
      %v380 = vshrl.u32 %v379, 7
      %v381 = vsub.s32 %v378, %v380
      %v382 = vrot.slane %v374, %v381
      %v384 = vunpack.c.l.s4 1983009808
      %v385 = vunpack.c.0.s8 %v384
      %v386 = vlaneseq
      %v387 = vshrl.u32 %v386, 7
      %v388 = vsub.s32 %v385, %v387
      %v389 = vrot.slane %v375, %v388
      %v390 = vcombine.low %v382, %v389
      %v393 = vcombine.low %v365, %v366
      %v394 = vcombine.low %v367, %v368
      %v396 = vunpack.c.l.s4 1983009808
      %v397 = vunpack.c.0.s8 %v396
      %v398 = vlaneseq
      %v399 = vshrl.u32 %v398, 7
      %v400 = vsub.s32 %v397, %v399
      %v401 = vrot.slane %v393, %v400
      %v403 = vunpack.c.l.s4 1983009808
      %v404 = vunpack.c.0.s8 %v403
      %v405 = vlaneseq
      %v406 = vshrl.u32 %v405, 7
      %v407 = vsub.s32 %v404, %v406
      %v408 = vrot.slane %v394, %v407
      %v409 = vcombine.low %v401, %v408
      %v412 = vcombine.low %v368, %v369
      %v414 = vunpack.c.l.s4 1983009808
      %v415 = vunpack.c.0.s8 %v414
      %v416 = vlaneseq
      %v417 = vshrl.u32 %v416, 7
      %v418 = vsub.s32 %v415, %v417
      %v419 = vrot.slane %v412, %v418
      %v420 = vcombine.low %v389, %v419
      %v422 = vld [vmem:[%s339] sm:$0xf]
      %v423 = vld [vmem:[%s339 + $0x4] sm:$0xf]
      %v424 = vld [vmem:[%s339 + $0x8] sm:$0xf]
      %v425 = vld [vmem:[%s339 + $0xc] sm:$0xf]
      %v426 = vld [vmem:[%s339 + $0x10] sm:$0xf]
      %v427 = vld [vmem:[%s339 + $0x14] sm:$0xf]
      %v428 = vld [vmem:[%s339 + $0x18] sm:$0xf]
      %v429 = vld [vmem:[%s339 + $0x1c] sm:$0xf]
      %v430 = vld [vmem:[%s339 + $0x20] sm:$0xf]
      %v431 = vld [vmem:[%s339 + $0x24] sm:$0xf]
      %v432 = vld [vmem:[%s339 + $0x28] sm:$0xf]
      %v433 = vld [vmem:[%s339 + $0x2c] sm:$0xf]
      %v434 = vld [vmem:[%s339 + $0x30] sm:$0xf]
      %v435 = vld [vmem:[%s339 + $0x34] sm:$0xf]
      %v436 = vld [vmem:[%s339 + $0x38] sm:$0xf]
      %v437 = vld [vmem:[%s339 + $0x3c] sm:$0xf]
      %v438 = vld [vmem:[%s339 + $0x40] sm:$0xf]
      %v439 = vld [vmem:[%s339 + $0x44] sm:$0xf]
      %v440 = vld [vmem:[%s339 + $0x48] sm:$0xf]
      %v441 = vld [vmem:[%s339 + $0x4c] sm:$0xf]
      %v442 = vld [vmem:[%s339 + $0x50] sm:$0xf]
      %v443 = vld [vmem:[%s339 + $0x54] sm:$0xf]
      %v444 = vld [vmem:[%s339 + $0x58] sm:$0xf]
      %v445 = vld [vmem:[%s339 + $0x5c] sm:$0xf]
      %v446 = vld [vmem:[%s339 + $0x60] sm:$0xf]
      %v447 = vld [vmem:[%s339 + $0x64] sm:$0xf]
      %v448 = vld [vmem:[%s339 + $0x68] sm:$0xf]
      %v449 = vld [vmem:[%s339 + $0x6c] sm:$0xf]
      %v450 = vld [vmem:[%s339 + $0x70] sm:$0xf]
      %v451 = vld [vmem:[%s339 + $0x74] sm:$0xf]
      %v452 = vld [vmem:[%s339 + $0x78] sm:$0xf]
      %v453 = vld [vmem:[%s339 + $0x7c] sm:$0xf]
      %v454 = vld [vmem:[%s339 + $0x80] sm:$0xf]
      %v455 = vld [vmem:[%s339 + $0x84] sm:$0xf]
      %v456 = vld [vmem:[%s339 + $0x88] sm:$0xf]
      %v457 = vld [vmem:[%s339 + $0x8c] sm:$0xf]
      %v458 = vld [vmem:[%s339 + $0x90] sm:$0xf]
      %v459 = vld [vmem:[%s339 + $0x94] sm:$0xf]
      %v460 = vld [vmem:[%s339 + $0x98] sm:$0xf]
      %v461 = vld [vmem:[%s339 + $0x9c] sm:$0xf]
      %v462 = vld [vmem:[%s339 + $0xa0] sm:$0xf]
      %v463 = vld [vmem:[%s339 + $0xa4] sm:$0xf]
      %v464 = vld [vmem:[%s339 + $0xa8] sm:$0xf]
      %v465 = vld [vmem:[%s339 + $0xac] sm:$0xf]
      %v466 = vld [vmem:[%s339 + $0xb0] sm:$0xf]
      %v467 = vld [vmem:[%s339 + $0xb4] sm:$0xf]
      %v468 = vld [vmem:[%s339 + $0xb8] sm:$0xf]
      %v469 = vld [vmem:[%s339 + $0xbc] sm:$0xf]
      %v471 = vunpack.c.l.s4 1983009808
      %v472 = vunpack.c.0.s8 %v471
      %v473 = vlaneseq
      %v474 = vshrl.u32 %v473, 7
      %v475 = vsub.s32 %v472, %v474
      %v476 = vrot.slane %v364, %v475
      %v477 = vcombine.high %v476, %v476
      %v479 = vunpack.c.l.s4 1983009808
      %v480 = vunpack.c.0.s8 %v479
      %v481 = vlaneseq
      %v482 = vshrl.u32 %v481, 7
      %v483 = vsub.s32 %v480, %v482
      %v484 = vrot.slane %v365, %v483
      %v485 = vcombine.high %v484, %v484
      %v487 = vunpack.c.l.s4 1983009808
      %v488 = vunpack.c.0.s8 %v487
      %v489 = vlaneseq
      %v490 = vshrl.u32 %v489, 7
      %v491 = vsub.s32 %v488, %v490
      %v492 = vrot.slane %v366, %v491
      %v493 = vcombine.high %v492, %v492
      %v495 = vunpack.c.l.s4 1983009808
      %v496 = vunpack.c.0.s8 %v495
      %v497 = vlaneseq
      %v498 = vshrl.u32 %v497, 7
      %v499 = vsub.s32 %v496, %v498
      %v500 = vrot.slane %v367, %v499
      %v501 = vcombine.high %v500, %v500
      %vm502 = vsmask.f32 1280
      %vm503 = vsmask.f32 3336
      %vm504 = vmor %vm502, %vm503
      %vm505 = vsmask.f32 5392
      %vm506 = vmor %vm504, %vm505
      %vm507 = vsmask.f32 7448
      %vm508 = vmor %vm506, %vm507
      %v510 = vshrl.u32 %v476, 16
      %v512 = vrot.slane %v510, 6
      %v513 = vshll.u32 %v476, 16
      %v515 = vrot.slane %v513, 7
      %v516 = vor.u32 %v512, %v515
      %v517 = vrot.slane %v516, 2
      %v519 = vshll.u32 %v477, 16
      %v521 = vrot.slane %v519, 7
      %v522 = vsel %vm508, %v517, %v521
      %v524 = vshrl.u32 %v484, 16
      %v526 = vrot.slane %v524, 6
      %v527 = vshll.u32 %v484, 16
      %v529 = vrot.slane %v527, 7
      %v530 = vor.u32 %v526, %v529
      %v531 = vrot.slane %v530, 2
      %v533 = vshll.u32 %v485, 16
      %v535 = vrot.slane %v533, 7
      %v536 = vsel %vm508, %v531, %v535
      %v538 = vshrl.u32 %v492, 16
      %v540 = vrot.slane %v538, 6
      %v541 = vshll.u32 %v492, 16
      %v543 = vrot.slane %v541, 7
      %v544 = vor.u32 %v540, %v543
      %v545 = vrot.slane %v544, 2
      %v547 = vshll.u32 %v493, 16
      %v549 = vrot.slane %v547, 7
      %v550 = vsel %vm508, %v545, %v549
      %v552 = vshrl.u32 %v500, 16
      %v554 = vrot.slane %v552, 6
      %v555 = vshll.u32 %v500, 16
      %v557 = vrot.slane %v555, 7
      %v558 = vor.u32 %v554, %v557
      %v559 = vrot.slane %v558, 2
      %v561 = vshll.u32 %v501, 16
      %v563 = vrot.slane %v561, 7
      %v564 = vsel %vm508, %v559, %v563
      %v566 = vunpack.c.l.s4 1983009808
      %v567 = vunpack.c.0.s8 %v566
      %v568 = vlaneseq
      %v569 = vshrl.u32 %v568, 7
      %v570 = vsub.s32 %v567, %v569
      %v571 = vrot.slane %v368, %v570
      %v572 = vcombine.high %v571, %v571
      %v574 = vshrl.u32 %v571, 16
      %v576 = vrot.slane %v574, 6
      %v577 = vshll.u32 %v571, 16
      %v579 = vrot.slane %v577, 7
      %v580 = vor.u32 %v576, %v579
      %v581 = vrot.slane %v580, 2
      %v583 = vshll.u32 %v572, 16
      %v585 = vrot.slane %v583, 7
      %v586 = vsel %vm508, %v581, %v585
      %v588 = vunpack.c.l.s4 1983009808
      %v589 = vunpack.c.0.s8 %v588
      %v590 = vlaneseq
      %v591 = vshrl.u32 %v590, 7
      %v592 = vsub.s32 %v589, %v591
      %v593 = vrot.slane %v369, %v592
      %v594 = vcombine.high %v593, %v593
      %v596 = vshrl.u32 %v593, 16
      %v598 = vrot.slane %v596, 6
      %v599 = vshll.u32 %v593, 16
      %v601 = vrot.slane %v599, 7
      %v602 = vor.u32 %v598, %v601
      %v603 = vrot.slane %v602, 2
      %v605 = vshll.u32 %v594, 16
      %v607 = vrot.slane %v605, 7
      %v608 = vsel %vm508, %v603, %v607
      %v609 = vcombine.low %v522, %v536
      %v610 = vcombine.low %v550, %v564
      %v612 = vunpack.c.l.s4 1983009808
      %v613 = vunpack.c.0.s8 %v612
      %v614 = vlaneseq
      %v615 = vshrl.u32 %v614, 7
      %v616 = vsub.s32 %v613, %v615
      %v617 = vrot.slane %v609, %v616
      %v619 = vunpack.c.l.s4 1983009808
      %v620 = vunpack.c.0.s8 %v619
      %v621 = vlaneseq
      %v622 = vshrl.u32 %v621, 7
      %v623 = vsub.s32 %v620, %v622
      %v624 = vrot.slane %v610, %v623
      %v625 = vcombine.low %v617, %v624
      %v627 = vcombine.low %v536, %v550
      %v628 = vcombine.low %v564, %v586
      %v630 = vunpack.c.l.s4 1983009808
      %v631 = vunpack.c.0.s8 %v630
      %v632 = vlaneseq
      %v633 = vshrl.u32 %v632, 7
      %v634 = vsub.s32 %v631, %v633
      %v635 = vrot.slane %v627, %v634
      %v637 = vunpack.c.l.s4 1983009808
      %v638 = vunpack.c.0.s8 %v637
      %v639 = vlaneseq
      %v640 = vshrl.u32 %v639, 7
      %v641 = vsub.s32 %v638, %v640
      %v642 = vrot.slane %v628, %v641
      %v643 = vcombine.low %v635, %v642
      %v645 = vcombine.low %v586, %v608
      %v647 = vunpack.c.l.s4 1983009808
      %v648 = vunpack.c.0.s8 %v647
      %v649 = vlaneseq
      %v650 = vshrl.u32 %v649, 7
      %v651 = vsub.s32 %v648, %v650
      %v652 = vrot.slane %v645, %v651
      %v653 = vcombine.low %v624, %v652
      %s655 = scalar_lea.vmem %s339, 192
      %v656 = vld [vmem:[%s655] sm:$0xf]
      %v657 = vld [vmem:[%s655 + $0x4] sm:$0xf]
      %v658 = vld [vmem:[%s655 + $0x8] sm:$0xf]
      %v659 = vld [vmem:[%s655 + $0xc] sm:$0xf]
      %v660 = vld [vmem:[%s655 + $0x10] sm:$0xf]
      %v661 = vld [vmem:[%s655 + $0x14] sm:$0xf]
      %v662 = vld [vmem:[%s655 + $0x18] sm:$0xf]
      %v663 = vld [vmem:[%s655 + $0x1c] sm:$0xf]
      %v664 = vld [vmem:[%s655 + $0x20] sm:$0xf]
      %v665 = vld [vmem:[%s655 + $0x24] sm:$0xf]
      %v666 = vld [vmem:[%s655 + $0x28] sm:$0xf]
      %v667 = vld [vmem:[%s655 + $0x2c] sm:$0xf]
      %v668 = vld [vmem:[%s655 + $0x30] sm:$0xf]
      %v669 = vld [vmem:[%s655 + $0x34] sm:$0xf]
      %v670 = vld [vmem:[%s655 + $0x38] sm:$0xf]
      %v671 = vld [vmem:[%s655 + $0x3c] sm:$0xf]
      %v672 = vld [vmem:[%s655 + $0x40] sm:$0xf]
      %v673 = vld [vmem:[%s655 + $0x44] sm:$0xf]
      %v674 = vld [vmem:[%s655 + $0x48] sm:$0xf]
      %v675 = vld [vmem:[%s655 + $0x4c] sm:$0xf]
      %v676 = vld [vmem:[%s655 + $0x50] sm:$0xf]
      %v677 = vld [vmem:[%s655 + $0x54] sm:$0xf]
      %v678 = vld [vmem:[%s655 + $0x58] sm:$0xf]
      %v679 = vld [vmem:[%s655 + $0x5c] sm:$0xf]
      %v680 = vld [vmem:[%s655 + $0x60] sm:$0xf]
      %v681 = vld [vmem:[%s655 + $0x64] sm:$0xf]
      %v682 = vld [vmem:[%s655 + $0x68] sm:$0xf]
      %v683 = vld [vmem:[%s655 + $0x6c] sm:$0xf]
      %v684 = vld [vmem:[%s655 + $0x70] sm:$0xf]
      %v685 = vld [vmem:[%s655 + $0x74] sm:$0xf]
      %v686 = vld [vmem:[%s655 + $0x78] sm:$0xf]
      %v687 = vld [vmem:[%s655 + $0x7c] sm:$0xf]
      %v688 = vld [vmem:[%s655 + $0x80] sm:$0xf]
      %v689 = vld [vmem:[%s655 + $0x84] sm:$0xf]
      %v690 = vld [vmem:[%s655 + $0x88] sm:$0xf]
      %v691 = vld [vmem:[%s655 + $0x8c] sm:$0xf]
      %v692 = vld [vmem:[%s655 + $0x90] sm:$0xf]
      %v693 = vld [vmem:[%s655 + $0x94] sm:$0xf]
      %v694 = vld [vmem:[%s655 + $0x98] sm:$0xf]
      %v695 = vld [vmem:[%s655 + $0x9c] sm:$0xf]
      %v696 = vld [vmem:[%s655 + $0xa0] sm:$0xf]
      %v697 = vld [vmem:[%s655 + $0xa4] sm:$0xf]
      %v698 = vld [vmem:[%s655 + $0xa8] sm:$0xf]
      %v699 = vld [vmem:[%s655 + $0xac] sm:$0xf]
      %v700 = vld [vmem:[%s655 + $0xb0] sm:$0xf]
      %v701 = vld [vmem:[%s655 + $0xb4] sm:$0xf]
      %v702 = vld [vmem:[%s655 + $0xb8] sm:$0xf]
      %v703 = vld [vmem:[%s655 + $0xbc] sm:$0xf]
      %v752 = vunpack.c.l.b16 %v656
      %v753 = vunpack.c.l.b16 %v657
      %v754 = vunpack.c.l.b16 %v658
      %v755 = vunpack.c.l.b16 %v659
      %v756 = vunpack.c.l.b16 %v660
      %v757 = vunpack.c.l.b16 %v661
      %v758 = vunpack.c.l.b16 %v662
      %v759 = vunpack.c.l.b16 %v663
      %v760 = vunpack.c.l.b16 %v664
      %v761 = vunpack.c.l.b16 %v665
      %v762 = vunpack.c.l.b16 %v666
      %v763 = vunpack.c.l.b16 %v667
      %v764 = vunpack.c.l.b16 %v668
      %v765 = vunpack.c.l.b16 %v669
      %v766 = vunpack.c.l.b16 %v670
      %v767 = vunpack.c.l.b16 %v671
      %v768 = vunpack.c.l.b16 %v672
      %v769 = vunpack.c.l.b16 %v673
      %v770 = vunpack.c.l.b16 %v674
      %v771 = vunpack.c.l.b16 %v675
      %v772 = vunpack.c.l.b16 %v676
      %v773 = vunpack.c.l.b16 %v677
      %v774 = vunpack.c.l.b16 %v678
      %v775 = vunpack.c.l.b16 %v679
      %v776 = vunpack.c.l.b16 %v680
      %v777 = vunpack.c.l.b16 %v681
      %v778 = vunpack.c.l.b16 %v682
      %v779 = vunpack.c.l.b16 %v683
      %v780 = vunpack.c.l.b16 %v684
      %v781 = vunpack.c.l.b16 %v685
      %v782 = vunpack.c.l.b16 %v686
      %v783 = vunpack.c.l.b16 %v687
      %v784 = vunpack.c.l.b16 %v688
      %v785 = vunpack.c.l.b16 %v689
      %v786 = vunpack.c.l.b16 %v690
      %v787 = vunpack.c.l.b16 %v691
      %v788 = vunpack.c.l.b16 %v692
      %v789 = vunpack.c.l.b16 %v693
      %v790 = vunpack.c.l.b16 %v694
      %v791 = vunpack.c.l.b16 %v695
      %v792 = vunpack.c.l.b16 %v696
      %v793 = vunpack.c.l.b16 %v697
      %v794 = vunpack.c.l.b16 %v698
      %v795 = vunpack.c.l.b16 %v699
      %v796 = vunpack.c.l.b16 %v700
      %v797 = vunpack.c.l.b16 %v701
      %v798 = vunpack.c.l.b16 %v702
      %v799 = vunpack.c.l.b16 %v703
      %v800 = vpack.c.b16 %v753, %v752
      %v801 = vpack.c.b16 %v755, %v754
      %v802 = vpack.c.b16 %v757, %v756
      %v803 = vpack.c.b16 %v759, %v758
      %v804 = vpack.c.b16 %v761, %v760
      %v805 = vpack.c.b16 %v763, %v762
      %v806 = vpack.c.b16 %v765, %v764
      %v807 = vpack.c.b16 %v767, %v766
      %v808 = vpack.c.b16 %v769, %v768
      %v809 = vpack.c.b16 %v771, %v770
      %v810 = vpack.c.b16 %v773, %v772
      %v811 = vpack.c.b16 %v775, %v774
      %v812 = vpack.c.b16 %v777, %v776
      %v813 = vpack.c.b16 %v779, %v778
      %v814 = vpack.c.b16 %v781, %v780
      %v815 = vpack.c.b16 %v783, %v782
      %v816 = vpack.c.b16 %v785, %v784
      %v817 = vpack.c.b16 %v787, %v786
      %v818 = vpack.c.b16 %v789, %v788
      %v819 = vpack.c.b16 %v791, %v790
      %v820 = vpack.c.b16 %v793, %v792
      %v821 = vpack.c.b16 %v795, %v794
      %v822 = vpack.c.b16 %v797, %v796
      %v823 = vpack.c.b16 %v799, %v798
      %848 = vmatprep.subr.bf16.mxu0 0
      %849 = vmatpush1.bf16.msra.mxu0 %v800
      %850 = vmatprep.subr.bf16.mxu0 0
      %851 = vmatpush1.bf16.msra.mxu0 %v801
      %852 = vmatprep.subr.bf16.mxu0 0
      %853 = vmatpush1.bf16.msra.mxu0 %v802
      %854 = vmatprep.subr.bf16.mxu0 0
      %855 = vmatpush1.bf16.msra.mxu0 %v803
      %856 = vmatprep.subr.bf16.mxu0 0
      %857 = vmatpush1.bf16.msra.mxu0 %v804
      %858 = vmatprep.subr.bf16.mxu0 0
      %859 = vmatpush1.bf16.msra.mxu0 %v805
      %860 = vmatprep.subr.bf16.mxu0 0
      %861 = vmatpush1.bf16.msra.mxu0 %v806
      %862 = vmatprep.subr.bf16.mxu0 0
      %863 = vmatpush1.bf16.msra.mxu0 %v807
      %864 = vmatprep.subr.bf16.mxu0 0
      %865 = vmatpush1.bf16.msra.mxu0 %v808
      %866 = vmatprep.subr.bf16.mxu0 0
      %867 = vmatpush1.bf16.msra.mxu0 %v809
      %868 = vmatprep.subr.bf16.mxu0 0
      %869 = vmatpush1.bf16.msra.mxu0 %v810
      %870 = vmatprep.subr.bf16.mxu0 0
      %871 = vmatpush1.bf16.msra.mxu0 %v811
      %872 = vmatprep.subr.bf16.mxu0 0
      %873 = vmatpush1.bf16.msra.mxu0 %v812
      %874 = vmatprep.subr.bf16.mxu0 0
      %875 = vmatpush1.bf16.msra.mxu0 %v813
      %876 = vmatprep.subr.bf16.mxu0 0
      %877 = vmatpush1.bf16.msra.mxu0 %v814
      %878 = vmatprep.subr.bf16.mxu0 0
      %879 = vmatpush1.bf16.msra.mxu0 %v815
      %880 = vmatprep.mubr.bf16.mxu0 %v643
      %881 = vmatmul.mubr.bf16.gmra.mrb[0].mxu0 %v625
      %v882 = vpop.f32.mrb[0].mxu0
      %v883 = vadd.f32 0.0, %v882
      %v884 = vpop.f32.mrb[0].mxu0
      %v885 = vpop.f32.mrb[0].mxu0
      %v886 = vadd.f32 0.0, %v885
      %v887 = vpop.f32.mrb[0].mxu0
      %888 = vdwg.mxu0
      %889 = vmatprep.subr.bf16.mxu0 0
      %890 = vmatpush1.bf16.msra.mxu0 %v816
      %891 = vmatprep.subr.bf16.mxu0 0
      %892 = vmatpush1.bf16.msra.mxu0 %v817
      %893 = vmatprep.subr.bf16.mxu0 0
      %894 = vmatpush1.bf16.msra.mxu0 %v818
      %895 = vmatprep.subr.bf16.mxu0 0
      %896 = vmatpush1.bf16.msra.mxu0 %v819
      %897 = vmatprep.subr.bf16.mxu0 0
      %898 = vmatpush1.bf16.msra.mxu0 %v820
      %899 = vmatprep.subr.bf16.mxu0 0
      %900 = vmatpush1.bf16.msra.mxu0 %v821
      %901 = vmatprep.subr.bf16.mxu0 0
      %902 = vmatpush1.bf16.msra.mxu0 %v822
      %903 = vmatprep.subr.bf16.mxu0 0
      %904 = vmatpush1.bf16.msra.mxu0 %v823
      %905 = vmatprep.subr.bf16.mxu0 0
      %906 = vmatpush1.bf16.msra.mxu0 0
      %907 = vmatprep.subr.bf16.mxu0 0
      %908 = vmatpush1.bf16.msra.mxu0 0
      %909 = vmatprep.subr.bf16.mxu0 0
      %910 = vmatpush1.bf16.msra.mxu0 0
      %911 = vmatprep.subr.bf16.mxu0 0
      %912 = vmatpush1.bf16.msra.mxu0 0
      %913 = vmatprep.subr.bf16.mxu0 0
      %914 = vmatpush1.bf16.msra.mxu0 0
      %915 = vmatprep.subr.bf16.mxu0 0
      %916 = vmatpush1.bf16.msra.mxu0 0
      %917 = vmatprep.subr.bf16.mxu0 0
      %918 = vmatpush1.bf16.msra.mxu0 0
      %919 = vmatprep.subr.bf16.mxu0 0
      %920 = vmatpush1.bf16.msra.mxu0 0
      %921 = vmatprep.mubr.bf16.mxu0 0
      %922 = vmatmul.mubr.bf16.gmra.mrb[0].mxu0 %v653
      %v923 = vpop.f32.mrb[0].mxu0
      %v924 = vadd.f32 %v883, %v923
      %v925 = vpop.f32.mrb[0].mxu0
      %v926 = vpop.f32.mrb[0].mxu0
      %v927 = vadd.f32 %v886, %v926
      %v928 = vpop.f32.mrb[0].mxu0
      %929 = vdwg.mxu0
      %v978 = vunpack.c.l.b16 %v422
      %v979 = vunpack.c.l.b16 %v423
      %v980 = vunpack.c.l.b16 %v424
      %v981 = vunpack.c.l.b16 %v425
      %v982 = vunpack.c.l.b16 %v426
      %v983 = vunpack.c.l.b16 %v427
      %v984 = vunpack.c.l.b16 %v428
      %v985 = vunpack.c.l.b16 %v429
      %v986 = vunpack.c.l.b16 %v430
      %v987 = vunpack.c.l.b16 %v431
      %v988 = vunpack.c.l.b16 %v432
      %v989 = vunpack.c.l.b16 %v433
      %v990 = vunpack.c.l.b16 %v434
      %v991 = vunpack.c.l.b16 %v435
      %v992 = vunpack.c.l.b16 %v436
      %v993 = vunpack.c.l.b16 %v437
      %v994 = vunpack.c.l.b16 %v438
      %v995 = vunpack.c.l.b16 %v439
      %v996 = vunpack.c.l.b16 %v440
      %v997 = vunpack.c.l.b16 %v441
      %v998 = vunpack.c.l.b16 %v442
      %v999 = vunpack.c.l.b16 %v443
      %v1000 = vunpack.c.l.b16 %v444
      %v1001 = vunpack.c.l.b16 %v445
      %v1002 = vunpack.c.l.b16 %v446
      %v1003 = vunpack.c.l.b16 %v447
      %v1004 = vunpack.c.l.b16 %v448
      %v1005 = vunpack.c.l.b16 %v449
      %v1006 = vunpack.c.l.b16 %v450
      %v1007 = vunpack.c.l.b16 %v451
      %v1008 = vunpack.c.l.b16 %v452
      %v1009 = vunpack.c.l.b16 %v453
      %v1010 = vunpack.c.l.b16 %v454
      %v1011 = vunpack.c.l.b16 %v455
      %v1012 = vunpack.c.l.b16 %v456
      %v1013 = vunpack.c.l.b16 %v457
      %v1014 = vunpack.c.l.b16 %v458
      %v1015 = vunpack.c.l.b16 %v459
      %v1016 = vunpack.c.l.b16 %v460
      %v1017 = vunpack.c.l.b16 %v461
      %v1018 = vunpack.c.l.b16 %v462
      %v1019 = vunpack.c.l.b16 %v463
      %v1020 = vunpack.c.l.b16 %v464
      %v1021 = vunpack.c.l.b16 %v465
      %v1022 = vunpack.c.l.b16 %v466
      %v1023 = vunpack.c.l.b16 %v467
      %v1024 = vunpack.c.l.b16 %v468
      %v1025 = vunpack.c.l.b16 %v469
      %v1026 = vpack.c.b16 %v979, %v978
      %v1027 = vpack.c.b16 %v981, %v980
      %v1028 = vpack.c.b16 %v983, %v982
      %v1029 = vpack.c.b16 %v985, %v984
      %v1030 = vpack.c.b16 %v987, %v986
      %v1031 = vpack.c.b16 %v989, %v988
      %v1032 = vpack.c.b16 %v991, %v990
      %v1033 = vpack.c.b16 %v993, %v992
      %v1034 = vpack.c.b16 %v995, %v994
      %v1035 = vpack.c.b16 %v997, %v996
      %v1036 = vpack.c.b16 %v999, %v998
      %v1037 = vpack.c.b16 %v1001, %v1000
      %v1038 = vpack.c.b16 %v1003, %v1002
      %v1039 = vpack.c.b16 %v1005, %v1004
      %v1040 = vpack.c.b16 %v1007, %v1006
      %v1041 = vpack.c.b16 %v1009, %v1008
      %v1042 = vpack.c.b16 %v1011, %v1010
      %v1043 = vpack.c.b16 %v1013, %v1012
      %v1044 = vpack.c.b16 %v1015, %v1014
      %v1045 = vpack.c.b16 %v1017, %v1016
      %v1046 = vpack.c.b16 %v1019, %v1018
      %v1047 = vpack.c.b16 %v1021, %v1020
      %v1048 = vpack.c.b16 %v1023, %v1022
      %v1049 = vpack.c.b16 %v1025, %v1024
      %1074 = vmatprep.subr.bf16.mxu0 0
      %1075 = vmatpush1.bf16.msra.mxu0 %v1026
      %1076 = vmatprep.subr.bf16.mxu0 0
      %1077 = vmatpush1.bf16.msra.mxu0 %v1027
      %1078 = vmatprep.subr.bf16.mxu0 0
      %1079 = vmatpush1.bf16.msra.mxu0 %v1028
      %1080 = vmatprep.subr.bf16.mxu0 0
      %1081 = vmatpush1.bf16.msra.mxu0 %v1029
      %1082 = vmatprep.subr.bf16.mxu0 0
      %1083 = vmatpush1.bf16.msra.mxu0 %v1030
      %1084 = vmatprep.subr.bf16.mxu0 0
      %1085 = vmatpush1.bf16.msra.mxu0 %v1031
      %1086 = vmatprep.subr.bf16.mxu0 0
      %1087 = vmatpush1.bf16.msra.mxu0 %v1032
      %1088 = vmatprep.subr.bf16.mxu0 0
      %1089 = vmatpush1.bf16.msra.mxu0 %v1033
      %1090 = vmatprep.subr.bf16.mxu0 0
      %1091 = vmatpush1.bf16.msra.mxu0 %v1034
      %1092 = vmatprep.subr.bf16.mxu0 0
      %1093 = vmatpush1.bf16.msra.mxu0 %v1035
      %1094 = vmatprep.subr.bf16.mxu0 0
      %1095 = vmatpush1.bf16.msra.mxu0 %v1036
      %1096 = vmatprep.subr.bf16.mxu0 0
      %1097 = vmatpush1.bf16.msra.mxu0 %v1037
      %1098 = vmatprep.subr.bf16.mxu0 0
      %1099 = vmatpush1.bf16.msra.mxu0 %v1038
      %1100 = vmatprep.subr.bf16.mxu0 0
      %1101 = vmatpush1.bf16.msra.mxu0 %v1039
      %1102 = vmatprep.subr.bf16.mxu0 0
      %1103 = vmatpush1.bf16.msra.mxu0 %v1040
      %1104 = vmatprep.subr.bf16.mxu0 0
      %1105 = vmatpush1.bf16.msra.mxu0 %v1041
      %1106 = vmatprep.mubr.bf16.mxu0 %v409
      %1107 = vmatmul.mubr.bf16.gmra.mrb[0].mxu0 %v390
      %v1108 = vpop.f32.mrb[0].mxu0
      %v1109 = vadd.f32 %v924, %v1108
      %v1110 = vpop.f32.mrb[0].mxu0
      %v1111 = vpop.f32.mrb[0].mxu0
      %v1112 = vadd.f32 %v927, %v1111
      %v1113 = vpop.f32.mrb[0].mxu0
      %1114 = vdwg.mxu0
      %1115 = vmatprep.subr.bf16.mxu0 0
      %1116 = vmatpush1.bf16.msra.mxu0 %v1042
      %1117 = vmatprep.subr.bf16.mxu0 0
      %1118 = vmatpush1.bf16.msra.mxu0 %v1043
      %1119 = vmatprep.subr.bf16.mxu0 0
      %1120 = vmatpush1.bf16.msra.mxu0 %v1044
      %1121 = vmatprep.subr.bf16.mxu0 0
      %1122 = vmatpush1.bf16.msra.mxu0 %v1045
      %1123 = vmatprep.subr.bf16.mxu0 0
      %1124 = vmatpush1.bf16.msra.mxu0 %v1046
      %1125 = vmatprep.subr.bf16.mxu0 0
      %1126 = vmatpush1.bf16.msra.mxu0 %v1047
      %1127 = vmatprep.subr.bf16.mxu0 0
      %1128 = vmatpush1.bf16.msra.mxu0 %v1048
      %1129 = vmatprep.subr.bf16.mxu0 0
      %1130 = vmatpush1.bf16.msra.mxu0 %v1049
      %1131 = vmatprep.subr.bf16.mxu0 0
      %1132 = vmatpush1.bf16.msra.mxu0 0
      %1133 = vmatprep.subr.bf16.mxu0 0
      %1134 = vmatpush1.bf16.msra.mxu0 0
      %1135 = vmatprep.subr.bf16.mxu0 0
      %1136 = vmatpush1.bf16.msra.mxu0 0
      %1137 = vmatprep.subr.bf16.mxu0 0
      %1138 = vmatpush1.bf16.msra.mxu0 0
      %1139 = vmatprep.subr.bf16.mxu0 0
      %1140 = vmatpush1.bf16.msra.mxu0 0
      %1141 = vmatprep.subr.bf16.mxu0 0
      %1142 = vmatpush1.bf16.msra.mxu0 0
      %1143 = vmatprep.subr.bf16.mxu0 0
      %1144 = vmatpush1.bf16.msra.mxu0 0
      %1145 = vmatprep.subr.bf16.mxu0 0
      %1146 = vmatpush1.bf16.msra.mxu0 0
      %1147 = vmatprep.mubr.bf16.mxu0 0
      %1148 = vmatmul.mubr.bf16.gmra.mrb[0].mxu0 %v420
      %v1149 = vpop.f32.mrb[0].mxu0
      %v1150 = vadd.f32 %v1109, %v1149
      %v1151 = vpop.f32.mrb[0].mxu0
      %v1152 = vpop.f32.mrb[0].mxu0
      %v1153 = vadd.f32 %v1112, %v1152
      %v1154 = vpop.f32.mrb[0].mxu0
      %1155 = vdwg.mxu0
      %vm1156 = vcmask 1040384
      %vm1157 = vcmask 1042434
      %vm1158 = vmor %vm1156, %vm1157
      %vm1159 = vcmask 1044484
      %vm1160 = vmor %vm1158, %vm1159
      %vm1161 = vcmask 1046534
      %vm1162 = vmor %vm1160, %vm1161
      %v1163 = vrot.slane %v476, 7
      %v1164 = vrot.slane %v1163, 2
      %v1165 = vrot.slane %v477, 7
      %v1166 = vsel %vm1162, %v1164, %v1165
      %v1167 = vrot.slane %v484, 7
      %v1168 = vrot.slane %v1167, 2
      %v1169 = vrot.slane %v485, 7
      %v1170 = vsel %vm1162, %v1168, %v1169
      %v1171 = vrot.slane %v492, 7
      %v1172 = vrot.slane %v1171, 2
      %v1173 = vrot.slane %v493, 7
      %v1174 = vsel %vm1162, %v1172, %v1173
      %v1175 = vrot.slane %v500, 7
      %v1176 = vrot.slane %v1175, 2
      %v1177 = vrot.slane %v501, 7
      %v1178 = vsel %vm1162, %v1176, %v1177
      %v1179 = vrot.slane %v571, 7
      %v1180 = vrot.slane %v1179, 2
      %v1181 = vrot.slane %v572, 7
      %v1182 = vsel %vm1162, %v1180, %v1181
      %v1183 = vrot.slane %v593, 7
      %v1184 = vrot.slane %v1183, 2
      %v1185 = vrot.slane %v594, 7
      %v1186 = vsel %vm1162, %v1184, %v1185
      %v1187 = vcombine.low %v1166, %v1170
      %v1188 = vcombine.low %v1174, %v1178
      %v1190 = vunpack.c.l.s4 1983009808
      %v1191 = vunpack.c.0.s8 %v1190
      %v1192 = vlaneseq
      %v1193 = vshrl.u32 %v1192, 7
      %v1194 = vsub.s32 %v1191, %v1193
      %v1195 = vrot.slane %v1187, %v1194
      %v1197 = vunpack.c.l.s4 1983009808
      %v1198 = vunpack.c.0.s8 %v1197
      %v1199 = vlaneseq
      %v1200 = vshrl.u32 %v1199, 7
      %v1201 = vsub.s32 %v1198, %v1200
      %v1202 = vrot.slane %v1188, %v1201
      %v1203 = vcombine.low %v1195, %v1202
      %v1205 = vcombine.low %v1170, %v1174
      %v1206 = vcombine.low %v1178, %v1182
      %v1208 = vunpack.c.l.s4 1983009808
      %v1209 = vunpack.c.0.s8 %v1208
      %v1210 = vlaneseq
      %v1211 = vshrl.u32 %v1210, 7
      %v1212 = vsub.s32 %v1209, %v1211
      %v1213 = vrot.slane %v1205, %v1212
      %v1215 = vunpack.c.l.s4 1983009808
      %v1216 = vunpack.c.0.s8 %v1215
      %v1217 = vlaneseq
      %v1218 = vshrl.u32 %v1217, 7
      %v1219 = vsub.s32 %v1216, %v1218
      %v1220 = vrot.slane %v1206, %v1219
      %v1221 = vcombine.low %v1213, %v1220
      %v1223 = vcombine.low %v1182, %v1186
      %v1225 = vunpack.c.l.s4 1983009808
      %v1226 = vunpack.c.0.s8 %v1225
      %v1227 = vlaneseq
      %v1228 = vshrl.u32 %v1227, 7
      %v1229 = vsub.s32 %v1226, %v1228
      %v1230 = vrot.slane %v1223, %v1229
      %v1231 = vcombine.low %v1202, %v1230
      %s1233 = scalar_lea.vmem %s339, 384
      %v1234 = vld [vmem:[%s1233] sm:$0xf]
      %v1235 = vld [vmem:[%s1233 + $0x4] sm:$0xf]
      %v1236 = vld [vmem:[%s1233 + $0x8] sm:$0xf]
      %v1237 = vld [vmem:[%s1233 + $0xc] sm:$0xf]
      %v1238 = vld [vmem:[%s1233 + $0x10] sm:$0xf]
      %v1239 = vld [vmem:[%s1233 + $0x14] sm:$0xf]
      %v1240 = vld [vmem:[%s1233 + $0x18] sm:$0xf]
      %v1241 = vld [vmem:[%s1233 + $0x1c] sm:$0xf]
      %v1242 = vld [vmem:[%s1233 + $0x20] sm:$0xf]
      %v1243 = vld [vmem:[%s1233 + $0x24] sm:$0xf]
      %v1244 = vld [vmem:[%s1233 + $0x28] sm:$0xf]
      %v1245 = vld [vmem:[%s1233 + $0x2c] sm:$0xf]
      %v1246 = vld [vmem:[%s1233 + $0x30] sm:$0xf]
      %v1247 = vld [vmem:[%s1233 + $0x34] sm:$0xf]
      %v1248 = vld [vmem:[%s1233 + $0x38] sm:$0xf]
      %v1249 = vld [vmem:[%s1233 + $0x3c] sm:$0xf]
      %v1250 = vld [vmem:[%s1233 + $0x40] sm:$0xf]
      %v1251 = vld [vmem:[%s1233 + $0x44] sm:$0xf]
      %v1252 = vld [vmem:[%s1233 + $0x48] sm:$0xf]
      %v1253 = vld [vmem:[%s1233 + $0x4c] sm:$0xf]
      %v1254 = vld [vmem:[%s1233 + $0x50] sm:$0xf]
      %v1255 = vld [vmem:[%s1233 + $0x54] sm:$0xf]
      %v1256 = vld [vmem:[%s1233 + $0x58] sm:$0xf]
      %v1257 = vld [vmem:[%s1233 + $0x5c] sm:$0xf]
      %v1258 = vld [vmem:[%s1233 + $0x60] sm:$0xf]
      %v1259 = vld [vmem:[%s1233 + $0x64] sm:$0xf]
      %v1260 = vld [vmem:[%s1233 + $0x68] sm:$0xf]
      %v1261 = vld [vmem:[%s1233 + $0x6c] sm:$0xf]
      %v1262 = vld [vmem:[%s1233 + $0x70] sm:$0xf]
      %v1263 = vld [vmem:[%s1233 + $0x74] sm:$0xf]
      %v1264 = vld [vmem:[%s1233 + $0x78] sm:$0xf]
      %v1265 = vld [vmem:[%s1233 + $0x7c] sm:$0xf]
      %v1266 = vld [vmem:[%s1233 + $0x80] sm:$0xf]
      %v1267 = vld [vmem:[%s1233 + $0x84] sm:$0xf]
      %v1268 = vld [vmem:[%s1233 + $0x88] sm:$0xf]
      %v1269 = vld [vmem:[%s1233 + $0x8c] sm:$0xf]
      %v1270 = vld [vmem:[%s1233 + $0x90] sm:$0xf]
      %v1271 = vld [vmem:[%s1233 + $0x94] sm:$0xf]
      %v1272 = vld [vmem:[%s1233 + $0x98] sm:$0xf]
      %v1273 = vld [vmem:[%s1233 + $0x9c] sm:$0xf]
      %v1274 = vld [vmem:[%s1233 + $0xa0] sm:$0xf]
      %v1275 = vld [vmem:[%s1233 + $0xa4] sm:$0xf]
      %v1276 = vld [vmem:[%s1233 + $0xa8] sm:$0xf]
      %v1277 = vld [vmem:[%s1233 + $0xac] sm:$0xf]
      %v1278 = vld [vmem:[%s1233 + $0xb0] sm:$0xf]
      %v1279 = vld [vmem:[%s1233 + $0xb4] sm:$0xf]
      %v1280 = vld [vmem:[%s1233 + $0xb8] sm:$0xf]
      %v1281 = vld [vmem:[%s1233 + $0xbc] sm:$0xf]
      %v1330 = vunpack.c.l.b16 %v1234
      %v1331 = vunpack.c.l.b16 %v1235
      %v1332 = vunpack.c.l.b16 %v1236
      %v1333 = vunpack.c.l.b16 %v1237
      %v1334 = vunpack.c.l.b16 %v1238
      %v1335 = vunpack.c.l.b16 %v1239
      %v1336 = vunpack.c.l.b16 %v1240
      %v1337 = vunpack.c.l.b16 %v1241
      %v1338 = vunpack.c.l.b16 %v1242
      %v1339 = vunpack.c.l.b16 %v1243
      %v1340 = vunpack.c.l.b16 %v1244
      %v1341 = vunpack.c.l.b16 %v1245
      %v1342 = vunpack.c.l.b16 %v1246
      %v1343 = vunpack.c.l.b16 %v1247
      %v1344 = vunpack.c.l.b16 %v1248
      %v1345 = vunpack.c.l.b16 %v1249
      %v1346 = vunpack.c.l.b16 %v1250
      %v1347 = vunpack.c.l.b16 %v1251
      %v1348 = vunpack.c.l.b16 %v1252
      %v1349 = vunpack.c.l.b16 %v1253
      %v1350 = vunpack.c.l.b16 %v1254
      %v1351 = vunpack.c.l.b16 %v1255
      %v1352 = vunpack.c.l.b16 %v1256
      %v1353 = vunpack.c.l.b16 %v1257
      %v1354 = vunpack.c.l.b16 %v1258
      %v1355 = vunpack.c.l.b16 %v1259
      %v1356 = vunpack.c.l.b16 %v1260
      %v1357 = vunpack.c.l.b16 %v1261
      %v1358 = vunpack.c.l.b16 %v1262
      %v1359 = vunpack.c.l.b16 %v1263
      %v1360 = vunpack.c.l.b16 %v1264
      %v1361 = vunpack.c.l.b16 %v1265
      %v1362 = vunpack.c.l.b16 %v1266
      %v1363 = vunpack.c.l.b16 %v1267
      %v1364 = vunpack.c.l.b16 %v1268
      %v1365 = vunpack.c.l.b16 %v1269
      %v1366 = vunpack.c.l.b16 %v1270
      %v1367 = vunpack.c.l.b16 %v1271
      %v1368 = vunpack.c.l.b16 %v1272
      %v1369 = vunpack.c.l.b16 %v1273
      %v1370 = vunpack.c.l.b16 %v1274
      %v1371 = vunpack.c.l.b16 %v1275
      %v1372 = vunpack.c.l.b16 %v1276
      %v1373 = vunpack.c.l.b16 %v1277
      %v1374 = vunpack.c.l.b16 %v1278
      %v1375 = vunpack.c.l.b16 %v1279
      %v1376 = vunpack.c.l.b16 %v1280
      %v1377 = vunpack.c.l.b16 %v1281
      %v1378 = vpack.c.b16 %v1331, %v1330
      %v1379 = vpack.c.b16 %v1333, %v1332
      %v1380 = vpack.c.b16 %v1335, %v1334
      %v1381 = vpack.c.b16 %v1337, %v1336
      %v1382 = vpack.c.b16 %v1339, %v1338
      %v1383 = vpack.c.b16 %v1341, %v1340
      %v1384 = vpack.c.b16 %v1343, %v1342
      %v1385 = vpack.c.b16 %v1345, %v1344
      %v1386 = vpack.c.b16 %v1347, %v1346
      %v1387 = vpack.c.b16 %v1349, %v1348
      %v1388 = vpack.c.b16 %v1351, %v1350
      %v1389 = vpack.c.b16 %v1353, %v1352
      %v1390 = vpack.c.b16 %v1355, %v1354
      %v1391 = vpack.c.b16 %v1357, %v1356
      %v1392 = vpack.c.b16 %v1359, %v1358
      %v1393 = vpack.c.b16 %v1361, %v1360
      %v1394 = vpack.c.b16 %v1363, %v1362
      %v1395 = vpack.c.b16 %v1365, %v1364
      %v1396 = vpack.c.b16 %v1367, %v1366
      %v1397 = vpack.c.b16 %v1369, %v1368
      %v1398 = vpack.c.b16 %v1371, %v1370
      %v1399 = vpack.c.b16 %v1373, %v1372
      %v1400 = vpack.c.b16 %v1375, %v1374
      %v1401 = vpack.c.b16 %v1377, %v1376
      %1426 = vmatprep.subr.bf16.mxu0 0
      %1427 = vmatpush1.bf16.msra.mxu0 %v1378
      %1428 = vmatprep.subr.bf16.mxu0 0
      %1429 = vmatpush1.bf16.msra.mxu0 %v1379
      %1430 = vmatprep.subr.bf16.mxu0 0
      %1431 = vmatpush1.bf16.msra.mxu0 %v1380
      %1432 = vmatprep.subr.bf16.mxu0 0
      %1433 = vmatpush1.bf16.msra.mxu0 %v1381
      %1434 = vmatprep.subr.bf16.mxu0 0
      %1435 = vmatpush1.bf16.msra.mxu0 %v1382
      %1436 = vmatprep.subr.bf16.mxu0 0
      %1437 = vmatpush1.bf16.msra.mxu0 %v1383
      %1438 = vmatprep.subr.bf16.mxu0 0
      %1439 = vmatpush1.bf16.msra.mxu0 %v1384
      %1440 = vmatprep.subr.bf16.mxu0 0
      %1441 = vmatpush1.bf16.msra.mxu0 %v1385
      %1442 = vmatprep.subr.bf16.mxu0 0
      %1443 = vmatpush1.bf16.msra.mxu0 %v1386
      %1444 = vmatprep.subr.bf16.mxu0 0
      %1445 = vmatpush1.bf16.msra.mxu0 %v1387
      %1446 = vmatprep.subr.bf16.mxu0 0
      %1447 = vmatpush1.bf16.msra.mxu0 %v1388
      %1448 = vmatprep.subr.bf16.mxu0 0
      %1449 = vmatpush1.bf16.msra.mxu0 %v1389
      %1450 = vmatprep.subr.bf16.mxu0 0
      %1451 = vmatpush1.bf16.msra.mxu0 %v1390
      %1452 = vmatprep.subr.bf16.mxu0 0
      %1453 = vmatpush1.bf16.msra.mxu0 %v1391
      %1454 = vmatprep.subr.bf16.mxu0 0
      %1455 = vmatpush1.bf16.msra.mxu0 %v1392
      %1456 = vmatprep.subr.bf16.mxu0 0
      %1457 = vmatpush1.bf16.msra.mxu0 %v1393
      %1458 = vmatprep.mubr.bf16.mxu0 %v1221
      %1459 = vmatmul.mubr.bf16.gmra.mrb[0].mxu0 %v1203
      %v1460 = vpop.f32.mrb[0].mxu0
      %v1461 = vadd.f32 0.0, %v1460
      %v1462 = vpop.f32.mrb[0].mxu0
      %v1463 = vpop.f32.mrb[0].mxu0
      %v1464 = vadd.f32 0.0, %v1463
      %v1465 = vpop.f32.mrb[0].mxu0
      %1466 = vdwg.mxu0
      %1467 = vmatprep.subr.bf16.mxu0 0
      %1468 = vmatpush1.bf16.msra.mxu0 %v1394
      %1469 = vmatprep.subr.bf16.mxu0 0
      %1470 = vmatpush1.bf16.msra.mxu0 %v1395
      %1471 = vmatprep.subr.bf16.mxu0 0
      %1472 = vmatpush1.bf16.msra.mxu0 %v1396
      %1473 = vmatprep.subr.bf16.mxu0 0
      %1474 = vmatpush1.bf16.msra.mxu0 %v1397
      %1475 = vmatprep.subr.bf16.mxu0 0
      %1476 = vmatpush1.bf16.msra.mxu0 %v1398
      %1477 = vmatprep.subr.bf16.mxu0 0
      %1478 = vmatpush1.bf16.msra.mxu0 %v1399
      %1479 = vmatprep.subr.bf16.mxu0 0
      %1480 = vmatpush1.bf16.msra.mxu0 %v1400
      %1481 = vmatprep.subr.bf16.mxu0 0
      %1482 = vmatpush1.bf16.msra.mxu0 %v1401
      %1483 = vmatprep.subr.bf16.mxu0 0
      %1484 = vmatpush1.bf16.msra.mxu0 0
      %1485 = vmatprep.subr.bf16.mxu0 0
      %1486 = vmatpush1.bf16.msra.mxu0 0
      %1487 = vmatprep.subr.bf16.mxu0 0
      %1488 = vmatpush1.bf16.msra.mxu0 0
      %1489 = vmatprep.subr.bf16.mxu0 0
      %1490 = vmatpush1.bf16.msra.mxu0 0
      %1491 = vmatprep.subr.bf16.mxu0 0
      %1492 = vmatpush1.bf16.msra.mxu0 0
      %1493 = vmatprep.subr.bf16.mxu0 0
      %1494 = vmatpush1.bf16.msra.mxu0 0
      %1495 = vmatprep.subr.bf16.mxu0 0
      %1496 = vmatpush1.bf16.msra.mxu0 0
      %1497 = vmatprep.subr.bf16.mxu0 0
      %1498 = vmatpush1.bf16.msra.mxu0 0
      %1499 = vmatprep.mubr.bf16.mxu0 0
      %1500 = vmatmul.mubr.bf16.gmra.mrb[0].mxu0 %v1231
      %v1501 = vpop.f32.mrb[0].mxu0
      %v1502 = vadd.f32 %v1461, %v1501
      %v1503 = vpop.f32.mrb[0].mxu0
      %v1504 = vpop.f32.mrb[0].mxu0
      %v1505 = vadd.f32 %v1464, %v1504
      %v1506 = vpop.f32.mrb[0].mxu0
      %1507 = vdwg.mxu0
      %v1508 = vadd.f32 %v1150, %v1502
      %v1509 = vadd.f32 %v1153, %v1505
      %v1510 = vld [vmem:[%s342] sm:$0x1]
      %v1512 = vlaneseq
      %v1513 = vshrl.u32 %v1512, 7
      %v1514 = vsub.s32 0, %v1513
      %v1515 = vrot.slane %v1510, %v1514
      %v1517 = vadd.f32 %v1508, %v1515
      %v1518 = vadd.f32 %v1509, %v1515
      %v1521 = vcombine.high %v1517, %v1517
      %v1522 = vcombine.high %v1518, %v1518
      %v1525 = vpack.c.bf16 %v1517, %v1517
      %v1526 = vpack.c.bf16 %v1521, %v1521
      %v1527 = vpack.c.bf16 %v1518, %v1518
      %v1528 = vpack.c.bf16 %v1522, %v1522
      %1529 = vst [vmem:[%s350] sm:$0x3] %v1525
      %1530 = vst [vmem:[%s350 + $0x2] sm:$0x3] %v1526
      %1531 = vst [vmem:[%s350 + $0x4] sm:$0x3] %v1527
      %1532 = vst [vmem:[%s350 + $0x6] sm:$0x3] %v1528
      %v1533 = vadd.f32 %v1517, %v1518
      %v1534 = vrot.slane %v1533, 4
      %v1535 = vadd.f32 %v1533, %v1534
      %v1536 = vrot.slane %v1535, 2
      %v1537 = vadd.f32 %v1535, %v1536
      %v1538 = vrot.slane %v1537, 1
      %v1539 = vadd.f32 %v1537, %v1538
      %1540 = vst [vmem:[%s356] sm:$0x1] %v1539
      %v1541 = vmul.f32 %v1517, %v1517
      %v1542 = vmul.f32 %v1518, %v1518
      %v1543 = vadd.f32 %v1541, %v1542
      %v1544 = vrot.slane %v1543, 4
      %v1545 = vadd.f32 %v1543, %v1544
      %v1546 = vrot.slane %v1545, 2
      %v1547 = vadd.f32 %v1545, %v1546
      %v1548 = vrot.slane %v1547, 1
      %v1549 = vadd.f32 %v1547, %v1548
      %1550 = vst [vmem:[%s362] sm:$0x1] %v1549
      %p1551 = scmp.lt.s32.totalorder %s24, 1
      %s1552 = scalar_select %p1551, %s24, 1
      %p1553 = scmp.lt.s32.totalorder %s23, 0
      %s1554 = scalar_select %p1553, %s23, 0
      %s1555 = smul.addr %s1552, 4
      %s1556 = sadd.s32 %s1554, %s1555
      %s1557 = smul.addr %s1556, 2
      %s1558 = scalar_lea.vmem %s5, %s1557
      %p1559 = scmp.lt.s32.totalorder %s24, 1
      %s1560 = scalar_select %p1559, %s24, 1
      %p1561 = scmp.lt.s32.totalorder %s23, 0
      %s1562 = scalar_select %p1561, %s23, 0
      %s1563 = sadd.s32 %s1562, %s1560
      %s1564 = scalar_lea.vmem %s6, %s1563
      %p1565 = scmp.lt.s32.totalorder %s24, 1
      %s1566 = scalar_select %p1565, %s24, 1
      %p1567 = scmp.lt.s32.totalorder %s23, 0
      %s1568 = scalar_select %p1567, %s23, 0
      %s1569 = sadd.s32 %s1568, %s1566
      %s1570 = scalar_lea.vmem %s7, %s1569
      // Predicated region
      $region41: #{global_net_forward.6} parent=39 // pred_check
        %p1571 = pneg %p171
      $region42: #{global_net_forward.6} parent=39 // pred_check_branch
        %1573 = sbr.rel (%p1571) target = $region44
      $region43: #{global_net_forward.6} parent=39 // pred_region
        _
      $region44: #{global_net_forward.6} parent=39 // pred_fallthru
        _
      // Predicated region
      $region45: #{global_net_forward.6} parent=39 // pred_check
        %p1574 = pneg %p199
      $region46: #{global_net_forward.6} parent=39 // pred_check_branch
        %1576 = sbr.rel (%p1574) target = $region48
      $region47: #{global_net_forward.6} parent=39 // pred_region
        _
      $region48: #{global_net_forward.6} parent=39 // pred_fallthru
        _
      // Predicated region
      $region49: #{global_net_forward.6} parent=39 // pred_check
        %p1577 = pneg %p227
      $region50: #{global_net_forward.6} parent=39 // pred_check_branch
        %1579 = sbr.rel (%p1577) target = $region52
      $region51: #{global_net_forward.6} parent=39 // pred_region
        _
      $region52: #{global_net_forward.6} parent=39 // pred_fallthru
        _
    $region40: #{global_net_forward.6} parent=5 // pred_fallthru
      _
    %p1580 = scmp.le.s32.totalorder 2, %s14
    // Predicated region
    $region53: #{global_net_forward.6} parent=5 // pred_check
      %p1581 = pneg %p1580
    $region54: #{global_net_forward.6} parent=5 // pred_check_branch
      %1583 = sbr.rel (%p1581) target = $region56
    $region55: #{global_net_forward.6} parent=5 // pred_region
      %s1584 = ssub.s32 %s14, 2
      // Predicated region
      $region57: #{global_net_forward.6} parent=55 // pred_check
        %p1585 = pneg %p177
      $region58: #{global_net_forward.6} parent=55 // pred_check_branch
        %1587 = sbr.rel (%p1585) target = $region60
      $region59: #{global_net_forward.6} parent=55 // pred_region
        %p1588 = scmp.lt.s32.totalorder %s26, 1
        %s1589 = scalar_select %p1588, %s26, 1
        %p1590 = scmp.lt.s32.totalorder %s25, 0
        %s1591 = scalar_select %p1590, %s25, 0
        %s1592 = smul.addr %s1589, 4
        %s1593 = sadd.s32 %s1591, %s1592
        %s1594 = smul.addr %s1593, 2
        %s1595 = scalar_lea.vmem %s5, %s1594
      $region60: #{global_net_forward.6} parent=55 // pred_fallthru
        _
      // Predicated region
      $region61: #{global_net_forward.6} parent=55 // pred_check
        %p1596 = pneg %p205
      $region62: #{global_net_forward.6} parent=55 // pred_check_branch
        %1598 = sbr.rel (%p1596) target = $region64
      $region63: #{global_net_forward.6} parent=55 // pred_region
        %p1599 = scmp.lt.s32.totalorder %s26, 1
        %s1600 = scalar_select %p1599, %s26, 1
        %p1601 = scmp.lt.s32.totalorder %s25, 0
        %s1602 = scalar_select %p1601, %s25, 0
        %s1603 = sadd.s32 %s1602, %s1600
        %s1604 = scalar_lea.vmem %s6, %s1603
      $region64: #{global_net_forward.6} parent=55 // pred_fallthru
        _
      // Predicated region
      $region65: #{global_net_forward.6} parent=55 // pred_check
        %p1605 = pneg %p233
      $region66: #{global_net_forward.6} parent=55 // pred_check_branch
        %1607 = sbr.rel (%p1605) target = $region68
      $region67: #{global_net_forward.6} parent=55 // pred_region
        %p1608 = scmp.lt.s32.totalorder %s26, 1
        %s1609 = scalar_select %p1608, %s26, 1
        %p1610 = scmp.lt.s32.totalorder %s25, 0
        %s1611 = scalar_select %p1610, %s25, 0
        %s1612 = sadd.s32 %s1611, %s1609
        %s1613 = scalar_lea.vmem %s7, %s1612
      $region68: #{global_net_forward.6} parent=55 // pred_fallthru
        _
    $region56: #{global_net_forward.6} parent=5 // pred_fallthru
      _
  $region6: #{global_net_forward.6} parent=0 // loop_footer
    %s18 = sadd.s32 1, %s14
  $region7: #{global_net_forward.6} parent=0 // loop_footer_branch
    %13 = sbr.rel target = $region3
  $region8: #{global_net_forward.6} parent=0 // loop_exit
    _

// kernel: global_net_forward.5
$region0: #{global_net_forward.5}
  #allocation0 [shape = 'u32[]', space=smem, size = 0x4, offset = 0x4, fixed_abs, tag = 'smem constant byte address 0x4 - core index']
  #allocation1 [shape = 'u32[144,128]{1,0:T(1,128)}', space=vmem, size = 0x12000, scoped, tag = 'internal scratch']
  %s0 = inlined_call_operand.vmem [shape: bf16[2,6,6,4], index: 0, kind: input, shape index: {}]
  %s1 = inlined_call_operand.vmem [shape: bf16[2,6,6,3], index: 1, kind: input, shape index: {}]
  %s2 = inlined_call_operand.vmem [shape: bf16[9,4,128], index: 2, kind: input, shape index: {}]
  %s3 = inlined_call_operand.vmem [shape: bf16[9,3,128], index: 3, kind: input, shape index: {}]
  %s4 = inlined_call_operand.vmem [shape: f32[1,128], index: 4, kind: input, shape index: {}]
  %s5 = inlined_call_operand.vmem [shape: bf16[2,4,4,128], index: 5, kind: output, shape index: {}]
  %s6 = sld [smem:[#allocation0]]
  $region53: #{global_net_forward.5} parent=0
    _
  %s8 = ssub.s32 1, %s6
  %s9 = scalar_select 0, %s8, %s6
  loop: start=0, step=1, limit=4
  $region2: #{global_net_forward.5} parent=0 // loop_pre_header
    _
  $region3: #{global_net_forward.5} parent=0 // loop_header
    %s11 = sphi 0, %s15
    %p12 = scmp.ge.s32.totalorder %s11, 4
    %s21 = sphi 0, %s23
    %s24 = sphi 0, %s21
    %s25 = sphi 0, %s24
    %s41 = sphi 0, %s25
    %s47 = sphi 0, %s49
    %s50 = sphi 0, %s47
    %s51 = sphi 0, %s50
    %s67 = sphi 0, %s51
    %s71 = sphi 0, %s71
    %s73 = sphi 0, %s71
    %s74 = sphi 0, %s73
    %s88 = sphi 0, %s74
    %s92 = sphi 0, %s92
    %s94 = sphi 0, %s92
    %s95 = sphi 0, %s94
    %s109 = sphi 0, %s95
    %s113 = sphi 0, %s113
    %s115 = sphi 0, %s113
    %s116 = sphi 0, %s115
    %s130 = sphi 0, %s116
    %s136 = sphi 0, %s138
    %s139 = sphi 0, %s136
    %s140 = sphi 0, %s139
    %s156 = sphi 0, %s140
  $region4: #{global_net_forward.5} parent=0 // loop_header_branch
    %14 = sbr.rel (%p12) target = $region8
  $region5: #{global_net_forward.5} parent=0 // loop_body
    %s16 = ssub.s32 %s11, 1
    %s17 = ssub.s32 %s11, 2
    %s18 = sadd.s32 %s11, 1
    %s19 = ssub.s32 %s11, %s18
    %p20 = scmp.eq.s32.totalorder %s19, 0
    %s22 = sadd.s32 %s21, 1
    %s23 = scalar_select %p20, %s21, %s22
    %p26 = pneg %p20
    %p27 = scmp.eq.s32.totalorder %s11, 1
    %p28 = por %p26, %p27
    %p29 = scmp.ne.s32.totalorder %s21, %s24
    %p30 = scmp.eq.s32.totalorder %s11, 0
    %p31 = por %p29, %p30
    %p32 = scmp.ne.s32.totalorder %s21, %s24
    %p33 = scmp.eq.s32.totalorder %s16, 1
    %p34 = por %p32, %p33
    %p35 = scmp.ne.s32.totalorder %s24, %s25
    %p36 = scmp.eq.s32.totalorder %s16, 0
    %p37 = por %p35, %p36
    %p38 = scmp.ne.s32.totalorder %s24, %s25
    %p39 = scmp.eq.s32.totalorder %s17, 1
    %p40 = por %p38, %p39
    %p42 = scmp.ne.s32.totalorder %s25, %s41
    %p43 = scmp.eq.s32.totalorder %s17, 0
    %p44 = por %p42, %p43
    %s45 = ssub.s32 %s11, %s18
    %p46 = scmp.eq.s32.totalorder %s45, 0
    %s48 = sadd.s32 %s47, 1
    %s49 = scalar_select %p46, %s47, %s48
    %p52 = pneg %p46
    %p53 = scmp.eq.s32.totalorder %s11, 1
    %p54 = por %p52, %p53
    %p55 = scmp.ne.s32.totalorder %s47, %s50
    %p56 = scmp.eq.s32.totalorder %s11, 0
    %p57 = por %p55, %p56
    %p58 = scmp.ne.s32.totalorder %s47, %s50
    %p59 = scmp.eq.s32.totalorder %s16, 1
    %p60 = por %p58, %p59
    %p61 = scmp.ne.s32.totalorder %s50, %s51
    %p62 = scmp.eq.s32.totalorder %s16, 0
    %p63 = por %p61, %p62
    %p64 = scmp.ne.s32.totalorder %s50, %s51
    %p65 = scmp.eq.s32.totalorder %s17, 1
    %p66 = por %p64, %p65
    %p68 = scmp.ne.s32.totalorder %s51, %s67
    %p69 = scmp.eq.s32.totalorder %s17, 0
    %p70 = por %p68, %p69
    %s72 = sadd.s32 %s71, 1
    %p75 = scmp.eq.s32.totalorder %s11, 1
    %p76 = scmp.ne.s32.totalorder %s71, %s73
    %p77 = scmp.eq.s32.totalorder %s11, 0
    %p78 = por %p76, %p77
    %p79 = scmp.ne.s32.totalorder %s71, %s73
    %p80 = scmp.eq.s32.totalorder %s16, 1
    %p81 = por %p79, %p80
    %p82 = scmp.ne.s32.totalorder %s73, %s74
    %p83 = scmp.eq.s32.totalorder %s16, 0
    %p84 = por %p82, %p83
    %p85 = scmp.ne.s32.totalorder %s73, %s74
    %p86 = scmp.eq.s32.totalorder %s17, 1
    %p87 = por %p85, %p86
    %p89 = scmp.ne.s32.totalorder %s74, %s88
    %p90 = scmp.eq.s32.totalorder %s17, 0
    %p91 = por %p89, %p90
    %s93 = sadd.s32 %s92, 1
    %p96 = scmp.eq.s32.totalorder %s11, 1
    %p97 = scmp.ne.s32.totalorder %s92, %s94
    %p98 = scmp.eq.s32.totalorder %s11, 0
    %p99 = por %p97, %p98
    %p100 = scmp.ne.s32.totalorder %s92, %s94
    %p101 = scmp.eq.s32.totalorder %s16, 1
    %p102 = por %p100, %p101
    %p103 = scmp.ne.s32.totalorder %s94, %s95
    %p104 = scmp.eq.s32.totalorder %s16, 0
    %p105 = por %p103, %p104
    %p106 = scmp.ne.s32.totalorder %s94, %s95
    %p107 = scmp.eq.s32.totalorder %s17, 1
    %p108 = por %p106, %p107
    %p110 = scmp.ne.s32.totalorder %s95, %s109
    %p111 = scmp.eq.s32.totalorder %s17, 0
    %p112 = por %p110, %p111
    %s114 = sadd.s32 %s113, 1
    %p117 = scmp.eq.s32.totalorder %s11, 1
    %p118 = scmp.ne.s32.totalorder %s113, %s115
    %p119 = scmp.eq.s32.totalorder %s11, 0
    %p120 = por %p118, %p119
    %p121 = scmp.ne.s32.totalorder %s113, %s115
    %p122 = scmp.eq.s32.totalorder %s16, 1
    %p123 = por %p121, %p122
    %p124 = scmp.ne.s32.totalorder %s115, %s116
    %p125 = scmp.eq.s32.totalorder %s16, 0
    %p126 = por %p124, %p125
    %p127 = scmp.ne.s32.totalorder %s115, %s116
    %p128 = scmp.eq.s32.totalorder %s17, 1
    %p129 = por %p127, %p128
    %p131 = scmp.ne.s32.totalorder %s116, %s130
    %p132 = scmp.eq.s32.totalorder %s17, 0
    %p133 = por %p131, %p132
    %s134 = ssub.s32 %s11, %s18
    %p135 = scmp.eq.s32.totalorder %s134, 0
    %s137 = sadd.s32 %s136, 1
    %s138 = scalar_select %p135, %s136, %s137
    %p141 = pneg %p135
    %p142 = scmp.eq.s32.totalorder %s11, 1
    %p143 = por %p141, %p142
    %p144 = scmp.ne.s32.totalorder %s136, %s139
    %p145 = scmp.eq.s32.totalorder %s11, 0
    %p146 = por %p144, %p145
    %p147 = scmp.ne.s32.totalorder %s136, %s139
    %p148 = scmp.eq.s32.totalorder %s16, 1
    %p149 = por %p147, %p148
    %p150 = scmp.ne.s32.totalorder %s139, %s140
    %p151 = scmp.eq.s32.totalorder %s16, 0
    %p152 = por %p150, %p151
    %p153 = scmp.ne.s32.totalorder %s139, %s140
    %p154 = scmp.eq.s32.totalorder %s17, 1
    %p155 = por %p153, %p154
    %p157 = scmp.ne.s32.totalorder %s140, %s156
    %p158 = scmp.eq.s32.totalorder %s17, 0
    %p159 = por %p157, %p158
    %p160 = scmp.le.s32.totalorder 1, %s11
    %p161 = scmp.lt.s32.totalorder %s11, 3
    %p162 = pnand %p160, %p161
    %p163 = pneg %p162
    // Predicated region
    $region9: #{global_net_forward.5} parent=5 // pred_check
      _
    $region10: #{global_net_forward.5} parent=5 // pred_check_branch
      %165 = sbr.rel (%p162) target = $region12
    $region11: #{global_net_forward.5} parent=5 // pred_region
      %s166 = ssub.s32 %s11, 1
      // Predicated region
      $region13: #{global_net_forward.5} parent=11 // pred_check
        %p167 = pneg %p84
      $region14: #{global_net_forward.5} parent=11 // pred_check_branch
        %169 = sbr.rel (%p167) target = $region16
      $region15: #{global_net_forward.5} parent=11 // pred_region
        _
      $region16: #{global_net_forward.5} parent=11 // pred_fallthru
        _
      // Predicated region
      $region17: #{global_net_forward.5} parent=11 // pred_check
        %p170 = pneg %p105
      $region18: #{global_net_forward.5} parent=11 // pred_check_branch
        %172 = sbr.rel (%p170) target = $region20
      $region19: #{global_net_forward.5} parent=11 // pred_region
        _
      $region20: #{global_net_forward.5} parent=11 // pred_fallthru
        _
      // Predicated region
      $region21: #{global_net_forward.5} parent=11 // pred_check
        %p173 = pneg %p126
      $region22: #{global_net_forward.5} parent=11 // pred_check_branch
        %175 = sbr.rel (%p173) target = $region24
      $region23: #{global_net_forward.5} parent=11 // pred_region
        _
      $region24: #{global_net_forward.5} parent=11 // pred_fallthru
        _
    $region12: #{global_net_forward.5} parent=5 // pred_fallthru
      _
    %p176 = scmp.lt.s32.totalorder %s11, 2
    // Predicated region
    $region25: #{global_net_forward.5} parent=5 // pred_check
      %p177 = pneg %p176
    $region26: #{global_net_forward.5} parent=5 // pred_check_branch
      %179 = sbr.rel (%p177) target = $region28
    $region27: #{global_net_forward.5} parent=5 // pred_region
      // Predicated region
      $region29: #{global_net_forward.5} parent=27 // pred_check
        %p180 = pneg %p31
      $region30: #{global_net_forward.5} parent=27 // pred_check_branch
        %182 = sbr.rel (%p180) target = $region32
      $region31: #{global_net_forward.5} parent=27 // pred_region
        %p183 = scmp.lt.s32.totalorder %s11, 1
        %s184 = scalar_select %p183, %s11, 1
        %s185 = smul.addr %s184, 6
        %s186 = smul.addr %s185, 4
        %s187 = scalar_lea.vmem %s0, %s186
      $region32: #{global_net_forward.5} parent=27 // pred_fallthru
        _
      // Predicated region
      $region33: #{global_net_forward.5} parent=27 // pred_check
        %p188 = pneg %p57
      $region34: #{global_net_forward.5} parent=27 // pred_check_branch
        %190 = sbr.rel (%p188) target = $region36
      $region35: #{global_net_forward.5} parent=27 // pred_region
        %p191 = scmp.lt.s32.totalorder %s11, 1
        %s192 = scalar_select %p191, %s11, 1
        %s193 = smul.addr %s192, 6
        %s194 = smul.addr %s193, 4
        %s195 = scalar_lea.vmem %s1, %s194
      $region36: #{global_net_forward.5} parent=27 // pred_fallthru
        _
    $region28: #{global_net_forward.5} parent=5 // pred_fallthru
      _
    %p196 = scmp.le.s32.totalorder 1, %s11
    %p197 = scmp.lt.s32.totalorder %s11, 3
    %p198 = pnand %p196, %p197
    %p199 = pneg %p198
    // Predicated region
    $region37: #{global_net_forward.5} parent=5 // pred_check
      _
    $region38: #{global_net_forward.5} parent=5 // pred_check_branch
      %201 = sbr.rel (%p198) target = $region40
    $region39: #{global_net_forward.5} parent=5 // pred_region
      %s202 = ssub.s32 %s11, 1
      %p203 = scmp.lt.s32.totalorder %s16, 1
      %s204 = scalar_select %p203, %s16, 1
      %s205 = smul.addr %s204, 6
      %s206 = smul.addr %s205, 4
      %s207 = scalar_lea.vmem %s0, %s206
      %p208 = pneg %p37
      %p209 = pneg %p34
      %p210 = scmp.lt.s32.totalorder %s16, 1
      %s211 = scalar_select %p210, %s16, 1
      %s212 = smul.addr %s211, 6
      %s213 = smul.addr %s212, 4
      %s214 = scalar_lea.vmem %s1, %s213
      %p215 = pneg %p63
      %p216 = pneg %p60
      %p217 = pneg %p84
      %p218 = pneg %p81
      %p219 = pneg %p105
      %p220 = pneg %p102
      %p221 = pneg %p126
      %p222 = pneg %p123
      %p223 = pneg %p152
      %p224 = pneg %p149
      %p225 = scmp.lt.s32.totalorder %s16, 1
      %s226 = scalar_select %p225, %s16, 1
      %s227 = smul.addr %s226, 4
      %s228 = smul.addr %s227, 2
      %s229 = scalar_lea.vmem %s5, %s228
      %p230 = scmp.lt.s32.totalorder %s16, 1
      %s231 = scalar_select %p230, %s16, 1
      %s232 = smul.addr %s231, 6
      %s233 = smul.addr %s232, 4
      %s234 = scalar_lea.vmem %s0, %s233
      %p235 = scmp.lt.s32.totalorder %s16, 1
      %s236 = scalar_select %p235, %s16, 1
      %s237 = smul.addr %s236, 6
      %s238 = smul.addr %s237, 4
      %s239 = scalar_lea.vmem %s1, %s238
      %p240 = scmp.lt.s32.totalorder %s16, 1
      %s241 = scalar_select %p240, %s16, 1
      %s242 = smul.addr %s241, 4
      %s243 = smul.addr %s242, 2
      %s244 = scalar_lea.vmem %s5, %s243
      %v246 = vld [vmem:[%s234] sm:$0x7]
      %v247 = vld [vmem:[%s234 + $0x4] sm:$0x7]
      %v248 = vld [vmem:[%s234 + $0x8] sm:$0x7]
      %v249 = vld [vmem:[%s234 + $0xc] sm:$0x7]
      %v250 = vld [vmem:[%s234 + $0x10] sm:$0x7]
      %v251 = vld [vmem:[%s234 + $0x14] sm:$0x7]
      %v252 = vld [vmem:[%s2] sm:$0x3]
      %s253 = scalar_lea.vmem %s2, 6
      %v254 = vld [vmem:[%s253] sm:$0x3]
      %v259 = vcombine.low %v247, %v248
      %v260 = vcombine.low %v249, %v250
      %v262 = vunpack.c.l.s4 1983009808
      %v263 = vunpack.c.0.s8 %v262
      %v264 = vlaneseq
      %v265 = vshrl.u32 %v264, 7
      %v266 = vsub.s32 %v263, %v265
      %v267 = vrot.slane %v259, %v266
      %v269 = vunpack.c.l.s4 1983009808
      %v270 = vunpack.c.0.s8 %v269
      %v271 = vlaneseq
      %v272 = vshrl.u32 %v271, 7
      %v273 = vsub.s32 %v270, %v272
      %v274 = vrot.slane %v260, %v273
      %v275 = vcombine.low %v267, %v274
      %vm276 = vcmask 31744
      %v278 = vsel %vm276, %v275, 0
      %vm280 = vcmask 1041408
      %v282 = vsel %vm280, %v254, 0
      %284 = vmatprep.subr.bf16.mxu0 0
      %285 = vmatpush1.bf16.msra.mxu0 %v282
      %286 = vmatprep.subr.bf16.mxu0 0
      %287 = vmatpush1.bf16.msra.mxu0 0
      %288 = vmatprep.subr.bf16.mxu0 0
      %289 = vmatpush1.bf16.msra.mxu0 0
      %290 = vmatprep.subr.bf16.mxu0 0
      %291 = vmatpush1.bf16.msra.mxu0 0
      %292 = vmatprep.subr.bf16.mxu0 0
      %293 = vmatpush1.bf16.msra.mxu0 0
      %294 = vmatprep.subr.bf16.mxu0 0
      %295 = vmatpush1.bf16.msra.mxu0 0
      %296 = vmatprep.subr.bf16.mxu0 0
      %297 = vmatpush1.bf16.msra.mxu0 0
      %298 = vmatprep.subr.bf16.mxu0 0
      %299 = vmatpush1.bf16.msra.mxu0 0
      %300 = vmatprep.subr.bf16.mxu0 0
      %301 = vmatpush1.bf16.msra.mxu0 0
      %302 = vmatprep.subr.bf16.mxu0 0
      %303 = vmatpush1.bf16.msra.mxu0 0
      %304 = vmatprep.subr.bf16.mxu0 0
      %305 = vmatpush1.bf16.msra.mxu0 0
      %306 = vmatprep.subr.bf16.mxu0 0
      %307 = vmatpush1.bf16.msra.mxu0 0
      %308 = vmatprep.subr.bf16.mxu0 0
      %309 = vmatpush1.bf16.msra.mxu0 0
      %310 = vmatprep.subr.bf16.mxu0 0
      %311 = vmatpush1.bf16.msra.mxu0 0
      %312 = vmatprep.subr.bf16.mxu0 0
      %313 = vmatpush1.bf16.msra.mxu0 0
      %314 = vmatprep.subr.bf16.mxu0 0
      %315 = vmatpush1.bf16.msra.mxu0 0
      %316 = vmatprep.mubr.bf16.mxu0 0
      %317 = vmatmul.mubr.bf16.gmra.mrb[0].mxu0 %v278
      %v318 = vpop.f32.mrb[0].mxu0
      %v319 = vadd.f32 0.0, %v318
      %v320 = vpop.f32.mrb[0].mxu0
      %v321 = vpop.f32.mrb[0].mxu0
      %v322 = vadd.f32 0.0, %v321
      %v323 = vpop.f32.mrb[0].mxu0
      %324 = vdwg.mxu0
      %v326 = vcombine.low %v246, %v247
      %v327 = vcombine.low %v248, %v249
      %v329 = vunpack.c.l.s4 1983009808
      %v330 = vunpack.c.0.s8 %v329
      %v331 = vlaneseq
      %v332 = vshrl.u32 %v331, 7
      %v333 = vsub.s32 %v330, %v332
      %v334 = vrot.slane %v326, %v333
      %v336 = vunpack.c.l.s4 1983009808
      %v337 = vunpack.c.0.s8 %v336
      %v338 = vlaneseq
      %v339 = vshrl.u32 %v338, 7
      %v340 = vsub.s32 %v337, %v339
      %v341 = vrot.slane %v327, %v340
      %v342 = vcombine.low %v334, %v341
      %v344 = vsel %vm276, %v342, 0
      %v347 = vsel %vm280, %v252, 0
      %349 = vmatprep.subr.bf16.mxu0 0
      %350 = vmatpush1.bf16.msra.mxu0 %v347
      %351 = vmatprep.subr.bf16.mxu0 0
      %352 = vmatpush1.bf16.msra.mxu0 0
      %353 = vmatprep.subr.bf16.mxu0 0
      %354 = vmatpush1.bf16.msra.mxu0 0
      %355 = vmatprep.subr.bf16.mxu0 0
      %356 = vmatpush1.bf16.msra.mxu0 0
      %357 = vmatprep.subr.bf16.mxu0 0
      %358 = vmatpush1.bf16.msra.mxu0 0
      %359 = vmatprep.subr.bf16.mxu0 0
      %360 = vmatpush1.bf16.msra.mxu0 0
      %361 = vmatprep.subr.bf16.mxu0 0
      %362 = vmatpush1.bf16.msra.mxu0 0
      %363 = vmatprep.subr.bf16.mxu0 0
      %364 = vmatpush1.bf16.msra.mxu0 0
      %365 = vmatprep.subr.bf16.mxu0 0
      %366 = vmatpush1.bf16.msra.mxu0 0
      %367 = vmatprep.subr.bf16.mxu0 0
      %368 = vmatpush1.bf16.msra.mxu0 0
      %369 = vmatprep.subr.bf16.mxu0 0
      %370 = vmatpush1.bf16.msra.mxu0 0
      %371 = vmatprep.subr.bf16.mxu0 0
      %372 = vmatpush1.bf16.msra.mxu0 0
      %373 = vmatprep.subr.bf16.mxu0 0
      %374 = vmatpush1.bf16.msra.mxu0 0
      %375 = vmatprep.subr.bf16.mxu0 0
      %376 = vmatpush1.bf16.msra.mxu0 0
      %377 = vmatprep.subr.bf16.mxu0 0
      %378 = vmatpush1.bf16.msra.mxu0 0
      %379 = vmatprep.subr.bf16.mxu0 0
      %380 = vmatpush1.bf16.msra.mxu0 0
      %381 = vmatprep.mubr.bf16.mxu0 0
      %382 = vmatmul.mubr.bf16.gmra.mrb[0].mxu0 %v344
      %v383 = vpop.f32.mrb[0].mxu0
      %v384 = vadd.f32 %v319, %v383
      %v385 = vpop.f32.mrb[0].mxu0
      %v386 = vpop.f32.mrb[0].mxu0
      %v387 = vadd.f32 %v322, %v386
      %v388 = vpop.f32.mrb[0].mxu0
      %389 = vdwg.mxu0
      %s390 = scalar_lea.vmem %s2, 12
      %v391 = vld [vmem:[%s390] sm:$0x3]
      %v393 = vcombine.low %v250, %v251
      %v395 = vunpack.c.l.s4 1983009808
      %v396 = vunpack.c.0.s8 %v395
      %v397 = vlaneseq
      %v398 = vshrl.u32 %v397, 7
      %v399 = vsub.s32 %v396, %v398
      %v400 = vrot.slane %v393, %v399
      %v401 = vcombine.low %v341, %v400
      %v403 = vsel %vm276, %v401, 0
      %v406 = vsel %vm280, %v391, 0
      %408 = vmatprep.subr.bf16.mxu0 0
      %409 = vmatpush1.bf16.msra.mxu0 %v406
      %410 = vmatprep.subr.bf16.mxu0 0
      %411 = vmatpush1.bf16.msra.mxu0 0
      %412 = vmatprep.subr.bf16.mxu0 0
      %413 = vmatpush1.bf16.msra.mxu0 0
      %414 = vmatprep.subr.bf16.mxu0 0
      %415 = vmatpush1.bf16.msra.mxu0 0
      %416 = vmatprep.subr.bf16.mxu0 0
      %417 = vmatpush1.bf16.msra.mxu0 0
      %418 = vmatprep.subr.bf16.mxu0 0
      %419 = vmatpush1.bf16.msra.mxu0 0
      %420 = vmatprep.subr.bf16.mxu0 0
      %421 = vmatpush1.bf16.msra.mxu0 0
      %422 = vmatprep.subr.bf16.mxu0 0
      %423 = vmatpush1.bf16.msra.mxu0 0
      %424 = vmatprep.subr.bf16.mxu0 0
      %425 = vmatpush1.bf16.msra.mxu0 0
      %426 = vmatprep.subr.bf16.mxu0 0
      %427 = vmatpush1.bf16.msra.mxu0 0
      %428 = vmatprep.subr.bf16.mxu0 0
      %429 = vmatpush1.bf16.msra.mxu0 0
      %430 = vmatprep.subr.bf16.mxu0 0
      %431 = vmatpush1.bf16.msra.mxu0 0
      %432 = vmatprep.subr.bf16.mxu0 0
      %433 = vmatpush1.bf16.msra.mxu0 0
      %434 = vmatprep.subr.bf16.mxu0 0
      %435 = vmatpush1.bf16.msra.mxu0 0
      %436 = vmatprep.subr.bf16.mxu0 0
      %437 = vmatpush1.bf16.msra.mxu0 0
      %438 = vmatprep.subr.bf16.mxu0 0
      %439 = vmatpush1.bf16.msra.mxu0 0
      %440 = vmatprep.mubr.bf16.mxu0 0
      %441 = vmatmul.mubr.bf16.gmra.mrb[0].mxu0 %v403
      %v442 = vpop.f32.mrb[0].mxu0
      %v443 = vadd.f32 0.0, %v442
      %v444 = vpop.f32.mrb[0].mxu0
      %v445 = vpop.f32.mrb[0].mxu0
      %v446 = vadd.f32 0.0, %v445
      %v447 = vpop.f32.mrb[0].mxu0
      %448 = vdwg.mxu0
      %v449 = vadd.f32 %v384, %v443
      %v450 = vadd.f32 %v387, %v446
      %v452 = vunpack.c.l.s4 1983009808
      %v453 = vunpack.c.0.s8 %v452
      %v454 = vlaneseq
      %v455 = vshrl.u32 %v454, 7
      %v456 = vsub.s32 %v453, %v455
      %v457 = vrot.slane %v246, %v456
      %v458 = vcombine.high %v457, %v457
      %v460 = vunpack.c.l.s4 1983009808
      %v461 = vunpack.c.0.s8 %v460
      %v462 = vlaneseq
      %v463 = vshrl.u32 %v462, 7
      %v464 = vsub.s32 %v461, %v463
      %v465 = vrot.slane %v247, %v464
      %v466 = vcombine.high %v465, %v465
      %v468 = vunpack.c.l.s4 1983009808
      %v469 = vunpack.c.0.s8 %v468
      %v470 = vlaneseq
      %v471 = vshrl.u32 %v470, 7
      %v472 = vsub.s32 %v469, %v471
      %v473 = vrot.slane %v248, %v472
      %v474 = vcombine.high %v473, %v473
      %v476 = vunpack.c.l.s4 1983009808
      %v477 = vunpack.c.0.s8 %v476
      %v478 = vlaneseq
      %v479 = vshrl.u32 %v478, 7
      %v480 = vsub.s32 %v477, %v479
      %v481 = vrot.slane %v249, %v480
      %v482 = vcombine.high %v481, %v481
      %vm483 = vsmask.f32 1280
      %vm484 = vsmask.f32 3336
      %vm485 = vmor %vm483, %vm484
      %vm486 = vsmask.f32 5392
      %vm487 = vmor %vm485, %vm486
      %vm488 = vsmask.f32 7448
      %vm489 = vmor %vm487, %vm488
      %v491 = vshrl.u32 %v457, 16
      %v493 = vrot.slane %v491, 6
      %v494 = vshll.u32 %v457, 16
      %v496 = vrot.slane %v494, 7
      %v497 = vor.u32 %v493, %v496
      %v498 = vrot.slane %v497, 2
      %v500 = vshll.u32 %v458, 16
      %v502 = vrot.slane %v500, 7
      %v503 = vsel %vm489, %v498, %v502
      %v505 = vshrl.u32 %v465, 16
      %v507 = vrot.slane %v505, 6
      %v508 = vshll.u32 %v465, 16
      %v510 = vrot.slane %v508, 7
      %v511 = vor.u32 %v507, %v510
      %v512 = vrot.slane %v511, 2
      %v514 = vshll.u32 %v466, 16
      %v516 = vrot.slane %v514, 7
      %v517 = vsel %vm489, %v512, %v516
      %v519 = vshrl.u32 %v473, 16
      %v521 = vrot.slane %v519, 6
      %v522 = vshll.u32 %v473, 16
      %v524 = vrot.slane %v522, 7
      %v525 = vor.u32 %v521, %v524
      %v526 = vrot.slane %v525, 2
      %v528 = vshll.u32 %v474, 16
      %v530 = vrot.slane %v528, 7
      %v531 = vsel %vm489, %v526, %v530
      %v533 = vshrl.u32 %v481, 16
      %v535 = vrot.slane %v533, 6
      %v536 = vshll.u32 %v481, 16
      %v538 = vrot.slane %v536, 7
      %v539 = vor.u32 %v535, %v538
      %v540 = vrot.slane %v539, 2
      %v542 = vshll.u32 %v482, 16
      %v544 = vrot.slane %v542, 7
      %v545 = vsel %vm489, %v540, %v544
      %s546 = scalar_lea.vmem %s2, 2
      %v547 = vld [vmem:[%s546] sm:$0x3]
      %v548 = vcombine.low %v503, %v517
      %v549 = vcombine.low %v531, %v545
      %v551 = vunpack.c.l.s4 1983009808
      %v552 = vunpack.c.0.s8 %v551
      %v553 = vlaneseq
      %v554 = vshrl.u32 %v553, 7
      %v555 = vsub.s32 %v552, %v554
      %v556 = vrot.slane %v548, %v555
      %v558 = vunpack.c.l.s4 1983009808
      %v559 = vunpack.c.0.s8 %v558
      %v560 = vlaneseq
      %v561 = vshrl.u32 %v560, 7
      %v562 = vsub.s32 %v559, %v561
      %v563 = vrot.slane %v549, %v562
      %v564 = vcombine.low %v556, %v563
      %v566 = vsel %vm276, %v564, 0
      %v569 = vsel %vm280, %v547, 0
      %571 = vmatprep.subr.bf16.mxu0 0
      %572 = vmatpush1.bf16.msra.mxu0 %v569
      %573 = vmatprep.subr.bf16.mxu0 0
      %574 = vmatpush1.bf16.msra.mxu0 0
      %575 = vmatprep.subr.bf16.mxu0 0
      %576 = vmatpush1.bf16.msra.mxu0 0
      %577 = vmatprep.subr.bf16.mxu0 0
      %578 = vmatpush1.bf16.msra.mxu0 0
      %579 = vmatprep.subr.bf16.mxu0 0
      %580 = vmatpush1.bf16.msra.mxu0 0
      %581 = vmatprep.subr.bf16.mxu0 0
      %582 = vmatpush1.bf16.msra.mxu0 0
      %583 = vmatprep.subr.bf16.mxu0 0
      %584 = vmatpush1.bf16.msra.mxu0 0
      %585 = vmatprep.subr.bf16.mxu0 0
      %586 = vmatpush1.bf16.msra.mxu0 0
      %587 = vmatprep.subr.bf16.mxu0 0
      %588 = vmatpush1.bf16.msra.mxu0 0
      %589 = vmatprep.subr.bf16.mxu0 0
      %590 = vmatpush1.bf16.msra.mxu0 0
      %591 = vmatprep.subr.bf16.mxu0 0
      %592 = vmatpush1.bf16.msra.mxu0 0
      %593 = vmatprep.subr.bf16.mxu0 0
      %594 = vmatpush1.bf16.msra.mxu0 0
      %595 = vmatprep.subr.bf16.mxu0 0
      %596 = vmatpush1.bf16.msra.mxu0 0
      %597 = vmatprep.subr.bf16.mxu0 0
      %598 = vmatpush1.bf16.msra.mxu0 0
      %599 = vmatprep.subr.bf16.mxu0 0
      %600 = vmatpush1.bf16.msra.mxu0 0
      %601 = vmatprep.subr.bf16.mxu0 0
      %602 = vmatpush1.bf16.msra.mxu0 0
      %603 = vmatprep.mubr.bf16.mxu0 0
      %604 = vmatmul.mubr.bf16.gmra.mrb[0].mxu0 %v566
      %v605 = vpop.f32.mrb[0].mxu0
      %v606 = vadd.f32 0.0, %v605
      %v607 = vpop.f32.mrb[0].mxu0
      %v608 = vpop.f32.mrb[0].mxu0
      %v609 = vadd.f32 0.0, %v608
      %v610 = vpop.f32.mrb[0].mxu0
      %611 = vdwg.mxu0
      %v612 = vadd.f32 %v449, %v606
      %v613 = vadd.f32 %v450, %v609
      %v615 = vunpack.c.l.s4 1983009808
      %v616 = vunpack.c.0.s8 %v615
      %v617 = vlaneseq
      %v618 = vshrl.u32 %v617, 7
      %v619 = vsub.s32 %v616, %v618
      %v620 = vrot.slane %v250, %v619
      %v621 = vcombine.high %v620, %v620
      %v623 = vshrl.u32 %v620, 16
      %v625 = vrot.slane %v623, 6
      %v626 = vshll.u32 %v620, 16
      %v628 = vrot.slane %v626, 7
      %v629 = vor.u32 %v625, %v628
      %v630 = vrot.slane %v629, 2
      %v632 = vshll.u32 %v621, 16
      %v634 = vrot.slane %v632, 7
      %v635 = vsel %vm489, %v630, %v634
      %s636 = scalar_lea.vmem %s2, 8
      %v637 = vld [vmem:[%s636] sm:$0x3]
      %v638 = vcombine.low %v517, %v531
      %v639 = vcombine.low %v545, %v635
      %v641 = vunpack.c.l.s4 1983009808
      %v642 = vunpack.c.0.s8 %v641
      %v643 = vlaneseq
      %v644 = vshrl.u32 %v643, 7
      %v645 = vsub.s32 %v642, %v644
      %v646 = vrot.slane %v638, %v645
      %v648 = vunpack.c.l.s4 1983009808
      %v649 = vunpack.c.0.s8 %v648
      %v650 = vlaneseq
      %v651 = vshrl.u32 %v650, 7
      %v652 = vsub.s32 %v649, %v651
      %v653 = vrot.slane %v639, %v652
      %v654 = vcombine.low %v646, %v653
      %v656 = vsel %vm276, %v654, 0
      %v659 = vsel %vm280, %v637, 0
      %661 = vmatprep.subr.bf16.mxu0 0
      %662 = vmatpush1.bf16.msra.mxu0 %v659
      %663 = vmatprep.subr.bf16.mxu0 0
      %664 = vmatpush1.bf16.msra.mxu0 0
      %665 = vmatprep.subr.bf16.mxu0 0
      %666 = vmatpush1.bf16.msra.mxu0 0
      %667 = vmatprep.subr.bf16.mxu0 0
      %668 = vmatpush1.bf16.msra.mxu0 0
      %669 = vmatprep.subr.bf16.mxu0 0
      %670 = vmatpush1.bf16.msra.mxu0 0
      %671 = vmatprep.subr.bf16.mxu0 0
      %672 = vmatpush1.bf16.msra.mxu0 0
      %673 = vmatprep.subr.bf16.mxu0 0
      %674 = vmatpush1.bf16.msra.mxu0 0
      %675 = vmatprep.subr.bf16.mxu0 0
      %676 = vmatpush1.bf16.msra.mxu0 0
      %677 = vmatprep.subr.bf16.mxu0 0
      %678 = vmatpush1.bf16.msra.mxu0 0
      %679 = vmatprep.subr.bf16.mxu0 0
      %680 = vmatpush1.bf16.msra.mxu0 0
      %681 = vmatprep.subr.bf16.mxu0 0
      %682 = vmatpush1.bf16.msra.mxu0 0
      %683 = vmatprep.subr.bf16.mxu0 0
      %684 = vmatpush1.bf16.msra.mxu0 0
      %685 = vmatprep.subr.bf16.mxu0 0
      %686 = vmatpush1.bf16.msra.mxu0 0
      %687 = vmatprep.subr.bf16.mxu0 0
      %688 = vmatpush1.bf16.msra.mxu0 0
      %689 = vmatprep.subr.bf16.mxu0 0
      %690 = vmatpush1.bf16.msra.mxu0 0
      %691 = vmatprep.subr.bf16.mxu0 0
      %692 = vmatpush1.bf16.msra.mxu0 0
      %693 = vmatprep.mubr.bf16.mxu0 0
      %694 = vmatmul.mubr.bf16.gmra.mrb[0].mxu0 %v656
      %v695 = vpop.f32.mrb[0].mxu0
      %v696 = vadd.f32 0.0, %v695
      %v697 = vpop.f32.mrb[0].mxu0
      %v698 = vpop.f32.mrb[0].mxu0
      %v699 = vadd.f32 0.0, %v698
      %v700 = vpop.f32.mrb[0].mxu0
      %701 = vdwg.mxu0
      %v702 = vadd.f32 %v612, %v696
      %v703 = vadd.f32 %v613, %v699
      %v705 = vunpack.c.l.s4 1983009808
      %v706 = vunpack.c.0.s8 %v705
      %v707 = vlaneseq
      %v708 = vshrl.u32 %v707, 7
      %v709 = vsub.s32 %v706, %v708
      %v710 = vrot.slane %v251, %v709
      %v711 = vcombine.high %v710, %v710
      %v713 = vshrl.u32 %v710, 16
      %v715 = vrot.slane %v713, 6
      %v716 = vshll.u32 %v710, 16
      %v718 = vrot.slane %v716, 7
      %v719 = vor.u32 %v715, %v718
      %v720 = vrot.slane %v719, 2
      %v722 = vshll.u32 %v711, 16
      %v724 = vrot.slane %v722, 7
      %v725 = vsel %vm489, %v720, %v724
      %s726 = scalar_lea.vmem %s2, 14
      %v727 = vld [vmem:[%s726] sm:$0x3]
      %v728 = vcombine.low %v635, %v725
      %v730 = vunpack.c.l.s4 1983009808
      %v731 = vunpack.c.0.s8 %v730
      %v732 = vlaneseq
      %v733 = vshrl.u32 %v732, 7
      %v734 = vsub.s32 %v731, %v733
      %v735 = vrot.slane %v728, %v734
      %v736 = vcombine.low %v563, %v735
      %v738 = vsel %vm276, %v736, 0
      %v741 = vsel %vm280, %v727, 0
      %743 = vmatprep.subr.bf16.mxu0 0
      %744 = vmatpush1.bf16.msra.mxu0 %v741
      %745 = vmatprep.subr.bf16.mxu0 0
      %746 = vmatpush1.bf16.msra.mxu0 0
      %747 = vmatprep.subr.bf16.mxu0 0
      %748 = vmatpush1.bf16.msra.mxu0 0
      %749 = vmatprep.subr.bf16.mxu0 0
      %750 = vmatpush1.bf16.msra.mxu0 0
      %751 = vmatprep.subr.bf16.mxu0 0
      %752 = vmatpush1.bf16.msra.mxu0 0
      %753 = vmatprep.subr.bf16.mxu0 0
      %754 = vmatpush1.bf16.msra.mxu0 0
      %755 = vmatprep.subr.bf16.mxu0 0
      %756 = vmatpush1.bf16.msra.mxu0 0
      %757 = vmatprep.subr.bf16.mxu0 0
      %758 = vmatpush1.bf16.msra.mxu0 0
      %759 = vmatprep.subr.bf16.mxu0 0
      %760 = vmatpush1.bf16.msra.mxu0 0
      %761 = vmatprep.subr.bf16.mxu0 0
      %762 = vmatpush1.bf16.msra.mxu0 0
      %763 = vmatprep.subr.bf16.mxu0 0
      %764 = vmatpush1.bf16.msra.mxu0 0
      %765 = vmatprep.subr.bf16.mxu0 0
      %766 = vmatpush1.bf16.msra.mxu0 0
      %767 = vmatprep.subr.bf16.mxu0 0
      %768 = vmatpush1.bf16.msra.mxu0 0
      %769 = vmatprep.subr.bf16.mxu0 0
      %770 = vmatpush1.bf16.msra.mxu0 0
      %771 = vmatprep.subr.bf16.mxu0 0
      %772 = vmatpush1.bf16.msra.mxu0 0
      %773 = vmatprep.subr.bf16.mxu0 0
      %774 = vmatpush1.bf16.msra.mxu0 0
      %775 = vmatprep.mubr.bf16.mxu0 0
      %776 = vmatmul.mubr.bf16.gmra.mrb[0].mxu0 %v738
      %v777 = vpop.f32.mrb[0].mxu0
      %v778 = vadd.f32 0.0, %v777
      %v779 = vpop.f32.mrb[0].mxu0
      %v780 = vpop.f32.mrb[0].mxu0
      %v781 = vadd.f32 0.0, %v780
      %v782 = vpop.f32.mrb[0].mxu0
      %783 = vdwg.mxu0
      %v784 = vadd.f32 %v702, %v778
      %v785 = vadd.f32 %v703, %v781
      %vm786 = vcmask 1040384
      %vm787 = vcmask 1042434
      %vm788 = vmor %vm786, %vm787
      %vm789 = vcmask 1044484
      %vm790 = vmor %vm788, %vm789
      %vm791 = vcmask 1046534
      %vm792 = vmor %vm790, %vm791
      %v793 = vrot.slane %v457, 7
      %v794 = vrot.slane %v793, 2
      %v795 = vrot.slane %v458, 7
      %v796 = vsel %vm792, %v794, %v795
      %v797 = vrot.slane %v465, 7
      %v798 = vrot.slane %v797, 2
      %v799 = vrot.slane %v466, 7
      %v800 = vsel %vm792, %v798, %v799
      %v801 = vrot.slane %v473, 7
      %v802 = vrot.slane %v801, 2
      %v803 = vrot.slane %v474, 7
      %v804 = vsel %vm792, %v802, %v803
      %v805 = vrot.slane %v481, 7
      %v806 = vrot.slane %v805, 2
      %v807 = vrot.slane %v482, 7
      %v808 = vsel %vm792, %v806, %v807
      %s809 = scalar_lea.vmem %s2, 4
      %v810 = vld [vmem:[%s809] sm:$0x3]
      %v811 = vcombine.low %v796, %v800
      %v812 = vcombine.low %v804, %v808
      %v814 = vunpack.c.l.s4 1983009808
      %v815 = vunpack.c.0.s8 %v814
      %v816 = vlaneseq
      %v817 = vshrl.u32 %v816, 7
      %v818 = vsub.s32 %v815, %v817
      %v819 = vrot.slane %v811, %v818
      %v821 = vunpack.c.l.s4 1983009808
      %v822 = vunpack.c.0.s8 %v821
      %v823 = vlaneseq
      %v824 = vshrl.u32 %v823, 7
      %v825 = vsub.s32 %v822, %v824
      %v826 = vrot.slane %v812, %v825
      %v827 = vcombine.low %v819, %v826
      %v829 = vsel %vm276, %v827, 0
      %v832 = vsel %vm280, %v810, 0
      %834 = vmatprep.subr.bf16.mxu0 0
      %835 = vmatpush1.bf16.msra.mxu0 %v832
      %836 = vmatprep.subr.bf16.mxu0 0
      %837 = vmatpush1.bf16.msra.mxu0 0
      %838 = vmatprep.subr.bf16.mxu0 0
      %839 = vmatpush1.bf16.msra.mxu0 0
      %840 = vmatprep.subr.bf16.mxu0 0
      %841 = vmatpush1.bf16.msra.mxu0 0
      %842 = vmatprep.subr.bf16.mxu0 0
      %843 = vmatpush1.bf16.msra.mxu0 0
      %844 = vmatprep.subr.bf16.mxu0 0
      %845 = vmatpush1.bf16.msra.mxu0 0
      %846 = vmatprep.subr.bf16.mxu0 0
      %847 = vmatpush1.bf16.msra.mxu0 0
      %848 = vmatprep.subr.bf16.mxu0 0
      %849 = vmatpush1.bf16.msra.mxu0 0
      %850 = vmatprep.subr.bf16.mxu0 0
      %851 = vmatpush1.bf16.msra.mxu0 0
      %852 = vmatprep.subr.bf16.mxu0 0
      %853 = vmatpush1.bf16.msra.mxu0 0
      %854 = vmatprep.subr.bf16.mxu0 0
      %855 = vmatpush1.bf16.msra.mxu0 0
      %856 = vmatprep.subr.bf16.mxu0 0
      %857 = vmatpush1.bf16.msra.mxu0 0
      %858 = vmatprep.subr.bf16.mxu0 0
      %859 = vmatpush1.bf16.msra.mxu0 0
      %860 = vmatprep.subr.bf16.mxu0 0
      %861 = vmatpush1.bf16.msra.mxu0 0
      %862 = vmatprep.subr.bf16.mxu0 0
      %863 = vmatpush1.bf16.msra.mxu0 0
      %864 = vmatprep.subr.bf16.mxu0 0
      %865 = vmatpush1.bf16.msra.mxu0 0
      %866 = vmatprep.mubr.bf16.mxu0 0
      %867 = vmatmul.mubr.bf16.gmra.mrb[0].mxu0 %v829
      %v868 = vpop.f32.mrb[0].mxu0
      %v869 = vadd.f32 0.0, %v868
      %v870 = vpop.f32.mrb[0].mxu0
      %v871 = vpop.f32.mrb[0].mxu0
      %v872 = vadd.f32 0.0, %v871
      %v873 = vpop.f32.mrb[0].mxu0
      %874 = vdwg.mxu0
      %v875 = vadd.f32 %v784, %v869
      %v876 = vadd.f32 %v785, %v872
      %v877 = vrot.slane %v620, 7
      %v878 = vrot.slane %v877, 2
      %v879 = vrot.slane %v621, 7
      %v880 = vsel %vm792, %v878, %v879
      %s881 = scalar_lea.vmem %s2, 10
      %v882 = vld [vmem:[%s881] sm:$0x3]
      %v883 = vcombine.low %v800, %v804
      %v884 = vcombine.low %v808, %v880
      %v886 = vunpack.c.l.s4 1983009808
      %v887 = vunpack.c.0.s8 %v886
      %v888 = vlaneseq
      %v889 = vshrl.u32 %v888, 7
      %v890 = vsub.s32 %v887, %v889
      %v891 = vrot.slane %v883, %v890
      %v893 = vunpack.c.l.s4 1983009808
      %v894 = vunpack.c.0.s8 %v893
      %v895 = vlaneseq
      %v896 = vshrl.u32 %v895, 7
      %v897 = vsub.s32 %v894, %v896
      %v898 = vrot.slane %v884, %v897
      %v899 = vcombine.low %v891, %v898
      %v901 = vsel %vm276, %v899, 0
      %v904 = vsel %vm280, %v882, 0
      %906 = vmatprep.subr.bf16.mxu0 0
      %907 = vmatpush1.bf16.msra.mxu0 %v904
      %908 = vmatprep.subr.bf16.mxu0 0
      %909 = vmatpush1.bf16.msra.mxu0 0
      %910 = vmatprep.subr.bf16.mxu0 0
      %911 = vmatpush1.bf16.msra.mxu0 0
      %912 = vmatprep.subr.bf16.mxu0 0
      %913 = vmatpush1.bf16.msra.mxu0 0
      %914 = vmatprep.subr.bf16.mxu0 0
      %915 = vmatpush1.bf16.msra.mxu0 0
      %916 = vmatprep.subr.bf16.mxu0 0
      %917 = vmatpush1.bf16.msra.mxu0 0
      %918 = vmatprep.subr.bf16.mxu0 0
      %919 = vmatpush1.bf16.msra.mxu0 0
      %920 = vmatprep.subr.bf16.mxu0 0
      %921 = vmatpush1.bf16.msra.mxu0 0
      %922 = vmatprep.subr.bf16.mxu0 0
      %923 = vmatpush1.bf16.msra.mxu0 0
      %924 = vmatprep.subr.bf16.mxu0 0
      %925 = vmatpush1.bf16.msra.mxu0 0
      %926 = vmatprep.subr.bf16.mxu0 0
      %927 = vmatpush1.bf16.msra.mxu0 0
      %928 = vmatprep.subr.bf16.mxu0 0
      %929 = vmatpush1.bf16.msra.mxu0 0
      %930 = vmatprep.subr.bf16.mxu0 0
      %931 = vmatpush1.bf16.msra.mxu0 0
      %932 = vmatprep.subr.bf16.mxu0 0
      %933 = vmatpush1.bf16.msra.mxu0 0
      %934 = vmatprep.subr.bf16.mxu0 0
      %935 = vmatpush1.bf16.msra.mxu0 0
      %936 = vmatprep.subr.bf16.mxu0 0
      %937 = vmatpush1.bf16.msra.mxu0 0
      %938 = vmatprep.mubr.bf16.mxu0 0
      %939 = vmatmul.mubr.bf16.gmra.mrb[0].mxu0 %v901
      %v940 = vpop.f32.mrb[0].mxu0
      %v941 = vadd.f32 0.0, %v940
      %v942 = vpop.f32.mrb[0].mxu0
      %v943 = vpop.f32.mrb[0].mxu0
      %v944 = vadd.f32 0.0, %v943
      %v945 = vpop.f32.mrb[0].mxu0
      %946 = vdwg.mxu0
      %v947 = vadd.f32 %v875, %v941
      %v948 = vadd.f32 %v876, %v944
      %v949 = vrot.slane %v710, 7
      %v950 = vrot.slane %v949, 2
      %v951 = vrot.slane %v711, 7
      %v952 = vsel %vm792, %v950, %v951
      %s953 = scalar_lea.vmem %s2, 16
      %v954 = vld [vmem:[%s953] sm:$0x3]
      %v955 = vcombine.low %v880, %v952
      %v957 = vunpack.c.l.s4 1983009808
      %v958 = vunpack.c.0.s8 %v957
      %v959 = vlaneseq
      %v960 = vshrl.u32 %v959, 7
      %v961 = vsub.s32 %v958, %v960
      %v962 = vrot.slane %v955, %v961
      %v963 = vcombine.low %v826, %v962
      %v965 = vsel %vm276, %v963, 0
      %v968 = vsel %vm280, %v954, 0
      %970 = vmatprep.subr.bf16.mxu0 0
      %971 = vmatpush1.bf16.msra.mxu0 %v968
      %972 = vmatprep.subr.bf16.mxu0 0
      %973 = vmatpush1.bf16.msra.mxu0 0
      %974 = vmatprep.subr.bf16.mxu0 0
      %975 = vmatpush1.bf16.msra.mxu0 0
      %976 = vmatprep.subr.bf16.mxu0 0
      %977 = vmatpush1.bf16.msra.mxu0 0
      %978 = vmatprep.subr.bf16.mxu0 0
      %979 = vmatpush1.bf16.msra.mxu0 0
      %980 = vmatprep.subr.bf16.mxu0 0
      %981 = vmatpush1.bf16.msra.mxu0 0
      %982 = vmatprep.subr.bf16.mxu0 0
      %983 = vmatpush1.bf16.msra.mxu0 0
      %984 = vmatprep.subr.bf16.mxu0 0
      %985 = vmatpush1.bf16.msra.mxu0 0
      %986 = vmatprep.subr.bf16.mxu0 0
      %987 = vmatpush1.bf16.msra.mxu0 0
      %988 = vmatprep.subr.bf16.mxu0 0
      %989 = vmatpush1.bf16.msra.mxu0 0
      %990 = vmatprep.subr.bf16.mxu0 0
      %991 = vmatpush1.bf16.msra.mxu0 0
      %992 = vmatprep.subr.bf16.mxu0 0
      %993 = vmatpush1.bf16.msra.mxu0 0
      %994 = vmatprep.subr.bf16.mxu0 0
      %995 = vmatpush1.bf16.msra.mxu0 0
      %996 = vmatprep.subr.bf16.mxu0 0
      %997 = vmatpush1.bf16.msra.mxu0 0
      %998 = vmatprep.subr.bf16.mxu0 0
      %999 = vmatpush1.bf16.msra.mxu0 0
      %1000 = vmatprep.subr.bf16.mxu0 0
      %1001 = vmatpush1.bf16.msra.mxu0 0
      %1002 = vmatprep.mubr.bf16.mxu0 0
      %1003 = vmatmul.mubr.bf16.gmra.mrb[0].mxu0 %v965
      %v1004 = vpop.f32.mrb[0].mxu0
      %v1005 = vadd.f32 0.0, %v1004
      %v1006 = vpop.f32.mrb[0].mxu0
      %v1007 = vpop.f32.mrb[0].mxu0
      %v1008 = vadd.f32 0.0, %v1007
      %v1009 = vpop.f32.mrb[0].mxu0
      %1010 = vdwg.mxu0
      %v1011 = vadd.f32 %v947, %v1005
      %v1012 = vadd.f32 %v948, %v1008
      %v1013 = vld [vmem:[%s239] sm:$0x7]
      %v1014 = vld [vmem:[%s239 + $0x4] sm:$0x7]
      %v1015 = vld [vmem:[%s239 + $0x8] sm:$0x7]
      %v1016 = vld [vmem:[%s239 + $0xc] sm:$0x7]
      %v1017 = vld [vmem:[%s239 + $0x10] sm:$0x7]
      %v1018 = vld [vmem:[%s239 + $0x14] sm:$0x7]
      %v1019 = vld [vmem:[%s3] sm:$0x3]
      %s1020 = scalar_lea.vmem %s3, 6
      %v1021 = vld [vmem:[%s1020] sm:$0x3]
      %v1026 = vcombine.low %v1014, %v1015
      %v1027 = vcombine.low %v1016, %v1017
      %v1029 = vunpack.c.l.s4 1983009808
      %v1030 = vunpack.c.0.s8 %v1029
      %v1031 = vlaneseq
      %v1032 = vshrl.u32 %v1031, 7
      %v1033 = vsub.s32 %v1030, %v1032
      %v1034 = vrot.slane %v1026, %v1033
      %v1036 = vunpack.c.l.s4 1983009808
      %v1037 = vunpack.c.0.s8 %v1036
      %v1038 = vlaneseq
      %v1039 = vshrl.u32 %v1038, 7
      %v1040 = vsub.s32 %v1037, %v1039
      %v1041 = vrot.slane %v1027, %v1040
      %v1042 = vcombine.low %v1034, %v1041
      %vm1043 = vcmask 23552
      %v1045 = vsel %vm1043, %v1042, 0
      %vm1047 = vcmask 1040384
      %v1048 = vsel %vm1047, 4294967295, 65535
      %v1049 = vsel %vm280, %v1048, 0
      %v1051 = vand.u32 %v1021, %v1049
      %1053 = vmatprep.subr.bf16.mxu0 0
      %1054 = vmatpush1.bf16.msra.mxu0 %v1051
      %1055 = vmatprep.subr.bf16.mxu0 0
      %1056 = vmatpush1.bf16.msra.mxu0 0
      %1057 = vmatprep.subr.bf16.mxu0 0
      %1058 = vmatpush1.bf16.msra.mxu0 0
      %1059 = vmatprep.subr.bf16.mxu0 0
      %1060 = vmatpush1.bf16.msra.mxu0 0
      %1061 = vmatprep.subr.bf16.mxu0 0
      %1062 = vmatpush1.bf16.msra.mxu0 0
      %1063 = vmatprep.subr.bf16.mxu0 0
      %1064 = vmatpush1.bf16.msra.mxu0 0
      %1065 = vmatprep.subr.bf16.mxu0 0
      %1066 = vmatpush1.bf16.msra.mxu0 0
      %1067 = vmatprep.subr.bf16.mxu0 0
      %1068 = vmatpush1.bf16.msra.mxu0 0
      %1069 = vmatprep.subr.bf16.mxu0 0
      %1070 = vmatpush1.bf16.msra.mxu0 0
      %1071 = vmatprep.subr.bf16.mxu0 0
      %1072 = vmatpush1.bf16.msra.mxu0 0
      %1073 = vmatprep.subr.bf16.mxu0 0
      %1074 = vmatpush1.bf16.msra.mxu0 0
      %1075 = vmatprep.subr.bf16.mxu0 0
      %1076 = vmatpush1.bf16.msra.mxu0 0
      %1077 = vmatprep.subr.bf16.mxu0 0
      %1078 = vmatpush1.bf16.msra.mxu0 0
      %1079 = vmatprep.subr.bf16.mxu0 0
      %1080 = vmatpush1.bf16.msra.mxu0 0
      %1081 = vmatprep.subr.bf16.mxu0 0
      %1082 = vmatpush1.bf16.msra.mxu0 0
      %1083 = vmatprep.subr.bf16.mxu0 0
      %1084 = vmatpush1.bf16.msra.mxu0 0
      %1085 = vmatprep.mubr.bf16.mxu0 0
      %1086 = vmatmul.mubr.bf16.gmra.mrb[0].mxu0 %v1045
      %v1087 = vpop.f32.mrb[0].mxu0
      %v1088 = vadd.f32 0.0, %v1087
      %v1089 = vpop.f32.mrb[0].mxu0
      %v1090 = vpop.f32.mrb[0].mxu0
      %v1091 = vadd.f32 0.0, %v1090
      %v1092 = vpop.f32.mrb[0].mxu0
      %1093 = vdwg.mxu0
      %v1095 = vcombine.low %v1013, %v1014
      %v1096 = vcombine.low %v1015, %v1016
      %v1098 = vunpack.c.l.s4 1983009808
      %v1099 = vunpack.c.0.s8 %v1098
      %v1100 = vlaneseq
      %v1101 = vshrl.u32 %v1100, 7
      %v1102 = vsub.s32 %v1099, %v1101
      %v1103 = vrot.slane %v1095, %v1102
      %v1105 = vunpack.c.l.s4 1983009808
      %v1106 = vunpack.c.0.s8 %v1105
      %v1107 = vlaneseq
      %v1108 = vshrl.u32 %v1107, 7
      %v1109 = vsub.s32 %v1106, %v1108
      %v1110 = vrot.slane %v1096, %v1109
      %v1111 = vcombine.low %v1103, %v1110
      %v1113 = vsel %vm1043, %v1111, 0
      %v1116 = vand.u32 %v1019, %v1049
      %1118 = vmatprep.subr.bf16.mxu0 0
      %1119 = vmatpush1.bf16.msra.mxu0 %v1116
      %1120 = vmatprep.subr.bf16.mxu0 0
      %1121 = vmatpush1.bf16.msra.mxu0 0
      %1122 = vmatprep.subr.bf16.mxu0 0
      %1123 = vmatpush1.bf16.msra.mxu0 0
      %1124 = vmatprep.subr.bf16.mxu0 0
      %1125 = vmatpush1.bf16.msra.mxu0 0
      %1126 = vmatprep.subr.bf16.mxu0 0
      %1127 = vmatpush1.bf16.msra.mxu0 0
      %1128 = vmatprep.subr.bf16.mxu0 0
      %1129 = vmatpush1.bf16.msra.mxu0 0
      %1130 = vmatprep.subr.bf16.mxu0 0
      %1131 = vmatpush1.bf16.msra.mxu0 0
      %1132 = vmatprep.subr.bf16.mxu0 0
      %1133 = vmatpush1.bf16.msra.mxu0 0
      %1134 = vmatprep.subr.bf16.mxu0 0
      %1135 = vmatpush1.bf16.msra.mxu0 0
      %1136 = vmatprep.subr.bf16.mxu0 0
      %1137 = vmatpush1.bf16.msra.mxu0 0
      %1138 = vmatprep.subr.bf16.mxu0 0
      %1139 = vmatpush1.bf16.msra.mxu0 0
      %1140 = vmatprep.subr.bf16.mxu0 0
      %1141 = vmatpush1.bf16.msra.mxu0 0
      %1142 = vmatprep.subr.bf16.mxu0 0
      %1143 = vmatpush1.bf16.msra.mxu0 0
      %1144 = vmatprep.subr.bf16.mxu0 0
      %1145 = vmatpush1.bf16.msra.mxu0 0
      %1146 = vmatprep.subr.bf16.mxu0 0
      %1147 = vmatpush1.bf16.msra.mxu0 0
      %1148 = vmatprep.subr.bf16.mxu0 0
      %1149 = vmatpush1.bf16.msra.mxu0 0
      %1150 = vmatprep.mubr.bf16.mxu0 0
      %1151 = vmatmul.mubr.bf16.gmra.mrb[0].mxu0 %v1113
      %v1152 = vpop.f32.mrb[0].mxu0
      %v1153 = vadd.f32 %v1088, %v1152
      %v1154 = vpop.f32.mrb[0].mxu0
      %v1155 = vpop.f32.mrb[0].mxu0
      %v1156 = vadd.f32 %v1091, %v1155
      %v1157 = vpop.f32.mrb[0].mxu0
      %1158 = vdwg.mxu0
      %s1159 = scalar_lea.vmem %s3, 12
      %v1160 = vld [vmem:[%s1159] sm:$0x3]
      %v1162 = vcombine.low %v1017, %v1018
      %v1164 = vunpack.c.l.s4 1983009808
      %v1165 = vunpack.c.0.s8 %v1164
      %v1166 = vlaneseq
      %v1167 = vshrl.u32 %v1166, 7
      %v1168 = vsub.s32 %v1165, %v1167
      %v1169 = vrot.slane %v1162, %v1168
      %v1170 = vcombine.low %v1110, %v1169
      %v1172 = vsel %vm1043, %v1170, 0
      %v1175 = vand.u32 %v1160, %v1049
      %1177 = vmatprep.subr.bf16.mxu0 0
      %1178 = vmatpush1.bf16.msra.mxu0 %v1175
      %1179 = vmatprep.subr.bf16.mxu0 0
      %1180 = vmatpush1.bf16.msra.mxu0 0
      %1181 = vmatprep.subr.bf16.mxu0 0
      %1182 = vmatpush1.bf16.msra.mxu0 0
      %1183 = vmatprep.subr.bf16.mxu0 0
      %1184 = vmatpush1.bf16.msra.mxu0 0
      %1185 = vmatprep.subr.bf16.mxu0 0
      %1186 = vmatpush1.bf16.msra.mxu0 0
      %1187 = vmatprep.subr.bf16.mxu0 0
      %1188 = vmatpush1.bf16.msra.mxu0 0
      %1189 = vmatprep.subr.bf16.mxu0 0
      %1190 = vmatpush1.bf16.msra.mxu0 0
      %1191 = vmatprep.subr.bf16.mxu0 0
      %1192 = vmatpush1.bf16.msra.mxu0 0
      %1193 = vmatprep.subr.bf16.mxu0 0
      %1194 = vmatpush1.bf16.msra.mxu0 0
      %1195 = vmatprep.subr.bf16.mxu0 0
      %1196 = vmatpush1.bf16.msra.mxu0 0
      %1197 = vmatprep.subr.bf16.mxu0 0
      %1198 = vmatpush1.bf16.msra.mxu0 0
      %1199 = vmatprep.subr.bf16.mxu0 0
      %1200 = vmatpush1.bf16.msra.mxu0 0
      %1201 = vmatprep.subr.bf16.mxu0 0
      %1202 = vmatpush1.bf16.msra.mxu0 0
      %1203 = vmatprep.subr.bf16.mxu0 0
      %1204 = vmatpush1.bf16.msra.mxu0 0
      %1205 = vmatprep.subr.bf16.mxu0 0
      %1206 = vmatpush1.bf16.msra.mxu0 0
      %1207 = vmatprep.subr.bf16.mxu0 0
      %1208 = vmatpush1.bf16.msra.mxu0 0
      %1209 = vmatprep.mubr.bf16.mxu0 0
      %1210 = vmatmul.mubr.bf16.gmra.mrb[0].mxu0 %v1172
      %v1211 = vpop.f32.mrb[0].mxu0
      %v1212 = vadd.f32 0.0, %v1211
      %v1213 = vpop.f32.mrb[0].mxu0
      %v1214 = vpop.f32.mrb[0].mxu0
      %v1215 = vadd.f32 0.0, %v1214
      %v1216 = vpop.f32.mrb[0].mxu0
      %1217 = vdwg.mxu0
      %v1218 = vadd.f32 %v1153, %v1212
      %v1219 = vadd.f32 %v1156, %v1215
      %v1221 = vunpack.c.l.s4 1983009808
      %v1222 = vunpack.c.0.s8 %v1221
      %v1223 = vlaneseq
      %v1224 = vshrl.u32 %v1223, 7
      %v1225 = vsub.s32 %v1222, %v1224
      %v1226 = vrot.slane %v1013, %v1225
      %v1227 = vcombine.high %v1226, %v1226
      %v1229 = vunpack.c.l.s4 1983009808
      %v1230 = vunpack.c.0.s8 %v1229
      %v1231 = vlaneseq
      %v1232 = vshrl.u32 %v1231, 7
      %v1233 = vsub.s32 %v1230, %v1232
      %v1234 = vrot.slane %v1014, %v1233
      %v1235 = vcombine.high %v1234, %v1234
      %v1237 = vunpack.c.l.s4 1983009808
      %v1238 = vunpack.c.0.s8 %v1237
      %v1239 = vlaneseq
      %v1240 = vshrl.u32 %v1239, 7
      %v1241 = vsub.s32 %v1238, %v1240
      %v1242 = vrot.slane %v1015, %v1241
      %v1243 = vcombine.high %v1242, %v1242
      %v1245 = vunpack.c.l.s4 1983009808
      %v1246 = vunpack.c.0.s8 %v1245
      %v1247 = vlaneseq
      %v1248 = vshrl.u32 %v1247, 7
      %v1249 = vsub.s32 %v1246, %v1248
      %v1250 = vrot.slane %v1016, %v1249
      %v1251 = vcombine.high %v1250, %v1250
      %v1253 = vshrl.u32 %v1226, 16
      %v1255 = vrot.slane %v1253, 6
      %v1256 = vshll.u32 %v1226, 16
      %v1258 = vrot.slane %v1256, 7
      %v1259 = vor.u32 %v1255, %v1258
      %v1260 = vrot.slane %v1259, 2
      %v1262 = vshll.u32 %v1227, 16
      %v1264 = vrot.slane %v1262, 7
      %v1265 = vsel %vm489, %v1260, %v1264
      %v1267 = vshrl.u32 %v1234, 16
      %v1269 = vrot.slane %v1267, 6
      %v1270 = vshll.u32 %v1234, 16
      %v1272 = vrot.slane %v1270, 7
      %v1273 = vor.u32 %v1269, %v1272
      %v1274 = vrot.slane %v1273, 2
      %v1276 = vshll.u32 %v1235, 16
      %v1278 = vrot.slane %v1276, 7
      %v1279 = vsel %vm489, %v1274, %v1278
      %v1281 = vshrl.u32 %v1242, 16
      %v1283 = vrot.slane %v1281, 6
      %v1284 = vshll.u32 %v1242, 16
      %v1286 = vrot.slane %v1284, 7
      %v1287 = vor.u32 %v1283, %v1286
      %v1288 = vrot.slane %v1287, 2
      %v1290 = vshll.u32 %v1243, 16
      %v1292 = vrot.slane %v1290, 7
      %v1293 = vsel %vm489, %v1288, %v1292
      %v1295 = vshrl.u32 %v1250, 16
      %v1297 = vrot.slane %v1295, 6
      %v1298 = vshll.u32 %v1250, 16
      %v1300 = vrot.slane %v1298, 7
      %v1301 = vor.u32 %v1297, %v1300
      %v1302 = vrot.slane %v1301, 2
      %v1304 = vshll.u32 %v1251, 16
      %v1306 = vrot.slane %v1304, 7
      %v1307 = vsel %vm489, %v1302, %v1306
      %s1308 = scalar_lea.vmem %s3, 2
      %v1309 = vld [vmem:[%s1308] sm:$0x3]
      %v1310 = vcombine.low %v1265, %v1279
      %v1311 = vcombine.low %v1293, %v1307
      %v1313 = vunpack.c.l.s4 1983009808
      %v1314 = vunpack.c.0.s8 %v1313
      %v1315 = vlaneseq
      %v1316 = vshrl.u32 %v1315, 7
      %v1317 = vsub.s32 %v1314, %v1316
      %v1318 = vrot.slane %v1310, %v1317
      %v1320 = vunpack.c.l.s4 1983009808
      %v1321 = vunpack.c.0.s8 %v1320
      %v1322 = vlaneseq
      %v1323 = vshrl.u32 %v1322, 7
      %v1324 = vsub.s32 %v1321, %v1323
      %v1325 = vrot.slane %v1311, %v1324
      %v1326 = vcombine.low %v1318, %v1325
      %v1328 = vsel %vm1043, %v1326, 0
      %v1331 = vand.u32 %v1309, %v1049
      %1333 = vmatprep.subr.bf16.mxu0 0
      %1334 = vmatpush1.bf16.msra.mxu0 %v1331
      %1335 = vmatprep.subr.bf16.mxu0 0
      %1336 = vmatpush1.bf16.msra.mxu0 0
      %1337 = vmatprep.subr.bf16.mxu0 0
      %1338 = vmatpush1.bf16.msra.mxu0 0
      %1339 = vmatprep.subr.bf16.mxu0 0
      %1340 = vmatpush1.bf16.msra.mxu0 0
      %1341 = vmatprep.subr.bf16.mxu0 0
      %1342 = vmatpush1.bf16.msra.mxu0 0
      %1343 = vmatprep.subr.bf16.mxu0 0
      %1344 = vmatpush1.bf16.msra.mxu0 0
      %1345 = vmatprep.subr.bf16.mxu0 0
      %1346 = vmatpush1.bf16.msra.mxu0 0
      %1347 = vmatprep.subr.bf16.mxu0 0
      %1348 = vmatpush1.bf16.msra.mxu0 0
      %1349 = vmatprep.subr.bf16.mxu0 0
      %1350 = vmatpush1.bf16.msra.mxu0 0
      %1351 = vmatprep.subr.bf16.mxu0 0
      %1352 = vmatpush1.bf16.msra.mxu0 0
      %1353 = vmatprep.subr.bf16.mxu0 0
      %1354 = vmatpush1.bf16.msra.mxu0 0
      %1355 = vmatprep.subr.bf16.mxu0 0
      %1356 = vmatpush1.bf16.msra.mxu0 0
      %1357 = vmatprep.subr.bf16.mxu0 0
      %1358 = vmatpush1.bf16.msra.mxu0 0
      %1359 = vmatprep.subr.bf16.mxu0 0
      %1360 = vmatpush1.bf16.msra.mxu0 0
      %1361 = vmatprep.subr.bf16.mxu0 0
      %1362 = vmatpush1.bf16.msra.mxu0 0
      %1363 = vmatprep.subr.bf16.mxu0 0
      %1364 = vmatpush1.bf16.msra.mxu0 0
      %1365 = vmatprep.mubr.bf16.mxu0 0
      %1366 = vmatmul.mubr.bf16.gmra.mrb[0].mxu0 %v1328
      %v1367 = vpop.f32.mrb[0].mxu0
      %v1368 = vadd.f32 0.0, %v1367
      %v1369 = vpop.f32.mrb[0].mxu0
      %v1370 = vpop.f32.mrb[0].mxu0
      %v1371 = vadd.f32 0.0, %v1370
      %v1372 = vpop.f32.mrb[0].mxu0
      %1373 = vdwg.mxu0
      %v1374 = vadd.f32 %v1218, %v1368
      %v1375 = vadd.f32 %v1219, %v1371
      %v1377 = vunpack.c.l.s4 1983009808
      %v1378 = vunpack.c.0.s8 %v1377
      %v1379 = vlaneseq
      %v1380 = vshrl.u32 %v1379, 7
      %v1381 = vsub.s32 %v1378, %v1380
      %v1382 = vrot.slane %v1017, %v1381
      %v1383 = vcombine.high %v1382, %v1382
      %v1385 = vshrl.u32 %v1382, 16
      %v1387 = vrot.slane %v1385, 6
      %v1388 = vshll.u32 %v1382, 16
      %v1390 = vrot.slane %v1388, 7
      %v1391 = vor.u32 %v1387, %v1390
      %v1392 = vrot.slane %v1391, 2
      %v1394 = vshll.u32 %v1383, 16
      %v1396 = vrot.slane %v1394, 7
      %v1397 = vsel %vm489, %v1392, %v1396
      %s1398 = scalar_lea.vmem %s3, 8
      %v1399 = vld [vmem:[%s1398] sm:$0x3]
      %v1400 = vcombine.low %v1279, %v1293
      %v1401 = vcombine.low %v1307, %v1397
      %v1403 = vunpack.c.l.s4 1983009808
      %v1404 = vunpack.c.0.s8 %v1403
      %v1405 = vlaneseq
      %v1406 = vshrl.u32 %v1405, 7
      %v1407 = vsub.s32 %v1404, %v1406
      %v1408 = vrot.slane %v1400, %v1407
      %v1410 = vunpack.c.l.s4 1983009808
      %v1411 = vunpack.c.0.s8 %v1410
      %v1412 = vlaneseq
      %v1413 = vshrl.u32 %v1412, 7
      %v1414 = vsub.s32 %v1411, %v1413
      %v1415 = vrot.slane %v1401, %v1414
      %v1416 = vcombine.low %v1408, %v1415
      %v1418 = vsel %vm1043, %v1416, 0
      %v1421 = vand.u32 %v1399, %v1049
      %1423 = vmatprep.subr.bf16.mxu0 0
      %1424 = vmatpush1.bf16.msra.mxu0 %v1421
      %1425 = vmatprep.subr.bf16.mxu0 0
      %1426 = vmatpush1.bf16.msra.mxu0 0
      %1427 = vmatprep.subr.bf16.mxu0 0
      %1428 = vmatpush1.bf16.msra.mxu0 0
      %1429 = vmatprep.subr.bf16.mxu0 0
      %1430 = vmatpush1.bf16.msra.mxu0 0
      %1431 = vmatprep.subr.bf16.mxu0 0
      %1432 = vmatpush1.bf16.msra.mxu0 0
      %1433 = vmatprep.subr.bf16.mxu0 0
      %1434 = vmatpush1.bf16.msra.mxu0 0
      %1435 = vmatprep.subr.bf16.mxu0 0
      %1436 = vmatpush1.bf16.msra.mxu0 0
      %1437 = vmatprep.subr.bf16.mxu0 0
      %1438 = vmatpush1.bf16.msra.mxu0 0
      %1439 = vmatprep.subr.bf16.mxu0 0
      %1440 = vmatpush1.bf16.msra.mxu0 0
      %1441 = vmatprep.subr.bf16.mxu0 0
      %1442 = vmatpush1.bf16.msra.mxu0 0
      %1443 = vmatprep.subr.bf16.mxu0 0
      %1444 = vmatpush1.bf16.msra.mxu0 0
      %1445 = vmatprep.subr.bf16.mxu0 0
      %1446 = vmatpush1.bf16.msra.mxu0 0
      %1447 = vmatprep.subr.bf16.mxu0 0
      %1448 = vmatpush1.bf16.msra.mxu0 0
      %1449 = vmatprep.subr.bf16.mxu0 0
      %1450 = vmatpush1.bf16.msra.mxu0 0
      %1451 = vmatprep.subr.bf16.mxu0 0
      %1452 = vmatpush1.bf16.msra.mxu0 0
      %1453 = vmatprep.subr.bf16.mxu0 0
      %1454 = vmatpush1.bf16.msra.mxu0 0
      %1455 = vmatprep.mubr.bf16.mxu0 0
      %1456 = vmatmul.mubr.bf16.gmra.mrb[0].mxu0 %v1418
      %v1457 = vpop.f32.mrb[0].mxu0
      %v1458 = vadd.f32 0.0, %v1457
      %v1459 = vpop.f32.mrb[0].mxu0
      %v1460 = vpop.f32.mrb[0].mxu0
      %v1461 = vadd.f32 0.0, %v1460
      %v1462 = vpop.f32.mrb[0].mxu0
      %1463 = vdwg.mxu0
      %v1464 = vadd.f32 %v1374, %v1458
      %v1465 = vadd.f32 %v1375, %v1461
      %v1467 = vunpack.c.l.s4 1983009808
      %v1468 = vunpack.c.0.s8 %v1467
      %v1469 = vlaneseq
      %v1470 = vshrl.u32 %v1469, 7
      %v1471 = vsub.s32 %v1468, %v1470
      %v1472 = vrot.slane %v1018, %v1471
      %v1473 = vcombine.high %v1472, %v1472
      %v1475 = vshrl.u32 %v1472, 16
      %v1477 = vrot.slane %v1475, 6
      %v1478 = vshll.u32 %v1472, 16
      %v1480 = vrot.slane %v1478, 7
      %v1481 = vor.u32 %v1477, %v1480
      %v1482 = vrot.slane %v1481, 2
      %v1484 = vshll.u32 %v1473, 16
      %v1486 = vrot.slane %v1484, 7
      %v1487 = vsel %vm489, %v1482, %v1486
      %s1488 = scalar_lea.vmem %s3, 14
      %v1489 = vld [vmem:[%s1488] sm:$0x3]
      %v1490 = vcombine.low %v1397, %v1487
      %v1492 = vunpack.c.l.s4 1983009808
      %v1493 = vunpack.c.0.s8 %v1492
      %v1494 = vlaneseq
      %v1495 = vshrl.u32 %v1494, 7
      %v1496 = vsub.s32 %v1493, %v1495
      %v1497 = vrot.slane %v1490, %v1496
      %v1498 = vcombine.low %v1325, %v1497
      %v1500 = vsel %vm1043, %v1498, 0
      %v1503 = vand.u32 %v1489, %v1049
      %1505 = vmatprep.subr.bf16.mxu0 0
      %1506 = vmatpush1.bf16.msra.mxu0 %v1503
      %1507 = vmatprep.subr.bf16.mxu0 0
      %1508 = vmatpush1.bf16.msra.mxu0 0
      %1509 = vmatprep.subr.bf16.mxu0 0
      %1510 = vmatpush1.bf16.msra.mxu0 0
      %1511 = vmatprep.subr.bf16.mxu0 0
      %1512 = vmatpush1.bf16.msra.mxu0 0
      %1513 = vmatprep.subr.bf16.mxu0 0
      %1514 = vmatpush1.bf16.msra.mxu0 0
      %1515 = vmatprep.subr.bf16.mxu0 0
      %1516 = vmatpush1.bf16.msra.mxu0 0
      %1517 = vmatprep.subr.bf16.mxu0 0
      %1518 = vmatpush1.bf16.msra.mxu0 0
      %1519 = vmatprep.subr.bf16.mxu0 0
      %1520 = vmatpush1.bf16.msra.mxu0 0
      %1521 = vmatprep.subr.bf16.mxu0 0
      %1522 = vmatpush1.bf16.msra.mxu0 0
      %1523 = vmatprep.subr.bf16.mxu0 0
      %1524 = vmatpush1.bf16.msra.mxu0 0
      %1525 = vmatprep.subr.bf16.mxu0 0
      %1526 = vmatpush1.bf16.msra.mxu0 0
      %1527 = vmatprep.subr.bf16.mxu0 0
      %1528 = vmatpush1.bf16.msra.mxu0 0
      %1529 = vmatprep.subr.bf16.mxu0 0
      %1530 = vmatpush1.bf16.msra.mxu0 0
      %1531 = vmatprep.subr.bf16.mxu0 0
      %1532 = vmatpush1.bf16.msra.mxu0 0
      %1533 = vmatprep.subr.bf16.mxu0 0
      %1534 = vmatpush1.bf16.msra.mxu0 0
      %1535 = vmatprep.subr.bf16.mxu0 0
      %1536 = vmatpush1.bf16.msra.mxu0 0
      %1537 = vmatprep.mubr.bf16.mxu0 0
      %1538 = vmatmul.mubr.bf16.gmra.mrb[0].mxu0 %v1500
      %v1539 = vpop.f32.mrb[0].mxu0
      %v1540 = vadd.f32 0.0, %v1539
      %v1541 = vpop.f32.mrb[0].mxu0
      %v1542 = vpop.f32.mrb[0].mxu0
      %v1543 = vadd.f32 0.0, %v1542
      %v1544 = vpop.f32.mrb[0].mxu0
      %1545 = vdwg.mxu0
      %v1546 = vadd.f32 %v1464, %v1540
      %v1547 = vadd.f32 %v1465, %v1543
      %v1548 = vrot.slane %v1226, 7
      %v1549 = vrot.slane %v1548, 2
      %v1550 = vrot.slane %v1227, 7
      %v1551 = vsel %vm792, %v1549, %v1550
      %v1552 = vrot.slane %v1234, 7
      %v1553 = vrot.slane %v1552, 2
      %v1554 = vrot.slane %v1235, 7
      %v1555 = vsel %vm792, %v1553, %v1554
      %v1556 = vrot.slane %v1242, 7
      %v1557 = vrot.slane %v1556, 2
      %v1558 = vrot.slane %v1243, 7
      %v1559 = vsel %vm792, %v1557, %v1558
      %v1560 = vrot.slane %v1250, 7
      %v1561 = vrot.slane %v1560, 2
      %v1562 = vrot.slane %v1251, 7
      %v1563 = vsel %vm792, %v1561, %v1562
      %s1564 = scalar_lea.vmem %s3, 4
      %v1565 = vld [vmem:[%s1564] sm:$0x3]
      %v1566 = vcombine.low %v1551, %v1555
      %v1567 = vcombine.low %v1559, %v1563
      %v1569 = vunpack.c.l.s4 1983009808
      %v1570 = vunpack.c.0.s8 %v1569
      %v1571 = vlaneseq
      %v1572 = vshrl.u32 %v1571, 7
      %v1573 = vsub.s32 %v1570, %v1572
      %v1574 = vrot.slane %v1566, %v1573
      %v1576 = vunpack.c.l.s4 1983009808
      %v1577 = vunpack.c.0.s8 %v1576
      %v1578 = vlaneseq
      %v1579 = vshrl.u32 %v1578, 7
      %v1580 = vsub.s32 %v1577, %v1579
      %v1581 = vrot.slane %v1567, %v1580
      %v1582 = vcombine.low %v1574, %v1581
      %v1584 = vsel %vm1043, %v1582, 0
      %v1587 = vand.u32 %v1565, %v1049
      %1589 = vmatprep.subr.bf16.mxu0 0
      %1590 = vmatpush1.bf16.msra.mxu0 %v1587
      %1591 = vmatprep.subr.bf16.mxu0 0
      %1592 = vmatpush1.bf16.msra.mxu0 0
      %1593 = vmatprep.subr.bf16.mxu0 0
      %1594 = vmatpush1.bf16.msra.mxu0 0
      %1595 = vmatprep.subr.bf16.mxu0 0
      %1596 = vmatpush1.bf16.msra.mxu0 0
      %1597 = vmatprep.subr.bf16.mxu0 0
      %1598 = vmatpush1.bf16.msra.mxu0 0
      %1599 = vmatprep.subr.bf16.mxu0 0
      %1600 = vmatpush1.bf16.msra.mxu0 0
      %1601 = vmatprep.subr.bf16.mxu0 0
      %1602 = vmatpush1.bf16.msra.mxu0 0
      %1603 = vmatprep.subr.bf16.mxu0 0
      %1604 = vmatpush1.bf16.msra.mxu0 0
      %1605 = vmatprep.subr.bf16.mxu0 0
      %1606 = vmatpush1.bf16.msra.mxu0 0
      %1607 = vmatprep.subr.bf16.mxu0 0
      %1608 = vmatpush1.bf16.msra.mxu0 0
      %1609 = vmatprep.subr.bf16.mxu0 0
      %1610 = vmatpush1.bf16.msra.mxu0 0
      %1611 = vmatprep.subr.bf16.mxu0 0
      %1612 = vmatpush1.bf16.msra.mxu0 0
      %1613 = vmatprep.subr.bf16.mxu0 0
      %1614 = vmatpush1.bf16.msra.mxu0 0
      %1615 = vmatprep.subr.bf16.mxu0 0
      %1616 = vmatpush1.bf16.msra.mxu0 0
      %1617 = vmatprep.subr.bf16.mxu0 0
      %1618 = vmatpush1.bf16.msra.mxu0 0
      %1619 = vmatprep.subr.bf16.mxu0 0
      %1620 = vmatpush1.bf16.msra.mxu0 0
      %1621 = vmatprep.mubr.bf16.mxu0 0
      %1622 = vmatmul.mubr.bf16.gmra.mrb[0].mxu0 %v1584
      %v1623 = vpop.f32.mrb[0].mxu0
      %v1624 = vadd.f32 0.0, %v1623
      %v1625 = vpop.f32.mrb[0].mxu0
      %v1626 = vpop.f32.mrb[0].mxu0
      %v1627 = vadd.f32 0.0, %v1626
      %v1628 = vpop.f32.mrb[0].mxu0
      %1629 = vdwg.mxu0
      %v1630 = vadd.f32 %v1546, %v1624
      %v1631 = vadd.f32 %v1547, %v1627
      %v1632 = vrot.slane %v1382, 7
      %v1633 = vrot.slane %v1632, 2
      %v1634 = vrot.slane %v1383, 7
      %v1635 = vsel %vm792, %v1633, %v1634
      %s1636 = scalar_lea.vmem %s3, 10
      %v1637 = vld [vmem:[%s1636] sm:$0x3]
      %v1638 = vcombine.low %v1555, %v1559
      %v1639 = vcombine.low %v1563, %v1635
      %v1641 = vunpack.c.l.s4 1983009808
      %v1642 = vunpack.c.0.s8 %v1641
      %v1643 = vlaneseq
      %v1644 = vshrl.u32 %v1643, 7
      %v1645 = vsub.s32 %v1642, %v1644
      %v1646 = vrot.slane %v1638, %v1645
      %v1648 = vunpack.c.l.s4 1983009808
      %v1649 = vunpack.c.0.s8 %v1648
      %v1650 = vlaneseq
      %v1651 = vshrl.u32 %v1650, 7
      %v1652 = vsub.s32 %v1649, %v1651
      %v1653 = vrot.slane %v1639, %v1652
      %v1654 = vcombine.low %v1646, %v1653
      %v1656 = vsel %vm1043, %v1654, 0
      %v1659 = vand.u32 %v1637, %v1049
      %1661 = vmatprep.subr.bf16.mxu0 0
      %1662 = vmatpush1.bf16.msra.mxu0 %v1659
      %1663 = vmatprep.subr.bf16.mxu0 0
      %1664 = vmatpush1.bf16.msra.mxu0 0
      %1665 = vmatprep.subr.bf16.mxu0 0
      %1666 = vmatpush1.bf16.msra.mxu0 0
      %1667 = vmatprep.subr.bf16.mxu0 0
      %1668 = vmatpush1.bf16.msra.mxu0 0
      %1669 = vmatprep.subr.bf16.mxu0 0
      %1670 = vmatpush1.bf16.msra.mxu0 0
      %1671 = vmatprep.subr.bf16.mxu0 0
      %1672 = vmatpush1.bf16.msra.mxu0 0
      %1673 = vmatprep.subr.bf16.mxu0 0
      %1674 = vmatpush1.bf16.msra.mxu0 0
      %1675 = vmatprep.subr.bf16.mxu0 0
      %1676 = vmatpush1.bf16.msra.mxu0 0
      %1677 = vmatprep.subr.bf16.mxu0 0
      %1678 = vmatpush1.bf16.msra.mxu0 0
      %1679 = vmatprep.subr.bf16.mxu0 0
      %1680 = vmatpush1.bf16.msra.mxu0 0
      %1681 = vmatprep.subr.bf16.mxu0 0
      %1682 = vmatpush1.bf16.msra.mxu0 0
      %1683 = vmatprep.subr.bf16.mxu0 0
      %1684 = vmatpush1.bf16.msra.mxu0 0
      %1685 = vmatprep.subr.bf16.mxu0 0
      %1686 = vmatpush1.bf16.msra.mxu0 0
      %1687 = vmatprep.subr.bf16.mxu0 0
      %1688 = vmatpush1.bf16.msra.mxu0 0
      %1689 = vmatprep.subr.bf16.mxu0 0
      %1690 = vmatpush1.bf16.msra.mxu0 0
      %1691 = vmatprep.subr.bf16.mxu0 0
      %1692 = vmatpush1.bf16.msra.mxu0 0
      %1693 = vmatprep.mubr.bf16.mxu0 0
      %1694 = vmatmul.mubr.bf16.gmra.mrb[0].mxu0 %v1656
      %v1695 = vpop.f32.mrb[0].mxu0
      %v1696 = vadd.f32 0.0, %v1695
      %v1697 = vpop.f32.mrb[0].mxu0
      %v1698 = vpop.f32.mrb[0].mxu0
      %v1699 = vadd.f32 0.0, %v1698
      %v1700 = vpop.f32.mrb[0].mxu0
      %1701 = vdwg.mxu0
      %v1702 = vadd.f32 %v1630, %v1696
      %v1703 = vadd.f32 %v1631, %v1699
      %v1704 = vrot.slane %v1472, 7
      %v1705 = vrot.slane %v1704, 2
      %v1706 = vrot.slane %v1473, 7
      %v1707 = vsel %vm792, %v1705, %v1706
      %s1708 = scalar_lea.vmem %s3, 16
      %v1709 = vld [vmem:[%s1708] sm:$0x3]
      %v1710 = vcombine.low %v1635, %v1707
      %v1712 = vunpack.c.l.s4 1983009808
      %v1713 = vunpack.c.0.s8 %v1712
      %v1714 = vlaneseq
      %v1715 = vshrl.u32 %v1714, 7
      %v1716 = vsub.s32 %v1713, %v1715
      %v1717 = vrot.slane %v1710, %v1716
      %v1718 = vcombine.low %v1581, %v1717
      %v1720 = vsel %vm1043, %v1718, 0
      %v1723 = vand.u32 %v1709, %v1049
      %1725 = vmatprep.subr.bf16.mxu0 0
      %1726 = vmatpush1.bf16.msra.mxu0 %v1723
      %1727 = vmatprep.subr.bf16.mxu0 0
      %1728 = vmatpush1.bf16.msra.mxu0 0
      %1729 = vmatprep.subr.bf16.mxu0 0
      %1730 = vmatpush1.bf16.msra.mxu0 0
      %1731 = vmatprep.subr.bf16.mxu0 0
      %1732 = vmatpush1.bf16.msra.mxu0 0
      %1733 = vmatprep.subr.bf16.mxu0 0
      %1734 = vmatpush1.bf16.msra.mxu0 0
      %1735 = vmatprep.subr.bf16.mxu0 0
      %1736 = vmatpush1.bf16.msra.mxu0 0
      %1737 = vmatprep.subr.bf16.mxu0 0
      %1738 = vmatpush1.bf16.msra.mxu0 0
      %1739 = vmatprep.subr.bf16.mxu0 0
      %1740 = vmatpush1.bf16.msra.mxu0 0
      %1741 = vmatprep.subr.bf16.mxu0 0
      %1742 = vmatpush1.bf16.msra.mxu0 0
      %1743 = vmatprep.subr.bf16.mxu0 0
      %1744 = vmatpush1.bf16.msra.mxu0 0
      %1745 = vmatprep.subr.bf16.mxu0 0
      %1746 = vmatpush1.bf16.msra.mxu0 0
      %1747 = vmatprep.subr.bf16.mxu0 0
      %1748 = vmatpush1.bf16.msra.mxu0 0
      %1749 = vmatprep.subr.bf16.mxu0 0
      %1750 = vmatpush1.bf16.msra.mxu0 0
      %1751 = vmatprep.subr.bf16.mxu0 0
      %1752 = vmatpush1.bf16.msra.mxu0 0
      %1753 = vmatprep.subr.bf16.mxu0 0
      %1754 = vmatpush1.bf16.msra.mxu0 0
      %1755 = vmatprep.subr.bf16.mxu0 0
      %1756 = vmatpush1.bf16.msra.mxu0 0
      %1757 = vmatprep.mubr.bf16.mxu0 0
      %1758 = vmatmul.mubr.bf16.gmra.mrb[0].mxu0 %v1720
      %v1759 = vpop.f32.mrb[0].mxu0
      %v1760 = vadd.f32 0.0, %v1759
      %v1761 = vpop.f32.mrb[0].mxu0
      %v1762 = vpop.f32.mrb[0].mxu0
      %v1763 = vadd.f32 0.0, %v1762
      %v1764 = vpop.f32.mrb[0].mxu0
      %1765 = vdwg.mxu0
      %v1766 = vadd.f32 %v1702, %v1760
      %v1767 = vadd.f32 %v1703, %v1763
      %v1768 = vadd.f32 %v1011, %v1766
      %v1769 = vadd.f32 %v1012, %v1767
      %v1770 = vld [vmem:[%s4] sm:$0x1]
      %v1772 = vlaneseq
      %v1773 = vshrl.u32 %v1772, 7
      %v1774 = vsub.s32 0, %v1773
      %v1775 = vrot.slane %v1770, %v1774
      %v1777 = vadd.f32 %v1768, %v1775
      %v1778 = vadd.f32 %v1769, %v1775
      %v1781 = vcombine.high %v1777, %v1777
      %v1782 = vcombine.high %v1778, %v1778
      %v1785 = vpack.c.bf16 %v1777, %v1777
      %v1786 = vpack.c.bf16 %v1781, %v1781
      %v1787 = vpack.c.bf16 %v1778, %v1778
      %v1788 = vpack.c.bf16 %v1782, %v1782
      %1789 = vst [vmem:[%s244] sm:$0x3] %v1785
      %1790 = vst [vmem:[%s244 + $0x2] sm:$0x3] %v1786
      %1791 = vst [vmem:[%s244 + $0x4] sm:$0x3] %v1787
      %1792 = vst [vmem:[%s244 + $0x6] sm:$0x3] %v1788
      %p1793 = scmp.lt.s32.totalorder %s16, 1
      %s1794 = scalar_select %p1793, %s16, 1
      %s1795 = smul.addr %s1794, 4
      %s1796 = smul.addr %s1795, 2
      %s1797 = scalar_lea.vmem %s5, %s1796
      // Predicated region
      $region41: #{global_net_forward.5} parent=39 // pred_check
        %p1798 = pneg %p149
      $region42: #{global_net_forward.5} parent=39 // pred_check_branch
        %1800 = sbr.rel (%p1798) target = $region44
      $region43: #{global_net_forward.5} parent=39 // pred_region
        _
      $region44: #{global_net_forward.5} parent=39 // pred_fallthru
        _
    $region40: #{global_net_forward.5} parent=5 // pred_fallthru
      _
    %p1801 = scmp.le.s32.totalorder 2, %s11
    // Predicated region
    $region45: #{global_net_forward.5} parent=5 // pred_check
      %p1802 = pneg %p1801
    $region46: #{global_net_forward.5} parent=5 // pred_check_branch
      %1804 = sbr.rel (%p1802) target = $region48
    $region47: #{global_net_forward.5} parent=5 // pred_region
      %s1805 = ssub.s32 %s11, 2
      // Predicated region
      $region49: #{global_net_forward.5} parent=47 // pred_check
        %p1806 = pneg %p155
      $region50: #{global_net_forward.5} parent=47 // pred_check_branch
        %1808 = sbr.rel (%p1806) target = $region52
      $region51: #{global_net_forward.5} parent=47 // pred_region
        %p1809 = scmp.lt.s32.totalorder %s17, 1
        %s1810 = scalar_select %p1809, %s17, 1
        %s1811 = smul.addr %s1810, 4
        %s1812 = smul.addr %s1811, 2
        %s1813 = scalar_lea.vmem %s5, %s1812
      $region52: #{global_net_forward.5} parent=47 // pred_fallthru
        _
    $region48: #{global_net_forward.5} parent=5 // pred_fallthru
      _
  $region6: #{global_net_forward.5} parent=0 // loop_footer
    %s15 = sadd.s32 1, %s11
  $region7: #{global_net_forward.5} parent=0 // loop_footer_branch
    %10 = sbr.rel target = $region3
  $region8: #{global_net_forward.5} parent=0 // loop_exit
    _

// kernel: global_net_forward.8
$region0: #{global_net_forward.8}
  #allocation0 [shape = 'u32[]', space=smem, size = 0x4, offset = 0x4, fixed_abs, tag = 'smem constant byte address 0x4 - core index']
  #allocation1 [shape = 'u32[144,128]{1,0:T(1,128)}', space=vmem, size = 0x12000, scoped, tag = 'internal scratch']
  %s0 = inlined_call_operand.vmem [shape: bf16[2,14,14,128], index: 0, kind: input, shape index: {}]
  %s1 = inlined_call_operand.vmem [shape: bf16[3,384,128], index: 1, kind: input, shape index: {}]
  %s2 = inlined_call_operand.vmem [shape: f32[1,128], index: 2, kind: input, shape index: {}]
  %s3 = inlined_call_operand.vmem [shape: f32[1,128], index: 3, kind: input, shape index: {}]
  %s4 = inlined_call_operand.vmem [shape: f32[1,128], index: 4, kind: input, shape index: {}]
  %s5 = inlined_call_operand.vmem [shape: bf16[2,4,4,128], index: 5, kind: output, shape index: {0}]
  %s6 = inlined_call_operand.vmem [shape: f32[2,1,128], index: 6, kind: output, shape index: {1}]
  %s7 = inlined_call_operand.vmem [shape: f32[2,1,128], index: 7, kind: output, shape index: {2}]
  %8 = xla_tuple %s5, %s6, %s7
  %s9 = sld [smem:[#allocation0]]
  $region69: #{global_net_forward.8} parent=0
    _
  %s11 = ssub.s32 1, %s9
  %s12 = scalar_select 0, %s11, %s9
  loop: start=0, step=1, limit=4
  $region2: #{global_net_forward.8} parent=0 // loop_pre_header
    _
  $region3: #{global_net_forward.8} parent=0 // loop_header
    %s14 = sphi 0, %s18
    %p15 = scmp.ge.s32.totalorder %s14, 4
    %s21 = sphi 0, %s33
    %s22 = sphi 0, %s29
    %s23 = sphi 0, %s21
    %s24 = sphi 0, %s22
    %s25 = sphi 0, %s23
    %s26 = sphi 0, %s24
    %s36 = sphi 0, %s38
    %s39 = sphi 0, %s36
    %s40 = sphi 0, %s39
    %s56 = sphi 0, %s40
    %s62 = sphi 0, %s64
    %s65 = sphi 0, %s62
    %s66 = sphi 0, %s65
    %s82 = sphi 0, %s66
    %s88 = sphi 0, %s90
    %s91 = sphi 0, %s88
    %s92 = sphi 0, %s91
    %s108 = sphi 0, %s92
    %s112 = sphi 0, %s112
    %s114 = sphi 0, %s112
    %s115 = sphi 0, %s114
    %s129 = sphi 0, %s115
    %s133 = sphi 0, %s133
    %s135 = sphi 0, %s133
    %s136 = sphi 0, %s135
    %s150 = sphi 0, %s136
    %s158 = sphi 0, %s160
    %s161 = sphi 0, %s158
    %s162 = sphi 0, %s161
    %s178 = sphi 0, %s162
    %s186 = sphi 0, %s188
    %s189 = sphi 0, %s186
    %s190 = sphi 0, %s189
    %s206 = sphi 0, %s190
    %s214 = sphi 0, %s216
    %s217 = sphi 0, %s214
    %s218 = sphi 0, %s217
    %s234 = sphi 0, %s218
  $region4: #{global_net_forward.8} parent=0 // loop_header_branch
    %17 = sbr.rel (%p15) target = $region8
  $region5: #{global_net_forward.8} parent=0 // loop_body
    %s19 = ssub.s32 %s14, 1
    %s20 = ssub.s32 %s14, 2
    %s27 = sadd.s32 1, %s22
    %p28 = scmp.ge.s32.totalorder %s27, 2
    %s29 = scalar_select %p28, 0, %s27
    %s30 = sadd.s32 1, %s21
    %s31 = scalar_select %p28, %s30, %s21
    %p32 = scmp.ge.s32.totalorder %s31, 1
    %s33 = scalar_select %p32, 0, %s31
    %s34 = ssub.s32 %s22, %s29
    %p35 = scmp.eq.s32.totalorder %s34, 0
    %s37 = sadd.s32 %s36, 1
    %s38 = scalar_select %p35, %s36, %s37
    %p41 = pneg %p35
    %p42 = scmp.eq.s32.totalorder %s14, 1
    %p43 = por %p41, %p42
    %p44 = scmp.ne.s32.totalorder %s36, %s39
    %p45 = scmp.eq.s32.totalorder %s14, 0
    %p46 = por %p44, %p45
    %p47 = scmp.ne.s32.totalorder %s36, %s39
    %p48 = scmp.eq.s32.totalorder %s19, 1
    %p49 = por %p47, %p48
    %p50 = scmp.ne.s32.totalorder %s39, %s40
    %p51 = scmp.eq.s32.totalorder %s19, 0
    %p52 = por %p50, %p51
    %p53 = scmp.ne.s32.totalorder %s39, %s40
    %p54 = scmp.eq.s32.totalorder %s20, 1
    %p55 = por %p53, %p54
    %p57 = scmp.ne.s32.totalorder %s40, %s56
    %p58 = scmp.eq.s32.totalorder %s20, 0
    %p59 = por %p57, %p58
    %s60 = ssub.s32 %s21, %s33
    %p61 = scmp.eq.s32.totalorder %s60, 0
    %s63 = sadd.s32 %s62, 1
    %s64 = scalar_select %p61, %s62, %s63
    %p67 = pneg %p61
    %p68 = scmp.eq.s32.totalorder %s14, 1
    %p69 = por %p67, %p68
    %p70 = scmp.ne.s32.totalorder %s62, %s65
    %p71 = scmp.eq.s32.totalorder %s14, 0
    %p72 = por %p70, %p71
    %p73 = scmp.ne.s32.totalorder %s62, %s65
    %p74 = scmp.eq.s32.totalorder %s19, 1
    %p75 = por %p73, %p74
    %p76 = scmp.ne.s32.totalorder %s65, %s66
    %p77 = scmp.eq.s32.totalorder %s19, 0
    %p78 = por %p76, %p77
    %p79 = scmp.ne.s32.totalorder %s65, %s66
    %p80 = scmp.eq.s32.totalorder %s20, 1
    %p81 = por %p79, %p80
    %p83 = scmp.ne.s32.totalorder %s66, %s82
    %p84 = scmp.eq.s32.totalorder %s20, 0
    %p85 = por %p83, %p84
    %s86 = ssub.s32 %s21, %s33
    %p87 = scmp.eq.s32.totalorder %s86, 0
    %s89 = sadd.s32 %s88, 1
    %s90 = scalar_select %p87, %s88, %s89
    %p93 = pneg %p87
    %p94 = scmp.eq.s32.totalorder %s14, 1
    %p95 = por %p93, %p94
    %p96 = scmp.ne.s32.totalorder %s88, %s91
    %p97 = scmp.eq.s32.totalorder %s14, 0
    %p98 = por %p96, %p97
    %p99 = scmp.ne.s32.totalorder %s88, %s91
    %p100 = scmp.eq.s32.totalorder %s19, 1
    %p101 = por %p99, %p100
    %p102 = scmp.ne.s32.totalorder %s91, %s92
    %p103 = scmp.eq.s32.totalorder %s19, 0
    %p104 = por %p102, %p103
    %p105 = scmp.ne.s32.totalorder %s91, %s92
    %p106 = scmp.eq.s32.totalorder %s20, 1
    %p107 = por %p105, %p106
    %p109 = scmp.ne.s32.totalorder %s92, %s108
    %p110 = scmp.eq.s32.totalorder %s20, 0
    %p111 = por %p109, %p110
    %s113 = sadd.s32 %s112, 1
    %p116 = scmp.eq.s32.totalorder %s14, 1
    %p117 = scmp.ne.s32.totalorder %s112, %s114
    %p118 = scmp.eq.s32.totalorder %s14, 0
    %p119 = por %p117, %p118
    %p120 = scmp.ne.s32.totalorder %s112, %s114
    %p121 = scmp.eq.s32.totalorder %s19, 1
    %p122 = por %p120, %p121
    %p123 = scmp.ne.s32.totalorder %s114, %s115
    %p124 = scmp.eq.s32.totalorder %s19, 0
    %p125 = por %p123, %p124
    %p126 = scmp.ne.s32.totalorder %s114, %s115
    %p127 = scmp.eq.s32.totalorder %s20, 1
    %p128 = por %p126, %p127
    %p130 = scmp.ne.s32.totalorder %s115, %s129
    %p131 = scmp.eq.s32.totalorder %s20, 0
    %p132 = por %p130, %p131
    %s134 = sadd.s32 %s133, 1
    %p137 = scmp.eq.s32.totalorder %s14, 1
    %p138 = scmp.ne.s32.totalorder %s133, %s135
    %p139 = scmp.eq.s32.totalorder %s14, 0
    %p140 = por %p138, %p139
    %p141 = scmp.ne.s32.totalorder %s133, %s135
    %p142 = scmp.eq.s32.totalorder %s19, 1
    %p143 = por %p141, %p142
    %p144 = scmp.ne.s32.totalorder %s135, %s136
    %p145 = scmp.eq.s32.totalorder %s19, 0
    %p146 = por %p144, %p145
    %p147 = scmp.ne.s32.totalorder %s135, %s136
    %p148 = scmp.eq.s32.totalorder %s20, 1
    %p149 = por %p147, %p148
    %p151 = scmp.ne.s32.totalorder %s136, %s150
    %p152 = scmp.eq.s32.totalorder %s20, 0
    %p153 = por %p151, %p152
    %s154 = ssub.s32 %s22, %s29
    %s155 = ssub.s32 %s21, %s33
    %s156 = sor.u32 %s154, %s155
    %p157 = scmp.eq.s32.totalorder %s156, 0
    %s159 = sadd.s32 %s158, 1
    %s160 = scalar_select %p157, %s158, %s159
    %p163 = pneg %p157
    %p164 = scmp.eq.s32.totalorder %s14, 1
    %p165 = por %p163, %p164
    %p166 = scmp.ne.s32.totalorder %s158, %s161
    %p167 = scmp.eq.s32.totalorder %s14, 0
    %p168 = por %p166, %p167
    %p169 = scmp.ne.s32.totalorder %s158, %s161
    %p170 = scmp.eq.s32.totalorder %s19, 1
    %p171 = por %p169, %p170
    %p172 = scmp.ne.s32.totalorder %s161, %s162
    %p173 = scmp.eq.s32.totalorder %s19, 0
    %p174 = por %p172, %p173
    %p175 = scmp.ne.s32.totalorder %s161, %s162
    %p176 = scmp.eq.s32.totalorder %s20, 1
    %p177 = por %p175, %p176
    %p179 = scmp.ne.s32.totalorder %s162, %s178
    %p180 = scmp.eq.s32.totalorder %s20, 0
    %p181 = por %p179, %p180
    %s182 = ssub.s32 %s22, %s29
    %s183 = ssub.s32 %s21, %s33
    %s184 = sor.u32 %s182, %s183
    %p185 = scmp.eq.s32.totalorder %s184, 0
    %s187 = sadd.s32 %s186, 1
    %s188 = scalar_select %p185, %s186, %s187
    %p191 = pneg %p185
    %p192 = scmp.eq.s32.totalorder %s14, 1
    %p193 = por %p191, %p192
    %p194 = scmp.ne.s32.totalorder %s186, %s189
    %p195 = scmp.eq.s32.totalorder %s14, 0
    %p196 = por %p194, %p195
    %p197 = scmp.ne.s32.totalorder %s186, %s189
    %p198 = scmp.eq.s32.totalorder %s19, 1
    %p199 = por %p197, %p198
    %p200 = scmp.ne.s32.totalorder %s189, %s190
    %p201 = scmp.eq.s32.totalorder %s19, 0
    %p202 = por %p200, %p201
    %p203 = scmp.ne.s32.totalorder %s189, %s190
    %p204 = scmp.eq.s32.totalorder %s20, 1
    %p205 = por %p203, %p204
    %p207 = scmp.ne.s32.totalorder %s190, %s206
    %p208 = scmp.eq.s32.totalorder %s20, 0
    %p209 = por %p207, %p208
    %s210 = ssub.s32 %s22, %s29
    %s211 = ssub.s32 %s21, %s33
    %s212 = sor.u32 %s210, %s211
    %p213 = scmp.eq.s32.totalorder %s212, 0
    %s215 = sadd.s32 %s214, 1
    %s216 = scalar_select %p213, %s214, %s215
    %p219 = pneg %p213
    %p220 = scmp.eq.s32.totalorder %s14, 1
    %p221 = por %p219, %p220
    %p222 = scmp.ne.s32.totalorder %s214, %s217
    %p223 = scmp.eq.s32.totalorder %s14, 0
    %p224 = por %p222, %p223
    %p225 = scmp.ne.s32.totalorder %s214, %s217
    %p226 = scmp.eq.s32.totalorder %s19, 1
    %p227 = por %p225, %p226
    %p228 = scmp.ne.s32.totalorder %s217, %s218
    %p229 = scmp.eq.s32.totalorder %s19, 0
    %p230 = por %p228, %p229
    %p231 = scmp.ne.s32.totalorder %s217, %s218
    %p232 = scmp.eq.s32.totalorder %s20, 1
    %p233 = por %p231, %p232
    %p235 = scmp.ne.s32.totalorder %s218, %s234
    %p236 = scmp.eq.s32.totalorder %s20, 0
    %p237 = por %p235, %p236
    %p238 = scmp.le.s32.totalorder 1, %s14
    %p239 = scmp.lt.s32.totalorder %s14, 3
    %p240 = pnand %p238, %p239
    %p241 = pneg %p240
    // Predicated region
    $region9: #{global_net_forward.8} parent=5 // pred_check
      _
    $region10: #{global_net_forward.8} parent=5 // pred_check_branch
      %243 = sbr.rel (%p240) target = $region12
    $region11: #{global_net_forward.8} parent=5 // pred_region
      %s244 = ssub.s32 %s14, 1
      // Predicated region
      $region13: #{global_net_forward.8} parent=11 // pred_check
        %p245 = pneg %p78
      $region14: #{global_net_forward.8} parent=11 // pred_check_branch
        %247 = sbr.rel (%p245) target = $region16
      $region15: #{global_net_forward.8} parent=11 // pred_region
        %p248 = scmp.lt.s32.totalorder %s23, 0
        %s249 = scalar_select %p248, %s23, 0
        %s250 = smul.addr %s249, 4
        %s251 = scalar_lea.vmem %s1, %s250
      $region16: #{global_net_forward.8} parent=11 // pred_fallthru
        _
      // Predicated region
      $region17: #{global_net_forward.8} parent=11 // pred_check
        %p252 = pneg %p104
      $region18: #{global_net_forward.8} parent=11 // pred_check_branch
        %254 = sbr.rel (%p252) target = $region20
      $region19: #{global_net_forward.8} parent=11 // pred_region
        %p255 = scmp.lt.s32.totalorder %s23, 0
        %s256 = scalar_select %p255, %s23, 0
        %s257 = scalar_lea.vmem %s2, %s256
      $region20: #{global_net_forward.8} parent=11 // pred_fallthru
        _
      // Predicated region
      $region21: #{global_net_forward.8} parent=11 // pred_check
        %p258 = pneg %p125
      $region22: #{global_net_forward.8} parent=11 // pred_check_branch
        %260 = sbr.rel (%p258) target = $region24
      $region23: #{global_net_forward.8} parent=11 // pred_region
        _
      $region24: #{global_net_forward.8} parent=11 // pred_fallthru
        _
      // Predicated region
      $region25: #{global_net_forward.8} parent=11 // pred_check
        %p261 = pneg %p146
      $region26: #{global_net_forward.8} parent=11 // pred_check_branch
        %263 = sbr.rel (%p261) target = $region28
      $region27: #{global_net_forward.8} parent=11 // pred_region
        _
      $region28: #{global_net_forward.8} parent=11 // pred_fallthru
        _
    $region12: #{global_net_forward.8} parent=5 // pred_fallthru
      _
    %p264 = scmp.lt.s32.totalorder %s14, 2
    // Predicated region
    $region29: #{global_net_forward.8} parent=5 // pred_check
      %p265 = pneg %p264
    $region30: #{global_net_forward.8} parent=5 // pred_check_branch
      %267 = sbr.rel (%p265) target = $region32
    $region31: #{global_net_forward.8} parent=5 // pred_region
      // Predicated region
      $region33: #{global_net_forward.8} parent=31 // pred_check
        %p268 = pneg %p46
      $region34: #{global_net_forward.8} parent=31 // pred_check_branch
        %270 = sbr.rel (%p268) target = $region36
      $region35: #{global_net_forward.8} parent=31 // pred_region
        %p271 = scmp.lt.s32.totalorder %s22, 1
        %s272 = scalar_select %p271, %s22, 1
        %s273 = smul.addr %s272, 28
        %s274 = smul.addr %s273, 4
        %s275 = scalar_lea.vmem %s0, %s274
      $region36: #{global_net_forward.8} parent=31 // pred_fallthru
        _
    $region32: #{global_net_forward.8} parent=5 // pred_fallthru
      _
    %p276 = scmp.le.s32.totalorder 1, %s14
    %p277 = scmp.lt.s32.totalorder %s14, 3
    %p278 = pnand %p276, %p277
    %p279 = pneg %p278
    // Predicated region
    $region37: #{global_net_forward.8} parent=5 // pred_check
      _
    $region38: #{global_net_forward.8} parent=5 // pred_check_branch
      %281 = sbr.rel (%p278) target = $region40
    $region39: #{global_net_forward.8} parent=5 // pred_region
      %s282 = ssub.s32 %s14, 1
      %p283 = scmp.lt.s32.totalorder %s24, 1
      %s284 = scalar_select %p283, %s24, 1
      %s285 = smul.addr %s284, 28
      %s286 = smul.addr %s285, 4
      %s287 = scalar_lea.vmem %s0, %s286
      %p288 = pneg %p52
      %p289 = pneg %p49
      %p290 = scmp.lt.s32.totalorder %s23, 0
      %s291 = scalar_select %p290, %s23, 0
      %s292 = smul.addr %s291, 4
      %s293 = scalar_lea.vmem %s1, %s292
      %p294 = pneg %p78
      %p295 = pneg %p75
      %p296 = scmp.lt.s32.totalorder %s23, 0
      %s297 = scalar_select %p296, %s23, 0
      %s298 = scalar_lea.vmem %s2, %s297
      %p299 = pneg %p104
      %p300 = pneg %p101
      %p301 = pneg %p125
      %p302 = pneg %p122
      %p303 = pneg %p146
      %p304 = pneg %p143
      %p305 = pneg %p174
      %p306 = pneg %p171
      %p307 = scmp.lt.s32.totalorder %s24, 1
      %s308 = scalar_select %p307, %s24, 1
      %p309 = scmp.lt.s32.totalorder %s23, 0
      %s310 = scalar_select %p309, %s23, 0
      %s311 = smul.addr %s308, 4
      %s312 = sadd.s32 %s310, %s311
      %s313 = smul.addr %s312, 2
      %s314 = scalar_lea.vmem %s5, %s313
      %p315 = pneg %p202
      %p316 = pneg %p199
      %p317 = scmp.lt.s32.totalorder %s24, 1
      %s318 = scalar_select %p317, %s24, 1
      %p319 = scmp.lt.s32.totalorder %s23, 0
      %s320 = scalar_select %p319, %s23, 0
      %s321 = sadd.s32 %s320, %s318
      %s322 = scalar_lea.vmem %s6, %s321
      %p323 = pneg %p230
      %p324 = pneg %p227
      %p325 = scmp.lt.s32.totalorder %s24, 1
      %s326 = scalar_select %p325, %s24, 1
      %p327 = scmp.lt.s32.totalorder %s23, 0
      %s328 = scalar_select %p327, %s23, 0
      %s329 = sadd.s32 %s328, %s326
      %s330 = scalar_lea.vmem %s7, %s329
      %p331 = scmp.lt.s32.totalorder %s24, 1
      %s332 = scalar_select %p331, %s24, 1
      %s333 = smul.addr %s332, 28
      %s334 = smul.addr %s333, 4
      %s335 = scalar_lea.vmem %s0, %s334
      %p336 = scmp.lt.s32.totalorder %s23, 0
      %s337 = scalar_select %p336, %s23, 0
      %s338 = smul.addr %s337, 4
      %s339 = scalar_lea.vmem %s1, %s338
      %p340 = scmp.lt.s32.totalorder %s23, 0
      %s341 = scalar_select %p340, %s23, 0
      %s342 = scalar_lea.vmem %s2, %s341
      %p343 = scmp.lt.s32.totalorder %s24, 1
      %s344 = scalar_select %p343, %s24, 1
      %p345 = scmp.lt.s32.totalorder %s23, 0
      %s346 = scalar_select %p345, %s23, 0
      %s347 = smul.addr %s344, 4
      %s348 = sadd.s32 %s346, %s347
      %s349 = smul.addr %s348, 2
      %s350 = scalar_lea.vmem %s5, %s349
      %p351 = scmp.lt.s32.totalorder %s24, 1
      %s352 = scalar_select %p351, %s24, 1
      %p353 = scmp.lt.s32.totalorder %s23, 0
      %s354 = scalar_select %p353, %s23, 0
      %s355 = sadd.s32 %s354, %s352
      %s356 = scalar_lea.vmem %s6, %s355
      %p357 = scmp.lt.s32.totalorder %s24, 1
      %s358 = scalar_select %p357, %s24, 1
      %p359 = scmp.lt.s32.totalorder %s23, 0
      %s360 = scalar_select %p359, %s23, 0
      %s361 = sadd.s32 %s360, %s358
      %s362 = scalar_lea.vmem %s7, %s361
      %v364 = vld [vmem:[%s335] sm:$0xf]
      %v365 = vld [vmem:[%s335 + $0x4] sm:$0x7]
      %v366 = vld [vmem:[%s335 + $0x8] sm:$0xf]
      %v367 = vld [vmem:[%s335 + $0xc] sm:$0x7]
      %v368 = vld [vmem:[%s335 + $0x10] sm:$0xf]
      %v369 = vld [vmem:[%s335 + $0x14] sm:$0x7]
      %v370 = vld [vmem:[%s335 + $0x18] sm:$0xf]
      %v371 = vld [vmem:[%s335 + $0x1c] sm:$0x7]
      %v372 = vld [vmem:[%s335 + $0x28] sm:$0xf]
      %v373 = vld [vmem:[%s335 + $0x2c] sm:$0x7]
      %v374 = vld [vmem:[%s335 + $0x30] sm:$0xf]
      %v375 = vld [vmem:[%s335 + $0x34] sm:$0x7]
      %v376 = vld [vmem:[%s335 + $0x38] sm:$0xf]
      %v377 = vld [vmem:[%s335 + $0x3c] sm:$0x7]
      %v378 = vld [vmem:[%s335 + $0x40] sm:$0xf]
      %v379 = vld [vmem:[%s335 + $0x44] sm:$0x7]
      %v380 = vld [vmem:[%s335 + $0x50] sm:$0xf]
      %v381 = vld [vmem:[%s335 + $0x54] sm:$0x7]
      %v382 = vld [vmem:[%s335 + $0x58] sm:$0xf]
      %v383 = vld [vmem:[%s335 + $0x5c] sm:$0x7]
      %v384 = vld [vmem:[%s335 + $0x60] sm:$0xf]
      %v385 = vld [vmem:[%s335 + $0x64] sm:$0x7]
      %v386 = vld [vmem:[%s335 + $0x68] sm:$0xf]
      %v387 = vld [vmem:[%s335 + $0x6c] sm:$0x7]
      %v388 = vld [vmem:[%s3] sm:$0x1]
      %v389 = vld [vmem:[%s4] sm:$0x1]
      %v390 = vunpack.c.l.bf16 %v364
      %v391 = vunpack.c.l.bf16 %v365
      %v392 = vunpack.c.l.bf16 %v366
      %v393 = vunpack.c.l.bf16 %v367
      %v394 = vunpack.c.l.bf16 %v368
      %v395 = vunpack.c.l.bf16 %v369
      %v396 = vunpack.c.l.bf16 %v370
      %v397 = vunpack.c.l.bf16 %v371
      %v398 = vunpack.c.l.bf16 %v372
      %v399 = vunpack.c.l.bf16 %v373
      %v400 = vunpack.c.l.bf16 %v374
      %v401 = vunpack.c.l.bf16 %v375
      %v402 = vunpack.c.l.bf16 %v376
      %v403 = vunpack.c.l.bf16 %v377
      %v404 = vunpack.c.l.bf16 %v378
      %v405 = vunpack.c.l.bf16 %v379
      %v406 = vunpack.c.l.bf16 %v380
      %v407 = vunpack.c.l.bf16 %v381
      %v408 = vunpack.c.l.bf16 %v382
      %v409 = vunpack.c.l.bf16 %v383
      %v410 = vunpack.c.l.bf16 %v384
      %v411 = vunpack.c.l.bf16 %v385
      %v412 = vunpack.c.l.bf16 %v386
      %v413 = vunpack.c.l.bf16 %v387
      %v415 = vlaneseq
      %v416 = vshrl.u32 %v415, 7
      %v417 = vsub.s32 0, %v416
      %v418 = vrot.slane %v388, %v417
      %v420 = vmul.f32 %v390, %v418
      %v421 = vmul.f32 %v391, %v418
      %v422 = vmul.f32 %v392, %v418
      %v423 = vmul.f32 %v393, %v418
      %v424 = vmul.f32 %v394, %v418
      %v425 = vmul.f32 %v395, %v418
      %v426 = vmul.f32 %v396, %v418
      %v427 = vmul.f32 %v397, %v418
      %v428 = vmul.f32 %v398, %v418
      %v429 = vmul.f32 %v399, %v418
      %v430 = vmul.f32 %v400, %v418
      %v431 = vmul.f32 %v401, %v418
      %v432 = vmul.f32 %v402, %v418
      %v433 = vmul.f32 %v403, %v418
      %v434 = vmul.f32 %v404, %v418
      %v435 = vmul.f32 %v405, %v418
      %v436 = vmul.f32 %v406, %v418
      %v437 = vmul.f32 %v407, %v418
      %v438 = vmul.f32 %v408, %v418
      %v439 = vmul.f32 %v409, %v418
      %v440 = vmul.f32 %v410, %v418
      %v441 = vmul.f32 %v411, %v418
      %v442 = vmul.f32 %v412, %v418
      %v443 = vmul.f32 %v413, %v418
      %v445 = vlaneseq
      %v446 = vshrl.u32 %v445, 7
      %v447 = vsub.s32 0, %v446
      %v448 = vrot.slane %v389, %v447
      %v450 = vadd.f32 %v420, %v448
      %v451 = vadd.f32 %v421, %v448
      %v452 = vadd.f32 %v422, %v448
      %v453 = vadd.f32 %v423, %v448
      %v454 = vadd.f32 %v424, %v448
      %v455 = vadd.f32 %v425, %v448
      %v456 = vadd.f32 %v426, %v448
      %v457 = vadd.f32 %v427, %v448
      %v458 = vadd.f32 %v428, %v448
      %v459 = vadd.f32 %v429, %v448
      %v460 = vadd.f32 %v430, %v448
      %v461 = vadd.f32 %v431, %v448
      %v462 = vadd.f32 %v432, %v448
      %v463 = vadd.f32 %v433, %v448
      %v464 = vadd.f32 %v434, %v448
      %v465 = vadd.f32 %v435, %v448
      %v466 = vadd.f32 %v436, %v448
      %v467 = vadd.f32 %v437, %v448
      %v468 = vadd.f32 %v438, %v448
      %v469 = vadd.f32 %v439, %v448
      %v470 = vadd.f32 %v440, %v448
      %v471 = vadd.f32 %v441, %v448
      %v472 = vadd.f32 %v442, %v448
      %v473 = vadd.f32 %v443, %v448
      %v474 = vmax.f32 %v450, 0.0
      %v475 = vmax.f32 %v451, 0.0
      %v476 = vmax.f32 %v452, 0.0
      %v477 = vmax.f32 %v453, 0.0
      %v478 = vmax.f32 %v454, 0.0
      %v479 = vmax.f32 %v455, 0.0
      %v480 = vmax.f32 %v456, 0.0
      %v481 = vmax.f32 %v457, 0.0
      %v482 = vmax.f32 %v458, 0.0
      %v483 = vmax.f32 %v459, 0.0
      %v484 = vmax.f32 %v460, 0.0
      %v485 = vmax.f32 %v461, 0.0
      %v486 = vmax.f32 %v462, 0.0
      %v487 = vmax.f32 %v463, 0.0
      %v488 = vmax.f32 %v464, 0.0
      %v489 = vmax.f32 %v465, 0.0
      %v490 = vmax.f32 %v466, 0.0
      %v491 = vmax.f32 %v467, 0.0
      %v492 = vmax.f32 %v468, 0.0
      %v493 = vmax.f32 %v469, 0.0
      %v494 = vmax.f32 %v470, 0.0
      %v495 = vmax.f32 %v471, 0.0
      %v496 = vmax.f32 %v472, 0.0
      %v497 = vmax.f32 %v473, 0.0
      %v498 = vlaneseq
      %v499 = vshrl.u32 %v498, 7
      %v500 = vadd.s32 %v499, 8
      %vm501 = vcmp.ge.s32.totalorder %v499, 5
      %vm502 = vcmp.ge.s32.totalorder %v500, 5
      %vm503 = vmand 0, %vm501
      %vm504 = vmand 0, %vm502
      %vm505 = vmand 1, %vm501
      %vm506 = vmand 1, %vm502
      %vm507 = vcmp.lt.s32.totalorder %v499, 9
      %vm508 = vcmp.lt.s32.totalorder %v500, 9
      %vm509 = vmand %vm503, %vm507
      %vm510 = vmand %vm504, %vm508
      %vm511 = vmand %vm505, %vm507
      %vm512 = vmand %vm506, %vm508
      %v513 = vsel %vm509, 1, 0
      %v514 = vsel %vm510, 1, 0
      %v515 = vsel %vm511, 1, 0
      %v516 = vsel %vm512, 1, 0
      %vm517 = vcmp.eq.s32.totalorder %v513, 1
      %vm518 = vcmp.eq.s32.totalorder %v514, 1
      %vm519 = vcmp.eq.s32.totalorder %v515, 1
      %vm520 = vcmp.eq.s32.totalorder %v516, 1
      %v521 = vsel %vm517, %v474, 0.0
      %v522 = vsel %vm518, %v475, 0.0
      %v523 = vsel %vm517, %v476, 0.0
      %v524 = vsel %vm518, %v477, 0.0
      %v525 = vsel %vm517, %v478, 0.0
      %v526 = vsel %vm518, %v479, 0.0
      %v527 = vsel %vm517, %v480, 0.0
      %v528 = vsel %vm518, %v481, 0.0
      %v529 = vsel %vm519, %v482, 0.0
      %v530 = vsel %vm520, %v483, 0.0
      %v531 = vsel %vm519, %v484, 0.0
      %v532 = vsel %vm520, %v485, 0.0
      %v533 = vsel %vm519, %v486, 0.0
      %v534 = vsel %vm520, %v487, 0.0
      %v535 = vsel %vm519, %v488, 0.0
      %v536 = vsel %vm520, %v489, 0.0
      %v537 = vsel %vm517, %v490, 0.0
      %v538 = vsel %vm518, %v491, 0.0
      %v539 = vsel %vm517, %v492, 0.0
      %v540 = vsel %vm518, %v493, 0.0
      %v541 = vsel %vm517, %v494, 0.0
      %v542 = vsel %vm518, %v495, 0.0
      %v543 = vsel %vm517, %v496, 0.0
      %v544 = vsel %vm518, %v497, 0.0
      %v545 = vpack.c.bf16 %v522, %v521
      %v546 = vpack.c.bf16 %v524, %v523
      %v547 = vpack.c.bf16 %v526, %v525
      %v548 = vpack.c.bf16 %v528, %v527
      %v549 = vpack.c.bf16 %v530, %v529
      %v550 = vpack.c.bf16 %v532, %v531
      %v551 = vpack.c.bf16 %v534, %v533
      %v552 = vpack.c.bf16 %v536, %v535
      %v553 = vpack.c.bf16 %v538, %v537
      %v554 = vpack.c.bf16 %v540, %v539
      %v555 = vpack.c.bf16 %v542, %v541
      %v556 = vpack.c.bf16 %v544, %v543
      %v561 = vcombine.low %v545, %v546
      %v562 = vcombine.low %v547, %v548
      %v564 = vunpack.c.l.s4 1983009808
      %v565 = vunpack.c.0.s8 %v564
      %v566 = vlaneseq
      %v567 = vshrl.u32 %v566, 7
      %v568 = vsub.s32 %v565, %v567
      %v569 = vrot.slane %v561, %v568
      %v571 = vunpack.c.l.s4 1983009808
      %v572 = vunpack.c.0.s8 %v571
      %v573 = vlaneseq
      %v574 = vshrl.u32 %v573, 7
      %v575 = vsub.s32 %v572, %v574
      %v576 = vrot.slane %v562, %v575
      %v577 = vcombine.low %v569, %v576
      %v583 = vcombine.low %v549, %v550
      %v584 = vcombine.low %v551, %v552
      %v586 = vunpack.c.l.s4 1983009808
      %v587 = vunpack.c.0.s8 %v586
      %v588 = vlaneseq
      %v589 = vshrl.u32 %v588, 7
      %v590 = vsub.s32 %v587, %v589
      %v591 = vrot.slane %v583, %v590
      %v593 = vunpack.c.l.s4 1983009808
      %v594 = vunpack.c.0.s8 %v593
      %v595 = vlaneseq
      %v596 = vshrl.u32 %v595, 7
      %v597 = vsub.s32 %v594, %v596
      %v598 = vrot.slane %v584, %v597
      %v599 = vcombine.low %v591, %v598
      %v605 = vcombine.low %v553, %v554
      %v606 = vcombine.low %v555, %v556
      %v608 = vunpack.c.l.s4 1983009808
      %v609 = vunpack.c.0.s8 %v608
      %v610 = vlaneseq
      %v611 = vshrl.u32 %v610, 7
      %v612 = vsub.s32 %v609, %v611
      %v613 = vrot.slane %v605, %v612
      %v615 = vunpack.c.l.s4 1983009808
      %v616 = vunpack.c.0.s8 %v615
      %v617 = vlaneseq
      %v618 = vshrl.u32 %v617, 7
      %v619 = vsub.s32 %v616, %v618
      %v620 = vrot.slane %v606, %v619
      %v621 = vcombine.low %v613, %v620
      %v623 = vld [vmem:[%s339] sm:$0xf]
      %v624 = vld [vmem:[%s339 + $0x4] sm:$0xf]
      %v625 = vld [vmem:[%s339 + $0x8] sm:$0xf]
      %v626 = vld [vmem:[%s339 + $0xc] sm:$0xf]
      %v627 = vld [vmem:[%s339 + $0x10] sm:$0xf]
      %v628 = vld [vmem:[%s339 + $0x14] sm:$0xf]
      %v629 = vld [vmem:[%s339 + $0x18] sm:$0xf]
      %v630 = vld [vmem:[%s339 + $0x1c] sm:$0xf]
      %v631 = vld [vmem:[%s339 + $0x20] sm:$0xf]
      %v632 = vld [vmem:[%s339 + $0x24] sm:$0xf]
      %v633 = vld [vmem:[%s339 + $0x28] sm:$0xf]
      %v634 = vld [vmem:[%s339 + $0x2c] sm:$0xf]
      %v635 = vld [vmem:[%s339 + $0x30] sm:$0xf]
      %v636 = vld [vmem:[%s339 + $0x34] sm:$0xf]
      %v637 = vld [vmem:[%s339 + $0x38] sm:$0xf]
      %v638 = vld [vmem:[%s339 + $0x3c] sm:$0xf]
      %v639 = vld [vmem:[%s339 + $0x40] sm:$0xf]
      %v640 = vld [vmem:[%s339 + $0x44] sm:$0xf]
      %v641 = vld [vmem:[%s339 + $0x48] sm:$0xf]
      %v642 = vld [vmem:[%s339 + $0x4c] sm:$0xf]
      %v643 = vld [vmem:[%s339 + $0x50] sm:$0xf]
      %v644 = vld [vmem:[%s339 + $0x54] sm:$0xf]
      %v645 = vld [vmem:[%s339 + $0x58] sm:$0xf]
      %v646 = vld [vmem:[%s339 + $0x5c] sm:$0xf]
      %v647 = vld [vmem:[%s339 + $0x60] sm:$0xf]
      %v648 = vld [vmem:[%s339 + $0x64] sm:$0xf]
      %v649 = vld [vmem:[%s339 + $0x68] sm:$0xf]
      %v650 = vld [vmem:[%s339 + $0x6c] sm:$0xf]
      %v651 = vld [vmem:[%s339 + $0x70] sm:$0xf]
      %v652 = vld [vmem:[%s339 + $0x74] sm:$0xf]
      %v653 = vld [vmem:[%s339 + $0x78] sm:$0xf]
      %v654 = vld [vmem:[%s339 + $0x7c] sm:$0xf]
      %v655 = vld [vmem:[%s339 + $0x80] sm:$0xf]
      %v656 = vld [vmem:[%s339 + $0x84] sm:$0xf]
      %v657 = vld [vmem:[%s339 + $0x88] sm:$0xf]
      %v658 = vld [vmem:[%s339 + $0x8c] sm:$0xf]
      %v659 = vld [vmem:[%s339 + $0x90] sm:$0xf]
      %v660 = vld [vmem:[%s339 + $0x94] sm:$0xf]
      %v661 = vld [vmem:[%s339 + $0x98] sm:$0xf]
      %v662 = vld [vmem:[%s339 + $0x9c] sm:$0xf]
      %v663 = vld [vmem:[%s339 + $0xa0] sm:$0xf]
      %v664 = vld [vmem:[%s339 + $0xa4] sm:$0xf]
      %v665 = vld [vmem:[%s339 + $0xa8] sm:$0xf]
      %v666 = vld [vmem:[%s339 + $0xac] sm:$0xf]
      %v667 = vld [vmem:[%s339 + $0xb0] sm:$0xf]
      %v668 = vld [vmem:[%s339 + $0xb4] sm:$0xf]
      %v669 = vld [vmem:[%s339 + $0xb8] sm:$0xf]
      %v670 = vld [vmem:[%s339 + $0xbc] sm:$0xf]
      %v671 = vcombine.high %v545, %v545
      %v673 = vunpack.c.l.s4 1983009808
      %v674 = vunpack.c.0.s8 %v673
      %v675 = vlaneseq
      %v676 = vshrl.u32 %v675, 7
      %v677 = vsub.s32 %v674, %v676
      %v678 = vrot.slane %v545, %v677
      %v680 = vunpack.c.l.s4 1983009808
      %v681 = vunpack.c.0.s8 %v680
      %v682 = vlaneseq
      %v683 = vshrl.u32 %v682, 7
      %v684 = vsub.s32 %v681, %v683
      %v685 = vrot.slane %v671, %v684
      %v686 = vcombine.high %v678, %v678
      %v687 = vcombine.high %v546, %v546
      %v689 = vunpack.c.l.s4 1983009808
      %v690 = vunpack.c.0.s8 %v689
      %v691 = vlaneseq
      %v692 = vshrl.u32 %v691, 7
      %v693 = vsub.s32 %v690, %v692
      %v694 = vrot.slane %v546, %v693
      %v696 = vunpack.c.l.s4 1983009808
      %v697 = vunpack.c.0.s8 %v696
      %v698 = vlaneseq
      %v699 = vshrl.u32 %v698, 7
      %v700 = vsub.s32 %v697, %v699
      %v701 = vrot.slane %v687, %v700
      %v702 = vcombine.high %v694, %v694
      %v703 = vcombine.high %v547, %v547
      %v705 = vunpack.c.l.s4 1983009808
      %v706 = vunpack.c.0.s8 %v705
      %v707 = vlaneseq
      %v708 = vshrl.u32 %v707, 7
      %v709 = vsub.s32 %v706, %v708
      %v710 = vrot.slane %v547, %v709
      %v712 = vunpack.c.l.s4 1983009808
      %v713 = vunpack.c.0.s8 %v712
      %v714 = vlaneseq
      %v715 = vshrl.u32 %v714, 7
      %v716 = vsub.s32 %v713, %v715
      %v717 = vrot.slane %v703, %v716
      %v718 = vcombine.high %v710, %v710
      %v719 = vcombine.high %v548, %v548
      %v721 = vunpack.c.l.s4 1983009808
      %v722 = vunpack.c.0.s8 %v721
      %v723 = vlaneseq
      %v724 = vshrl.u32 %v723, 7
      %v725 = vsub.s32 %v722, %v724
      %v726 = vrot.slane %v548, %v725
      %v728 = vunpack.c.l.s4 1983009808
      %v729 = vunpack.c.0.s8 %v728
      %v730 = vlaneseq
      %v731 = vshrl.u32 %v730, 7
      %v732 = vsub.s32 %v729, %v731
      %v733 = vrot.slane %v719, %v732
      %v734 = vcombine.high %v726, %v726
      %vm735 = vsmask.f32 1280
      %vm736 = vsmask.f32 3336
      %vm737 = vmor %vm735, %vm736
      %vm738 = vsmask.f32 5392
      %vm739 = vmor %vm737, %vm738
      %vm740 = vsmask.f32 7448
      %vm741 = vmor %vm739, %vm740
      %v743 = vshrl.u32 %v686, 16
      %v745 = vrot.slane %v743, 6
      %v746 = vshll.u32 %v686, 16
      %v748 = vrot.slane %v746, 7
      %v749 = vor.u32 %v745, %v748
      %v750 = vrot.slane %v749, 2
      %v752 = vshll.u32 %v685, 16
      %v754 = vrot.slane %v752, 7
      %v755 = vsel %vm741, %v750, %v754
      %v757 = vshrl.u32 %v702, 16
      %v759 = vrot.slane %v757, 6
      %v760 = vshll.u32 %v702, 16
      %v762 = vrot.slane %v760, 7
      %v763 = vor.u32 %v759, %v762
      %v764 = vrot.slane %v763, 2
      %v766 = vshll.u32 %v701, 16
      %v768 = vrot.slane %v766, 7
      %v769 = vsel %vm741, %v764, %v768
      %v771 = vshrl.u32 %v718, 16
      %v773 = vrot.slane %v771, 6
      %v774 = vshll.u32 %v718, 16
      %v776 = vrot.slane %v774, 7
      %v777 = vor.u32 %v773, %v776
      %v778 = vrot.slane %v777, 2
      %v780 = vshll.u32 %v717, 16
      %v782 = vrot.slane %v780, 7
      %v783 = vsel %vm741, %v778, %v782
      %v785 = vshrl.u32 %v734, 16
      %v787 = vrot.slane %v785, 6
      %v788 = vshll.u32 %v734, 16
      %v790 = vrot.slane %v788, 7
      %v791 = vor.u32 %v787, %v790
      %v792 = vrot.slane %v791, 2
      %v794 = vshll.u32 %v733, 16
      %v796 = vrot.slane %v794, 7
      %v797 = vsel %vm741, %v792, %v796
      %v798 = vcombine.high %v549, %v549
      %v800 = vunpack.c.l.s4 1983009808
      %v801 = vunpack.c.0.s8 %v800
      %v802 = vlaneseq
      %v803 = vshrl.u32 %v802, 7
      %v804 = vsub.s32 %v801, %v803
      %v805 = vrot.slane %v549, %v804
      %v807 = vunpack.c.l.s4 1983009808
      %v808 = vunpack.c.0.s8 %v807
      %v809 = vlaneseq
      %v810 = vshrl.u32 %v809, 7
      %v811 = vsub.s32 %v808, %v810
      %v812 = vrot.slane %v798, %v811
      %v813 = vcombine.high %v805, %v805
      %v814 = vcombine.high %v550, %v550
      %v816 = vunpack.c.l.s4 1983009808
      %v817 = vunpack.c.0.s8 %v816
      %v818 = vlaneseq
      %v819 = vshrl.u32 %v818, 7
      %v820 = vsub.s32 %v817, %v819
      %v821 = vrot.slane %v550, %v820
      %v823 = vunpack.c.l.s4 1983009808
      %v824 = vunpack.c.0.s8 %v823
      %v825 = vlaneseq
      %v826 = vshrl.u32 %v825, 7
      %v827 = vsub.s32 %v824, %v826
      %v828 = vrot.slane %v814, %v827
      %v829 = vcombine.high %v821, %v821
      %v830 = vcombine.high %v551, %v551
      %v832 = vunpack.c.l.s4 1983009808
      %v833 = vunpack.c.0.s8 %v832
      %v834 = vlaneseq
      %v835 = vshrl.u32 %v834, 7
      %v836 = vsub.s32 %v833, %v835
      %v837 = vrot.slane %v551, %v836
      %v839 = vunpack.c.l.s4 1983009808
      %v840 = vunpack.c.0.s8 %v839
      %v841 = vlaneseq
      %v842 = vshrl.u32 %v841, 7
      %v843 = vsub.s32 %v840, %v842
      %v844 = vrot.slane %v830, %v843
      %v845 = vcombine.high %v837, %v837
      %v846 = vcombine.high %v552, %v552
      %v848 = vunpack.c.l.s4 1983009808
      %v849 = vunpack.c.0.s8 %v848
      %v850 = vlaneseq
      %v851 = vshrl.u32 %v850, 7
      %v852 = vsub.s32 %v849, %v851
      %v853 = vrot.slane %v552, %v852
      %v855 = vunpack.c.l.s4 1983009808
      %v856 = vunpack.c.0.s8 %v855
      %v857 = vlaneseq
      %v858 = vshrl.u32 %v857, 7
      %v859 = vsub.s32 %v856, %v858
      %v860 = vrot.slane %v846, %v859
      %v861 = vcombine.high %v853, %v853
      %v863 = vshrl.u32 %v813, 16
      %v865 = vrot.slane %v863, 6
      %v866 = vshll.u32 %v813, 16
      %v868 = vrot.slane %v866, 7
      %v869 = vor.u32 %v865, %v868
      %v870 = vrot.slane %v869, 2
      %v872 = vshll.u32 %v812, 16
      %v874 = vrot.slane %v872, 7
      %v875 = vsel %vm741, %v870, %v874
      %v877 = vshrl.u32 %v829, 16
      %v879 = vrot.slane %v877, 6
      %v880 = vshll.u32 %v829, 16
      %v882 = vrot.slane %v880, 7
      %v883 = vor.u32 %v879, %v882
      %v884 = vrot.slane %v883, 2
      %v886 = vshll.u32 %v828, 16
      %v888 = vrot.slane %v886, 7
      %v889 = vsel %vm741, %v884, %v888
      %v891 = vshrl.u32 %v845, 16
      %v893 = vrot.slane %v891, 6
      %v894 = vshll.u32 %v845, 16
      %v896 = vrot.slane %v894, 7
      %v897 = vor.u32 %v893, %v896
      %v898 = vrot.slane %v897, 2
      %v900 = vshll.u32 %v844, 16
      %v902 = vrot.slane %v900, 7
      %v903 = vsel %vm741, %v898, %v902
      %v905 = vshrl.u32 %v861, 16
      %v907 = vrot.slane %v905, 6
      %v908 = vshll.u32 %v861, 16
      %v910 = vrot.slane %v908, 7
      %v911 = vor.u32 %v907, %v910
      %v912 = vrot.slane %v911, 2
      %v914 = vshll.u32 %v860, 16
      %v916 = vrot.slane %v914, 7
      %v917 = vsel %vm741, %v912, %v916
      %v918 = vcombine.high %v553, %v553
      %v920 = vunpack.c.l.s4 1983009808
      %v921 = vunpack.c.0.s8 %v920
      %v922 = vlaneseq
      %v923 = vshrl.u32 %v922, 7
      %v924 = vsub.s32 %v921, %v923
      %v925 = vrot.slane %v553, %v924
      %v927 = vunpack.c.l.s4 1983009808
      %v928 = vunpack.c.0.s8 %v927
      %v929 = vlaneseq
      %v930 = vshrl.u32 %v929, 7
      %v931 = vsub.s32 %v928, %v930
      %v932 = vrot.slane %v918, %v931
      %v933 = vcombine.high %v925, %v925
      %v934 = vcombine.high %v554, %v554
      %v936 = vunpack.c.l.s4 1983009808
      %v937 = vunpack.c.0.s8 %v936
      %v938 = vlaneseq
      %v939 = vshrl.u32 %v938, 7
      %v940 = vsub.s32 %v937, %v939
      %v941 = vrot.slane %v554, %v940
      %v943 = vunpack.c.l.s4 1983009808
      %v944 = vunpack.c.0.s8 %v943
      %v945 = vlaneseq
      %v946 = vshrl.u32 %v945, 7
      %v947 = vsub.s32 %v944, %v946
      %v948 = vrot.slane %v934, %v947
      %v949 = vcombine.high %v941, %v941
      %v950 = vcombine.high %v555, %v555
      %v952 = vunpack.c.l.s4 1983009808
      %v953 = vunpack.c.0.s8 %v952
      %v954 = vlaneseq
      %v955 = vshrl.u32 %v954, 7
      %v956 = vsub.s32 %v953, %v955
      %v957 = vrot.slane %v555, %v956
      %v959 = vunpack.c.l.s4 1983009808
      %v960 = vunpack.c.0.s8 %v959
      %v961 = vlaneseq
      %v962 = vshrl.u32 %v961, 7
      %v963 = vsub.s32 %v960, %v962
      %v964 = vrot.slane %v950, %v963
      %v965 = vcombine.high %v957, %v957
      %v966 = vcombine.high %v556, %v556
      %v968 = vunpack.c.l.s4 1983009808
      %v969 = vunpack.c.0.s8 %v968
      %v970 = vlaneseq
      %v971 = vshrl.u32 %v970, 7
      %v972 = vsub.s32 %v969, %v971
      %v973 = vrot.slane %v556, %v972
      %v975 = vunpack.c.l.s4 1983009808
      %v976 = vunpack.c.0.s8 %v975
      %v977 = vlaneseq
      %v978 = vshrl.u32 %v977, 7
      %v979 = vsub.s32 %v976, %v978
      %v980 = vrot.slane %v966, %v979
      %v981 = vcombine.high %v973, %v973
      %v983 = vshrl.u32 %v933, 16
      %v985 = vrot.slane %v983, 6
      %v986 = vshll.u32 %v933, 16
      %v988 = vrot.slane %v986, 7
      %v989 = vor.u32 %v985, %v988
      %v990 = vrot.slane %v989, 2
      %v992 = vshll.u32 %v932, 16
      %v994 = vrot.slane %v992, 7
      %v995 = vsel %vm741, %v990, %v994
      %v997 = vshrl.u32 %v949, 16
      %v999 = vrot.slane %v997, 6
      %v1000 = vshll.u32 %v949, 16
      %v1002 = vrot.slane %v1000, 7
      %v1003 = vor.u32 %v999, %v1002
      %v1004 = vrot.slane %v1003, 2
      %v1006 = vshll.u32 %v948, 16
      %v1008 = vrot.slane %v1006, 7
      %v1009 = vsel %vm741, %v1004, %v1008
      %v1011 = vshrl.u32 %v965, 16
      %v1013 = vrot.slane %v1011, 6
      %v1014 = vshll.u32 %v965, 16
      %v1016 = vrot.slane %v1014, 7
      %v1017 = vor.u32 %v1013, %v1016
      %v1018 = vrot.slane %v1017, 2
      %v1020 = vshll.u32 %v964, 16
      %v1022 = vrot.slane %v1020, 7
      %v1023 = vsel %vm741, %v1018, %v1022
      %v1025 = vshrl.u32 %v981, 16
      %v1027 = vrot.slane %v1025, 6
      %v1028 = vshll.u32 %v981, 16
      %v1030 = vrot.slane %v1028, 7
      %v1031 = vor.u32 %v1027, %v1030
      %v1032 = vrot.slane %v1031, 2
      %v1034 = vshll.u32 %v980, 16
      %v1036 = vrot.slane %v1034, 7
      %v1037 = vsel %vm741, %v1032, %v1036
      %v1038 = vcombine.low %v755, %v769
      %v1039 = vcombine.low %v783, %v797
      %v1041 = vunpack.c.l.s4 1983009808
      %v1042 = vunpack.c.0.s8 %v1041
      %v1043 = vlaneseq
      %v1044 = vshrl.u32 %v1043, 7
      %v1045 = vsub.s32 %v1042, %v1044
      %v1046 = vrot.slane %v1038, %v1045
      %v1048 = vunpack.c.l.s4 1983009808
      %v1049 = vunpack.c.0.s8 %v1048
      %v1050 = vlaneseq
      %v1051 = vshrl.u32 %v1050, 7
      %v1052 = vsub.s32 %v1049, %v1051
      %v1053 = vrot.slane %v1039, %v1052
      %v1054 = vcombine.low %v1046, %v1053
      %v1056 = vcombine.low %v875, %v889
      %v1057 = vcombine.low %v903, %v917
      %v1059 = vunpack.c.l.s4 1983009808
      %v1060 = vunpack.c.0.s8 %v1059
      %v1061 = vlaneseq
      %v1062 = vshrl.u32 %v1061, 7
      %v1063 = vsub.s32 %v1060, %v1062
      %v1064 = vrot.slane %v1056, %v1063
      %v1066 = vunpack.c.l.s4 1983009808
      %v1067 = vunpack.c.0.s8 %v1066
      %v1068 = vlaneseq
      %v1069 = vshrl.u32 %v1068, 7
      %v1070 = vsub.s32 %v1067, %v1069
      %v1071 = vrot.slane %v1057, %v1070
      %v1072 = vcombine.low %v1064, %v1071
      %v1074 = vcombine.low %v995, %v1009
      %v1075 = vcombine.low %v1023, %v1037
      %v1077 = vunpack.c.l.s4 1983009808
      %v1078 = vunpack.c.0.s8 %v1077
      %v1079 = vlaneseq
      %v1080 = vshrl.u32 %v1079, 7
      %v1081 = vsub.s32 %v1078, %v1080
      %v1082 = vrot.slane %v1074, %v1081
      %v1084 = vunpack.c.l.s4 1983009808
      %v1085 = vunpack.c.0.s8 %v1084
      %v1086 = vlaneseq
      %v1087 = vshrl.u32 %v1086, 7
      %v1088 = vsub.s32 %v1085, %v1087
      %v1089 = vrot.slane %v1075, %v1088
      %v1090 = vcombine.low %v1082, %v1089
      %s1092 = scalar_lea.vmem %s339, 192
      %v1093 = vld [vmem:[%s1092] sm:$0xf]
      %v1094 = vld [vmem:[%s1092 + $0x4] sm:$0xf]
      %v1095 = vld [vmem:[%s1092 + $0x8] sm:$0xf]
      %v1096 = vld [vmem:[%s1092 + $0xc] sm:$0xf]
      %v1097 = vld [vmem:[%s1092 + $0x10] sm:$0xf]
      %v1098 = vld [vmem:[%s1092 + $0x14] sm:$0xf]
      %v1099 = vld [vmem:[%s1092 + $0x18] sm:$0xf]
      %v1100 = vld [vmem:[%s1092 + $0x1c] sm:$0xf]
      %v1101 = vld [vmem:[%s1092 + $0x20] sm:$0xf]
      %v1102 = vld [vmem:[%s1092 + $0x24] sm:$0xf]
      %v1103 = vld [vmem:[%s1092 + $0x28] sm:$0xf]
      %v1104 = vld [vmem:[%s1092 + $0x2c] sm:$0xf]
      %v1105 = vld [vmem:[%s1092 + $0x30] sm:$0xf]
      %v1106 = vld [vmem:[%s1092 + $0x34] sm:$0xf]
      %v1107 = vld [vmem:[%s1092 + $0x38] sm:$0xf]
      %v1108 = vld [vmem:[%s1092 + $0x3c] sm:$0xf]
      %v1109 = vld [vmem:[%s1092 + $0x40] sm:$0xf]
      %v1110 = vld [vmem:[%s1092 + $0x44] sm:$0xf]
      %v1111 = vld [vmem:[%s1092 + $0x48] sm:$0xf]
      %v1112 = vld [vmem:[%s1092 + $0x4c] sm:$0xf]
      %v1113 = vld [vmem:[%s1092 + $0x50] sm:$0xf]
      %v1114 = vld [vmem:[%s1092 + $0x54] sm:$0xf]
      %v1115 = vld [vmem:[%s1092 + $0x58] sm:$0xf]
      %v1116 = vld [vmem:[%s1092 + $0x5c] sm:$0xf]
      %v1117 = vld [vmem:[%s1092 + $0x60] sm:$0xf]
      %v1118 = vld [vmem:[%s1092 + $0x64] sm:$0xf]
      %v1119 = vld [vmem:[%s1092 + $0x68] sm:$0xf]
      %v1120 = vld [vmem:[%s1092 + $0x6c] sm:$0xf]
      %v1121 = vld [vmem:[%s1092 + $0x70] sm:$0xf]
      %v1122 = vld [vmem:[%s1092 + $0x74] sm:$0xf]
      %v1123 = vld [vmem:[%s1092 + $0x78] sm:$0xf]
      %v1124 = vld [vmem:[%s1092 + $0x7c] sm:$0xf]
      %v1125 = vld [vmem:[%s1092 + $0x80] sm:$0xf]
      %v1126 = vld [vmem:[%s1092 + $0x84] sm:$0xf]
      %v1127 = vld [vmem:[%s1092 + $0x88] sm:$0xf]
      %v1128 = vld [vmem:[%s1092 + $0x8c] sm:$0xf]
      %v1129 = vld [vmem:[%s1092 + $0x90] sm:$0xf]
      %v1130 = vld [vmem:[%s1092 + $0x94] sm:$0xf]
      %v1131 = vld [vmem:[%s1092 + $0x98] sm:$0xf]
      %v1132 = vld [vmem:[%s1092 + $0x9c] sm:$0xf]
      %v1133 = vld [vmem:[%s1092 + $0xa0] sm:$0xf]
      %v1134 = vld [vmem:[%s1092 + $0xa4] sm:$0xf]
      %v1135 = vld [vmem:[%s1092 + $0xa8] sm:$0xf]
      %v1136 = vld [vmem:[%s1092 + $0xac] sm:$0xf]
      %v1137 = vld [vmem:[%s1092 + $0xb0] sm:$0xf]
      %v1138 = vld [vmem:[%s1092 + $0xb4] sm:$0xf]
      %v1139 = vld [vmem:[%s1092 + $0xb8] sm:$0xf]
      %v1140 = vld [vmem:[%s1092 + $0xbc] sm:$0xf]
      %v1189 = vunpack.c.l.b16 %v1093
      %v1190 = vunpack.c.l.b16 %v1094
      %v1191 = vunpack.c.l.b16 %v1095
      %v1192 = vunpack.c.l.b16 %v1096
      %v1193 = vunpack.c.l.b16 %v1097
      %v1194 = vunpack.c.l.b16 %v1098
      %v1195 = vunpack.c.l.b16 %v1099
      %v1196 = vunpack.c.l.b16 %v1100
      %v1197 = vunpack.c.l.b16 %v1101
      %v1198 = vunpack.c.l.b16 %v1102
      %v1199 = vunpack.c.l.b16 %v1103
      %v1200 = vunpack.c.l.b16 %v1104
      %v1201 = vunpack.c.l.b16 %v1105
      %v1202 = vunpack.c.l.b16 %v1106
      %v1203 = vunpack.c.l.b16 %v1107
      %v1204 = vunpack.c.l.b16 %v1108
      %v1205 = vunpack.c.l.b16 %v1109
      %v1206 = vunpack.c.l.b16 %v1110
      %v1207 = vunpack.c.l.b16 %v1111
      %v1208 = vunpack.c.l.b16 %v1112
      %v1209 = vunpack.c.l.b16 %v1113
      %v1210 = vunpack.c.l.b16 %v1114
      %v1211 = vunpack.c.l.b16 %v1115
      %v1212 = vunpack.c.l.b16 %v1116
      %v1213 = vunpack.c.l.b16 %v1117
      %v1214 = vunpack.c.l.b16 %v1118
      %v1215 = vunpack.c.l.b16 %v1119
      %v1216 = vunpack.c.l.b16 %v1120
      %v1217 = vunpack.c.l.b16 %v1121
      %v1218 = vunpack.c.l.b16 %v1122
      %v1219 = vunpack.c.l.b16 %v1123
      %v1220 = vunpack.c.l.b16 %v1124
      %v1221 = vunpack.c.l.b16 %v1125
      %v1222 = vunpack.c.l.b16 %v1126
      %v1223 = vunpack.c.l.b16 %v1127
      %v1224 = vunpack.c.l.b16 %v1128
      %v1225 = vunpack.c.l.b16 %v1129
      %v1226 = vunpack.c.l.b16 %v1130
      %v1227 = vunpack.c.l.b16 %v1131
      %v1228 = vunpack.c.l.b16 %v1132
      %v1229 = vunpack.c.l.b16 %v1133
      %v1230 = vunpack.c.l.b16 %v1134
      %v1231 = vunpack.c.l.b16 %v1135
      %v1232 = vunpack.c.l.b16 %v1136
      %v1233 = vunpack.c.l.b16 %v1137
      %v1234 = vunpack.c.l.b16 %v1138
      %v1235 = vunpack.c.l.b16 %v1139
      %v1236 = vunpack.c.l.b16 %v1140
      %v1237 = vpack.c.b16 %v1190, %v1189
      %v1238 = vpack.c.b16 %v1192, %v1191
      %v1239 = vpack.c.b16 %v1194, %v1193
      %v1240 = vpack.c.b16 %v1196, %v1195
      %v1241 = vpack.c.b16 %v1198, %v1197
      %v1242 = vpack.c.b16 %v1200, %v1199
      %v1243 = vpack.c.b16 %v1202, %v1201
      %v1244 = vpack.c.b16 %v1204, %v1203
      %v1245 = vpack.c.b16 %v1206, %v1205
      %v1246 = vpack.c.b16 %v1208, %v1207
      %v1247 = vpack.c.b16 %v1210, %v1209
      %v1248 = vpack.c.b16 %v1212, %v1211
      %v1249 = vpack.c.b16 %v1214, %v1213
      %v1250 = vpack.c.b16 %v1216, %v1215
      %v1251 = vpack.c.b16 %v1218, %v1217
      %v1252 = vpack.c.b16 %v1220, %v1219
      %v1253 = vpack.c.b16 %v1222, %v1221
      %v1254 = vpack.c.b16 %v1224, %v1223
      %v1255 = vpack.c.b16 %v1226, %v1225
      %v1256 = vpack.c.b16 %v1228, %v1227
      %v1257 = vpack.c.b16 %v1230, %v1229
      %v1258 = vpack.c.b16 %v1232, %v1231
      %v1259 = vpack.c.b16 %v1234, %v1233
      %v1260 = vpack.c.b16 %v1236, %v1235
      %1285 = vmatprep.subr.bf16.mxu0 0
      %1286 = vmatpush1.bf16.msra.mxu0 %v1237
      %1287 = vmatprep.subr.bf16.mxu0 0
      %1288 = vmatpush1.bf16.msra.mxu0 %v1238
      %1289 = vmatprep.subr.bf16.mxu0 0
      %1290 = vmatpush1.bf16.msra.mxu0 %v1239
      %1291 = vmatprep.subr.bf16.mxu0 0
      %1292 = vmatpush1.bf16.msra.mxu0 %v1240
      %1293 = vmatprep.subr.bf16.mxu0 0
      %1294 = vmatpush1.bf16.msra.mxu0 %v1241
      %1295 = vmatprep.subr.bf16.mxu0 0
      %1296 = vmatpush1.bf16.msra.mxu0 %v1242
      %1297 = vmatprep.subr.bf16.mxu0 0
      %1298 = vmatpush1.bf16.msra.mxu0 %v1243
      %1299 = vmatprep.subr.bf16.mxu0 0
      %1300 = vmatpush1.bf16.msra.mxu0 %v1244
      %1301 = vmatprep.subr.bf16.mxu0 0
      %1302 = vmatpush1.bf16.msra.mxu0 %v1245
      %1303 = vmatprep.subr.bf16.mxu0 0
      %1304 = vmatpush1.bf16.msra.mxu0 %v1246
      %1305 = vmatprep.subr.bf16.mxu0 0
      %1306 = vmatpush1.bf16.msra.mxu0 %v1247
      %1307 = vmatprep.subr.bf16.mxu0 0
      %1308 = vmatpush1.bf16.msra.mxu0 %v1248
      %1309 = vmatprep.subr.bf16.mxu0 0
      %1310 = vmatpush1.bf16.msra.mxu0 %v1249
      %1311 = vmatprep.subr.bf16.mxu0 0
      %1312 = vmatpush1.bf16.msra.mxu0 %v1250
      %1313 = vmatprep.subr.bf16.mxu0 0
      %1314 = vmatpush1.bf16.msra.mxu0 %v1251
      %1315 = vmatprep.subr.bf16.mxu0 0
      %1316 = vmatpush1.bf16.msra.mxu0 %v1252
      %1317 = vmatprep.mubr.bf16.mxu0 %v1072
      %1318 = vmatmul.mubr.bf16.gmra.mrb[0].mxu0 %v1054
      %v1319 = vpop.f32.mrb[0].mxu0
      %v1320 = vadd.f32 0.0, %v1319
      %v1321 = vpop.f32.mrb[0].mxu0
      %v1322 = vpop.f32.mrb[0].mxu0
      %v1323 = vadd.f32 0.0, %v1322
      %v1324 = vpop.f32.mrb[0].mxu0
      %1325 = vdwg.mxu0
      %1326 = vmatprep.subr.bf16.mxu0 0
      %1327 = vmatpush1.bf16.msra.mxu0 %v1253
      %1328 = vmatprep.subr.bf16.mxu0 0
      %1329 = vmatpush1.bf16.msra.mxu0 %v1254
      %1330 = vmatprep.subr.bf16.mxu0 0
      %1331 = vmatpush1.bf16.msra.mxu0 %v1255
      %1332 = vmatprep.subr.bf16.mxu0 0
      %1333 = vmatpush1.bf16.msra.mxu0 %v1256
      %1334 = vmatprep.subr.bf16.mxu0 0
      %1335 = vmatpush1.bf16.msra.mxu0 %v1257
      %1336 = vmatprep.subr.bf16.mxu0 0
      %1337 = vmatpush1.bf16.msra.mxu0 %v1258
      %1338 = vmatprep.subr.bf16.mxu0 0
      %1339 = vmatpush1.bf16.msra.mxu0 %v1259
      %1340 = vmatprep.subr.bf16.mxu0 0
      %1341 = vmatpush1.bf16.msra.mxu0 %v1260
      %1342 = vmatprep.subr.bf16.mxu0 0
      %1343 = vmatpush1.bf16.msra.mxu0 0
      %1344 = vmatprep.subr.bf16.mxu0 0
      %1345 = vmatpush1.bf16.msra.mxu0 0
      %1346 = vmatprep.subr.bf16.mxu0 0
      %1347 = vmatpush1.bf16.msra.mxu0 0
      %1348 = vmatprep.subr.bf16.mxu0 0
      %1349 = vmatpush1.bf16.msra.mxu0 0
      %1350 = vmatprep.subr.bf16.mxu0 0
      %1351 = vmatpush1.bf16.msra.mxu0 0
      %1352 = vmatprep.subr.bf16.mxu0 0
      %1353 = vmatpush1.bf16.msra.mxu0 0
      %1354 = vmatprep.subr.bf16.mxu0 0
      %1355 = vmatpush1.bf16.msra.mxu0 0
      %1356 = vmatprep.subr.bf16.mxu0 0
      %1357 = vmatpush1.bf16.msra.mxu0 0
      %1358 = vmatprep.mubr.bf16.mxu0 0
      %1359 = vmatmul.mubr.bf16.gmra.mrb[0].mxu0 %v1090
      %v1360 = vpop.f32.mrb[0].mxu0
      %v1361 = vadd.f32 %v1320, %v1360
      %v1362 = vpop.f32.mrb[0].mxu0
      %v1363 = vpop.f32.mrb[0].mxu0
      %v1364 = vadd.f32 %v1323, %v1363
      %v1365 = vpop.f32.mrb[0].mxu0
      %1366 = vdwg.mxu0
      %v1415 = vunpack.c.l.b16 %v623
      %v1416 = vunpack.c.l.b16 %v624
      %v1417 = vunpack.c.l.b16 %v625
      %v1418 = vunpack.c.l.b16 %v626
      %v1419 = vunpack.c.l.b16 %v627
      %v1420 = vunpack.c.l.b16 %v628
      %v1421 = vunpack.c.l.b16 %v629
      %v1422 = vunpack.c.l.b16 %v630
      %v1423 = vunpack.c.l.b16 %v631
      %v1424 = vunpack.c.l.b16 %v632
      %v1425 = vunpack.c.l.b16 %v633
      %v1426 = vunpack.c.l.b16 %v634
      %v1427 = vunpack.c.l.b16 %v635
      %v1428 = vunpack.c.l.b16 %v636
      %v1429 = vunpack.c.l.b16 %v637
      %v1430 = vunpack.c.l.b16 %v638
      %v1431 = vunpack.c.l.b16 %v639
      %v1432 = vunpack.c.l.b16 %v640
      %v1433 = vunpack.c.l.b16 %v641
      %v1434 = vunpack.c.l.b16 %v642
      %v1435 = vunpack.c.l.b16 %v643
      %v1436 = vunpack.c.l.b16 %v644
      %v1437 = vunpack.c.l.b16 %v645
      %v1438 = vunpack.c.l.b16 %v646
      %v1439 = vunpack.c.l.b16 %v647
      %v1440 = vunpack.c.l.b16 %v648
      %v1441 = vunpack.c.l.b16 %v649
      %v1442 = vunpack.c.l.b16 %v650
      %v1443 = vunpack.c.l.b16 %v651
      %v1444 = vunpack.c.l.b16 %v652
      %v1445 = vunpack.c.l.b16 %v653
      %v1446 = vunpack.c.l.b16 %v654
      %v1447 = vunpack.c.l.b16 %v655
      %v1448 = vunpack.c.l.b16 %v656
      %v1449 = vunpack.c.l.b16 %v657
      %v1450 = vunpack.c.l.b16 %v658
      %v1451 = vunpack.c.l.b16 %v659
      %v1452 = vunpack.c.l.b16 %v660
      %v1453 = vunpack.c.l.b16 %v661
      %v1454 = vunpack.c.l.b16 %v662
      %v1455 = vunpack.c.l.b16 %v663
      %v1456 = vunpack.c.l.b16 %v664
      %v1457 = vunpack.c.l.b16 %v665
      %v1458 = vunpack.c.l.b16 %v666
      %v1459 = vunpack.c.l.b16 %v667
      %v1460 = vunpack.c.l.b16 %v668
      %v1461 = vunpack.c.l.b16 %v669
      %v1462 = vunpack.c.l.b16 %v670
      %v1463 = vpack.c.b16 %v1416, %v1415
      %v1464 = vpack.c.b16 %v1418, %v1417
      %v1465 = vpack.c.b16 %v1420, %v1419
      %v1466 = vpack.c.b16 %v1422, %v1421
      %v1467 = vpack.c.b16 %v1424, %v1423
      %v1468 = vpack.c.b16 %v1426, %v1425
      %v1469 = vpack.c.b16 %v1428, %v1427
      %v1470 = vpack.c.b16 %v1430, %v1429
      %v1471 = vpack.c.b16 %v1432, %v1431
      %v1472 = vpack.c.b16 %v1434, %v1433
      %v1473 = vpack.c.b16 %v1436, %v1435
      %v1474 = vpack.c.b16 %v1438, %v1437
      %v1475 = vpack.c.b16 %v1440, %v1439
      %v1476 = vpack.c.b16 %v1442, %v1441
      %v1477 = vpack.c.b16 %v1444, %v1443
      %v1478 = vpack.c.b16 %v1446, %v1445
      %v1479 = vpack.c.b16 %v1448, %v1447
      %v1480 = vpack.c.b16 %v1450, %v1449
      %v1481 = vpack.c.b16 %v1452, %v1451
      %v1482 = vpack.c.b16 %v1454, %v1453
      %v1483 = vpack.c.b16 %v1456, %v1455
      %v1484 = vpack.c.b16 %v1458, %v1457
      %v1485 = vpack.c.b16 %v1460, %v1459
      %v1486 = vpack.c.b16 %v1462, %v1461
      %1511 = vmatprep.subr.bf16.mxu0 0
      %1512 = vmatpush1.bf16.msra.mxu0 %v1463
      %1513 = vmatprep.subr.bf16.mxu0 0
      %1514 = vmatpush1.bf16.msra.mxu0 %v1464
      %1515 = vmatprep.subr.bf16.mxu0 0
      %1516 = vmatpush1.bf16.msra.mxu0 %v1465
      %1517 = vmatprep.subr.bf16.mxu0 0
      %1518 = vmatpush1.bf16.msra.mxu0 %v1466
      %1519 = vmatprep.subr.bf16.mxu0 0
      %1520 = vmatpush1.bf16.msra.mxu0 %v1467
      %1521 = vmatprep.subr.bf16.mxu0 0
      %1522 = vmatpush1.bf16.msra.mxu0 %v1468
      %1523 = vmatprep.subr.bf16.mxu0 0
      %1524 = vmatpush1.bf16.msra.mxu0 %v1469
      %1525 = vmatprep.subr.bf16.mxu0 0
      %1526 = vmatpush1.bf16.msra.mxu0 %v1470
      %1527 = vmatprep.subr.bf16.mxu0 0
      %1528 = vmatpush1.bf16.msra.mxu0 %v1471
      %1529 = vmatprep.subr.bf16.mxu0 0
      %1530 = vmatpush1.bf16.msra.mxu0 %v1472
      %1531 = vmatprep.subr.bf16.mxu0 0
      %1532 = vmatpush1.bf16.msra.mxu0 %v1473
      %1533 = vmatprep.subr.bf16.mxu0 0
      %1534 = vmatpush1.bf16.msra.mxu0 %v1474
      %1535 = vmatprep.subr.bf16.mxu0 0
      %1536 = vmatpush1.bf16.msra.mxu0 %v1475
      %1537 = vmatprep.subr.bf16.mxu0 0
      %1538 = vmatpush1.bf16.msra.mxu0 %v1476
      %1539 = vmatprep.subr.bf16.mxu0 0
      %1540 = vmatpush1.bf16.msra.mxu0 %v1477
      %1541 = vmatprep.subr.bf16.mxu0 0
      %1542 = vmatpush1.bf16.msra.mxu0 %v1478
      %1543 = vmatprep.mubr.bf16.mxu0 %v599
      %1544 = vmatmul.mubr.bf16.gmra.mrb[0].mxu0 %v577
      %v1545 = vpop.f32.mrb[0].mxu0
      %v1546 = vadd.f32 %v1361, %v1545
      %v1547 = vpop.f32.mrb[0].mxu0
      %v1548 = vpop.f32.mrb[0].mxu0
      %v1549 = vadd.f32 %v1364, %v1548
      %v1550 = vpop.f32.mrb[0].mxu0
      %1551 = vdwg.mxu0
      %1552 = vmatprep.subr.bf16.mxu0 0
      %1553 = vmatpush1.bf16.msra.mxu0 %v1479
      %1554 = vmatprep.subr.bf16.mxu0 0
      %1555 = vmatpush1.bf16.msra.mxu0 %v1480
      %1556 = vmatprep.subr.bf16.mxu0 0
      %1557 = vmatpush1.bf16.msra.mxu0 %v1481
      %1558 = vmatprep.subr.bf16.mxu0 0
      %1559 = vmatpush1.bf16.msra.mxu0 %v1482
      %1560 = vmatprep.subr.bf16.mxu0 0
      %1561 = vmatpush1.bf16.msra.mxu0 %v1483
      %1562 = vmatprep.subr.bf16.mxu0 0
      %1563 = vmatpush1.bf16.msra.mxu0 %v1484
      %1564 = vmatprep.subr.bf16.mxu0 0
      %1565 = vmatpush1.bf16.msra.mxu0 %v1485
      %1566 = vmatprep.subr.bf16.mxu0 0
      %1567 = vmatpush1.bf16.msra.mxu0 %v1486
      %1568 = vmatprep.subr.bf16.mxu0 0
      %1569 = vmatpush1.bf16.msra.mxu0 0
      %1570 = vmatprep.subr.bf16.mxu0 0
      %1571 = vmatpush1.bf16.msra.mxu0 0
      %1572 = vmatprep.subr.bf16.mxu0 0
      %1573 = vmatpush1.bf16.msra.mxu0 0
      %1574 = vmatprep.subr.bf16.mxu0 0
      %1575 = vmatpush1.bf16.msra.mxu0 0
      %1576 = vmatprep.subr.bf16.mxu0 0
      %1577 = vmatpush1.bf16.msra.mxu0 0
      %1578 = vmatprep.subr.bf16.mxu0 0
      %1579 = vmatpush1.bf16.msra.mxu0 0
      %1580 = vmatprep.subr.bf16.mxu0 0
      %1581 = vmatpush1.bf16.msra.mxu0 0
      %1582 = vmatprep.subr.bf16.mxu0 0
      %1583 = vmatpush1.bf16.msra.mxu0 0
      %1584 = vmatprep.mubr.bf16.mxu0 0
      %1585 = vmatmul.mubr.bf16.gmra.mrb[0].mxu0 %v621
      %v1586 = vpop.f32.mrb[0].mxu0
      %v1587 = vadd.f32 %v1546, %v1586
      %v1588 = vpop.f32.mrb[0].mxu0
      %v1589 = vpop.f32.mrb[0].mxu0
      %v1590 = vadd.f32 %v1549, %v1589
      %v1591 = vpop.f32.mrb[0].mxu0
      %1592 = vdwg.mxu0
      %v1593 = vcombine.high %v685, %v685
      %v1594 = vcombine.high %v701, %v701
      %v1595 = vcombine.high %v717, %v717
      %v1596 = vcombine.high %v733, %v733
      %vm1597 = vcmask 1040384
      %vm1598 = vcmask 1042434
      %vm1599 = vmor %vm1597, %vm1598
      %vm1600 = vcmask 1044484
      %vm1601 = vmor %vm1599, %vm1600
      %vm1602 = vcmask 1046534
      %vm1603 = vmor %vm1601, %vm1602
      %v1604 = vrot.slane %v685, 7
      %v1605 = vrot.slane %v1604, 2
      %v1606 = vrot.slane %v1593, 7
      %v1607 = vsel %vm1603, %v1605, %v1606
      %v1608 = vrot.slane %v701, 7
      %v1609 = vrot.slane %v1608, 2
      %v1610 = vrot.slane %v1594, 7
      %v1611 = vsel %vm1603, %v1609, %v1610
      %v1612 = vrot.slane %v717, 7
      %v1613 = vrot.slane %v1612, 2
      %v1614 = vrot.slane %v1595, 7
      %v1615 = vsel %vm1603, %v1613, %v1614
      %v1616 = vrot.slane %v733, 7
      %v1617 = vrot.slane %v1616, 2
      %v1618 = vrot.slane %v1596, 7
      %v1619 = vsel %vm1603, %v1617, %v1618
      %v1620 = vcombine.high %v812, %v812
      %v1621 = vcombine.high %v828, %v828
      %v1622 = vcombine.high %v844, %v844
      %v1623 = vcombine.high %v860, %v860
      %v1624 = vrot.slane %v812, 7
      %v1625 = vrot.slane %v1624, 2
      %v1626 = vrot.slane %v1620, 7
      %v1627 = vsel %vm1603, %v1625, %v1626
      %v1628 = vrot.slane %v828, 7
      %v1629 = vrot.slane %v1628, 2
      %v1630 = vrot.slane %v1621, 7
      %v1631 = vsel %vm1603, %v1629, %v1630
      %v1632 = vrot.slane %v844, 7
      %v1633 = vrot.slane %v1632, 2
      %v1634 = vrot.slane %v1622, 7
      %v1635 = vsel %vm1603, %v1633, %v1634
      %v1636 = vrot.slane %v860, 7
      %v1637 = vrot.slane %v1636, 2
      %v1638 = vrot.slane %v1623, 7
      %v1639 = vsel %vm1603, %v1637, %v1638
      %v1640 = vcombine.high %v932, %v932
      %v1641 = vcombine.high %v948, %v948
      %v1642 = vcombine.high %v964, %v964
      %v1643 = vcombine.high %v980, %v980
      %v1644 = vrot.slane %v932, 7
      %v1645 = vrot.slane %v1644, 2
      %v1646 = vrot.slane %v1640, 7
      %v1647 = vsel %vm1603, %v1645, %v1646
      %v1648 = vrot.slane %v948, 7
      %v1649 = vrot.slane %v1648, 2
      %v1650 = vrot.slane %v1641, 7
      %v1651 = vsel %vm1603, %v1649, %v1650
      %v1652 = vrot.slane %v964, 7
      %v1653 = vrot.slane %v1652, 2
      %v1654 = vrot.slane %v1642, 7
      %v1655 = vsel %vm1603, %v1653, %v1654
      %v1656 = vrot.slane %v980, 7
      %v1657 = vrot.slane %v1656, 2
      %v1658 = vrot.slane %v1643, 7
      %v1659 = vsel %vm1603, %v1657, %v1658
      %v1660 = vcombine.low %v1607, %v1611
      %v1661 = vcombine.low %v1615, %v1619
      %v1663 = vunpack.c.l.s4 1983009808
      %v1664 = vunpack.c.0.s8 %v1663
      %v1665 = vlaneseq
      %v1666 = vshrl.u32 %v1665, 7
      %v1667 = vsub.s32 %v1664, %v1666
      %v1668 = vrot.slane %v1660, %v1667
      %v1670 = vunpack.c.l.s4 1983009808
      %v1671 = vunpack.c.0.s8 %v1670
      %v1672 = vlaneseq
      %v1673 = vshrl.u32 %v1672, 7
      %v1674 = vsub.s32 %v1671, %v1673
      %v1675 = vrot.slane %v1661, %v1674
      %v1676 = vcombine.low %v1668, %v1675
      %v1678 = vcombine.low %v1627, %v1631
      %v1679 = vcombine.low %v1635, %v1639
      %v1681 = vunpack.c.l.s4 1983009808
      %v1682 = vunpack.c.0.s8 %v1681
      %v1683 = vlaneseq
      %v1684 = vshrl.u32 %v1683, 7
      %v1685 = vsub.s32 %v1682, %v1684
      %v1686 = vrot.slane %v1678, %v1685
      %v1688 = vunpack.c.l.s4 1983009808
      %v1689 = vunpack.c.0.s8 %v1688
      %v1690 = vlaneseq
      %v1691 = vshrl.u32 %v1690, 7
      %v1692 = vsub.s32 %v1689, %v1691
      %v1693 = vrot.slane %v1679, %v1692
      %v1694 = vcombine.low %v1686, %v1693
      %v1696 = vcombine.low %v1647, %v1651
      %v1697 = vcombine.low %v1655, %v1659
      %v1699 = vunpack.c.l.s4 1983009808
      %v1700 = vunpack.c.0.s8 %v1699
      %v1701 = vlaneseq
      %v1702 = vshrl.u32 %v1701, 7
      %v1703 = vsub.s32 %v1700, %v1702
      %v1704 = vrot.slane %v1696, %v1703
      %v1706 = vunpack.c.l.s4 1983009808
      %v1707 = vunpack.c.0.s8 %v1706
      %v1708 = vlaneseq
      %v1709 = vshrl.u32 %v1708, 7
      %v1710 = vsub.s32 %v1707, %v1709
      %v1711 = vrot.slane %v1697, %v1710
      %v1712 = vcombine.low %v1704, %v1711
      %s1714 = scalar_lea.vmem %s339, 384
      %v1715 = vld [vmem:[%s1714] sm:$0xf]
      %v1716 = vld [vmem:[%s1714 + $0x4] sm:$0xf]
      %v1717 = vld [vmem:[%s1714 + $0x8] sm:$0xf]
      %v1718 = vld [vmem:[%s1714 + $0xc] sm:$0xf]
      %v1719 = vld [vmem:[%s1714 + $0x10] sm:$0xf]
      %v1720 = vld [vmem:[%s1714 + $0x14] sm:$0xf]
      %v1721 = vld [vmem:[%s1714 + $0x18] sm:$0xf]
      %v1722 = vld [vmem:[%s1714 + $0x1c] sm:$0xf]
      %v1723 = vld [vmem:[%s1714 + $0x20] sm:$0xf]
      %v1724 = vld [vmem:[%s1714 + $0x24] sm:$0xf]
      %v1725 = vld [vmem:[%s1714 + $0x28] sm:$0xf]
      %v1726 = vld [vmem:[%s1714 + $0x2c] sm:$0xf]
      %v1727 = vld [vmem:[%s1714 + $0x30] sm:$0xf]
      %v1728 = vld [vmem:[%s1714 + $0x34] sm:$0xf]
      %v1729 = vld [vmem:[%s1714 + $0x38] sm:$0xf]
      %v1730 = vld [vmem:[%s1714 + $0x3c] sm:$0xf]
      %v1731 = vld [vmem:[%s1714 + $0x40] sm:$0xf]
      %v1732 = vld [vmem:[%s1714 + $0x44] sm:$0xf]
      %v1733 = vld [vmem:[%s1714 + $0x48] sm:$0xf]
      %v1734 = vld [vmem:[%s1714 + $0x4c] sm:$0xf]
      %v1735 = vld [vmem:[%s1714 + $0x50] sm:$0xf]
      %v1736 = vld [vmem:[%s1714 + $0x54] sm:$0xf]
      %v1737 = vld [vmem:[%s1714 + $0x58] sm:$0xf]
      %v1738 = vld [vmem:[%s1714 + $0x5c] sm:$0xf]
      %v1739 = vld [vmem:[%s1714 + $0x60] sm:$0xf]
      %v1740 = vld [vmem:[%s1714 + $0x64] sm:$0xf]
      %v1741 = vld [vmem:[%s1714 + $0x68] sm:$0xf]
      %v1742 = vld [vmem:[%s1714 + $0x6c] sm:$0xf]
      %v1743 = vld [vmem:[%s1714 + $0x70] sm:$0xf]
      %v1744 = vld [vmem:[%s1714 + $0x74] sm:$0xf]
      %v1745 = vld [vmem:[%s1714 + $0x78] sm:$0xf]
      %v1746 = vld [vmem:[%s1714 + $0x7c] sm:$0xf]
      %v1747 = vld [vmem:[%s1714 + $0x80] sm:$0xf]
      %v1748 = vld [vmem:[%s1714 + $0x84] sm:$0xf]
      %v1749 = vld [vmem:[%s1714 + $0x88] sm:$0xf]
      %v1750 = vld [vmem:[%s1714 + $0x8c] sm:$0xf]
      %v1751 = vld [vmem:[%s1714 + $0x90] sm:$0xf]
      %v1752 = vld [vmem:[%s1714 + $0x94] sm:$0xf]
      %v1753 = vld [vmem:[%s1714 + $0x98] sm:$0xf]
      %v1754 = vld [vmem:[%s1714 + $0x9c] sm:$0xf]
      %v1755 = vld [vmem:[%s1714 + $0xa0] sm:$0xf]
      %v1756 = vld [vmem:[%s1714 + $0xa4] sm:$0xf]
      %v1757 = vld [vmem:[%s1714 + $0xa8] sm:$0xf]
      %v1758 = vld [vmem:[%s1714 + $0xac] sm:$0xf]
      %v1759 = vld [vmem:[%s1714 + $0xb0] sm:$0xf]
      %v1760 = vld [vmem:[%s1714 + $0xb4] sm:$0xf]
      %v1761 = vld [vmem:[%s1714 + $0xb8] sm:$0xf]
      %v1762 = vld [vmem:[%s1714 + $0xbc] sm:$0xf]
      %v1811 = vunpack.c.l.b16 %v1715
      %v1812 = vunpack.c.l.b16 %v1716
      %v1813 = vunpack.c.l.b16 %v1717
      %v1814 = vunpack.c.l.b16 %v1718
      %v1815 = vunpack.c.l.b16 %v1719
      %v1816 = vunpack.c.l.b16 %v1720
      %v1817 = vunpack.c.l.b16 %v1721
      %v1818 = vunpack.c.l.b16 %v1722
      %v1819 = vunpack.c.l.b16 %v1723
      %v1820 = vunpack.c.l.b16 %v1724
      %v1821 = vunpack.c.l.b16 %v1725
      %v1822 = vunpack.c.l.b16 %v1726
      %v1823 = vunpack.c.l.b16 %v1727
      %v1824 = vunpack.c.l.b16 %v1728
      %v1825 = vunpack.c.l.b16 %v1729
      %v1826 = vunpack.c.l.b16 %v1730
      %v1827 = vunpack.c.l.b16 %v1731
      %v1828 = vunpack.c.l.b16 %v1732
      %v1829 = vunpack.c.l.b16 %v1733
      %v1830 = vunpack.c.l.b16 %v1734
      %v1831 = vunpack.c.l.b16 %v1735
      %v1832 = vunpack.c.l.b16 %v1736
      %v1833 = vunpack.c.l.b16 %v1737
      %v1834 = vunpack.c.l.b16 %v1738
      %v1835 = vunpack.c.l.b16 %v1739
      %v1836 = vunpack.c.l.b16 %v1740
      %v1837 = vunpack.c.l.b16 %v1741
      %v1838 = vunpack.c.l.b16 %v1742
      %v1839 = vunpack.c.l.b16 %v1743
      %v1840 = vunpack.c.l.b16 %v1744
      %v1841 = vunpack.c.l.b16 %v1745
      %v1842 = vunpack.c.l.b16 %v1746
      %v1843 = vunpack.c.l.b16 %v1747
      %v1844 = vunpack.c.l.b16 %v1748
      %v1845 = vunpack.c.l.b16 %v1749
      %v1846 = vunpack.c.l.b16 %v1750
      %v1847 = vunpack.c.l.b16 %v1751
      %v1848 = vunpack.c.l.b16 %v1752
      %v1849 = vunpack.c.l.b16 %v1753
      %v1850 = vunpack.c.l.b16 %v1754
      %v1851 = vunpack.c.l.b16 %v1755
      %v1852 = vunpack.c.l.b16 %v1756
      %v1853 = vunpack.c.l.b16 %v1757
      %v1854 = vunpack.c.l.b16 %v1758
      %v1855 = vunpack.c.l.b16 %v1759
      %v1856 = vunpack.c.l.b16 %v1760
      %v1857 = vunpack.c.l.b16 %v1761
      %v1858 = vunpack.c.l.b16 %v1762
      %v1859 = vpack.c.b16 %v1812, %v1811
      %v1860 = vpack.c.b16 %v1814, %v1813
      %v1861 = vpack.c.b16 %v1816, %v1815
      %v1862 = vpack.c.b16 %v1818, %v1817
      %v1863 = vpack.c.b16 %v1820, %v1819
      %v1864 = vpack.c.b16 %v1822, %v1821
      %v1865 = vpack.c.b16 %v1824, %v1823
      %v1866 = vpack.c.b16 %v1826, %v1825
      %v1867 = vpack.c.b16 %v1828, %v1827
      %v1868 = vpack.c.b16 %v1830, %v1829
      %v1869 = vpack.c.b16 %v1832, %v1831
      %v1870 = vpack.c.b16 %v1834, %v1833
      %v1871 = vpack.c.b16 %v1836, %v1835
      %v1872 = vpack.c.b16 %v1838, %v1837
      %v1873 = vpack.c.b16 %v1840, %v1839
      %v1874 = vpack.c.b16 %v1842, %v1841
      %v1875 = vpack.c.b16 %v1844, %v1843
      %v1876 = vpack.c.b16 %v1846, %v1845
      %v1877 = vpack.c.b16 %v1848, %v1847
      %v1878 = vpack.c.b16 %v1850, %v1849
      %v1879 = vpack.c.b16 %v1852, %v1851
      %v1880 = vpack.c.b16 %v1854, %v1853
      %v1881 = vpack.c.b16 %v1856, %v1855
      %v1882 = vpack.c.b16 %v1858, %v1857
      %1907 = vmatprep.subr.bf16.mxu0 0
      %1908 = vmatpush1.bf16.msra.mxu0 %v1859
      %1909 = vmatprep.subr.bf16.mxu0 0
      %1910 = vmatpush1.bf16.msra.mxu0 %v1860
      %1911 = vmatprep.subr.bf16.mxu0 0
      %1912 = vmatpush1.bf16.msra.mxu0 %v1861
      %1913 = vmatprep.subr.bf16.mxu0 0
      %1914 = vmatpush1.bf16.msra.mxu0 %v1862
      %1915 = vmatprep.subr.bf16.mxu0 0
      %1916 = vmatpush1.bf16.msra.mxu0 %v1863
      %1917 = vmatprep.subr.bf16.mxu0 0
      %1918 = vmatpush1.bf16.msra.mxu0 %v1864
      %1919 = vmatprep.subr.bf16.mxu0 0
      %1920 = vmatpush1.bf16.msra.mxu0 %v1865
      %1921 = vmatprep.subr.bf16.mxu0 0
      %1922 = vmatpush1.bf16.msra.mxu0 %v1866
      %1923 = vmatprep.subr.bf16.mxu0 0
      %1924 = vmatpush1.bf16.msra.mxu0 %v1867
      %1925 = vmatprep.subr.bf16.mxu0 0
      %1926 = vmatpush1.bf16.msra.mxu0 %v1868
      %1927 = vmatprep.subr.bf16.mxu0 0
      %1928 = vmatpush1.bf16.msra.mxu0 %v1869
      %1929 = vmatprep.subr.bf16.mxu0 0
      %1930 = vmatpush1.bf16.msra.mxu0 %v1870
      %1931 = vmatprep.subr.bf16.mxu0 0
      %1932 = vmatpush1.bf16.msra.mxu0 %v1871
      %1933 = vmatprep.subr.bf16.mxu0 0
      %1934 = vmatpush1.bf16.msra.mxu0 %v1872
      %1935 = vmatprep.subr.bf16.mxu0 0
      %1936 = vmatpush1.bf16.msra.mxu0 %v1873
      %1937 = vmatprep.subr.bf16.mxu0 0
      %1938 = vmatpush1.bf16.msra.mxu0 %v1874
      %1939 = vmatprep.mubr.bf16.mxu0 %v1694
      %1940 = vmatmul.mubr.bf16.gmra.mrb[0].mxu0 %v1676
      %v1941 = vpop.f32.mrb[0].mxu0
      %v1942 = vadd.f32 0.0, %v1941
      %v1943 = vpop.f32.mrb[0].mxu0
      %v1944 = vpop.f32.mrb[0].mxu0
      %v1945 = vadd.f32 0.0, %v1944
      %v1946 = vpop.f32.mrb[0].mxu0
      %1947 = vdwg.mxu0
      %1948 = vmatprep.subr.bf16.mxu0 0
      %1949 = vmatpush1.bf16.msra.mxu0 %v1875
      %1950 = vmatprep.subr.bf16.mxu0 0
      %1951 = vmatpush1.bf16.msra.mxu0 %v1876
      %1952 = vmatprep.subr.bf16.mxu0 0
      %1953 = vmatpush1.bf16.msra.mxu0 %v1877
      %1954 = vmatprep.subr.bf16.mxu0 0
      %1955 = vmatpush1.bf16.msra.mxu0 %v1878
      %1956 = vmatprep.subr.bf16.mxu0 0
      %1957 = vmatpush1.bf16.msra.mxu0 %v1879
      %1958 = vmatprep.subr.bf16.mxu0 0
      %1959 = vmatpush1.bf16.msra.mxu0 %v1880
      %1960 = vmatprep.subr.bf16.mxu0 0
      %1961 = vmatpush1.bf16.msra.mxu0 %v1881
      %1962 = vmatprep.subr.bf16.mxu0 0
      %1963 = vmatpush1.bf16.msra.mxu0 %v1882
      %1964 = vmatprep.subr.bf16.mxu0 0
      %1965 = vmatpush1.bf16.msra.mxu0 0
      %1966 = vmatprep.subr.bf16.mxu0 0
      %1967 = vmatpush1.bf16.msra.mxu0 0
      %1968 = vmatprep.subr.bf16.mxu0 0
      %1969 = vmatpush1.bf16.msra.mxu0 0
      %1970 = vmatprep.subr.bf16.mxu0 0
      %1971 = vmatpush1.bf16.msra.mxu0 0
      %1972 = vmatprep.subr.bf16.mxu0 0
      %1973 = vmatpush1.bf16.msra.mxu0 0
      %1974 = vmatprep.subr.bf16.mxu0 0
      %1975 = vmatpush1.bf16.msra.mxu0 0
      %1976 = vmatprep.subr.bf16.mxu0 0
      %1977 = vmatpush1.bf16.msra.mxu0 0
      %1978 = vmatprep.subr.bf16.mxu0 0
      %1979 = vmatpush1.bf16.msra.mxu0 0
      %1980 = vmatprep.mubr.bf16.mxu0 0
      %1981 = vmatmul.mubr.bf16.gmra.mrb[0].mxu0 %v1712
      %v1982 = vpop.f32.mrb[0].mxu0
      %v1983 = vadd.f32 %v1942, %v1982
      %v1984 = vpop.f32.mrb[0].mxu0
      %v1985 = vpop.f32.mrb[0].mxu0
      %v1986 = vadd.f32 %v1945, %v1985
      %v1987 = vpop.f32.mrb[0].mxu0
      %1988 = vdwg.mxu0
      %v1989 = vadd.f32 %v1587, %v1983
      %v1990 = vadd.f32 %v1590, %v1986
      %v1991 = vld [vmem:[%s342] sm:$0x1]
      %v1993 = vlaneseq
      %v1994 = vshrl.u32 %v1993, 7
      %v1995 = vsub.s32 0, %v1994
      %v1996 = vrot.slane %v1991, %v1995
      %v1998 = vadd.f32 %v1989, %v1996
      %v1999 = vadd.f32 %v1990, %v1996
      %v2002 = vcombine.high %v1998, %v1998
      %v2003 = vcombine.high %v1999, %v1999
      %v2006 = vpack.c.bf16 %v1998, %v1998
      %v2007 = vpack.c.bf16 %v2002, %v2002
      %v2008 = vpack.c.bf16 %v1999, %v1999
      %v2009 = vpack.c.bf16 %v2003, %v2003
      %2010 = vst [vmem:[%s350] sm:$0x3] %v2006
      %2011 = vst [vmem:[%s350 + $0x2] sm:$0x3] %v2007
      %2012 = vst [vmem:[%s350 + $0x4] sm:$0x3] %v2008
      %2013 = vst [vmem:[%s350 + $0x6] sm:$0x3] %v2009
      %v2014 = vadd.f32 %v1998, %v1999
      %v2015 = vrot.slane %v2014, 4
      %v2016 = vadd.f32 %v2014, %v2015
      %v2017 = vrot.slane %v2016, 2
      %v2018 = vadd.f32 %v2016, %v2017
      %v2019 = vrot.slane %v2018, 1
      %v2020 = vadd.f32 %v2018, %v2019
      %2021 = vst [vmem:[%s356] sm:$0x1] %v2020
      %v2022 = vmul.f32 %v1998, %v1998
      %v2023 = vmul.f32 %v1999, %v1999
      %v2024 = vadd.f32 %v2022, %v2023
      %v2025 = vrot.slane %v2024, 4
      %v2026 = vadd.f32 %v2024, %v2025
      %v2027 = vrot.slane %v2026, 2
      %v2028 = vadd.f32 %v2026, %v2027
      %v2029 = vrot.slane %v2028, 1
      %v2030 = vadd.f32 %v2028, %v2029
      %2031 = vst [vmem:[%s362] sm:$0x1] %v2030
      %p2032 = scmp.lt.s32.totalorder %s24, 1
      %s2033 = scalar_select %p2032, %s24, 1
      %p2034 = scmp.lt.s32.totalorder %s23, 0
      %s2035 = scalar_select %p2034, %s23, 0
      %s2036 = smul.addr %s2033, 4
      %s2037 = sadd.s32 %s2035, %s2036
      %s2038 = smul.addr %s2037, 2
      %s2039 = scalar_lea.vmem %s5, %s2038
      %p2040 = scmp.lt.s32.totalorder %s24, 1
      %s2041 = scalar_select %p2040, %s24, 1
      %p2042 = scmp.lt.s32.totalorder %s23, 0
      %s2043 = scalar_select %p2042, %s23, 0
      %s2044 = sadd.s32 %s2043, %s2041
      %s2045 = scalar_lea.vmem %s6, %s2044
      %p2046 = scmp.lt.s32.totalorder %s24, 1
      %s2047 = scalar_select %p2046, %s24, 1
      %p2048 = scmp.lt.s32.totalorder %s23, 0
      %s2049 = scalar_select %p2048, %s23, 0
      %s2050 = sadd.s32 %s2049, %s2047
      %s2051 = scalar_lea.vmem %s7, %s2050
      // Predicated region
      $region41: #{global_net_forward.8} parent=39 // pred_check
        %p2052 = pneg %p171
      $region42: #{global_net_forward.8} parent=39 // pred_check_branch
        %2054 = sbr.rel (%p2052) target = $region44
      $region43: #{global_net_forward.8} parent=39 // pred_region
        _
      $region44: #{global_net_forward.8} parent=39 // pred_fallthru
        _
      // Predicated region
      $region45: #{global_net_forward.8} parent=39 // pred_check
        %p2055 = pneg %p199
      $region46: #{global_net_forward.8} parent=39 // pred_check_branch
        %2057 = sbr.rel (%p2055) target = $region48
      $region47: #{global_net_forward.8} parent=39 // pred_region
        _
      $region48: #{global_net_forward.8} parent=39 // pred_fallthru
        _
      // Predicated region
      $region49: #{global_net_forward.8} parent=39 // pred_check
        %p2058 = pneg %p227
      $region50: #{global_net_forward.8} parent=39 // pred_check_branch
        %2060 = sbr.rel (%p2058) target = $region52
      $region51: #{global_net_forward.8} parent=39 // pred_region
        _
      $region52: #{global_net_forward.8} parent=39 // pred_fallthru
        _
    $region40: #{global_net_forward.8} parent=5 // pred_fallthru
      _
    %p2061 = scmp.le.s32.totalorder 2, %s14
    // Predicated region
    $region53: #{global_net_forward.8} parent=5 // pred_check
      %p2062 = pneg %p2061
    $region54: #{global_net_forward.8} parent=5 // pred_check_branch
      %2064 = sbr.rel (%p2062) target = $region56
    $region55: #{global_net_forward.8} parent=5 // pred_region
      %s2065 = ssub.s32 %s14, 2
      // Predicated region
      $region57: #{global_net_forward.8} parent=55 // pred_check
        %p2066 = pneg %p177
      $region58: #{global_net_forward.8} parent=55 // pred_check_branch
        %2068 = sbr.rel (%p2066) target = $region60
      $region59: #{global_net_forward.8} parent=55 // pred_region
        %p2069 = scmp.lt.s32.totalorder %s26, 1
        %s2070 = scalar_select %p2069, %s26, 1
        %p2071 = scmp.lt.s32.totalorder %s25, 0
        %s2072 = scalar_select %p2071, %s25, 0
        %s2073 = smul.addr %s2070, 4
        %s2074 = sadd.s32 %s2072, %s2073
        %s2075 = smul.addr %s2074, 2
        %s2076 = scalar_lea.vmem %s5, %s2075
      $region60: #{global_net_forward.8} parent=55 // pred_fallthru
        _
      // Predicated region
      $region61: #{global_net_forward.8} parent=55 // pred_check
        %p2077 = pneg %p205
      $region62: #{global_net_forward.8} parent=55 // pred_check_branch
        %2079 = sbr.rel (%p2077) target = $region64
      $region63: #{global_net_forward.8} parent=55 // pred_region
        %p2080 = scmp.lt.s32.totalorder %s26, 1
        %s2081 = scalar_select %p2080, %s26, 1
        %p2082 = scmp.lt.s32.totalorder %s25, 0
        %s2083 = scalar_select %p2082, %s25, 0
        %s2084 = sadd.s32 %s2083, %s2081
        %s2085 = scalar_lea.vmem %s6, %s2084
      $region64: #{global_net_forward.8} parent=55 // pred_fallthru
        _
      // Predicated region
      $region65: #{global_net_forward.8} parent=55 // pred_check
        %p2086 = pneg %p233
      $region66: #{global_net_forward.8} parent=55 // pred_check_branch
        %2088 = sbr.rel (%p2086) target = $region68
      $region67: #{global_net_forward.8} parent=55 // pred_region
        %p2089 = scmp.lt.s32.totalorder %s26, 1
        %s2090 = scalar_select %p2089, %s26, 1
        %p2091 = scmp.lt.s32.totalorder %s25, 0
        %s2092 = scalar_select %p2091, %s25, 0
        %s2093 = sadd.s32 %s2092, %s2090
        %s2094 = scalar_lea.vmem %s7, %s2093
      $region68: #{global_net_forward.8} parent=55 // pred_fallthru
        _
    $region56: #{global_net_forward.8} parent=5 // pred_fallthru
      _
  $region6: #{global_net_forward.8} parent=0 // loop_footer
    %s18 = sadd.s32 1, %s14
  $region7: #{global_net_forward.8} parent=0 // loop_footer_branch
    %13 = sbr.rel target = $region3
  $region8: #{global_net_forward.8} parent=0 // loop_exit
    _

// kernel: global_net_forward.9
$region0: #{global_net_forward.9}
  #allocation0 [shape = 'u32[]', space=smem, size = 0x4, offset = 0x4, fixed_abs, tag = 'smem constant byte address 0x4 - core index']
  #allocation1 [shape = 'u32[144,128]{1,0:T(1,128)}', space=vmem, size = 0x12000, scoped, tag = 'internal scratch']
  %s0 = inlined_call_operand.vmem [shape: bf16[2,6,6,128], index: 0, kind: input, shape index: {}]
  %s1 = inlined_call_operand.vmem [shape: bf16[3,384,128], index: 1, kind: input, shape index: {}]
  %s2 = inlined_call_operand.vmem [shape: f32[1,128], index: 2, kind: input, shape index: {}]
  %s3 = inlined_call_operand.vmem [shape: f32[1,128], index: 3, kind: input, shape index: {}]
  %s4 = inlined_call_operand.vmem [shape: f32[1,128], index: 4, kind: input, shape index: {}]
  %s5 = inlined_call_operand.vmem [shape: f32[2,4,4,128], index: 5, kind: output, shape index: {}]
  %s6 = sld [smem:[#allocation0]]
  $region53: #{global_net_forward.9} parent=0
    _
  %s8 = ssub.s32 1, %s6
  %s9 = scalar_select 0, %s8, %s6
  loop: start=0, step=1, limit=4
  $region2: #{global_net_forward.9} parent=0 // loop_pre_header
    _
  $region3: #{global_net_forward.9} parent=0 // loop_header
    %s11 = sphi 0, %s15
    %p12 = scmp.ge.s32.totalorder %s11, 4
    %s21 = sphi 0, %s23
    %s24 = sphi 0, %s21
    %s25 = sphi 0, %s24
    %s41 = sphi 0, %s25
    %s45 = sphi 0, %s45
    %s47 = sphi 0, %s45
    %s48 = sphi 0, %s47
    %s62 = sphi 0, %s48
    %s66 = sphi 0, %s66
    %s68 = sphi 0, %s66
    %s69 = sphi 0, %s68
    %s83 = sphi 0, %s69
    %s87 = sphi 0, %s87
    %s89 = sphi 0, %s87
    %s90 = sphi 0, %s89
    %s104 = sphi 0, %s90
    %s108 = sphi 0, %s108
    %s110 = sphi 0, %s108
    %s111 = sphi 0, %s110
    %s125 = sphi 0, %s111
    %s131 = sphi 0, %s133
    %s134 = sphi 0, %s131
    %s135 = sphi 0, %s134
    %s151 = sphi 0, %s135
  $region4: #{global_net_forward.9} parent=0 // loop_header_branch
    %14 = sbr.rel (%p12) target = $region8
  $region5: #{global_net_forward.9} parent=0 // loop_body
    %s16 = ssub.s32 %s11, 1
    %s17 = ssub.s32 %s11, 2
    %s18 = sadd.s32 %s11, 1
    %s19 = ssub.s32 %s11, %s18
    %p20 = scmp.eq.s32.totalorder %s19, 0
    %s22 = sadd.s32 %s21, 1
    %s23 = scalar_select %p20, %s21, %s22
    %p26 = pneg %p20
    %p27 = scmp.eq.s32.totalorder %s11, 1
    %p28 = por %p26, %p27
    %p29 = scmp.ne.s32.totalorder %s21, %s24
    %p30 = scmp.eq.s32.totalorder %s11, 0
    %p31 = por %p29, %p30
    %p32 = scmp.ne.s32.totalorder %s21, %s24
    %p33 = scmp.eq.s32.totalorder %s16, 1
    %p34 = por %p32, %p33
    %p35 = scmp.ne.s32.totalorder %s24, %s25
    %p36 = scmp.eq.s32.totalorder %s16, 0
    %p37 = por %p35, %p36
    %p38 = scmp.ne.s32.totalorder %s24, %s25
    %p39 = scmp.eq.s32.totalorder %s17, 1
    %p40 = por %p38, %p39
    %p42 = scmp.ne.s32.totalorder %s25, %s41
    %p43 = scmp.eq.s32.totalorder %s17, 0
    %p44 = por %p42, %p43
    %s46 = sadd.s32 %s45, 1
    %p49 = scmp.eq.s32.totalorder %s11, 1
    %p50 = scmp.ne.s32.totalorder %s45, %s47
    %p51 = scmp.eq.s32.totalorder %s11, 0
    %p52 = por %p50, %p51
    %p53 = scmp.ne.s32.totalorder %s45, %s47
    %p54 = scmp.eq.s32.totalorder %s16, 1
    %p55 = por %p53, %p54
    %p56 = scmp.ne.s32.totalorder %s47, %s48
    %p57 = scmp.eq.s32.totalorder %s16, 0
    %p58 = por %p56, %p57
    %p59 = scmp.ne.s32.totalorder %s47, %s48
    %p60 = scmp.eq.s32.totalorder %s17, 1
    %p61 = por %p59, %p60
    %p63 = scmp.ne.s32.totalorder %s48, %s62
    %p64 = scmp.eq.s32.totalorder %s17, 0
    %p65 = por %p63, %p64
    %s67 = sadd.s32 %s66, 1
    %p70 = scmp.eq.s32.totalorder %s11, 1
    %p71 = scmp.ne.s32.totalorder %s66, %s68
    %p72 = scmp.eq.s32.totalorder %s11, 0
    %p73 = por %p71, %p72
    %p74 = scmp.ne.s32.totalorder %s66, %s68
    %p75 = scmp.eq.s32.totalorder %s16, 1
    %p76 = por %p74, %p75
    %p77 = scmp.ne.s32.totalorder %s68, %s69
    %p78 = scmp.eq.s32.totalorder %s16, 0
    %p79 = por %p77, %p78
    %p80 = scmp.ne.s32.totalorder %s68, %s69
    %p81 = scmp.eq.s32.totalorder %s17, 1
    %p82 = por %p80, %p81
    %p84 = scmp.ne.s32.totalorder %s69, %s83
    %p85 = scmp.eq.s32.totalorder %s17, 0
    %p86 = por %p84, %p85
    %s88 = sadd.s32 %s87, 1
    %p91 = scmp.eq.s32.totalorder %s11, 1
    %p92 = scmp.ne.s32.totalorder %s87, %s89
    %p93 = scmp.eq.s32.totalorder %s11, 0
    %p94 = por %p92, %p93
    %p95 = scmp.ne.s32.totalorder %s87, %s89
    %p96 = scmp.eq.s32.totalorder %s16, 1
    %p97 = por %p95, %p96
    %p98 = scmp.ne.s32.totalorder %s89, %s90
    %p99 = scmp.eq.s32.totalorder %s16, 0
    %p100 = por %p98, %p99
    %p101 = scmp.ne.s32.totalorder %s89, %s90
    %p102 = scmp.eq.s32.totalorder %s17, 1
    %p103 = por %p101, %p102
    %p105 = scmp.ne.s32.totalorder %s90, %s104
    %p106 = scmp.eq.s32.totalorder %s17, 0
    %p107 = por %p105, %p106
    %s109 = sadd.s32 %s108, 1
    %p112 = scmp.eq.s32.totalorder %s11, 1
    %p113 = scmp.ne.s32.totalorder %s108, %s110
    %p114 = scmp.eq.s32.totalorder %s11, 0
    %p115 = por %p113, %p114
    %p116 = scmp.ne.s32.totalorder %s108, %s110
    %p117 = scmp.eq.s32.totalorder %s16, 1
    %p118 = por %p116, %p117
    %p119 = scmp.ne.s32.totalorder %s110, %s111
    %p120 = scmp.eq.s32.totalorder %s16, 0
    %p121 = por %p119, %p120
    %p122 = scmp.ne.s32.totalorder %s110, %s111
    %p123 = scmp.eq.s32.totalorder %s17, 1
    %p124 = por %p122, %p123
    %p126 = scmp.ne.s32.totalorder %s111, %s125
    %p127 = scmp.eq.s32.totalorder %s17, 0
    %p128 = por %p126, %p127
    %s129 = ssub.s32 %s11, %s18
    %p130 = scmp.eq.s32.totalorder %s129, 0
    %s132 = sadd.s32 %s131, 1
    %s133 = scalar_select %p130, %s131, %s132
    %p136 = pneg %p130
    %p137 = scmp.eq.s32.totalorder %s11, 1
    %p138 = por %p136, %p137
    %p139 = scmp.ne.s32.totalorder %s131, %s134
    %p140 = scmp.eq.s32.totalorder %s11, 0
    %p141 = por %p139, %p140
    %p142 = scmp.ne.s32.totalorder %s131, %s134
    %p143 = scmp.eq.s32.totalorder %s16, 1
    %p144 = por %p142, %p143
    %p145 = scmp.ne.s32.totalorder %s134, %s135
    %p146 = scmp.eq.s32.totalorder %s16, 0
    %p147 = por %p145, %p146
    %p148 = scmp.ne.s32.totalorder %s134, %s135
    %p149 = scmp.eq.s32.totalorder %s17, 1
    %p150 = por %p148, %p149
    %p152 = scmp.ne.s32.totalorder %s135, %s151
    %p153 = scmp.eq.s32.totalorder %s17, 0
    %p154 = por %p152, %p153
    %p155 = scmp.le.s32.totalorder 1, %s11
    %p156 = scmp.lt.s32.totalorder %s11, 3
    %p157 = pnand %p155, %p156
    %p158 = pneg %p157
    // Predicated region
    $region9: #{global_net_forward.9} parent=5 // pred_check
      _
    $region10: #{global_net_forward.9} parent=5 // pred_check_branch
      %160 = sbr.rel (%p157) target = $region12
    $region11: #{global_net_forward.9} parent=5 // pred_region
      %s161 = ssub.s32 %s11, 1
      // Predicated region
      $region13: #{global_net_forward.9} parent=11 // pred_check
        %p162 = pneg %p58
      $region14: #{global_net_forward.9} parent=11 // pred_check_branch
        %164 = sbr.rel (%p162) target = $region16
      $region15: #{global_net_forward.9} parent=11 // pred_region
        _
      $region16: #{global_net_forward.9} parent=11 // pred_fallthru
        _
      // Predicated region
      $region17: #{global_net_forward.9} parent=11 // pred_check
        %p165 = pneg %p79
      $region18: #{global_net_forward.9} parent=11 // pred_check_branch
        %167 = sbr.rel (%p165) target = $region20
      $region19: #{global_net_forward.9} parent=11 // pred_region
        _
      $region20: #{global_net_forward.9} parent=11 // pred_fallthru
        _
      // Predicated region
      $region21: #{global_net_forward.9} parent=11 // pred_check
        %p168 = pneg %p100
      $region22: #{global_net_forward.9} parent=11 // pred_check_branch
        %170 = sbr.rel (%p168) target = $region24
      $region23: #{global_net_forward.9} parent=11 // pred_region
        _
      $region24: #{global_net_forward.9} parent=11 // pred_fallthru
        _
      // Predicated region
      $region25: #{global_net_forward.9} parent=11 // pred_check
        %p171 = pneg %p121
      $region26: #{global_net_forward.9} parent=11 // pred_check_branch
        %173 = sbr.rel (%p171) target = $region28
      $region27: #{global_net_forward.9} parent=11 // pred_region
        _
      $region28: #{global_net_forward.9} parent=11 // pred_fallthru
        _
    $region12: #{global_net_forward.9} parent=5 // pred_fallthru
      _
    %p174 = scmp.lt.s32.totalorder %s11, 2
    // Predicated region
    $region29: #{global_net_forward.9} parent=5 // pred_check
      %p175 = pneg %p174
    $region30: #{global_net_forward.9} parent=5 // pred_check_branch
      %177 = sbr.rel (%p175) target = $region32
    $region31: #{global_net_forward.9} parent=5 // pred_region
      // Predicated region
      $region33: #{global_net_forward.9} parent=31 // pred_check
        %p178 = pneg %p31
      $region34: #{global_net_forward.9} parent=31 // pred_check_branch
        %180 = sbr.rel (%p178) target = $region36
      $region35: #{global_net_forward.9} parent=31 // pred_region
        %p181 = scmp.lt.s32.totalorder %s11, 1
        %s182 = scalar_select %p181, %s11, 1
        %s183 = smul.addr %s182, 6
        %s184 = smul.addr %s183, 4
        %s185 = scalar_lea.vmem %s0, %s184
      $region36: #{global_net_forward.9} parent=31 // pred_fallthru
        _
    $region32: #{global_net_forward.9} parent=5 // pred_fallthru
      _
    %p186 = scmp.le.s32.totalorder 1, %s11
    %p187 = scmp.lt.s32.totalorder %s11, 3
    %p188 = pnand %p186, %p187
    %p189 = pneg %p188
    // Predicated region
    $region37: #{global_net_forward.9} parent=5 // pred_check
      _
    $region38: #{global_net_forward.9} parent=5 // pred_check_branch
      %191 = sbr.rel (%p188) target = $region40
    $region39: #{global_net_forward.9} parent=5 // pred_region
      %s192 = ssub.s32 %s11, 1
      %p193 = scmp.lt.s32.totalorder %s16, 1
      %s194 = scalar_select %p193, %s16, 1
      %s195 = smul.addr %s194, 6
      %s196 = smul.addr %s195, 4
      %s197 = scalar_lea.vmem %s0, %s196
      %p198 = pneg %p37
      %p199 = pneg %p34
      %p200 = pneg %p58
      %p201 = pneg %p55
      %p202 = pneg %p79
      %p203 = pneg %p76
      %p204 = pneg %p100
      %p205 = pneg %p97
      %p206 = pneg %p121
      %p207 = pneg %p118
      %p208 = pneg %p147
      %p209 = pneg %p144
      %p210 = scmp.lt.s32.totalorder %s16, 1
      %s211 = scalar_select %p210, %s16, 1
      %s212 = smul.addr %s211, 4
      %s213 = smul.addr %s212, 4
      %s214 = scalar_lea.vmem %s5, %s213
      %p215 = scmp.lt.s32.totalorder %s16, 1
      %s216 = scalar_select %p215, %s16, 1
      %s217 = smul.addr %s216, 6
      %s218 = smul.addr %s217, 4
      %s219 = scalar_lea.vmem %s0, %s218
      %p220 = scmp.lt.s32.totalorder %s16, 1
      %s221 = scalar_select %p220, %s16, 1
      %s222 = smul.addr %s221, 4
      %s223 = smul.addr %s222, 4
      %s224 = scalar_lea.vmem %s5, %s223
      %v226 = vld [vmem:[%s219] sm:$0x7]
      %v227 = vld [vmem:[%s219 + $0x4] sm:$0x7]
      %v228 = vld [vmem:[%s219 + $0x8] sm:$0x7]
      %v229 = vld [vmem:[%s219 + $0xc] sm:$0x7]
      %v230 = vld [vmem:[%s219 + $0x10] sm:$0x7]
      %v231 = vld [vmem:[%s219 + $0x14] sm:$0x7]
      %v232 = vld [vmem:[%s3] sm:$0x1]
      %v233 = vld [vmem:[%s4] sm:$0x1]
      %v234 = vunpack.c.l.bf16 %v226
      %v235 = vunpack.c.l.bf16 %v227
      %v236 = vunpack.c.l.bf16 %v228
      %v237 = vunpack.c.l.bf16 %v229
      %v238 = vunpack.c.l.bf16 %v230
      %v239 = vunpack.c.l.bf16 %v231
      %v241 = vlaneseq
      %v242 = vshrl.u32 %v241, 7
      %v243 = vsub.s32 0, %v242
      %v244 = vrot.slane %v232, %v243
      %v246 = vmul.f32 %v234, %v244
      %v247 = vmul.f32 %v235, %v244
      %v248 = vmul.f32 %v236, %v244
      %v249 = vmul.f32 %v237, %v244
      %v250 = vmul.f32 %v238, %v244
      %v251 = vmul.f32 %v239, %v244
      %v253 = vlaneseq
      %v254 = vshrl.u32 %v253, 7
      %v255 = vsub.s32 0, %v254
      %v256 = vrot.slane %v233, %v255
      %v258 = vadd.f32 %v246, %v256
      %v259 = vadd.f32 %v247, %v256
      %v260 = vadd.f32 %v248, %v256
      %v261 = vadd.f32 %v249, %v256
      %v262 = vadd.f32 %v250, %v256
      %v263 = vadd.f32 %v251, %v256
      %v264 = vmax.f32 %v258, 0.0
      %v265 = vmax.f32 %v259, 0.0
      %v266 = vmax.f32 %v260, 0.0
      %v267 = vmax.f32 %v261, 0.0
      %v268 = vmax.f32 %v262, 0.0
      %v269 = vmax.f32 %v263, 0.0
      %v270 = vlaneseq
      %v271 = vshrl.u32 %v270, 7
      %vm272 = vcmp.ge.s32.totalorder %v271, 1
      %vm273 = vmand 0, %vm272
      %vm274 = vmand 1, %vm272
      %vm275 = vcmp.lt.s32.totalorder %v271, 5
      %vm276 = vmand %vm273, %vm275
      %vm277 = vmand %vm274, %vm275
      %v278 = vsel %vm276, 1, 0
      %v279 = vsel %vm277, 1, 0
      %vm280 = vcmp.eq.s32.totalorder %v278, 1
      %vm281 = vcmp.eq.s32.totalorder %v279, 1
      %v282 = vsel %vm280, %v264, 0.0
      %v283 = vsel %vm281, %v265, 0.0
      %v284 = vsel %vm281, %v266, 0.0
      %v285 = vsel %vm281, %v267, 0.0
      %v286 = vsel %vm281, %v268, 0.0
      %v287 = vsel %vm280, %v269, 0.0
      %v288 = vpack.c.bf16 %v282, %v282
      %v289 = vpack.c.bf16 %v283, %v283
      %v290 = vpack.c.bf16 %v284, %v284
      %v291 = vpack.c.bf16 %v285, %v285
      %v292 = vpack.c.bf16 %v286, %v286
      %v293 = vpack.c.bf16 %v287, %v287
      %v298 = vcombine.low %v288, %v289
      %v299 = vcombine.low %v290, %v291
      %v301 = vunpack.c.l.s4 1983009808
      %v302 = vunpack.c.0.s8 %v301
      %v303 = vlaneseq
      %v304 = vshrl.u32 %v303, 7
      %v305 = vsub.s32 %v302, %v304
      %v306 = vrot.slane %v298, %v305
      %v308 = vunpack.c.l.s4 1983009808
      %v309 = vunpack.c.0.s8 %v308
      %v310 = vlaneseq
      %v311 = vshrl.u32 %v310, 7
      %v312 = vsub.s32 %v309, %v311
      %v313 = vrot.slane %v299, %v312
      %v314 = vcombine.low %v306, %v313
      %v317 = vcombine.low %v289, %v290
      %v318 = vcombine.low %v291, %v292
      %v320 = vunpack.c.l.s4 1983009808
      %v321 = vunpack.c.0.s8 %v320
      %v322 = vlaneseq
      %v323 = vshrl.u32 %v322, 7
      %v324 = vsub.s32 %v321, %v323
      %v325 = vrot.slane %v317, %v324
      %v327 = vunpack.c.l.s4 1983009808
      %v328 = vunpack.c.0.s8 %v327
      %v329 = vlaneseq
      %v330 = vshrl.u32 %v329, 7
      %v331 = vsub.s32 %v328, %v330
      %v332 = vrot.slane %v318, %v331
      %v333 = vcombine.low %v325, %v332
      %v336 = vcombine.low %v292, %v293
      %v338 = vunpack.c.l.s4 1983009808
      %v339 = vunpack.c.0.s8 %v338
      %v340 = vlaneseq
      %v341 = vshrl.u32 %v340, 7
      %v342 = vsub.s32 %v339, %v341
      %v343 = vrot.slane %v336, %v342
      %v344 = vcombine.low %v313, %v343
      %v346 = vld [vmem:[%s1] sm:$0xf]
      %v347 = vld [vmem:[%s1 + $0x4] sm:$0xf]
      %v348 = vld [vmem:[%s1 + $0x8] sm:$0xf]
      %v349 = vld [vmem:[%s1 + $0xc] sm:$0xf]
      %v350 = vld [vmem:[%s1 + $0x10] sm:$0xf]
      %v351 = vld [vmem:[%s1 + $0x14] sm:$0xf]
      %v352 = vld [vmem:[%s1 + $0x18] sm:$0xf]
      %v353 = vld [vmem:[%s1 + $0x1c] sm:$0xf]
      %v354 = vld [vmem:[%s1 + $0x20] sm:$0xf]
      %v355 = vld [vmem:[%s1 + $0x24] sm:$0xf]
      %v356 = vld [vmem:[%s1 + $0x28] sm:$0xf]
      %v357 = vld [vmem:[%s1 + $0x2c] sm:$0xf]
      %v358 = vld [vmem:[%s1 + $0x30] sm:$0xf]
      %v359 = vld [vmem:[%s1 + $0x34] sm:$0xf]
      %v360 = vld [vmem:[%s1 + $0x38] sm:$0xf]
      %v361 = vld [vmem:[%s1 + $0x3c] sm:$0xf]
      %v362 = vld [vmem:[%s1 + $0x40] sm:$0xf]
      %v363 = vld [vmem:[%s1 + $0x44] sm:$0xf]
      %v364 = vld [vmem:[%s1 + $0x48] sm:$0xf]
      %v365 = vld [vmem:[%s1 + $0x4c] sm:$0xf]
      %v366 = vld [vmem:[%s1 + $0x50] sm:$0xf]
      %v367 = vld [vmem:[%s1 + $0x54] sm:$0xf]
      %v368 = vld [vmem:[%s1 + $0x58] sm:$0xf]
      %v369 = vld [vmem:[%s1 + $0x5c] sm:$0xf]
      %v370 = vld [vmem:[%s1 + $0x60] sm:$0xf]
      %v371 = vld [vmem:[%s1 + $0x64] sm:$0xf]
      %v372 = vld [vmem:[%s1 + $0x68] sm:$0xf]
      %v373 = vld [vmem:[%s1 + $0x6c] sm:$0xf]
      %v374 = vld [vmem:[%s1 + $0x70] sm:$0xf]
      %v375 = vld [vmem:[%s1 + $0x74] sm:$0xf]
      %v376 = vld [vmem:[%s1 + $0x78] sm:$0xf]
      %v377 = vld [vmem:[%s1 + $0x7c] sm:$0xf]
      %v378 = vld [vmem:[%s1 + $0x80] sm:$0xf]
      %v379 = vld [vmem:[%s1 + $0x84] sm:$0xf]
      %v380 = vld [vmem:[%s1 + $0x88] sm:$0xf]
      %v381 = vld [vmem:[%s1 + $0x8c] sm:$0xf]
      %v382 = vld [vmem:[%s1 + $0x90] sm:$0xf]
      %v383 = vld [vmem:[%s1 + $0x94] sm:$0xf]
      %v384 = vld [vmem:[%s1 + $0x98] sm:$0xf]
      %v385 = vld [vmem:[%s1 + $0x9c] sm:$0xf]
      %v386 = vld [vmem:[%s1 + $0xa0] sm:$0xf]
      %v387 = vld [vmem:[%s1 + $0xa4] sm:$0xf]
      %v388 = vld [vmem:[%s1 + $0xa8] sm:$0xf]
      %v389 = vld [vmem:[%s1 + $0xac] sm:$0xf]
      %v390 = vld [vmem:[%s1 + $0xb0] sm:$0xf]
      %v391 = vld [vmem:[%s1 + $0xb4] sm:$0xf]
      %v392 = vld [vmem:[%s1 + $0xb8] sm:$0xf]
      %v393 = vld [vmem:[%s1 + $0xbc] sm:$0xf]
      %v395 = vunpack.c.l.s4 1983009808
      %v396 = vunpack.c.0.s8 %v395
      %v397 = vlaneseq
      %v398 = vshrl.u32 %v397, 7
      %v399 = vsub.s32 %v396, %v398
      %v400 = vrot.slane %v288, %v399
      %v401 = vcombine.high %v400, %v400
      %v403 = vunpack.c.l.s4 1983009808
      %v404 = vunpack.c.0.s8 %v403
      %v405 = vlaneseq
      %v406 = vshrl.u32 %v405, 7
      %v407 = vsub.s32 %v404, %v406
      %v408 = vrot.slane %v289, %v407
      %v409 = vcombine.high %v408, %v408
      %v411 = vunpack.c.l.s4 1983009808
      %v412 = vunpack.c.0.s8 %v411
      %v413 = vlaneseq
      %v414 = vshrl.u32 %v413, 7
      %v415 = vsub.s32 %v412, %v414
      %v416 = vrot.slane %v290, %v415
      %v417 = vcombine.high %v416, %v416
      %v419 = vunpack.c.l.s4 1983009808
      %v420 = vunpack.c.0.s8 %v419
      %v421 = vlaneseq
      %v422 = vshrl.u32 %v421, 7
      %v423 = vsub.s32 %v420, %v422
      %v424 = vrot.slane %v291, %v423
      %v425 = vcombine.high %v424, %v424
      %vm426 = vsmask.f32 1280
      %vm427 = vsmask.f32 3336
      %vm428 = vmor %vm426, %vm427
      %vm429 = vsmask.f32 5392
      %vm430 = vmor %vm428, %vm429
      %vm431 = vsmask.f32 7448
      %vm432 = vmor %vm430, %vm431
      %v434 = vshrl.u32 %v400, 16
      %v436 = vrot.slane %v434, 6
      %v437 = vshll.u32 %v400, 16
      %v439 = vrot.slane %v437, 7
      %v440 = vor.u32 %v436, %v439
      %v441 = vrot.slane %v440, 2
      %v443 = vshll.u32 %v401, 16
      %v445 = vrot.slane %v443, 7
      %v446 = vsel %vm432, %v441, %v445
      %v448 = vshrl.u32 %v408, 16
      %v450 = vrot.slane %v448, 6
      %v451 = vshll.u32 %v408, 16
      %v453 = vrot.slane %v451, 7
      %v454 = vor.u32 %v450, %v453
      %v455 = vrot.slane %v454, 2
      %v457 = vshll.u32 %v409, 16
      %v459 = vrot.slane %v457, 7
      %v460 = vsel %vm432, %v455, %v459
      %v462 = vshrl.u32 %v416, 16
      %v464 = vrot.slane %v462, 6
      %v465 = vshll.u32 %v416, 16
      %v467 = vrot.slane %v465, 7
      %v468 = vor.u32 %v464, %v467
      %v469 = vrot.slane %v468, 2
      %v471 = vshll.u32 %v417, 16
      %v473 = vrot.slane %v471, 7
      %v474 = vsel %vm432, %v469, %v473
      %v476 = vshrl.u32 %v424, 16
      %v478 = vrot.slane %v476, 6
      %v479 = vshll.u32 %v424, 16
      %v481 = vrot.slane %v479, 7
      %v482 = vor.u32 %v478, %v481
      %v483 = vrot.slane %v482, 2
      %v485 = vshll.u32 %v425, 16
      %v487 = vrot.slane %v485, 7
      %v488 = vsel %vm432, %v483, %v487
      %v490 = vunpack.c.l.s4 1983009808
      %v491 = vunpack.c.0.s8 %v490
      %v492 = vlaneseq
      %v493 = vshrl.u32 %v492, 7
      %v494 = vsub.s32 %v491, %v493
      %v495 = vrot.slane %v292, %v494
      %v496 = vcombine.high %v495, %v495
      %v498 = vshrl.u32 %v495, 16
      %v500 = vrot.slane %v498, 6
      %v501 = vshll.u32 %v495, 16
      %v503 = vrot.slane %v501, 7
      %v504 = vor.u32 %v500, %v503
      %v505 = vrot.slane %v504, 2
      %v507 = vshll.u32 %v496, 16
      %v509 = vrot.slane %v507, 7
      %v510 = vsel %vm432, %v505, %v509
      %v512 = vunpack.c.l.s4 1983009808
      %v513 = vunpack.c.0.s8 %v512
      %v514 = vlaneseq
      %v515 = vshrl.u32 %v514, 7
      %v516 = vsub.s32 %v513, %v515
      %v517 = vrot.slane %v293, %v516
      %v518 = vcombine.high %v517, %v517
      %v520 = vshrl.u32 %v517, 16
      %v522 = vrot.slane %v520, 6
      %v523 = vshll.u32 %v517, 16
      %v525 = vrot.slane %v523, 7
      %v526 = vor.u32 %v522, %v525
      %v527 = vrot.slane %v526, 2
      %v529 = vshll.u32 %v518, 16
      %v531 = vrot.slane %v529, 7
      %v532 = vsel %vm432, %v527, %v531
      %v533 = vcombine.low %v446, %v460
      %v534 = vcombine.low %v474, %v488
      %v536 = vunpack.c.l.s4 1983009808
      %v537 = vunpack.c.0.s8 %v536
      %v538 = vlaneseq
      %v539 = vshrl.u32 %v538, 7
      %v540 = vsub.s32 %v537, %v539
      %v541 = vrot.slane %v533, %v540
      %v543 = vunpack.c.l.s4 1983009808
      %v544 = vunpack.c.0.s8 %v543
      %v545 = vlaneseq
      %v546 = vshrl.u32 %v545, 7
      %v547 = vsub.s32 %v544, %v546
      %v548 = vrot.slane %v534, %v547
      %v549 = vcombine.low %v541, %v548
      %v551 = vcombine.low %v460, %v474
      %v552 = vcombine.low %v488, %v510
      %v554 = vunpack.c.l.s4 1983009808
      %v555 = vunpack.c.0.s8 %v554
      %v556 = vlaneseq
      %v557 = vshrl.u32 %v556, 7
      %v558 = vsub.s32 %v555, %v557
      %v559 = vrot.slane %v551, %v558
      %v561 = vunpack.c.l.s4 1983009808
      %v562 = vunpack.c.0.s8 %v561
      %v563 = vlaneseq
      %v564 = vshrl.u32 %v563, 7
      %v565 = vsub.s32 %v562, %v564
      %v566 = vrot.slane %v552, %v565
      %v567 = vcombine.low %v559, %v566
      %v569 = vcombine.low %v510, %v532
      %v571 = vunpack.c.l.s4 1983009808
      %v572 = vunpack.c.0.s8 %v571
      %v573 = vlaneseq
      %v574 = vshrl.u32 %v573, 7
      %v575 = vsub.s32 %v572, %v574
      %v576 = vrot.slane %v569, %v575
      %v577 = vcombine.low %v548, %v576
      %s579 = scalar_lea.vmem %s1, 192
      %v580 = vld [vmem:[%s579] sm:$0xf]
      %v581 = vld [vmem:[%s579 + $0x4] sm:$0xf]
      %v582 = vld [vmem:[%s579 + $0x8] sm:$0xf]
      %v583 = vld [vmem:[%s579 + $0xc] sm:$0xf]
      %v584 = vld [vmem:[%s579 + $0x10] sm:$0xf]
      %v585 = vld [vmem:[%s579 + $0x14] sm:$0xf]
      %v586 = vld [vmem:[%s579 + $0x18] sm:$0xf]
      %v587 = vld [vmem:[%s579 + $0x1c] sm:$0xf]
      %v588 = vld [vmem:[%s579 + $0x20] sm:$0xf]
      %v589 = vld [vmem:[%s579 + $0x24] sm:$0xf]
      %v590 = vld [vmem:[%s579 + $0x28] sm:$0xf]
      %v591 = vld [vmem:[%s579 + $0x2c] sm:$0xf]
      %v592 = vld [vmem:[%s579 + $0x30] sm:$0xf]
      %v593 = vld [vmem:[%s579 + $0x34] sm:$0xf]
      %v594 = vld [vmem:[%s579 + $0x38] sm:$0xf]
      %v595 = vld [vmem:[%s579 + $0x3c] sm:$0xf]
      %v596 = vld [vmem:[%s579 + $0x40] sm:$0xf]
      %v597 = vld [vmem:[%s579 + $0x44] sm:$0xf]
      %v598 = vld [vmem:[%s579 + $0x48] sm:$0xf]
      %v599 = vld [vmem:[%s579 + $0x4c] sm:$0xf]
      %v600 = vld [vmem:[%s579 + $0x50] sm:$0xf]
      %v601 = vld [vmem:[%s579 + $0x54] sm:$0xf]
      %v602 = vld [vmem:[%s579 + $0x58] sm:$0xf]
      %v603 = vld [vmem:[%s579 + $0x5c] sm:$0xf]
      %v604 = vld [vmem:[%s579 + $0x60] sm:$0xf]
      %v605 = vld [vmem:[%s579 + $0x64] sm:$0xf]
      %v606 = vld [vmem:[%s579 + $0x68] sm:$0xf]
      %v607 = vld [vmem:[%s579 + $0x6c] sm:$0xf]
      %v608 = vld [vmem:[%s579 + $0x70] sm:$0xf]
      %v609 = vld [vmem:[%s579 + $0x74] sm:$0xf]
      %v610 = vld [vmem:[%s579 + $0x78] sm:$0xf]
      %v611 = vld [vmem:[%s579 + $0x7c] sm:$0xf]
      %v612 = vld [vmem:[%s579 + $0x80] sm:$0xf]
      %v613 = vld [vmem:[%s579 + $0x84] sm:$0xf]
      %v614 = vld [vmem:[%s579 + $0x88] sm:$0xf]
      %v615 = vld [vmem:[%s579 + $0x8c] sm:$0xf]
      %v616 = vld [vmem:[%s579 + $0x90] sm:$0xf]
      %v617 = vld [vmem:[%s579 + $0x94] sm:$0xf]
      %v618 = vld [vmem:[%s579 + $0x98] sm:$0xf]
      %v619 = vld [vmem:[%s579 + $0x9c] sm:$0xf]
      %v620 = vld [vmem:[%s579 + $0xa0] sm:$0xf]
      %v621 = vld [vmem:[%s579 + $0xa4] sm:$0xf]
      %v622 = vld [vmem:[%s579 + $0xa8] sm:$0xf]
      %v623 = vld [vmem:[%s579 + $0xac] sm:$0xf]
      %v624 = vld [vmem:[%s579 + $0xb0] sm:$0xf]
      %v625 = vld [vmem:[%s579 + $0xb4] sm:$0xf]
      %v626 = vld [vmem:[%s579 + $0xb8] sm:$0xf]
      %v627 = vld [vmem:[%s579 + $0xbc] sm:$0xf]
      %v676 = vunpack.c.l.b16 %v580
      %v677 = vunpack.c.l.b16 %v581
      %v678 = vunpack.c.l.b16 %v582
      %v679 = vunpack.c.l.b16 %v583
      %v680 = vunpack.c.l.b16 %v584
      %v681 = vunpack.c.l.b16 %v585
      %v682 = vunpack.c.l.b16 %v586
      %v683 = vunpack.c.l.b16 %v587
      %v684 = vunpack.c.l.b16 %v588
      %v685 = vunpack.c.l.b16 %v589
      %v686 = vunpack.c.l.b16 %v590
      %v687 = vunpack.c.l.b16 %v591
      %v688 = vunpack.c.l.b16 %v592
      %v689 = vunpack.c.l.b16 %v593
      %v690 = vunpack.c.l.b16 %v594
      %v691 = vunpack.c.l.b16 %v595
      %v692 = vunpack.c.l.b16 %v596
      %v693 = vunpack.c.l.b16 %v597
      %v694 = vunpack.c.l.b16 %v598
      %v695 = vunpack.c.l.b16 %v599
      %v696 = vunpack.c.l.b16 %v600
      %v697 = vunpack.c.l.b16 %v601
      %v698 = vunpack.c.l.b16 %v602
      %v699 = vunpack.c.l.b16 %v603
      %v700 = vunpack.c.l.b16 %v604
      %v701 = vunpack.c.l.b16 %v605
      %v702 = vunpack.c.l.b16 %v606
      %v703 = vunpack.c.l.b16 %v607
      %v704 = vunpack.c.l.b16 %v608
      %v705 = vunpack.c.l.b16 %v609
      %v706 = vunpack.c.l.b16 %v610
      %v707 = vunpack.c.l.b16 %v611
      %v708 = vunpack.c.l.b16 %v612
      %v709 = vunpack.c.l.b16 %v613
      %v710 = vunpack.c.l.b16 %v614
      %v711 = vunpack.c.l.b16 %v615
      %v712 = vunpack.c.l.b16 %v616
      %v713 = vunpack.c.l.b16 %v617
      %v714 = vunpack.c.l.b16 %v618
      %v715 = vunpack.c.l.b16 %v619
      %v716 = vunpack.c.l.b16 %v620
      %v717 = vunpack.c.l.b16 %v621
      %v718 = vunpack.c.l.b16 %v622
      %v719 = vunpack.c.l.b16 %v623
      %v720 = vunpack.c.l.b16 %v624
      %v721 = vunpack.c.l.b16 %v625
      %v722 = vunpack.c.l.b16 %v626
      %v723 = vunpack.c.l.b16 %v627
      %v724 = vpack.c.b16 %v677, %v676
      %v725 = vpack.c.b16 %v679, %v678
      %v726 = vpack.c.b16 %v681, %v680
      %v727 = vpack.c.b16 %v683, %v682
      %v728 = vpack.c.b16 %v685, %v684
      %v729 = vpack.c.b16 %v687, %v686
      %v730 = vpack.c.b16 %v689, %v688
      %v731 = vpack.c.b16 %v691, %v690
      %v732 = vpack.c.b16 %v693, %v692
      %v733 = vpack.c.b16 %v695, %v694
      %v734 = vpack.c.b16 %v697, %v696
      %v735 = vpack.c.b16 %v699, %v698
      %v736 = vpack.c.b16 %v701, %v700
      %v737 = vpack.c.b16 %v703, %v702
      %v738 = vpack.c.b16 %v705, %v704
      %v739 = vpack.c.b16 %v707, %v706
      %v740 = vpack.c.b16 %v709, %v708
      %v741 = vpack.c.b16 %v711, %v710
      %v742 = vpack.c.b16 %v713, %v712
      %v743 = vpack.c.b16 %v715, %v714
      %v744 = vpack.c.b16 %v717, %v716
      %v745 = vpack.c.b16 %v719, %v718
      %v746 = vpack.c.b16 %v721, %v720
      %v747 = vpack.c.b16 %v723, %v722
      %772 = vmatprep.subr.bf16.mxu0 0
      %773 = vmatpush1.bf16.msra.mxu0 %v724
      %774 = vmatprep.subr.bf16.mxu0 0
      %775 = vmatpush1.bf16.msra.mxu0 %v725
      %776 = vmatprep.subr.bf16.mxu0 0
      %777 = vmatpush1.bf16.msra.mxu0 %v726
      %778 = vmatprep.subr.bf16.mxu0 0
      %779 = vmatpush1.bf16.msra.mxu0 %v727
      %780 = vmatprep.subr.bf16.mxu0 0
      %781 = vmatpush1.bf16.msra.mxu0 %v728
      %782 = vmatprep.subr.bf16.mxu0 0
      %783 = vmatpush1.bf16.msra.mxu0 %v729
      %784 = vmatprep.subr.bf16.mxu0 0
      %785 = vmatpush1.bf16.msra.mxu0 %v730
      %786 = vmatprep.subr.bf16.mxu0 0
      %787 = vmatpush1.bf16.msra.mxu0 %v731
      %788 = vmatprep.subr.bf16.mxu0 0
      %789 = vmatpush1.bf16.msra.mxu0 %v732
      %790 = vmatprep.subr.bf16.mxu0 0
      %791 = vmatpush1.bf16.msra.mxu0 %v733
      %792 = vmatprep.subr.bf16.mxu0 0
      %793 = vmatpush1.bf16.msra.mxu0 %v734
      %794 = vmatprep.subr.bf16.mxu0 0
      %795 = vmatpush1.bf16.msra.mxu0 %v735
      %796 = vmatprep.subr.bf16.mxu0 0
      %797 = vmatpush1.bf16.msra.mxu0 %v736
      %798 = vmatprep.subr.bf16.mxu0 0
      %799 = vmatpush1.bf16.msra.mxu0 %v737
      %800 = vmatprep.subr.bf16.mxu0 0
      %801 = vmatpush1.bf16.msra.mxu0 %v738
      %802 = vmatprep.subr.bf16.mxu0 0
      %803 = vmatpush1.bf16.msra.mxu0 %v739
      %804 = vmatprep.mubr.bf16.mxu0 %v567
      %805 = vmatmul.mubr.bf16.gmra.mrb[0].mxu0 %v549
      %v806 = vpop.f32.mrb[0].mxu0
      %v807 = vadd.f32 0.0, %v806
      %v808 = vpop.f32.mrb[0].mxu0
      %v809 = vpop.f32.mrb[0].mxu0
      %v810 = vadd.f32 0.0, %v809
      %v811 = vpop.f32.mrb[0].mxu0
      %812 = vdwg.mxu0
      %813 = vmatprep.subr.bf16.mxu0 0
      %814 = vmatpush1.bf16.msra.mxu0 %v740
      %815 = vmatprep.subr.bf16.mxu0 0
      %816 = vmatpush1.bf16.msra.mxu0 %v741
      %817 = vmatprep.subr.bf16.mxu0 0
      %818 = vmatpush1.bf16.msra.mxu0 %v742
      %819 = vmatprep.subr.bf16.mxu0 0
      %820 = vmatpush1.bf16.msra.mxu0 %v743
      %821 = vmatprep.subr.bf16.mxu0 0
      %822 = vmatpush1.bf16.msra.mxu0 %v744
      %823 = vmatprep.subr.bf16.mxu0 0
      %824 = vmatpush1.bf16.msra.mxu0 %v745
      %825 = vmatprep.subr.bf16.mxu0 0
      %826 = vmatpush1.bf16.msra.mxu0 %v746
      %827 = vmatprep.subr.bf16.mxu0 0
      %828 = vmatpush1.bf16.msra.mxu0 %v747
      %829 = vmatprep.subr.bf16.mxu0 0
      %830 = vmatpush1.bf16.msra.mxu0 0
      %831 = vmatprep.subr.bf16.mxu0 0
      %832 = vmatpush1.bf16.msra.mxu0 0
      %833 = vmatprep.subr.bf16.mxu0 0
      %834 = vmatpush1.bf16.msra.mxu0 0
      %835 = vmatprep.subr.bf16.mxu0 0
      %836 = vmatpush1.bf16.msra.mxu0 0
      %837 = vmatprep.subr.bf16.mxu0 0
      %838 = vmatpush1.bf16.msra.mxu0 0
      %839 = vmatprep.subr.bf16.mxu0 0
      %840 = vmatpush1.bf16.msra.mxu0 0
      %841 = vmatprep.subr.bf16.mxu0 0
      %842 = vmatpush1.bf16.msra.mxu0 0
      %843 = vmatprep.subr.bf16.mxu0 0
      %844 = vmatpush1.bf16.msra.mxu0 0
      %845 = vmatprep.mubr.bf16.mxu0 0
      %846 = vmatmul.mubr.bf16.gmra.mrb[0].mxu0 %v577
      %v847 = vpop.f32.mrb[0].mxu0
      %v848 = vadd.f32 %v807, %v847
      %v849 = vpop.f32.mrb[0].mxu0
      %v850 = vpop.f32.mrb[0].mxu0
      %v851 = vadd.f32 %v810, %v850
      %v852 = vpop.f32.mrb[0].mxu0
      %853 = vdwg.mxu0
      %v902 = vunpack.c.l.b16 %v346
      %v903 = vunpack.c.l.b16 %v347
      %v904 = vunpack.c.l.b16 %v348
      %v905 = vunpack.c.l.b16 %v349
      %v906 = vunpack.c.l.b16 %v350
      %v907 = vunpack.c.l.b16 %v351
      %v908 = vunpack.c.l.b16 %v352
      %v909 = vunpack.c.l.b16 %v353
      %v910 = vunpack.c.l.b16 %v354
      %v911 = vunpack.c.l.b16 %v355
      %v912 = vunpack.c.l.b16 %v356
      %v913 = vunpack.c.l.b16 %v357
      %v914 = vunpack.c.l.b16 %v358
      %v915 = vunpack.c.l.b16 %v359
      %v916 = vunpack.c.l.b16 %v360
      %v917 = vunpack.c.l.b16 %v361
      %v918 = vunpack.c.l.b16 %v362
      %v919 = vunpack.c.l.b16 %v363
      %v920 = vunpack.c.l.b16 %v364
      %v921 = vunpack.c.l.b16 %v365
      %v922 = vunpack.c.l.b16 %v366
      %v923 = vunpack.c.l.b16 %v367
      %v924 = vunpack.c.l.b16 %v368
      %v925 = vunpack.c.l.b16 %v369
      %v926 = vunpack.c.l.b16 %v370
      %v927 = vunpack.c.l.b16 %v371
      %v928 = vunpack.c.l.b16 %v372
      %v929 = vunpack.c.l.b16 %v373
      %v930 = vunpack.c.l.b16 %v374
      %v931 = vunpack.c.l.b16 %v375
      %v932 = vunpack.c.l.b16 %v376
      %v933 = vunpack.c.l.b16 %v377
      %v934 = vunpack.c.l.b16 %v378
      %v935 = vunpack.c.l.b16 %v379
      %v936 = vunpack.c.l.b16 %v380
      %v937 = vunpack.c.l.b16 %v381
      %v938 = vunpack.c.l.b16 %v382
      %v939 = vunpack.c.l.b16 %v383
      %v940 = vunpack.c.l.b16 %v384
      %v941 = vunpack.c.l.b16 %v385
      %v942 = vunpack.c.l.b16 %v386
      %v943 = vunpack.c.l.b16 %v387
      %v944 = vunpack.c.l.b16 %v388
      %v945 = vunpack.c.l.b16 %v389
      %v946 = vunpack.c.l.b16 %v390
      %v947 = vunpack.c.l.b16 %v391
      %v948 = vunpack.c.l.b16 %v392
      %v949 = vunpack.c.l.b16 %v393
      %v950 = vpack.c.b16 %v903, %v902
      %v951 = vpack.c.b16 %v905, %v904
      %v952 = vpack.c.b16 %v907, %v906
      %v953 = vpack.c.b16 %v909, %v908
      %v954 = vpack.c.b16 %v911, %v910
      %v955 = vpack.c.b16 %v913, %v912
      %v956 = vpack.c.b16 %v915, %v914
      %v957 = vpack.c.b16 %v917, %v916
      %v958 = vpack.c.b16 %v919, %v918
      %v959 = vpack.c.b16 %v921, %v920
      %v960 = vpack.c.b16 %v923, %v922
      %v961 = vpack.c.b16 %v925, %v924
      %v962 = vpack.c.b16 %v927, %v926
      %v963 = vpack.c.b16 %v929, %v928
      %v964 = vpack.c.b16 %v931, %v930
      %v965 = vpack.c.b16 %v933, %v932
      %v966 = vpack.c.b16 %v935, %v934
      %v967 = vpack.c.b16 %v937, %v936
      %v968 = vpack.c.b16 %v939, %v938
      %v969 = vpack.c.b16 %v941, %v940
      %v970 = vpack.c.b16 %v943, %v942
      %v971 = vpack.c.b16 %v945, %v944
      %v972 = vpack.c.b16 %v947, %v946
      %v973 = vpack.c.b16 %v949, %v948
      %998 = vmatprep.subr.bf16.mxu0 0
      %999 = vmatpush1.bf16.msra.mxu0 %v950
      %1000 = vmatprep.subr.bf16.mxu0 0
      %1001 = vmatpush1.bf16.msra.mxu0 %v951
      %1002 = vmatprep.subr.bf16.mxu0 0
      %1003 = vmatpush1.bf16.msra.mxu0 %v952
      %1004 = vmatprep.subr.bf16.mxu0 0
      %1005 = vmatpush1.bf16.msra.mxu0 %v953
      %1006 = vmatprep.subr.bf16.mxu0 0
      %1007 = vmatpush1.bf16.msra.mxu0 %v954
      %1008 = vmatprep.subr.bf16.mxu0 0
      %1009 = vmatpush1.bf16.msra.mxu0 %v955
      %1010 = vmatprep.subr.bf16.mxu0 0
      %1011 = vmatpush1.bf16.msra.mxu0 %v956
      %1012 = vmatprep.subr.bf16.mxu0 0
      %1013 = vmatpush1.bf16.msra.mxu0 %v957
      %1014 = vmatprep.subr.bf16.mxu0 0
      %1015 = vmatpush1.bf16.msra.mxu0 %v958
      %1016 = vmatprep.subr.bf16.mxu0 0
      %1017 = vmatpush1.bf16.msra.mxu0 %v959
      %1018 = vmatprep.subr.bf16.mxu0 0
      %1019 = vmatpush1.bf16.msra.mxu0 %v960
      %1020 = vmatprep.subr.bf16.mxu0 0
      %1021 = vmatpush1.bf16.msra.mxu0 %v961
      %1022 = vmatprep.subr.bf16.mxu0 0
      %1023 = vmatpush1.bf16.msra.mxu0 %v962
      %1024 = vmatprep.subr.bf16.mxu0 0
      %1025 = vmatpush1.bf16.msra.mxu0 %v963
      %1026 = vmatprep.subr.bf16.mxu0 0
      %1027 = vmatpush1.bf16.msra.mxu0 %v964
      %1028 = vmatprep.subr.bf16.mxu0 0
      %1029 = vmatpush1.bf16.msra.mxu0 %v965
      %1030 = vmatprep.mubr.bf16.mxu0 %v333
      %1031 = vmatmul.mubr.bf16.gmra.mrb[0].mxu0 %v314
      %v1032 = vpop.f32.mrb[0].mxu0
      %v1033 = vadd.f32 %v848, %v1032
      %v1034 = vpop.f32.mrb[0].mxu0
      %v1035 = vpop.f32.mrb[0].mxu0
      %v1036 = vadd.f32 %v851, %v1035
      %v1037 = vpop.f32.mrb[0].mxu0
      %1038 = vdwg.mxu0
      %1039 = vmatprep.subr.bf16.mxu0 0
      %1040 = vmatpush1.bf16.msra.mxu0 %v966
      %1041 = vmatprep.subr.bf16.mxu0 0
      %1042 = vmatpush1.bf16.msra.mxu0 %v967
      %1043 = vmatprep.subr.bf16.mxu0 0
      %1044 = vmatpush1.bf16.msra.mxu0 %v968
      %1045 = vmatprep.subr.bf16.mxu0 0
      %1046 = vmatpush1.bf16.msra.mxu0 %v969
      %1047 = vmatprep.subr.bf16.mxu0 0
      %1048 = vmatpush1.bf16.msra.mxu0 %v970
      %1049 = vmatprep.subr.bf16.mxu0 0
      %1050 = vmatpush1.bf16.msra.mxu0 %v971
      %1051 = vmatprep.subr.bf16.mxu0 0
      %1052 = vmatpush1.bf16.msra.mxu0 %v972
      %1053 = vmatprep.subr.bf16.mxu0 0
      %1054 = vmatpush1.bf16.msra.mxu0 %v973
      %1055 = vmatprep.subr.bf16.mxu0 0
      %1056 = vmatpush1.bf16.msra.mxu0 0
      %1057 = vmatprep.subr.bf16.mxu0 0
      %1058 = vmatpush1.bf16.msra.mxu0 0
      %1059 = vmatprep.subr.bf16.mxu0 0
      %1060 = vmatpush1.bf16.msra.mxu0 0
      %1061 = vmatprep.subr.bf16.mxu0 0
      %1062 = vmatpush1.bf16.msra.mxu0 0
      %1063 = vmatprep.subr.bf16.mxu0 0
      %1064 = vmatpush1.bf16.msra.mxu0 0
      %1065 = vmatprep.subr.bf16.mxu0 0
      %1066 = vmatpush1.bf16.msra.mxu0 0
      %1067 = vmatprep.subr.bf16.mxu0 0
      %1068 = vmatpush1.bf16.msra.mxu0 0
      %1069 = vmatprep.subr.bf16.mxu0 0
      %1070 = vmatpush1.bf16.msra.mxu0 0
      %1071 = vmatprep.mubr.bf16.mxu0 0
      %1072 = vmatmul.mubr.bf16.gmra.mrb[0].mxu0 %v344
      %v1073 = vpop.f32.mrb[0].mxu0
      %v1074 = vadd.f32 %v1033, %v1073
      %v1075 = vpop.f32.mrb[0].mxu0
      %v1076 = vpop.f32.mrb[0].mxu0
      %v1077 = vadd.f32 %v1036, %v1076
      %v1078 = vpop.f32.mrb[0].mxu0
      %1079 = vdwg.mxu0
      %vm1080 = vcmask 1040384
      %vm1081 = vcmask 1042434
      %vm1082 = vmor %vm1080, %vm1081
      %vm1083 = vcmask 1044484
      %vm1084 = vmor %vm1082, %vm1083
      %vm1085 = vcmask 1046534
      %vm1086 = vmor %vm1084, %vm1085
      %v1087 = vrot.slane %v400, 7
      %v1088 = vrot.slane %v1087, 2
      %v1089 = vrot.slane %v401, 7
      %v1090 = vsel %vm1086, %v1088, %v1089
      %v1091 = vrot.slane %v408, 7
      %v1092 = vrot.slane %v1091, 2
      %v1093 = vrot.slane %v409, 7
      %v1094 = vsel %vm1086, %v1092, %v1093
      %v1095 = vrot.slane %v416, 7
      %v1096 = vrot.slane %v1095, 2
      %v1097 = vrot.slane %v417, 7
      %v1098 = vsel %vm1086, %v1096, %v1097
      %v1099 = vrot.slane %v424, 7
      %v1100 = vrot.slane %v1099, 2
      %v1101 = vrot.slane %v425, 7
      %v1102 = vsel %vm1086, %v1100, %v1101
      %v1103 = vrot.slane %v495, 7
      %v1104 = vrot.slane %v1103, 2
      %v1105 = vrot.slane %v496, 7
      %v1106 = vsel %vm1086, %v1104, %v1105
      %v1107 = vrot.slane %v517, 7
      %v1108 = vrot.slane %v1107, 2
      %v1109 = vrot.slane %v518, 7
      %v1110 = vsel %vm1086, %v1108, %v1109
      %v1111 = vcombine.low %v1090, %v1094
      %v1112 = vcombine.low %v1098, %v1102
      %v1114 = vunpack.c.l.s4 1983009808
      %v1115 = vunpack.c.0.s8 %v1114
      %v1116 = vlaneseq
      %v1117 = vshrl.u32 %v1116, 7
      %v1118 = vsub.s32 %v1115, %v1117
      %v1119 = vrot.slane %v1111, %v1118
      %v1121 = vunpack.c.l.s4 1983009808
      %v1122 = vunpack.c.0.s8 %v1121
      %v1123 = vlaneseq
      %v1124 = vshrl.u32 %v1123, 7
      %v1125 = vsub.s32 %v1122, %v1124
      %v1126 = vrot.slane %v1112, %v1125
      %v1127 = vcombine.low %v1119, %v1126
      %v1129 = vcombine.low %v1094, %v1098
      %v1130 = vcombine.low %v1102, %v1106
      %v1132 = vunpack.c.l.s4 1983009808
      %v1133 = vunpack.c.0.s8 %v1132
      %v1134 = vlaneseq
      %v1135 = vshrl.u32 %v1134, 7
      %v1136 = vsub.s32 %v1133, %v1135
      %v1137 = vrot.slane %v1129, %v1136
      %v1139 = vunpack.c.l.s4 1983009808
      %v1140 = vunpack.c.0.s8 %v1139
      %v1141 = vlaneseq
      %v1142 = vshrl.u32 %v1141, 7
      %v1143 = vsub.s32 %v1140, %v1142
      %v1144 = vrot.slane %v1130, %v1143
      %v1145 = vcombine.low %v1137, %v1144
      %v1147 = vcombine.low %v1106, %v1110
      %v1149 = vunpack.c.l.s4 1983009808
      %v1150 = vunpack.c.0.s8 %v1149
      %v1151 = vlaneseq
      %v1152 = vshrl.u32 %v1151, 7
      %v1153 = vsub.s32 %v1150, %v1152
      %v1154 = vrot.slane %v1147, %v1153
      %v1155 = vcombine.low %v1126, %v1154
      %s1157 = scalar_lea.vmem %s1, 384
      %v1158 = vld [vmem:[%s1157] sm:$0xf]
      %v1159 = vld [vmem:[%s1157 + $0x4] sm:$0xf]
      %v1160 = vld [vmem:[%s1157 + $0x8] sm:$0xf]
      %v1161 = vld [vmem:[%s1157 + $0xc] sm:$0xf]
      %v1162 = vld [vmem:[%s1157 + $0x10] sm:$0xf]
      %v1163 = vld [vmem:[%s1157 + $0x14] sm:$0xf]
      %v1164 = vld [vmem:[%s1157 + $0x18] sm:$0xf]
      %v1165 = vld [vmem:[%s1157 + $0x1c] sm:$0xf]
      %v1166 = vld [vmem:[%s1157 + $0x20] sm:$0xf]
      %v1167 = vld [vmem:[%s1157 + $0x24] sm:$0xf]
      %v1168 = vld [vmem:[%s1157 + $0x28] sm:$0xf]
      %v1169 = vld [vmem:[%s1157 + $0x2c] sm:$0xf]
      %v1170 = vld [vmem:[%s1157 + $0x30] sm:$0xf]
      %v1171 = vld [vmem:[%s1157 + $0x34] sm:$0xf]
      %v1172 = vld [vmem:[%s1157 + $0x38] sm:$0xf]
      %v1173 = vld [vmem:[%s1157 + $0x3c] sm:$0xf]
      %v1174 = vld [vmem:[%s1157 + $0x40] sm:$0xf]
      %v1175 = vld [vmem:[%s1157 + $0x44] sm:$0xf]
      %v1176 = vld [vmem:[%s1157 + $0x48] sm:$0xf]
      %v1177 = vld [vmem:[%s1157 + $0x4c] sm:$0xf]
      %v1178 = vld [vmem:[%s1157 + $0x50] sm:$0xf]
      %v1179 = vld [vmem:[%s1157 + $0x54] sm:$0xf]
      %v1180 = vld [vmem:[%s1157 + $0x58] sm:$0xf]
      %v1181 = vld [vmem:[%s1157 + $0x5c] sm:$0xf]
      %v1182 = vld [vmem:[%s1157 + $0x60] sm:$0xf]
      %v1183 = vld [vmem:[%s1157 + $0x64] sm:$0xf]
      %v1184 = vld [vmem:[%s1157 + $0x68] sm:$0xf]
      %v1185 = vld [vmem:[%s1157 + $0x6c] sm:$0xf]
      %v1186 = vld [vmem:[%s1157 + $0x70] sm:$0xf]
      %v1187 = vld [vmem:[%s1157 + $0x74] sm:$0xf]
      %v1188 = vld [vmem:[%s1157 + $0x78] sm:$0xf]
      %v1189 = vld [vmem:[%s1157 + $0x7c] sm:$0xf]
      %v1190 = vld [vmem:[%s1157 + $0x80] sm:$0xf]
      %v1191 = vld [vmem:[%s1157 + $0x84] sm:$0xf]
      %v1192 = vld [vmem:[%s1157 + $0x88] sm:$0xf]
      %v1193 = vld [vmem:[%s1157 + $0x8c] sm:$0xf]
      %v1194 = vld [vmem:[%s1157 + $0x90] sm:$0xf]
      %v1195 = vld [vmem:[%s1157 + $0x94] sm:$0xf]
      %v1196 = vld [vmem:[%s1157 + $0x98] sm:$0xf]
      %v1197 = vld [vmem:[%s1157 + $0x9c] sm:$0xf]
      %v1198 = vld [vmem:[%s1157 + $0xa0] sm:$0xf]
      %v1199 = vld [vmem:[%s1157 + $0xa4] sm:$0xf]
      %v1200 = vld [vmem:[%s1157 + $0xa8] sm:$0xf]
      %v1201 = vld [vmem:[%s1157 + $0xac] sm:$0xf]
      %v1202 = vld [vmem:[%s1157 + $0xb0] sm:$0xf]
      %v1203 = vld [vmem:[%s1157 + $0xb4] sm:$0xf]
      %v1204 = vld [vmem:[%s1157 + $0xb8] sm:$0xf]
      %v1205 = vld [vmem:[%s1157 + $0xbc] sm:$0xf]
      %v1254 = vunpack.c.l.b16 %v1158
      %v1255 = vunpack.c.l.b16 %v1159
      %v1256 = vunpack.c.l.b16 %v1160
      %v1257 = vunpack.c.l.b16 %v1161
      %v1258 = vunpack.c.l.b16 %v1162
      %v1259 = vunpack.c.l.b16 %v1163
      %v1260 = vunpack.c.l.b16 %v1164
      %v1261 = vunpack.c.l.b16 %v1165
      %v1262 = vunpack.c.l.b16 %v1166
      %v1263 = vunpack.c.l.b16 %v1167
      %v1264 = vunpack.c.l.b16 %v1168
      %v1265 = vunpack.c.l.b16 %v1169
      %v1266 = vunpack.c.l.b16 %v1170
      %v1267 = vunpack.c.l.b16 %v1171
      %v1268 = vunpack.c.l.b16 %v1172
      %v1269 = vunpack.c.l.b16 %v1173
      %v1270 = vunpack.c.l.b16 %v1174
      %v1271 = vunpack.c.l.b16 %v1175
      %v1272 = vunpack.c.l.b16 %v1176
      %v1273 = vunpack.c.l.b16 %v1177
      %v1274 = vunpack.c.l.b16 %v1178
      %v1275 = vunpack.c.l.b16 %v1179
      %v1276 = vunpack.c.l.b16 %v1180
      %v1277 = vunpack.c.l.b16 %v1181
      %v1278 = vunpack.c.l.b16 %v1182
      %v1279 = vunpack.c.l.b16 %v1183
      %v1280 = vunpack.c.l.b16 %v1184
      %v1281 = vunpack.c.l.b16 %v1185
      %v1282 = vunpack.c.l.b16 %v1186
      %v1283 = vunpack.c.l.b16 %v1187
      %v1284 = vunpack.c.l.b16 %v1188
      %v1285 = vunpack.c.l.b16 %v1189
      %v1286 = vunpack.c.l.b16 %v1190
      %v1287 = vunpack.c.l.b16 %v1191
      %v1288 = vunpack.c.l.b16 %v1192
      %v1289 = vunpack.c.l.b16 %v1193
      %v1290 = vunpack.c.l.b16 %v1194
      %v1291 = vunpack.c.l.b16 %v1195
      %v1292 = vunpack.c.l.b16 %v1196
      %v1293 = vunpack.c.l.b16 %v1197
      %v1294 = vunpack.c.l.b16 %v1198
      %v1295 = vunpack.c.l.b16 %v1199
      %v1296 = vunpack.c.l.b16 %v1200
      %v1297 = vunpack.c.l.b16 %v1201
      %v1298 = vunpack.c.l.b16 %v1202
      %v1299 = vunpack.c.l.b16 %v1203
      %v1300 = vunpack.c.l.b16 %v1204
      %v1301 = vunpack.c.l.b16 %v1205
      %v1302 = vpack.c.b16 %v1255, %v1254
      %v1303 = vpack.c.b16 %v1257, %v1256
      %v1304 = vpack.c.b16 %v1259, %v1258
      %v1305 = vpack.c.b16 %v1261, %v1260
      %v1306 = vpack.c.b16 %v1263, %v1262
      %v1307 = vpack.c.b16 %v1265, %v1264
      %v1308 = vpack.c.b16 %v1267, %v1266
      %v1309 = vpack.c.b16 %v1269, %v1268
      %v1310 = vpack.c.b16 %v1271, %v1270
      %v1311 = vpack.c.b16 %v1273, %v1272
      %v1312 = vpack.c.b16 %v1275, %v1274
      %v1313 = vpack.c.b16 %v1277, %v1276
      %v1314 = vpack.c.b16 %v1279, %v1278
      %v1315 = vpack.c.b16 %v1281, %v1280
      %v1316 = vpack.c.b16 %v1283, %v1282
      %v1317 = vpack.c.b16 %v1285, %v1284
      %v1318 = vpack.c.b16 %v1287, %v1286
      %v1319 = vpack.c.b16 %v1289, %v1288
      %v1320 = vpack.c.b16 %v1291, %v1290
      %v1321 = vpack.c.b16 %v1293, %v1292
      %v1322 = vpack.c.b16 %v1295, %v1294
      %v1323 = vpack.c.b16 %v1297, %v1296
      %v1324 = vpack.c.b16 %v1299, %v1298
      %v1325 = vpack.c.b16 %v1301, %v1300
      %1350 = vmatprep.subr.bf16.mxu0 0
      %1351 = vmatpush1.bf16.msra.mxu0 %v1302
      %1352 = vmatprep.subr.bf16.mxu0 0
      %1353 = vmatpush1.bf16.msra.mxu0 %v1303
      %1354 = vmatprep.subr.bf16.mxu0 0
      %1355 = vmatpush1.bf16.msra.mxu0 %v1304
      %1356 = vmatprep.subr.bf16.mxu0 0
      %1357 = vmatpush1.bf16.msra.mxu0 %v1305
      %1358 = vmatprep.subr.bf16.mxu0 0
      %1359 = vmatpush1.bf16.msra.mxu0 %v1306
      %1360 = vmatprep.subr.bf16.mxu0 0
      %1361 = vmatpush1.bf16.msra.mxu0 %v1307
      %1362 = vmatprep.subr.bf16.mxu0 0
      %1363 = vmatpush1.bf16.msra.mxu0 %v1308
      %1364 = vmatprep.subr.bf16.mxu0 0
      %1365 = vmatpush1.bf16.msra.mxu0 %v1309
      %1366 = vmatprep.subr.bf16.mxu0 0
      %1367 = vmatpush1.bf16.msra.mxu0 %v1310
      %1368 = vmatprep.subr.bf16.mxu0 0
      %1369 = vmatpush1.bf16.msra.mxu0 %v1311
      %1370 = vmatprep.subr.bf16.mxu0 0
      %1371 = vmatpush1.bf16.msra.mxu0 %v1312
      %1372 = vmatprep.subr.bf16.mxu0 0
      %1373 = vmatpush1.bf16.msra.mxu0 %v1313
      %1374 = vmatprep.subr.bf16.mxu0 0
      %1375 = vmatpush1.bf16.msra.mxu0 %v1314
      %1376 = vmatprep.subr.bf16.mxu0 0
      %1377 = vmatpush1.bf16.msra.mxu0 %v1315
      %1378 = vmatprep.subr.bf16.mxu0 0
      %1379 = vmatpush1.bf16.msra.mxu0 %v1316
      %1380 = vmatprep.subr.bf16.mxu0 0
      %1381 = vmatpush1.bf16.msra.mxu0 %v1317
      %1382 = vmatprep.mubr.bf16.mxu0 %v1145
      %1383 = vmatmul.mubr.bf16.gmra.mrb[0].mxu0 %v1127
      %v1384 = vpop.f32.mrb[0].mxu0
      %v1385 = vadd.f32 0.0, %v1384
      %v1386 = vpop.f32.mrb[0].mxu0
      %v1387 = vpop.f32.mrb[0].mxu0
      %v1388 = vadd.f32 0.0, %v1387
      %v1389 = vpop.f32.mrb[0].mxu0
      %1390 = vdwg.mxu0
      %1391 = vmatprep.subr.bf16.mxu0 0
      %1392 = vmatpush1.bf16.msra.mxu0 %v1318
      %1393 = vmatprep.subr.bf16.mxu0 0
      %1394 = vmatpush1.bf16.msra.mxu0 %v1319
      %1395 = vmatprep.subr.bf16.mxu0 0
      %1396 = vmatpush1.bf16.msra.mxu0 %v1320
      %1397 = vmatprep.subr.bf16.mxu0 0
      %1398 = vmatpush1.bf16.msra.mxu0 %v1321
      %1399 = vmatprep.subr.bf16.mxu0 0
      %1400 = vmatpush1.bf16.msra.mxu0 %v1322
      %1401 = vmatprep.subr.bf16.mxu0 0
      %1402 = vmatpush1.bf16.msra.mxu0 %v1323
      %1403 = vmatprep.subr.bf16.mxu0 0
      %1404 = vmatpush1.bf16.msra.mxu0 %v1324
      %1405 = vmatprep.subr.bf16.mxu0 0
      %1406 = vmatpush1.bf16.msra.mxu0 %v1325
      %1407 = vmatprep.subr.bf16.mxu0 0
      %1408 = vmatpush1.bf16.msra.mxu0 0
      %1409 = vmatprep.subr.bf16.mxu0 0
      %1410 = vmatpush1.bf16.msra.mxu0 0
      %1411 = vmatprep.subr.bf16.mxu0 0
      %1412 = vmatpush1.bf16.msra.mxu0 0
      %1413 = vmatprep.subr.bf16.mxu0 0
      %1414 = vmatpush1.bf16.msra.mxu0 0
      %1415 = vmatprep.subr.bf16.mxu0 0
      %1416 = vmatpush1.bf16.msra.mxu0 0
      %1417 = vmatprep.subr.bf16.mxu0 0
      %1418 = vmatpush1.bf16.msra.mxu0 0
      %1419 = vmatprep.subr.bf16.mxu0 0
      %1420 = vmatpush1.bf16.msra.mxu0 0
      %1421 = vmatprep.subr.bf16.mxu0 0
      %1422 = vmatpush1.bf16.msra.mxu0 0
      %1423 = vmatprep.mubr.bf16.mxu0 0
      %1424 = vmatmul.mubr.bf16.gmra.mrb[0].mxu0 %v1155
      %v1425 = vpop.f32.mrb[0].mxu0
      %v1426 = vadd.f32 %v1385, %v1425
      %v1427 = vpop.f32.mrb[0].mxu0
      %v1428 = vpop.f32.mrb[0].mxu0
      %v1429 = vadd.f32 %v1388, %v1428
      %v1430 = vpop.f32.mrb[0].mxu0
      %1431 = vdwg.mxu0
      %v1432 = vadd.f32 %v1074, %v1426
      %v1433 = vadd.f32 %v1077, %v1429
      %v1434 = vld [vmem:[%s2] sm:$0x1]
      %v1436 = vlaneseq
      %v1437 = vshrl.u32 %v1436, 7
      %v1438 = vsub.s32 0, %v1437
      %v1439 = vrot.slane %v1434, %v1438
      %v1441 = vadd.f32 %v1432, %v1439
      %v1442 = vadd.f32 %v1433, %v1439
      %v1443 = vxor.u32 %v1441, 2147483648
      %v1444 = vxor.u32 %v1442, 2147483648
      %v1445 = vmul.f32 %v1443, 1.442695
      %v1446 = vpow.pop %v1445
      %v1447 = vmul.f32 %v1444, 1.442695
      %v1448 = vpow.pop %v1447
      %v1449 = vadd.f32 %v1446, 1.0
      %v1450 = vadd.f32 %v1448, 1.0
      %v1451 = vrcp.pop %v1449
      %v1452 = vmul.f32 1.0, %v1451
      %v1453 = vrcp.pop %v1450
      %v1454 = vmul.f32 1.0, %v1453
      %v1457 = vcombine.high %v1452, %v1452
      %v1458 = vcombine.high %v1454, %v1454
      %1461 = vst [vmem:[%s224] sm:$0xf] %v1452
      %1462 = vst [vmem:[%s224 + $0x4] sm:$0xf] %v1457
      %1463 = vst [vmem:[%s224 + $0x8] sm:$0xf] %v1454
      %1464 = vst [vmem:[%s224 + $0xc] sm:$0xf] %v1458
      %p1465 = scmp.lt.s32.totalorder %s16, 1
      %s1466 = scalar_select %p1465, %s16, 1
      %s1467 = smul.addr %s1466, 4
      %s1468 = smul.addr %s1467, 4
      %s1469 = scalar_lea.vmem %s5, %s1468
      // Predicated region
      $region41: #{global_net_forward.9} parent=39 // pred_check
        %p1470 = pneg %p144
      $region42: #{global_net_forward.9} parent=39 // pred_check_branch
        %1472 = sbr.rel (%p1470) target = $region44
      $region43: #{global_net_forward.9} parent=39 // pred_region
        _
      $region44: #{global_net_forward.9} parent=39 // pred_fallthru
        _
    $region40: #{global_net_forward.9} parent=5 // pred_fallthru
      _
    %p1473 = scmp.le.s32.totalorder 2, %s11
    // Predicated region
    $region45: #{global_net_forward.9} parent=5 // pred_check
      %p1474 = pneg %p1473
    $region46: #{global_net_forward.9} parent=5 // pred_check_branch
      %1476 = sbr.rel (%p1474) target = $region48
    $region47: #{global_net_forward.9} parent=5 // pred_region
      %s1477 = ssub.s32 %s11, 2
      // Predicated region
      $region49: #{global_net_forward.9} parent=47 // pred_check
        %p1478 = pneg %p150
      $region50: #{global_net_forward.9} parent=47 // pred_check_branch
        %1480 = sbr.rel (%p1478) target = $region52
      $region51: #{global_net_forward.9} parent=47 // pred_region
        %p1481 = scmp.lt.s32.totalorder %s17, 1
        %s1482 = scalar_select %p1481, %s17, 1
        %s1483 = smul.addr %s1482, 4
        %s1484 = smul.addr %s1483, 4
        %s1485 = scalar_lea.vmem %s5, %s1484
      $region52: #{global_net_forward.9} parent=47 // pred_fallthru
        _
    $region48: #{global_net_forward.9} parent=5 // pred_fallthru
      _
  $region6: #{global_net_forward.9} parent=0 // loop_footer
    %s15 = sadd.s32 1, %s11
  $region7: #{global_net_forward.9} parent=0 // loop_footer_branch
    %10 = sbr.rel target = $region3
  $region8: #{global_net_forward.9} parent=0 // loop_exit
    _

</llo_original>
